<compile_context>
chip_gen: v6e
topology: v6e:2x2x1
jax: 0.10.0
libtpu: 0.0.40
codegen_flags: <defaults>
</compile_context>

<pallas_src>
import functools

import jax
import jax.numpy as jnp
from jax.experimental import pallas as pl
from jax.experimental.pallas import tpu as pltpu

_VMEM_LIMIT = 32 * 1024 * 1024  # explicit scoped-VMEM budget (safe on v5e/v6e/v7x)


def _round_up(x, m):
    return -(-x // m) * m


# --------------------------- 1x1 conv (+BN+SiLU) kernel ----------------------------

def _make_matmul_bias_silu_kernel(n_in):
    """Kernel: o = silu(sum_i x_i @ w_i + b).  refs = (x_0..x_{n-1}, w_0..w_{n-1}, b, o)."""

    def kernel(*refs):
        x_refs = refs[:n_in]
        w_refs = refs[n_in:2 * n_in]
        b_ref = refs[2 * n_in]
        o_ref = refs[2 * n_in + 1]
        acc = jnp.dot(x_refs[0][...], w_refs[0][...],
                      preferred_element_type=jnp.float32)
        for xr, wr in zip(x_refs[1:], w_refs[1:]):
            acc = acc + jnp.dot(xr[...], wr[...],
                                preferred_element_type=jnp.float32)
        acc = acc + b_ref[...].astype(jnp.float32)
        out = acc * jax.nn.sigmoid(acc)          # SiLU; sigmoid goes to the EUP slot
        o_ref[...] = out.astype(o_ref.dtype)

    return kernel


def _matmul_bias_silu(xs, ws, b, *, out_dtype, tm=512):
    """Fused multi-input pixels-x-channels matmul + bias + SiLU.

    xs: list of (M, K_i) bf16 slabs (same M); ws: list of (K_i, C) bf16 folded weights;
    b: (1, C) f32 folded bias.  Returns (M, C) in out_dtype.
    """
    M = xs[0].shape[0]
    C = ws[0].shape[1]
    n_in = len(xs)
    tm = M if M < tm else tm                      # full-M block when M is small
    grid = (pl.cdiv(M, tm),)

    in_specs = [pl.BlockSpec((tm, x.shape[1]), lambda i: (i, 0)) for x in xs]
    in_specs += [pl.BlockSpec((w.shape[0], C), lambda i: (0, 0)) for w in ws]
    in_specs += [pl.BlockSpec((1, C), lambda i: (0, 0))]

    return pl.pallas_call(
        _make_matmul_bias_silu_kernel(n_in),
        out_shape=jax.ShapeDtypeStruct((M, C), out_dtype),
        grid_spec=pltpu.PrefetchScalarGridSpec(
            num_scalar_prefetch=0,
            grid=grid,
            in_specs=in_specs,
            out_specs=pl.BlockSpec((tm, C), lambda i: (i, 0)),
        ),
        compiler_params=pltpu.CompilerParams(
            dimension_semantics=("parallel",),
            vmem_limit_bytes=_VMEM_LIMIT),
    )(*xs, *ws, b)


# ----------------- fused Bottleneck kernel (two 3x3 convs in one pass) --------------

def _make_bottleneck_fused_kernel(H, W, Wp, has_res, mid_base):
    """Fused Bottleneck: 3x3 Conv+BN+SiLU -> 3x3 Conv+BN+SiLU (+ residual).

    Grid = (batch,).  The whole padded image ((H+2)*Wp rows, Wp=W+2, plus 8 extra zero
    rows) arrives as one auto-pipelined VMEM block.  Conv #1 is computed as 9 shifted
    (H*Wp, Cin) x (Cin, Cout) matmuls; its output raster is re-assembled as a zero-padded
    raster inside a VMEM scratch (`mid`) and conv #2 reads shifted slices of it — the
    intermediate never touches HBM.  The residual add (shortcut) reuses the resident
    input block.  Output is an (H*Wp) raster with the two pad columns zeroed.
    """
    L = H * Wp

    def kernel(xp_ref, wa_ref, ba_ref, wb_ref, bb_ref, o_ref, mid):
        # Pad regions of `mid` are written once; the valid region is overwritten each step.
        @pl.when(pl.program_id(0) == 0)
        def _():
            mid[...] = jnp.zeros_like(mid)

        col = jax.lax.broadcasted_iota(jnp.int32, (L, 1), 0) % Wp
        valid = col < W

        # --- Bottleneck.cv1: 3x3 conv + folded BN + SiLU --------------------------
        acc = None
        for ky in range(3):
            for kx in range(3):
                xt = xp_ref[pl.ds(ky * Wp + kx, L), :]                # (L, Cin) bf16
                part = jnp.dot(xt, wa_ref[ky * 3 + kx],
                               preferred_element_type=jnp.float32)
                acc = part if acc is None else acc + part
        acc = acc + ba_ref[...].astype(jnp.float32)
        h1 = acc * jax.nn.sigmoid(acc)                                # SiLU
        h1 = jnp.where(valid, h1, 0.0)                                # zero pad columns

        # Intermediate stays in VMEM as a padded raster: value (r, c) at mid_base + r*Wp + c.
        mid[pl.ds(mid_base, L), :] = h1.astype(mid.dtype)

        # --- Bottleneck.cv2: 3x3 conv + folded BN + SiLU (+ fused residual) -------
        acc2 = None
        for ky in range(3):
            for kx in range(3):
                start = mid_base - (Wp + 1) + ky * Wp + kx            # static, >= 0
                xt = mid[pl.ds(start, L), :]
                part = jnp.dot(xt, wb_ref[ky * 3 + kx],
                               preferred_element_type=jnp.float32)
                acc2 = part if acc2 is None else acc2 + part
        acc2 = acc2 + bb_ref[...].astype(jnp.float32)
        out = acc2 * jax.nn.sigmoid(acc2)                             # SiLU
        if has_res:
            out = out + xp_ref[pl.ds(Wp + 1, L), :].astype(jnp.float32)
        out = jnp.where(valid, out, 0.0)                              # zero pad columns
        o_ref[...] = out.astype(o_ref.dtype)[None]

    return kernel


def _fused_fits(H, W, c, budget=12 * 1024 * 1024):
    """Conservative VMEM estimate (lane-padded) for the fused whole-image bottleneck."""
    Wp = W + 2
    L = H * Wp
    P = (H + 2) * Wp + 8
    c_pad = max(128, _round_up(c, 128))
    xin = 2 * P * c_pad * 2           # double-buffered padded-input block (bf16)
    mid = (P + 32) * c_pad * 2        # VMEM intermediate raster (bf16)
    out = 2 * L * c_pad * 2           # double-buffered output block (bf16)
    tmp = 3 * L * c_pad * 4           # f32 accumulators / temporaries
    return xin + mid + out + tmp <= budget


def _bottleneck_fused(xp_flat, wa, ba, wb, bb, *, N, H, W, shortcut):
    """xp_flat: (N, (H+2)*(W+2) + 8, C) bf16 padded input (8 extra zero rows).
    Returns (N, H*(W+2), C) bf16 in the padded-column raster."""
    Wp = W + 2
    c_in = wa.shape[1]
    c_out = wb.shape[2]
    P_ext = xp_flat.shape[1]
    L = H * Wp
    mid_base = _round_up(Wp + 1, 16)                 # sublane-aligned store offset
    mid_rows = mid_base + L + Wp + 8                 # covers largest shifted read

    return pl.pallas_call(
        _make_bottleneck_fused_kernel(H, W, Wp, shortcut, mid_base),
        out_shape=jax.ShapeDtypeStruct((N, L, c_out), jnp.bfloat16),
        grid_spec=pltpu.PrefetchScalarGridSpec(
            num_scalar_prefetch=0,
            grid=(N,),
            in_specs=[
                pl.BlockSpec((None, P_ext, c_in), lambda n: (n, 0, 0)),
                pl.BlockSpec((9, c_in, wa.shape[2]), lambda n: (0, 0, 0)),
                pl.BlockSpec((1, wa.shape[2]), lambda n: (0, 0)),
                pl.BlockSpec((9, wb.shape[1], c_out), lambda n: (0, 0, 0)),
                pl.BlockSpec((1, c_out), lambda n: (0, 0)),
            ],
            out_specs=pl.BlockSpec((1, L, c_out), lambda n: (n, 0, 0)),
            scratch_shapes=[pltpu.VMEM((mid_rows, wa.shape[2]), jnp.bfloat16)],
        ),
        compiler_params=pltpu.CompilerParams(
            dimension_semantics=("parallel",),
            vmem_limit_bytes=_VMEM_LIMIT),
    )(xp_flat, wa, ba, wb, bb)


# --------------- fallback: row-tiled 3x3 conv (+BN+SiLU) kernel (manual DMA) --------

def _make_conv3x3_kernel(th, W, Wp, has_res):
    """3x3 / stride-1 / pad-1 conv on a padded-raster slab (row-tiled, manual halo DMA)."""
    L = th * Wp

    def kernel(*refs):
        if has_res:
            (xp_hbm, res_hbm, w_ref, b_ref, o_ref,
             xbuf, xsem, rbuf, rsem) = refs
        else:
            xp_hbm, w_ref, b_ref, o_ref, xbuf, xsem = refs

        n = pl.program_id(0)
        i = pl.program_id(1)
        base = i * L

        cp = pltpu.make_async_copy(
            xp_hbm.at[n, pl.ds(base, (th + 2) * Wp)],
            xbuf.at[pl.ds(0, (th + 2) * Wp)],
            xsem)
        cp.start()
        if has_res:
            rcp = pltpu.make_async_copy(
                res_hbm.at[n, pl.ds(base + Wp + 1, L)], rbuf, rsem)
            rcp.start()
        cp.wait()

        acc = None
        for ky in range(3):
            for kx in range(3):
                xt = xbuf[pl.ds(ky * Wp + kx, L), :]                  # (L, Cin) bf16
                part = jnp.dot(xt, w_ref[ky * 3 + kx],
                               preferred_element_type=jnp.float32)
                acc = part if acc is None else acc + part
        acc = acc + b_ref[...].astype(jnp.float32)
        out = acc * jax.nn.sigmoid(acc)                               # SiLU

        if has_res:
            rcp.wait()
            out = out + rbuf[...].astype(jnp.float32)                 # fused residual add

        # Zero the two pad columns of the raster so the output is fully defined.
        col = jax.lax.broadcasted_iota(jnp.int32, (L, 1), 0) % Wp
        out = jnp.where(col < W, out, 0.0)
        o_ref[...] = out.astype(o_ref.dtype)[None]

    return kernel


def _pick_row_tile(H, Wp, cin, cout):
    """Largest output-row tile th (th | H) whose VMEM working set stays small."""
    budget = 4 * 1024 * 1024

    def footprint(th):
        xb = ((th + 2) * Wp + 8) * cin * 2            # bf16 halo slab
        ob = 2 * th * Wp * cout * 2                   # double-buffered bf16 out block
        ac = th * Wp * cout * 4                       # f32 accumulator
        rb = th * Wp * cin * 2                        # optional residual buffer
        return xb + ob + ac + rb

    if footprint(H) <= budget:
        return H
    for th in range(H - 1, 0, -1):
        if H % th == 0 and (th * Wp) % 8 == 0 and footprint(th) <= budget:
            return th
    return H


def _conv3x3_bn_silu(xp_flat, w9, b, *, N, H, W, res_flat=None):
    """xp_flat: (N, (H+2)*(W+2), Cin) bf16 padded input (flattened spatial).
    Returns (N, H*(W+2), Cout) bf16 in the padded-column raster."""
    Wp = W + 2
    cin = xp_flat.shape[-1]
    cout = w9.shape[-1]
    th = _pick_row_tile(H, Wp, cin, cout)
    nblk = H // th
    L = th * Wp
    has_res = res_flat is not None

    in_specs = [pl.BlockSpec(memory_space=pl.ANY)]
    inputs = [xp_flat]
    if has_res:
        in_specs.append(pl.BlockSpec(memory_space=pl.ANY))
        inputs.append(res_flat)
    in_specs += [
        pl.BlockSpec((9, cin, cout), lambda n, i: (0, 0, 0)),
        pl.BlockSpec((1, cout), lambda n, i: (0, 0)),
    ]
    inputs += [w9, b]

    scratch = [pltpu.VMEM(((th + 2) * Wp + 8, cin), jnp.bfloat16),
               pltpu.SemaphoreType.DMA]
    if has_res:
        scratch += [pltpu.VMEM((L, res_flat.shape[-1]), jnp.bfloat16),
                    pltpu.SemaphoreType.DMA]

    return pl.pallas_call(
        _make_conv3x3_kernel(th, W, Wp, has_res),
        out_shape=jax.ShapeDtypeStruct((N, H * Wp, cout), jnp.bfloat16),
        grid_spec=pltpu.PrefetchScalarGridSpec(
            num_scalar_prefetch=0,
            grid=(N, nblk),
            in_specs=in_specs,
            out_specs=pl.BlockSpec((1, L, cout), lambda n, i: (n, i, 0)),
            scratch_shapes=scratch,
        ),
        compiler_params=pltpu.CompilerParams(
            dimension_semantics=("parallel", "parallel"),
            vmem_limit_bytes=_VMEM_LIMIT),
    )(*inputs)


# ------------------------------ JAX glue -------------------------------------------

def _pad_flat(x_nhwc, extra=0):
    """Zero-pad H and W by 1 and flatten spatial: (N,H,W,C) -> (N,(H+2)*(W+2)+extra,C)."""
    N, H, W, C = x_nhwc.shape
    xp = jnp.pad(x_nhwc, ((0, 0), (1, 1), (1, 1), (0, 0)))
    xp = xp.reshape(N, (H + 2) * (W + 2), C)
    if extra:
        xp = jnp.pad(xp, ((0, 0), (0, extra), (0, 0)))
    return xp


def _crop_raster(t_padded, N, H, W):
    """(N, H*(W+2), C) padded-column raster -> (N, H, W, C)."""
    C = t_padded.shape[-1]
    return t_padded.reshape(N, H, W + 2, C)[:, :, :W, :]


def _fold_bn(w, gamma, beta, mean, var, eps=1e-3):
    # w: (Cout, Cin, kh, kw); ultralytics Conv has no conv bias, BN eps=1e-3.
    scale = gamma / jnp.sqrt(var + eps)
    w_f = w * scale[:, None, None, None]
    b_f = beta - mean * scale
    return w_f, b_f


def _init_conv_bn(key, c_in, c_out, k):
    kw_, kg, kb, km, kv = jax.random.split(key, 5)
    w = jax.random.normal(kw_, (c_out, c_in, k, k), jnp.float32) * 0.1
    gamma = jax.random.uniform(kg, (c_out,), jnp.float32, 0.8, 1.2)
    beta = jax.random.normal(kb, (c_out,), jnp.float32) * 0.05
    mean = jax.random.normal(km, (c_out,), jnp.float32) * 0.05
    var = jax.random.uniform(kv, (c_out,), jnp.float32, 0.8, 1.2)
    w_f, b_f = _fold_bn(w, gamma, beta, mean, var)
    if k == 1:
        w_m = jnp.transpose(w_f[:, :, 0, 0], (1, 0))                       # (Cin, Cout)
    else:
        w_m = jnp.transpose(w_f, (2, 3, 1, 0)).reshape(k * k, c_in, c_out)  # (9, Cin, Cout)
    return w_m.astype(jnp.bfloat16), b_f.reshape(1, c_out).astype(jnp.float32)


def init_c2f_params(key, c1, c2, n=1, e=0.5):
    """Deterministic synthetic params mirroring C2f.__init__ (BN folded, matmul layout, bf16)."""
    c = int(c2 * e)
    keys = jax.random.split(key, 2 + 2 * n)
    params = {
        "cv1": _init_conv_bn(keys[0], c1, 2 * c, 1),                 # Conv(c1, 2c, 1, 1)
        "cv2": _init_conv_bn(keys[1], (2 + n) * c, c2, 1),           # Conv((2+n)c, c2, 1)
        "m": [
            (_init_conv_bn(keys[2 + 2 * i], c, c, 3),                # Bottleneck.cv1 (3x3)
             _init_conv_bn(keys[3 + 2 * i], c, c, 3))                # Bottleneck.cv2 (3x3)
            for i in range(n)
        ],
    }
    return params, c


# TODO(synk): grouped conv (g > 1) not implemented (module default g=1).
def c2f_forward(params, x_nchw, *, shortcut=False):
    """Exact C2f.forward semantics. x_nchw: (N, c1, H, W) f32 -> (N, c2, H, W) f32."""
    x = jnp.transpose(x_nchw, (0, 2, 3, 1)).astype(jnp.bfloat16)      # NCHW -> NHWC, bf16
    N, H, W, c1 = x.shape
    M = N * H * W

    w1, b1 = params["cv1"]
    two_c = w1.shape[1]
    c = two_c // 2

    # cv1 (1x1): bf16 activations; chunk(2, channel) is just a channel split of y.
    y2d = _matmul_bias_silu([x.reshape(M, c1)], [w1], b1, out_dtype=jnp.bfloat16)
    feats = [y2d]                                                     # holds [chunk0 | chunk1]
    cur = y2d.reshape(N, H, W, two_c)[..., c:]                        # y[-1] = chunk1

    use_fused = _fused_fits(H, W, c)
    for (w_a, b_a), (w_b, b_b) in params["m"]:                        # Bottlenecks on y[-1]
        if use_fused:
            # Single kernel: both 3x3 convs + residual; intermediate stays in VMEM.
            xp1 = _pad_flat(cur, extra=8)
            t2p = _bottleneck_fused(xp1, w_a, b_a, w_b, b_b,
                                    N=N, H=H, W=W, shortcut=shortcut)
        else:
            # Fallback for large feature maps: row-tiled kernels with halo DMA.
            xp1 = _pad_flat(cur)
            t1p = _conv3x3_bn_silu(xp1, w_a, b_a, N=N, H=H, W=W)
            xp2 = _pad_flat(_crop_raster(t1p, N, H, W))
            t2p = _conv3x3_bn_silu(xp2, w_b, b_b, N=N, H=H, W=W,
                                   res_flat=xp1 if shortcut else None)
        cur = _crop_raster(t2p, N, H, W)
        feats.append(cur.reshape(M, c))

    # cv2 (1x1) over the concatenation, without materializing torch.cat: each branch is a
    # separate kernel input matched with its slice of the folded cv2 weight.
    w2, b2 = params["cv2"]
    c2 = w2.shape[1]
    ws = [w2[:two_c]] + [w2[two_c + i * c: two_c + (i + 1) * c]
                         for i in range(len(params["m"]))]
    out2d = _matmul_bias_silu(feats, ws, b2, out_dtype=jnp.float32)
    out = out2d.reshape(N, H, W, c2)
    return jnp.transpose(out, (0, 3, 1, 2))                           # NHWC -> NCHW


if __name__ == "__main__":
    key = jax.random.PRNGKey(0)
    kx, kp = jax.random.split(key)

    # C2f(c1=4, c2=4, n=1, shortcut=False, g=1, e=0.5)  ->  hidden c = 2
    N, C1, H, W = 2, 4, 16, 16
    C2, n = 4, 1

    x = jax.random.normal(kx, (N, C1, H, W), jnp.float32)
    params, _ = init_c2f_params(kp, C1, C2, n=n, e=0.5)

    fwd = jax.jit(functools.partial(c2f_forward, shortcut=False))
    out = fwd(params, x)
    jax.block_until_ready(out)
    assert out.shape == (N, C2, H, W), out.shape
    assert out.dtype == jnp.float32

    # Also exercise the fused-residual (shortcut=True) path used by backbone C2f blocks.
    fwd_sc = jax.jit(functools.partial(c2f_forward, shortcut=True))
    out_sc = fwd_sc(params, x)
    jax.block_until_ready(out_sc)
    assert out_sc.shape == (N, C2, H, W), out_sc.shape

    print("KERNEL_OK")
</pallas_src>

<mosaic_0001>
module attributes {stable_mosaic.version = 11 : i64} {
  func.func @kernel(%arg0: i32, %arg1: memref<512x4xbf16, #tpu.memory_space<vmem>>, %arg2: memref<4x4xbf16, #tpu.memory_space<vmem>>, %arg3: memref<1x4xf32, #tpu.memory_space<vmem>>, %arg4: memref<512x4xbf16, #tpu.memory_space<vmem>>) attributes {dimension_semantics = [#tpu.dimension_semantics<parallel>], iteration_bounds = array<i64: 1>, scalar_prefetch = 0 : i64, scratch_operands = 0 : i64, tpu.core_type = #tpu.core_type<tc>, window_params = [{transform_indices = @transform_0, window_bounds = array<i64: 512, 4>}, {pipeline_mode = #tpu.pipeline_mode<synchronous>, transform_indices = @transform_1, window_bounds = array<i64: 4, 4>}, {pipeline_mode = #tpu.pipeline_mode<synchronous>, transform_indices = @transform_2, window_bounds = array<i64: 1, 4>}, {transform_indices = @transform_3, window_bounds = array<i64: 512, 4>}]} {
    %c0 = arith.constant 0 : index
    %c0_0 = arith.constant 0 : index
    %0 = vector.load %arg1[%c0, %c0_0] : memref<512x4xbf16, #tpu.memory_space<vmem>>, vector<512x4xbf16>
    %c0_1 = arith.constant 0 : index
    %c0_2 = arith.constant 0 : index
    %1 = vector.load %arg2[%c0_1, %c0_2] : memref<4x4xbf16, #tpu.memory_space<vmem>>, vector<4x4xbf16>
    %cst = arith.constant dense<0.000000e+00> : vector<512x4xf32>
    %2 = tpu.matmul %0, %1, %cst {dimension_numbers = #tpu.dot_dimension_numbers<[1], [0], [0], [1], [0, 0, 1, 1], [], []>} : vector<512x4xbf16>, vector<4x4xbf16>, vector<512x4xf32> -> vector<512x4xf32>
    %c0_3 = arith.constant 0 : index
    %c0_4 = arith.constant 0 : index
    %3 = vector.load %arg3[%c0_3, %c0_4] : memref<1x4xf32, #tpu.memory_space<vmem>>, vector<1x4xf32>
    %4 = vector.broadcast %3 : vector<1x4xf32> to vector<512x4xf32>
    %5 = arith.addf %2, %4 : vector<512x4xf32>
    %6 = arith.negf %5 : vector<512x4xf32>
    %7 = math.exp %6 : vector<512x4xf32>
    %cst_5 = arith.constant 1.000000e+00 : f32
    %8 = vector.broadcast %cst_5 : f32 to vector<512x4xf32>
    %9 = arith.addf %8, %7 : vector<512x4xf32>
    %10 = arith.divf %8, %9 : vector<512x4xf32>
    %11 = arith.mulf %5, %10 : vector<512x4xf32>
    %12 = arith.truncf %11 : vector<512x4xf32> to vector<512x4xbf16>
    %c0_6 = arith.constant 0 : index
    %c0_7 = arith.constant 0 : index
    %13 = vector.load %arg4[%c0_6, %c0_7] : memref<512x4xbf16, #tpu.memory_space<vmem>>, vector<512x4xbf16>
    tpu.vector_store %arg4[%c0_6, %c0_7], %12 {strides = array<i32>} : memref<512x4xbf16, #tpu.memory_space<vmem>>, vector<512x4xbf16>,
    return
  }
  func.func @transform_0(%arg0: i32) -> (i32, i32) {
    %c0_i32 = arith.constant 0 : i32
    %c0_i32_0 = arith.constant 0 : i32
    return %arg0, %c0_i32 : i32, i32
  }
  func.func @transform_1(%arg0: i32) -> (i32, i32) {
    %c0_i32 = arith.constant 0 : i32
    %c0_i32_0 = arith.constant 0 : i32
    %c0_i32_1 = arith.constant 0 : i32
    return %c0_i32, %c0_i32_0 : i32, i32
  }
  func.func @transform_2(%arg0: i32) -> (i32, i32) {
    %c0_i32 = arith.constant 0 : i32
    %c0_i32_0 = arith.constant 0 : i32
    %c0_i32_1 = arith.constant 0 : i32
    return %c0_i32, %c0_i32_0 : i32, i32
  }
  func.func @transform_3(%arg0: i32) -> (i32, i32) {
    %c0_i32 = arith.constant 0 : i32
    %c0_i32_0 = arith.constant 0 : i32
    return %arg0, %c0_i32 : i32, i32
  }
}

module attributes {stable_mosaic.version = 11 : i64} {
  func.func @kernel(%arg0: i32, %arg1: memref<1x332x2xbf16, #tpu.memory_space<vmem>>, %arg2: memref<9x2x2xbf16, #tpu.memory_space<vmem>>, %arg3: memref<1x2xf32, #tpu.memory_space<vmem>>, %arg4: memref<9x2x2xbf16, #tpu.memory_space<vmem>>, %arg5: memref<1x2xf32, #tpu.memory_space<vmem>>, %arg6: memref<1x288x2xbf16, #tpu.memory_space<vmem>>, %arg7: memref<346x2xbf16, #tpu.memory_space<vmem>>) attributes {dimension_semantics = [#tpu.dimension_semantics<parallel>], iteration_bounds = array<i64: 2>, scalar_prefetch = 0 : i64, scratch_operands = 1 : i64, tpu.core_type = #tpu.core_type<tc>, window_params = [{transform_indices = @transform_0, window_bounds = array<i64: 1, 332, 2>}, {pipeline_mode = #tpu.pipeline_mode<synchronous>, transform_indices = @transform_1, window_bounds = array<i64: 9, 2, 2>}, {pipeline_mode = #tpu.pipeline_mode<synchronous>, transform_indices = @transform_2, window_bounds = array<i64: 1, 2>}, {pipeline_mode = #tpu.pipeline_mode<synchronous>, transform_indices = @transform_3, window_bounds = array<i64: 9, 2, 2>}, {pipeline_mode = #tpu.pipeline_mode<synchronous>, transform_indices = @transform_4, window_bounds = array<i64: 1, 2>}, {transform_indices = @transform_5, window_bounds = array<i64: 1, 288, 2>}]} {
    %c0_i32 = arith.constant 0 : i32
    %0 = arith.cmpi eq, %arg0, %c0_i32 : i32
    %1 = arith.extui %0 : i1 to i32
    %c0_i32_0 = arith.constant 0 : i32
    %2 = arith.cmpi ne, %1, %c0_i32_0 : i32
    scf.if %2 {
      %cst_110 = arith.constant 0.000000e+00 : bf16
      %150 = vector.broadcast %cst_110 : bf16 to vector<346x2xbf16>
      %c0_111 = arith.constant 0 : index
      %c0_112 = arith.constant 0 : index
      %151 = vector.load %arg7[%c0_111, %c0_112] : memref<346x2xbf16, #tpu.memory_space<vmem>>, vector<346x2xbf16>
      tpu.vector_store %arg7[%c0_111, %c0_112], %150 {strides = array<i32>} : memref<346x2xbf16, #tpu.memory_space<vmem>>, vector<346x2xbf16>,
    } else {
    }
    %3 = tpu.iota {dimensions = array<i32: 0>} : vector<288x1xi32>
    %c18_i32 = arith.constant 18 : i32
    %c0_i32_1 = arith.constant 0 : i32
    %4 = arith.cmpi eq, %c18_i32, %c0_i32_1 : i32
    %c1_i32 = arith.constant 1 : i32
    %5 = arith.select %4, %c1_i32, %c18_i32 : i32
    %6 = vector.broadcast %5 : i32 to vector<288x1xi32>
    %7 = arith.remsi %3, %6 : vector<288x1xi32>
    %c0_i32_2 = arith.constant 0 : i32
    %8 = vector.broadcast %c0_i32_2 : i32 to vector<288x1xi32>
    %9 = arith.cmpi ne, %7, %8 : vector<288x1xi32>
    %c0_i32_3 = arith.constant 0 : i32
    %10 = vector.broadcast %c0_i32_3 : i32 to vector<288x1xi32>
    %11 = arith.cmpi slt, %7, %10 : vector<288x1xi32>
    %c0_i32_4 = arith.constant 0 : i32
    %12 = arith.cmpi slt, %5, %c0_i32_4 : i32
    %13 = vector.broadcast %12 : i1 to vector<288x1xi1>
    %14 = vector.broadcast %13 : vector<288x1xi1> to vector<288x1xi1>
    %15 = arith.xori %11, %14 : vector<288x1xi1>
    %16 = arith.andi %15, %9 : vector<288x1xi1>
    %17 = vector.broadcast %5 : i32 to vector<288x1xi32>
    %18 = arith.addi %7, %17 : vector<288x1xi32>
    %19 = arith.select %16, %18, %7 : vector<288x1xi1>, vector<288x1xi32>
    %c16_i32 = arith.constant 16 : i32
    %20 = vector.broadcast %c16_i32 : i32 to vector<288x1xi32>
    %21 = arith.cmpi slt, %19, %20 : vector<288x1xi32>
    %c0 = arith.constant 0 : index
    %c0_5 = arith.constant 0 : index
    %c0_6 = arith.constant 0 : index
    %22 = vector.load %arg1[%c0, %c0_5, %c0_6] : memref<1x332x2xbf16, #tpu.memory_space<vmem>>, vector<1x288x2xbf16>
    %23 = vector.shape_cast %22 : vector<1x288x2xbf16> to vector<288x2xbf16>
    %c0_7 = arith.constant 0 : index
    %c0_8 = arith.constant 0 : index
    %c0_9 = arith.constant 0 : index
    %24 = vector.load %arg2[%c0_7, %c0_8, %c0_9] : memref<9x2x2xbf16, #tpu.memory_space<vmem>>, vector<1x2x2xbf16>
    %25 = vector.shape_cast %24 : vector<1x2x2xbf16> to vector<2x2xbf16>
    %cst = arith.constant dense<0.000000e+00> : vector<288x2xf32>
    %26 = tpu.matmul %23, %25, %cst {dimension_numbers = #tpu.dot_dimension_numbers<[1], [0], [0], [1], [0, 0, 1, 1], [], []>} : vector<288x2xbf16>, vector<2x2xbf16>, vector<288x2xf32> -> vector<288x2xf32>
    %c0_10 = arith.constant 0 : index
    %c1 = arith.constant 1 : index
    %c0_11 = arith.constant 0 : index
    %27 = vector.load %arg1[%c0_10, %c1, %c0_11] : memref<1x332x2xbf16, #tpu.memory_space<vmem>>, vector<1x288x2xbf16>
    %28 = vector.shape_cast %27 : vector<1x288x2xbf16> to vector<288x2xbf16>
    %c1_12 = arith.constant 1 : index
    %c0_13 = arith.constant 0 : index
    %c0_14 = arith.constant 0 : index
    %29 = vector.load %arg2[%c1_12, %c0_13, %c0_14] : memref<9x2x2xbf16, #tpu.memory_space<vmem>>, vector<1x2x2xbf16>
    %30 = vector.shape_cast %29 : vector<1x2x2xbf16> to vector<2x2xbf16>
    %cst_15 = arith.constant dense<0.000000e+00> : vector<288x2xf32>
    %31 = tpu.matmul %28, %30, %cst_15 {dimension_numbers = #tpu.dot_dimension_numbers<[1], [0], [0], [1], [0, 0, 1, 1], [], []>} : vector<288x2xbf16>, vector<2x2xbf16>, vector<288x2xf32> -> vector<288x2xf32>
    %32 = arith.addf %26, %31 : vector<288x2xf32>
    %c0_16 = arith.constant 0 : index
    %c2 = arith.constant 2 : index
    %c0_17 = arith.constant 0 : index
    %33 = vector.load %arg1[%c0_16, %c2, %c0_17] : memref<1x332x2xbf16, #tpu.memory_space<vmem>>, vector<1x288x2xbf16>
    %34 = vector.shape_cast %33 : vector<1x288x2xbf16> to vector<288x2xbf16>
    %c2_18 = arith.constant 2 : index
    %c0_19 = arith.constant 0 : index
    %c0_20 = arith.constant 0 : index
    %35 = vector.load %arg2[%c2_18, %c0_19, %c0_20] : memref<9x2x2xbf16, #tpu.memory_space<vmem>>, vector<1x2x2xbf16>
    %36 = vector.shape_cast %35 : vector<1x2x2xbf16> to vector<2x2xbf16>
    %cst_21 = arith.constant dense<0.000000e+00> : vector<288x2xf32>
    %37 = tpu.matmul %34, %36, %cst_21 {dimension_numbers = #tpu.dot_dimension_numbers<[1], [0], [0], [1], [0, 0, 1, 1], [], []>} : vector<288x2xbf16>, vector<2x2xbf16>, vector<288x2xf32> -> vector<288x2xf32>
    %38 = arith.addf %32, %37 : vector<288x2xf32>
    %c0_22 = arith.constant 0 : index
    %c18 = arith.constant 18 : index
    %c0_23 = arith.constant 0 : index
    %39 = vector.load %arg1[%c0_22, %c18, %c0_23] : memref<1x332x2xbf16, #tpu.memory_space<vmem>>, vector<1x288x2xbf16>
    %40 = vector.shape_cast %39 : vector<1x288x2xbf16> to vector<288x2xbf16>
    %c3 = arith.constant 3 : index
    %c0_24 = arith.constant 0 : index
    %c0_25 = arith.constant 0 : index
    %41 = vector.load %arg2[%c3, %c0_24, %c0_25] : memref<9x2x2xbf16, #tpu.memory_space<vmem>>, vector<1x2x2xbf16>
    %42 = vector.shape_cast %41 : vector<1x2x2xbf16> to vector<2x2xbf16>
    %cst_26 = arith.constant dense<0.000000e+00> : vector<288x2xf32>
    %43 = tpu.matmul %40, %42, %cst_26 {dimension_numbers = #tpu.dot_dimension_numbers<[1], [0], [0], [1], [0, 0, 1, 1], [], []>} : vector<288x2xbf16>, vector<2x2xbf16>, vector<288x2xf32> -> vector<288x2xf32>
    %44 = arith.addf %38, %43 : vector<288x2xf32>
    %c0_27 = arith.constant 0 : index
    %c19 = arith.constant 19 : index
    %c0_28 = arith.constant 0 : index
    %45 = vector.load %arg1[%c0_27, %c19, %c0_28] : memref<1x332x2xbf16, #tpu.memory_space<vmem>>, vector<1x288x2xbf16>
    %46 = vector.shape_cast %45 : vector<1x288x2xbf16> to vector<288x2xbf16>
    %c4 = arith.constant 4 : index
    %c0_29 = arith.constant 0 : index
    %c0_30 = arith.constant 0 : index
    %47 = vector.load %arg2[%c4, %c0_29, %c0_30] : memref<9x2x2xbf16, #tpu.memory_space<vmem>>, vector<1x2x2xbf16>
    %48 = vector.shape_cast %47 : vector<1x2x2xbf16> to vector<2x2xbf16>
    %cst_31 = arith.constant dense<0.000000e+00> : vector<288x2xf32>
    %49 = tpu.matmul %46, %48, %cst_31 {dimension_numbers = #tpu.dot_dimension_numbers<[1], [0], [0], [1], [0, 0, 1, 1], [], []>} : vector<288x2xbf16>, vector<2x2xbf16>, vector<288x2xf32> -> vector<288x2xf32>
    %50 = arith.addf %44, %49 : vector<288x2xf32>
    %c0_32 = arith.constant 0 : index
    %c20 = arith.constant 20 : index
    %c0_33 = arith.constant 0 : index
    %51 = vector.load %arg1[%c0_32, %c20, %c0_33] : memref<1x332x2xbf16, #tpu.memory_space<vmem>>, vector<1x288x2xbf16>
    %52 = vector.shape_cast %51 : vector<1x288x2xbf16> to vector<288x2xbf16>
    %c5 = arith.constant 5 : index
    %c0_34 = arith.constant 0 : index
    %c0_35 = arith.constant 0 : index
    %53 = vector.load %arg2[%c5, %c0_34, %c0_35] : memref<9x2x2xbf16, #tpu.memory_space<vmem>>, vector<1x2x2xbf16>
    %54 = vector.shape_cast %53 : vector<1x2x2xbf16> to vector<2x2xbf16>
    %cst_36 = arith.constant dense<0.000000e+00> : vector<288x2xf32>
    %55 = tpu.matmul %52, %54, %cst_36 {dimension_numbers = #tpu.dot_dimension_numbers<[1], [0], [0], [1], [0, 0, 1, 1], [], []>} : vector<288x2xbf16>, vector<2x2xbf16>, vector<288x2xf32> -> vector<288x2xf32>
    %56 = arith.addf %50, %55 : vector<288x2xf32>
    %c0_37 = arith.constant 0 : index
    %c36 = arith.constant 36 : index
    %c0_38 = arith.constant 0 : index
    %57 = vector.load %arg1[%c0_37, %c36, %c0_38] : memref<1x332x2xbf16, #tpu.memory_space<vmem>>, vector<1x288x2xbf16>
    %58 = vector.shape_cast %57 : vector<1x288x2xbf16> to vector<288x2xbf16>
    %c6 = arith.constant 6 : index
    %c0_39 = arith.constant 0 : index
    %c0_40 = arith.constant 0 : index
    %59 = vector.load %arg2[%c6, %c0_39, %c0_40] : memref<9x2x2xbf16, #tpu.memory_space<vmem>>, vector<1x2x2xbf16>
    %60 = vector.shape_cast %59 : vector<1x2x2xbf16> to vector<2x2xbf16>
    %cst_41 = arith.constant dense<0.000000e+00> : vector<288x2xf32>
    %61 = tpu.matmul %58, %60, %cst_41 {dimension_numbers = #tpu.dot_dimension_numbers<[1], [0], [0], [1], [0, 0, 1, 1], [], []>} : vector<288x2xbf16>, vector<2x2xbf16>, vector<288x2xf32> -> vector<288x2xf32>
    %62 = arith.addf %56, %61 : vector<288x2xf32>
    %c0_42 = arith.constant 0 : index
    %c37 = arith.constant 37 : index
    %c0_43 = arith.constant 0 : index
    %63 = vector.load %arg1[%c0_42, %c37, %c0_43] : memref<1x332x2xbf16, #tpu.memory_space<vmem>>, vector<1x288x2xbf16>
    %64 = vector.shape_cast %63 : vector<1x288x2xbf16> to vector<288x2xbf16>
    %c7 = arith.constant 7 : index
    %c0_44 = arith.constant 0 : index
    %c0_45 = arith.constant 0 : index
    %65 = vector.load %arg2[%c7, %c0_44, %c0_45] : memref<9x2x2xbf16, #tpu.memory_space<vmem>>, vector<1x2x2xbf16>
    %66 = vector.shape_cast %65 : vector<1x2x2xbf16> to vector<2x2xbf16>
    %cst_46 = arith.constant dense<0.000000e+00> : vector<288x2xf32>
    %67 = tpu.matmul %64, %66, %cst_46 {dimension_numbers = #tpu.dot_dimension_numbers<[1], [0], [0], [1], [0, 0, 1, 1], [], []>} : vector<288x2xbf16>, vector<2x2xbf16>, vector<288x2xf32> -> vector<288x2xf32>
    %68 = arith.addf %62, %67 : vector<288x2xf32>
    %c0_47 = arith.constant 0 : index
    %c38 = arith.constant 38 : index
    %c0_48 = arith.constant 0 : index
    %69 = vector.load %arg1[%c0_47, %c38, %c0_48] : memref<1x332x2xbf16, #tpu.memory_space<vmem>>, vector<1x288x2xbf16>
    %70 = vector.shape_cast %69 : vector<1x288x2xbf16> to vector<288x2xbf16>
    %c8 = arith.constant 8 : index
    %c0_49 = arith.constant 0 : index
    %c0_50 = arith.constant 0 : index
    %71 = vector.load %arg2[%c8, %c0_49, %c0_50] : memref<9x2x2xbf16, #tpu.memory_space<vmem>>, vector<1x2x2xbf16>
    %72 = vector.shape_cast %71 : vector<1x2x2xbf16> to vector<2x2xbf16>
    %cst_51 = arith.constant dense<0.000000e+00> : vector<288x2xf32>
    %73 = tpu.matmul %70, %72, %cst_51 {dimension_numbers = #tpu.dot_dimension_numbers<[1], [0], [0], [1], [0, 0, 1, 1], [], []>} : vector<288x2xbf16>, vector<2x2xbf16>, vector<288x2xf32> -> vector<288x2xf32>
    %74 = arith.addf %68, %73 : vector<288x2xf32>
    %c0_52 = arith.constant 0 : index
    %c0_53 = arith.constant 0 : index
    %75 = vector.load %arg3[%c0_52, %c0_53] : memref<1x2xf32, #tpu.memory_space<vmem>>, vector<1x2xf32>
    %76 = vector.broadcast %75 : vector<1x2xf32> to vector<288x2xf32>
    %77 = arith.addf %74, %76 : vector<288x2xf32>
    %78 = arith.negf %77 : vector<288x2xf32>
    %79 = math.exp %78 : vector<288x2xf32>
    %cst_54 = arith.constant 1.000000e+00 : f32
    %80 = vector.broadcast %cst_54 : f32 to vector<288x2xf32>
    %81 = arith.addf %80, %79 : vector<288x2xf32>
    %82 = arith.divf %80, %81 : vector<288x2xf32>
    %83 = arith.mulf %77, %82 : vector<288x2xf32>
    %cst_55 = arith.constant 0.000000e+00 : f32
    %84 = vector.shape_cast %21 : vector<288x1xi1> to vector<288x1xi1>
    %85 = vector.broadcast %84 : vector<288x1xi1> to vector<288x2xi1>
    %86 = vector.broadcast %cst_55 : f32 to vector<288x2xf32>
    %87 = arith.select %85, %83, %86 : vector<288x2xi1>, vector<288x2xf32>
    %88 = arith.truncf %87 : vector<288x2xf32> to vector<288x2xbf16>
    %c32 = arith.constant 32 : index
    %c0_56 = arith.constant 0 : index
    %89 = vector.load %arg7[%c32, %c0_56] : memref<346x2xbf16, #tpu.memory_space<vmem>>, vector<288x2xbf16>
    tpu.vector_store %arg7[%c32, %c0_56], %88 {strides = array<i32>} : memref<346x2xbf16, #tpu.memory_space<vmem>>, vector<288x2xbf16>,
    %c13 = arith.constant 13 : index
    %c0_57 = arith.constant 0 : index
    %90 = vector.load %arg7[%c13, %c0_57] : memref<346x2xbf16, #tpu.memory_space<vmem>>, vector<288x2xbf16>
    %c0_58 = arith.constant 0 : index
    %c0_59 = arith.constant 0 : index
    %c0_60 = arith.constant 0 : index
    %91 = vector.load %arg4[%c0_58, %c0_59, %c0_60] : memref<9x2x2xbf16, #tpu.memory_space<vmem>>, vector<1x2x2xbf16>
    %92 = vector.shape_cast %91 : vector<1x2x2xbf16> to vector<2x2xbf16>
    %cst_61 = arith.constant dense<0.000000e+00> : vector<288x2xf32>
    %93 = tpu.matmul %90, %92, %cst_61 {dimension_numbers = #tpu.dot_dimension_numbers<[1], [0], [0], [1], [0, 0, 1, 1], [], []>} : vector<288x2xbf16>, vector<2x2xbf16>, vector<288x2xf32> -> vector<288x2xf32>
    %c14 = arith.constant 14 : index
    %c0_62 = arith.constant 0 : index
    %94 = vector.load %arg7[%c14, %c0_62] : memref<346x2xbf16, #tpu.memory_space<vmem>>, vector<288x2xbf16>
    %c1_63 = arith.constant 1 : index
    %c0_64 = arith.constant 0 : index
    %c0_65 = arith.constant 0 : index
    %95 = vector.load %arg4[%c1_63, %c0_64, %c0_65] : memref<9x2x2xbf16, #tpu.memory_space<vmem>>, vector<1x2x2xbf16>
    %96 = vector.shape_cast %95 : vector<1x2x2xbf16> to vector<2x2xbf16>
    %cst_66 = arith.constant dense<0.000000e+00> : vector<288x2xf32>
    %97 = tpu.matmul %94, %96, %cst_66 {dimension_numbers = #tpu.dot_dimension_numbers<[1], [0], [0], [1], [0, 0, 1, 1], [], []>} : vector<288x2xbf16>, vector<2x2xbf16>, vector<288x2xf32> -> vector<288x2xf32>
    %98 = arith.addf %93, %97 : vector<288x2xf32>
    %c15 = arith.constant 15 : index
    %c0_67 = arith.constant 0 : index
    %99 = vector.load %arg7[%c15, %c0_67] : memref<346x2xbf16, #tpu.memory_space<vmem>>, vector<288x2xbf16>
    %c2_68 = arith.constant 2 : index
    %c0_69 = arith.constant 0 : index
    %c0_70 = arith.constant 0 : index
    %100 = vector.load %arg4[%c2_68, %c0_69, %c0_70] : memref<9x2x2xbf16, #tpu.memory_space<vmem>>, vector<1x2x2xbf16>
    %101 = vector.shape_cast %100 : vector<1x2x2xbf16> to vector<2x2xbf16>
    %cst_71 = arith.constant dense<0.000000e+00> : vector<288x2xf32>
    %102 = tpu.matmul %99, %101, %cst_71 {dimension_numbers = #tpu.dot_dimension_numbers<[1], [0], [0], [1], [0, 0, 1, 1], [], []>} : vector<288x2xbf16>, vector<2x2xbf16>, vector<288x2xf32> -> vector<288x2xf32>
    %103 = arith.addf %98, %102 : vector<288x2xf32>
    %c31 = arith.constant 31 : index
    %c0_72 = arith.constant 0 : index
    %104 = vector.load %arg7[%c31, %c0_72] : memref<346x2xbf16, #tpu.memory_space<vmem>>, vector<288x2xbf16>
    %c3_73 = arith.constant 3 : index
    %c0_74 = arith.constant 0 : index
    %c0_75 = arith.constant 0 : index
    %105 = vector.load %arg4[%c3_73, %c0_74, %c0_75] : memref<9x2x2xbf16, #tpu.memory_space<vmem>>, vector<1x2x2xbf16>
    %106 = vector.shape_cast %105 : vector<1x2x2xbf16> to vector<2x2xbf16>
    %cst_76 = arith.constant dense<0.000000e+00> : vector<288x2xf32>
    %107 = tpu.matmul %104, %106, %cst_76 {dimension_numbers = #tpu.dot_dimension_numbers<[1], [0], [0], [1], [0, 0, 1, 1], [], []>} : vector<288x2xbf16>, vector<2x2xbf16>, vector<288x2xf32> -> vector<288x2xf32>
    %108 = arith.addf %103, %107 : vector<288x2xf32>
    %c32_77 = arith.constant 32 : index
    %c0_78 = arith.constant 0 : index
    %109 = vector.load %arg7[%c32_77, %c0_78] : memref<346x2xbf16, #tpu.memory_space<vmem>>, vector<288x2xbf16>
    %c4_79 = arith.constant 4 : index
    %c0_80 = arith.constant 0 : index
    %c0_81 = arith.constant 0 : index
    %110 = vector.load %arg4[%c4_79, %c0_80, %c0_81] : memref<9x2x2xbf16, #tpu.memory_space<vmem>>, vector<1x2x2xbf16>
    %111 = vector.shape_cast %110 : vector<1x2x2xbf16> to vector<2x2xbf16>
    %cst_82 = arith.constant dense<0.000000e+00> : vector<288x2xf32>
    %112 = tpu.matmul %109, %111, %cst_82 {dimension_numbers = #tpu.dot_dimension_numbers<[1], [0], [0], [1], [0, 0, 1, 1], [], []>} : vector<288x2xbf16>, vector<2x2xbf16>, vector<288x2xf32> -> vector<288x2xf32>
    %113 = arith.addf %108, %112 : vector<288x2xf32>
    %c33 = arith.constant 33 : index
    %c0_83 = arith.constant 0 : index
    %114 = vector.load %arg7[%c33, %c0_83] : memref<346x2xbf16, #tpu.memory_space<vmem>>, vector<288x2xbf16>
    %c5_84 = arith.constant 5 : index
    %c0_85 = arith.constant 0 : index
    %c0_86 = arith.constant 0 : index
    %115 = vector.load %arg4[%c5_84, %c0_85, %c0_86] : memref<9x2x2xbf16, #tpu.memory_space<vmem>>, vector<1x2x2xbf16>
    %116 = vector.shape_cast %115 : vector<1x2x2xbf16> to vector<2x2xbf16>
    %cst_87 = arith.constant dense<0.000000e+00> : vector<288x2xf32>
    %117 = tpu.matmul %114, %116, %cst_87 {dimension_numbers = #tpu.dot_dimension_numbers<[1], [0], [0], [1], [0, 0, 1, 1], [], []>} : vector<288x2xbf16>, vector<2x2xbf16>, vector<288x2xf32> -> vector<288x2xf32>
    %118 = arith.addf %113, %117 : vector<288x2xf32>
    %c49 = arith.constant 49 : index
    %c0_88 = arith.constant 0 : index
    %119 = vector.load %arg7[%c49, %c0_88] : memref<346x2xbf16, #tpu.memory_space<vmem>>, vector<288x2xbf16>
    %c6_89 = arith.constant 6 : index
    %c0_90 = arith.constant 0 : index
    %c0_91 = arith.constant 0 : index
    %120 = vector.load %arg4[%c6_89, %c0_90, %c0_91] : memref<9x2x2xbf16, #tpu.memory_space<vmem>>, vector<1x2x2xbf16>
    %121 = vector.shape_cast %120 : vector<1x2x2xbf16> to vector<2x2xbf16>
    %cst_92 = arith.constant dense<0.000000e+00> : vector<288x2xf32>
    %122 = tpu.matmul %119, %121, %cst_92 {dimension_numbers = #tpu.dot_dimension_numbers<[1], [0], [0], [1], [0, 0, 1, 1], [], []>} : vector<288x2xbf16>, vector<2x2xbf16>, vector<288x2xf32> -> vector<288x2xf32>
    %123 = arith.addf %118, %122 : vector<288x2xf32>
    %c50 = arith.constant 50 : index
    %c0_93 = arith.constant 0 : index
    %124 = vector.load %arg7[%c50, %c0_93] : memref<346x2xbf16, #tpu.memory_space<vmem>>, vector<288x2xbf16>
    %c7_94 = arith.constant 7 : index
    %c0_95 = arith.constant 0 : index
    %c0_96 = arith.constant 0 : index
    %125 = vector.load %arg4[%c7_94, %c0_95, %c0_96] : memref<9x2x2xbf16, #tpu.memory_space<vmem>>, vector<1x2x2xbf16>
    %126 = vector.shape_cast %125 : vector<1x2x2xbf16> to vector<2x2xbf16>
    %cst_97 = arith.constant dense<0.000000e+00> : vector<288x2xf32>
    %127 = tpu.matmul %124, %126, %cst_97 {dimension_numbers = #tpu.dot_dimension_numbers<[1], [0], [0], [1], [0, 0, 1, 1], [], []>} : vector<288x2xbf16>, vector<2x2xbf16>, vector<288x2xf32> -> vector<288x2xf32>
    %128 = arith.addf %123, %127 : vector<288x2xf32>
    %c51 = arith.constant 51 : index
    %c0_98 = arith.constant 0 : index
    %129 = vector.load %arg7[%c51, %c0_98] : memref<346x2xbf16, #tpu.memory_space<vmem>>, vector<288x2xbf16>
    %c8_99 = arith.constant 8 : index
    %c0_100 = arith.constant 0 : index
    %c0_101 = arith.constant 0 : index
    %130 = vector.load %arg4[%c8_99, %c0_100, %c0_101] : memref<9x2x2xbf16, #tpu.memory_space<vmem>>, vector<1x2x2xbf16>
    %131 = vector.shape_cast %130 : vector<1x2x2xbf16> to vector<2x2xbf16>
    %cst_102 = arith.constant dense<0.000000e+00> : vector<288x2xf32>
    %132 = tpu.matmul %129, %131, %cst_102 {dimension_numbers = #tpu.dot_dimension_numbers<[1], [0], [0], [1], [0, 0, 1, 1], [], []>} : vector<288x2xbf16>, vector<2x2xbf16>, vector<288x2xf32> -> vector<288x2xf32>
    %133 = arith.addf %128, %132 : vector<288x2xf32>
    %c0_103 = arith.constant 0 : index
    %c0_104 = arith.constant 0 : index
    %134 = vector.load %arg5[%c0_103, %c0_104] : memref<1x2xf32, #tpu.memory_space<vmem>>, vector<1x2xf32>
    %135 = vector.broadcast %134 : vector<1x2xf32> to vector<288x2xf32>
    %136 = arith.addf %133, %135 : vector<288x2xf32>
    %137 = arith.negf %136 : vector<288x2xf32>
    %138 = math.exp %137 : vector<288x2xf32>
    %cst_105 = arith.constant 1.000000e+00 : f32
    %139 = vector.broadcast %cst_105 : f32 to vector<288x2xf32>
    %140 = arith.addf %139, %138 : vector<288x2xf32>
    %141 = arith.divf %139, %140 : vector<288x2xf32>
    %142 = arith.mulf %136, %141 : vector<288x2xf32>
    %cst_106 = arith.constant 0.000000e+00 : f32
    %143 = vector.shape_cast %21 : vector<288x1xi1> to vector<288x1xi1>
    %144 = vector.broadcast %143 : vector<288x1xi1> to vector<288x2xi1>
    %145 = vector.broadcast %cst_106 : f32 to vector<288x2xf32>
    %146 = arith.select %144, %142, %145 : vector<288x2xi1>, vector<288x2xf32>
    %147 = arith.truncf %146 : vector<288x2xf32> to vector<288x2xbf16>
    %148 = vector.shape_cast %147 : vector<288x2xbf16> to vector<1x288x2xbf16>
    %c0_107 = arith.constant 0 : index
    %c0_108 = arith.constant 0 : index
    %c0_109 = arith.constant 0 : index
    %149 = vector.load %arg6[%c0_107, %c0_108, %c0_109] : memref<1x288x2xbf16, #tpu.memory_space<vmem>>, vector<1x288x2xbf16>
    tpu.vector_store %arg6[%c0_107, %c0_108, %c0_109], %148 {strides = array<i32>} : memref<1x288x2xbf16, #tpu.memory_space<vmem>>, vector<1x288x2xbf16>,
    return
  }
  func.func @transform_0(%arg0: i32) -> (i32, i32, i32) {
    %c0_i32 = arith.constant 0 : i32
    %c0_i32_0 = arith.constant 0 : i32
    %c0_i32_1 = arith.constant 0 : i32
    return %arg0, %c0_i32, %c0_i32_0 : i32, i32, i32
  }
  func.func @transform_1(%arg0: i32) -> (i32, i32, i32) {
    %c0_i32 = arith.constant 0 : i32
    %c0_i32_0 = arith.constant 0 : i32
    %c0_i32_1 = arith.constant 0 : i32
    %c0_i32_2 = arith.constant 0 : i32
    return %c0_i32, %c0_i32_0, %c0_i32_1 : i32, i32, i32
  }
  func.func @transform_2(%arg0: i32) -> (i32, i32) {
    %c0_i32 = arith.constant 0 : i32
    %c0_i32_0 = arith.constant 0 : i32
    %c0_i32_1 = arith.constant 0 : i32
    return %c0_i32, %c0_i32_0 : i32, i32
  }
  func.func @transform_3(%arg0: i32) -> (i32, i32, i32) {
    %c0_i32 = arith.constant 0 : i32
    %c0_i32_0 = arith.constant 0 : i32
    %c0_i32_1 = arith.constant 0 : i32
    %c0_i32_2 = arith.constant 0 : i32
    return %c0_i32, %c0_i32_0, %c0_i32_1 : i32, i32, i32
  }
  func.func @transform_4(%arg0: i32) -> (i32, i32) {
    %c0_i32 = arith.constant 0 : i32
    %c0_i32_0 = arith.constant 0 : i32
    %c0_i32_1 = arith.constant 0 : i32
    return %c0_i32, %c0_i32_0 : i32, i32
  }
  func.func @transform_5(%arg0: i32) -> (i32, i32, i32) {
    %c0_i32 = arith.constant 0 : i32
    %c0_i32_0 = arith.constant 0 : i32
    %c0_i32_1 = arith.constant 0 : i32
    return %arg0, %c0_i32, %c0_i32_0 : i32, i32, i32
  }
}

module attributes {stable_mosaic.version = 11 : i64} {
  func.func @kernel(%arg0: i32, %arg1: memref<512x4xbf16, #tpu.memory_space<vmem>>, %arg2: memref<512x2xbf16, #tpu.memory_space<vmem>>, %arg3: memref<4x4xbf16, #tpu.memory_space<vmem>>, %arg4: memref<2x4xbf16, #tpu.memory_space<vmem>>, %arg5: memref<1x4xf32, #tpu.memory_space<vmem>>, %arg6: memref<512x4xf32, #tpu.memory_space<vmem>>) attributes {dimension_semantics = [#tpu.dimension_semantics<parallel>], iteration_bounds = array<i64: 1>, scalar_prefetch = 0 : i64, scratch_operands = 0 : i64, tpu.core_type = #tpu.core_type<tc>, window_params = [{transform_indices = @transform_0, window_bounds = array<i64: 512, 4>}, {transform_indices = @transform_1, window_bounds = array<i64: 512, 2>}, {pipeline_mode = #tpu.pipeline_mode<synchronous>, transform_indices = @transform_2, window_bounds = array<i64: 4, 4>}, {pipeline_mode = #tpu.pipeline_mode<synchronous>, transform_indices = @transform_3, window_bounds = array<i64: 2, 4>}, {pipeline_mode = #tpu.pipeline_mode<synchronous>, transform_indices = @transform_4, window_bounds = array<i64: 1, 4>}, {transform_indices = @transform_5, window_bounds = array<i64: 512, 4>}]} {
    %c0 = arith.constant 0 : index
    %c0_0 = arith.constant 0 : index
    %0 = vector.load %arg1[%c0, %c0_0] : memref<512x4xbf16, #tpu.memory_space<vmem>>, vector<512x4xbf16>
    %c0_1 = arith.constant 0 : index
    %c0_2 = arith.constant 0 : index
    %1 = vector.load %arg3[%c0_1, %c0_2] : memref<4x4xbf16, #tpu.memory_space<vmem>>, vector<4x4xbf16>
    %cst = arith.constant dense<0.000000e+00> : vector<512x4xf32>
    %2 = tpu.matmul %0, %1, %cst {dimension_numbers = #tpu.dot_dimension_numbers<[1], [0], [0], [1], [0, 0, 1, 1], [], []>} : vector<512x4xbf16>, vector<4x4xbf16>, vector<512x4xf32> -> vector<512x4xf32>
    %c0_3 = arith.constant 0 : index
    %c0_4 = arith.constant 0 : index
    %3 = vector.load %arg2[%c0_3, %c0_4] : memref<512x2xbf16, #tpu.memory_space<vmem>>, vector<512x2xbf16>
    %c0_5 = arith.constant 0 : index
    %c0_6 = arith.constant 0 : index
    %4 = vector.load %arg4[%c0_5, %c0_6] : memref<2x4xbf16, #tpu.memory_space<vmem>>, vector<2x4xbf16>
    %cst_7 = arith.constant dense<0.000000e+00> : vector<512x4xf32>
    %5 = tpu.matmul %3, %4, %cst_7 {dimension_numbers = #tpu.dot_dimension_numbers<[1], [0], [0], [1], [0, 0, 1, 1], [], []>} : vector<512x2xbf16>, vector<2x4xbf16>, vector<512x4xf32> -> vector<512x4xf32>
    %6 = arith.addf %2, %5 : vector<512x4xf32>
    %c0_8 = arith.constant 0 : index
    %c0_9 = arith.constant 0 : index
    %7 = vector.load %arg5[%c0_8, %c0_9] : memref<1x4xf32, #tpu.memory_space<vmem>>, vector<1x4xf32>
    %8 = vector.broadcast %7 : vector<1x4xf32> to vector<512x4xf32>
    %9 = arith.addf %6, %8 : vector<512x4xf32>
    %10 = arith.negf %9 : vector<512x4xf32>
    %11 = math.exp %10 : vector<512x4xf32>
    %cst_10 = arith.constant 1.000000e+00 : f32
    %12 = vector.broadcast %cst_10 : f32 to vector<512x4xf32>
    %13 = arith.addf %12, %11 : vector<512x4xf32>
    %14 = arith.divf %12, %13 : vector<512x4xf32>
    %15 = arith.mulf %9, %14 : vector<512x4xf32>
    %c0_11 = arith.constant 0 : index
    %c0_12 = arith.constant 0 : index
    %16 = vector.load %arg6[%c0_11, %c0_12] : memref<512x4xf32, #tpu.memory_space<vmem>>, vector<512x4xf32>
    tpu.vector_store %arg6[%c0_11, %c0_12], %15 {strides = array<i32>} : memref<512x4xf32, #tpu.memory_space<vmem>>, vector<512x4xf32>,
    return
  }
  func.func @transform_0(%arg0: i32) -> (i32, i32) {
    %c0_i32 = arith.constant 0 : i32
    %c0_i32_0 = arith.constant 0 : i32
    return %arg0, %c0_i32 : i32, i32
  }
  func.func @transform_1(%arg0: i32) -> (i32, i32) {
    %c0_i32 = arith.constant 0 : i32
    %c0_i32_0 = arith.constant 0 : i32
    return %arg0, %c0_i32 : i32, i32
  }
  func.func @transform_2(%arg0: i32) -> (i32, i32) {
    %c0_i32 = arith.constant 0 : i32
    %c0_i32_0 = arith.constant 0 : i32
    %c0_i32_1 = arith.constant 0 : i32
    return %c0_i32, %c0_i32_0 : i32, i32
  }
  func.func @transform_3(%arg0: i32) -> (i32, i32) {
    %c0_i32 = arith.constant 0 : i32
    %c0_i32_0 = arith.constant 0 : i32
    %c0_i32_1 = arith.constant 0 : i32
    return %c0_i32, %c0_i32_0 : i32, i32
  }
  func.func @transform_4(%arg0: i32) -> (i32, i32) {
    %c0_i32 = arith.constant 0 : i32
    %c0_i32_0 = arith.constant 0 : i32
    %c0_i32_1 = arith.constant 0 : i32
    return %c0_i32, %c0_i32_0 : i32, i32
  }
  func.func @transform_5(%arg0: i32) -> (i32, i32) {
    %c0_i32 = arith.constant 0 : i32
    %c0_i32_0 = arith.constant 0 : i32
    return %arg0, %c0_i32 : i32, i32
  }
}

</mosaic_0001>

<llo_original>
// kernel: c2f_forward.3
$region0: #{c2f_forward.3}
  #allocation0 [shape = 'u32[]', space=smem, size = 0x4, offset = 0x4, fixed_abs, tag = 'smem constant byte address 0x4 - core index']
  #allocation1 [shape = 'u32[144,128]{1,0:T(1,128)}', space=vmem, size = 0x12000, scoped, tag = 'internal scratch']
  %s0 = inlined_call_operand.vmem [shape: bf16[512,4], index: 0, kind: input, shape index: {}]
  %s1 = inlined_call_operand.vmem [shape: bf16[4,4], index: 1, kind: input, shape index: {}]
  %s2 = inlined_call_operand.vmem [shape: f32[1,4], index: 2, kind: input, shape index: {}]
  %s3 = inlined_call_operand.vmem [shape: bf16[512,4], index: 3, kind: output, shape index: {}]
  %s4 = sld [smem:[#allocation0]]
  $region22: #{c2f_forward.3} parent=0
    _
  %s6 = ssub.s32 1, %s4
  %s7 = scalar_select 0, %s6, %s4
  // Predicated region
  $region2: #{c2f_forward.3} parent=0 // pred_check
    _
  $region3: #{c2f_forward.3} parent=0 // pred_check_branch
    %9 = sbr.rel (0) target = $region5
  $region4: #{c2f_forward.3} parent=0 // pred_region
    _
  $region5: #{c2f_forward.3} parent=0 // pred_fallthru
    _
  // Predicated region
  $region6: #{c2f_forward.3} parent=0 // pred_check
    _
  $region7: #{c2f_forward.3} parent=0 // pred_check_branch
    %11 = sbr.rel (0) target = $region9
  $region8: #{c2f_forward.3} parent=0 // pred_region
    _
  $region9: #{c2f_forward.3} parent=0 // pred_fallthru
    _
  // Predicated region
  $region10: #{c2f_forward.3} parent=0 // pred_check
    _
  $region11: #{c2f_forward.3} parent=0 // pred_check_branch
    %13 = sbr.rel (0) target = $region13
  $region12: #{c2f_forward.3} parent=0 // pred_region
    _
  $region13: #{c2f_forward.3} parent=0 // pred_fallthru
    _
  %v15 = vld [vmem:[%s0] sm:$0xf]
  %v16 = vld [vmem:[%s0 + $0x4] sm:$0xf]
  %v17 = vld [vmem:[%s0 + $0x8] sm:$0xf]
  %v18 = vld [vmem:[%s0 + $0xc] sm:$0xf]
  %v19 = vld [vmem:[%s0 + $0x10] sm:$0xf]
  %v20 = vld [vmem:[%s0 + $0x14] sm:$0xf]
  %v21 = vld [vmem:[%s0 + $0x18] sm:$0xf]
  %v22 = vld [vmem:[%s0 + $0x1c] sm:$0xf]
  %v23 = vld [vmem:[%s0 + $0x20] sm:$0xf]
  %v24 = vld [vmem:[%s0 + $0x24] sm:$0xf]
  %v25 = vld [vmem:[%s0 + $0x28] sm:$0xf]
  %v26 = vld [vmem:[%s0 + $0x2c] sm:$0xf]
  %v27 = vld [vmem:[%s0 + $0x30] sm:$0xf]
  %v28 = vld [vmem:[%s0 + $0x34] sm:$0xf]
  %v29 = vld [vmem:[%s0 + $0x38] sm:$0xf]
  %v30 = vld [vmem:[%s0 + $0x3c] sm:$0xf]
  %v31 = vld [vmem:[%s0 + $0x40] sm:$0xf]
  %v32 = vld [vmem:[%s0 + $0x44] sm:$0xf]
  %v33 = vld [vmem:[%s0 + $0x48] sm:$0xf]
  %v34 = vld [vmem:[%s0 + $0x4c] sm:$0xf]
  %v35 = vld [vmem:[%s0 + $0x50] sm:$0xf]
  %v36 = vld [vmem:[%s0 + $0x54] sm:$0xf]
  %v37 = vld [vmem:[%s0 + $0x58] sm:$0xf]
  %v38 = vld [vmem:[%s0 + $0x5c] sm:$0xf]
  %v39 = vld [vmem:[%s0 + $0x60] sm:$0xf]
  %v40 = vld [vmem:[%s0 + $0x64] sm:$0xf]
  %v41 = vld [vmem:[%s0 + $0x68] sm:$0xf]
  %v42 = vld [vmem:[%s0 + $0x6c] sm:$0xf]
  %v43 = vld [vmem:[%s0 + $0x70] sm:$0xf]
  %v44 = vld [vmem:[%s0 + $0x74] sm:$0xf]
  %v45 = vld [vmem:[%s0 + $0x78] sm:$0xf]
  %v46 = vld [vmem:[%s0 + $0x7c] sm:$0xf]
  %v47 = vld [vmem:[%s0 + $0x80] sm:$0xf]
  %v48 = vld [vmem:[%s0 + $0x84] sm:$0xf]
  %v49 = vld [vmem:[%s0 + $0x88] sm:$0xf]
  %v50 = vld [vmem:[%s0 + $0x8c] sm:$0xf]
  %v51 = vld [vmem:[%s0 + $0x90] sm:$0xf]
  %v52 = vld [vmem:[%s0 + $0x94] sm:$0xf]
  %v53 = vld [vmem:[%s0 + $0x98] sm:$0xf]
  %v54 = vld [vmem:[%s0 + $0x9c] sm:$0xf]
  %v55 = vld [vmem:[%s0 + $0xa0] sm:$0xf]
  %v56 = vld [vmem:[%s0 + $0xa4] sm:$0xf]
  %v57 = vld [vmem:[%s0 + $0xa8] sm:$0xf]
  %v58 = vld [vmem:[%s0 + $0xac] sm:$0xf]
  %v59 = vld [vmem:[%s0 + $0xb0] sm:$0xf]
  %v60 = vld [vmem:[%s0 + $0xb4] sm:$0xf]
  %v61 = vld [vmem:[%s0 + $0xb8] sm:$0xf]
  %v62 = vld [vmem:[%s0 + $0xbc] sm:$0xf]
  %v63 = vld [vmem:[%s0 + $0xc0] sm:$0xf]
  %v64 = vld [vmem:[%s0 + $0xc4] sm:$0xf]
  %v65 = vld [vmem:[%s0 + $0xc8] sm:$0xf]
  %v66 = vld [vmem:[%s0 + $0xcc] sm:$0xf]
  %v67 = vld [vmem:[%s0 + $0xd0] sm:$0xf]
  %v68 = vld [vmem:[%s0 + $0xd4] sm:$0xf]
  %v69 = vld [vmem:[%s0 + $0xd8] sm:$0xf]
  %v70 = vld [vmem:[%s0 + $0xdc] sm:$0xf]
  %v71 = vld [vmem:[%s0 + $0xe0] sm:$0xf]
  %v72 = vld [vmem:[%s0 + $0xe4] sm:$0xf]
  %v73 = vld [vmem:[%s0 + $0xe8] sm:$0xf]
  %v74 = vld [vmem:[%s0 + $0xec] sm:$0xf]
  %v75 = vld [vmem:[%s0 + $0xf0] sm:$0xf]
  %v76 = vld [vmem:[%s0 + $0xf4] sm:$0xf]
  %v77 = vld [vmem:[%s0 + $0xf8] sm:$0xf]
  %v78 = vld [vmem:[%s0 + $0xfc] sm:$0xf]
  %v79 = vld [vmem:[%s1] sm:$0x3]
  %v80 = vld [vmem:[%s2] sm:$0x1]
  %v82 = vlaneseq
  %v83 = vshrl.u32 %v82, 7
  %v84 = vsub.s32 0, %v83
  %v85 = vrot.slane %v80, %v84
  %v151 = vunpack.c.l.b16 %v15
  %v152 = vunpack.c.l.b16 %v16
  %v153 = vunpack.c.l.b16 %v17
  %v154 = vunpack.c.l.b16 %v18
  %v155 = vunpack.c.l.b16 %v19
  %v156 = vunpack.c.l.b16 %v20
  %v157 = vunpack.c.l.b16 %v21
  %v158 = vunpack.c.l.b16 %v22
  %v159 = vunpack.c.l.b16 %v23
  %v160 = vunpack.c.l.b16 %v24
  %v161 = vunpack.c.l.b16 %v25
  %v162 = vunpack.c.l.b16 %v26
  %v163 = vunpack.c.l.b16 %v27
  %v164 = vunpack.c.l.b16 %v28
  %v165 = vunpack.c.l.b16 %v29
  %v166 = vunpack.c.l.b16 %v30
  %v167 = vunpack.c.l.b16 %v31
  %v168 = vunpack.c.l.b16 %v32
  %v169 = vunpack.c.l.b16 %v33
  %v170 = vunpack.c.l.b16 %v34
  %v171 = vunpack.c.l.b16 %v35
  %v172 = vunpack.c.l.b16 %v36
  %v173 = vunpack.c.l.b16 %v37
  %v174 = vunpack.c.l.b16 %v38
  %v175 = vunpack.c.l.b16 %v39
  %v176 = vunpack.c.l.b16 %v40
  %v177 = vunpack.c.l.b16 %v41
  %v178 = vunpack.c.l.b16 %v42
  %v179 = vunpack.c.l.b16 %v43
  %v180 = vunpack.c.l.b16 %v44
  %v181 = vunpack.c.l.b16 %v45
  %v182 = vunpack.c.l.b16 %v46
  %v183 = vunpack.c.l.b16 %v47
  %v184 = vunpack.c.l.b16 %v48
  %v185 = vunpack.c.l.b16 %v49
  %v186 = vunpack.c.l.b16 %v50
  %v187 = vunpack.c.l.b16 %v51
  %v188 = vunpack.c.l.b16 %v52
  %v189 = vunpack.c.l.b16 %v53
  %v190 = vunpack.c.l.b16 %v54
  %v191 = vunpack.c.l.b16 %v55
  %v192 = vunpack.c.l.b16 %v56
  %v193 = vunpack.c.l.b16 %v57
  %v194 = vunpack.c.l.b16 %v58
  %v195 = vunpack.c.l.b16 %v59
  %v196 = vunpack.c.l.b16 %v60
  %v197 = vunpack.c.l.b16 %v61
  %v198 = vunpack.c.l.b16 %v62
  %v199 = vunpack.c.l.b16 %v63
  %v200 = vunpack.c.l.b16 %v64
  %v201 = vunpack.c.l.b16 %v65
  %v202 = vunpack.c.l.b16 %v66
  %v203 = vunpack.c.l.b16 %v67
  %v204 = vunpack.c.l.b16 %v68
  %v205 = vunpack.c.l.b16 %v69
  %v206 = vunpack.c.l.b16 %v70
  %v207 = vunpack.c.l.b16 %v71
  %v208 = vunpack.c.l.b16 %v72
  %v209 = vunpack.c.l.b16 %v73
  %v210 = vunpack.c.l.b16 %v74
  %v211 = vunpack.c.l.b16 %v75
  %v212 = vunpack.c.l.b16 %v76
  %v213 = vunpack.c.l.b16 %v77
  %v214 = vunpack.c.l.b16 %v78
  %v215 = vpack.c.b16 %v152, %v151
  %v216 = vpack.c.b16 %v154, %v153
  %v217 = vpack.c.b16 %v156, %v155
  %v218 = vpack.c.b16 %v158, %v157
  %v219 = vpack.c.b16 %v160, %v159
  %v220 = vpack.c.b16 %v162, %v161
  %v221 = vpack.c.b16 %v164, %v163
  %v222 = vpack.c.b16 %v166, %v165
  %v223 = vpack.c.b16 %v168, %v167
  %v224 = vpack.c.b16 %v170, %v169
  %v225 = vpack.c.b16 %v172, %v171
  %v226 = vpack.c.b16 %v174, %v173
  %v227 = vpack.c.b16 %v176, %v175
  %v228 = vpack.c.b16 %v178, %v177
  %v229 = vpack.c.b16 %v180, %v179
  %v230 = vpack.c.b16 %v182, %v181
  %v231 = vpack.c.b16 %v184, %v183
  %v232 = vpack.c.b16 %v186, %v185
  %v233 = vpack.c.b16 %v188, %v187
  %v234 = vpack.c.b16 %v190, %v189
  %v235 = vpack.c.b16 %v192, %v191
  %v236 = vpack.c.b16 %v194, %v193
  %v237 = vpack.c.b16 %v196, %v195
  %v238 = vpack.c.b16 %v198, %v197
  %v239 = vpack.c.b16 %v200, %v199
  %v240 = vpack.c.b16 %v202, %v201
  %v241 = vpack.c.b16 %v204, %v203
  %v242 = vpack.c.b16 %v206, %v205
  %v243 = vpack.c.b16 %v208, %v207
  %v244 = vpack.c.b16 %v210, %v209
  %v245 = vpack.c.b16 %v212, %v211
  %v246 = vpack.c.b16 %v214, %v213
  %vm247 = vcmask 31744
  %v249 = vsel %vm247, %v215, 0
  %v252 = vsel %vm247, %v216, 0
  %v255 = vsel %vm247, %v217, 0
  %v258 = vsel %vm247, %v218, 0
  %v261 = vsel %vm247, %v219, 0
  %v264 = vsel %vm247, %v220, 0
  %v267 = vsel %vm247, %v221, 0
  %v270 = vsel %vm247, %v222, 0
  %v273 = vsel %vm247, %v223, 0
  %v276 = vsel %vm247, %v224, 0
  %v279 = vsel %vm247, %v225, 0
  %v282 = vsel %vm247, %v226, 0
  %v285 = vsel %vm247, %v227, 0
  %v288 = vsel %vm247, %v228, 0
  %v291 = vsel %vm247, %v229, 0
  %v294 = vsel %vm247, %v230, 0
  %v297 = vsel %vm247, %v231, 0
  %v300 = vsel %vm247, %v232, 0
  %v303 = vsel %vm247, %v233, 0
  %v306 = vsel %vm247, %v234, 0
  %v309 = vsel %vm247, %v235, 0
  %v312 = vsel %vm247, %v236, 0
  %v315 = vsel %vm247, %v237, 0
  %v318 = vsel %vm247, %v238, 0
  %v321 = vsel %vm247, %v239, 0
  %v324 = vsel %vm247, %v240, 0
  %v327 = vsel %vm247, %v241, 0
  %v330 = vsel %vm247, %v242, 0
  %v333 = vsel %vm247, %v243, 0
  %v336 = vsel %vm247, %v244, 0
  %v339 = vsel %vm247, %v245, 0
  %v342 = vsel %vm247, %v246, 0
  %vm344 = vcmask 1041408
  %v346 = vsel %vm344, %v79, 0
  %348 = vmatprep.subr.bf16.mxu0 0
  %349 = vmatpush1.bf16.msra.mxu0 0
  %350 = vmatprep.subr.bf16.mxu0 0
  %351 = vmatpush1.bf16.msra.mxu0 0
  %352 = vmatprep.subr.bf16.mxu0 0
  %353 = vmatpush1.bf16.msra.mxu0 0
  %354 = vmatprep.subr.bf16.mxu0 0
  %355 = vmatpush1.bf16.msra.mxu0 0
  %356 = vmatprep.subr.bf16.mxu0 0
  %357 = vmatpush1.bf16.msra.mxu0 0
  %358 = vmatprep.subr.bf16.mxu0 0
  %359 = vmatpush1.bf16.msra.mxu0 0
  %360 = vmatprep.subr.bf16.mxu0 0
  %361 = vmatpush1.bf16.msra.mxu0 0
  %362 = vmatprep.subr.bf16.mxu0 0
  %363 = vmatpush1.bf16.msra.mxu0 %v346
  %364 = vmatprep.subr.bf16.mxu0 0
  %365 = vmatpush2.bf16.msra.mxu0 0
  %366 = vmatprep.subr.bf16.mxu0 0
  %367 = vmatpush2.bf16.msra.mxu0 0
  %368 = vmatprep.subr.bf16.mxu0 0
  %369 = vmatpush2.bf16.msra.mxu0 0
  %370 = vmatprep.subr.bf16.mxu0 0
  %371 = vmatpush2.bf16.msra.mxu0 0
  %372 = vmatprep.subr.bf16.mxu0 0
  %373 = vmatpush2.bf16.msra.mxu0 0
  %374 = vmatprep.subr.bf16.mxu0 0
  %375 = vmatpush2.bf16.msra.mxu0 0
  %376 = vmatprep.subr.bf16.mxu0 0
  %377 = vmatpush2.bf16.msra.mxu0 0
  %378 = vmatprep.subr.bf16.mxu0 0
  %379 = vmatpush2.bf16.msra.mxu0 0
  %380 = vmatprep.mubr.bf16.mxu0 0
  %381 = vmatmul.mubr.bf16.gmra.mxu0 %v249
  %v382 = vpop.f32.mrf.mxu0
  %v383 = vadd.f32 %v85, %v382
  %v384 = vpop.f32.mrf.mxu0
  %v385 = vpop.f32.mrf.mxu0
  %v386 = vadd.f32 %v85, %v385
  %v387 = vpop.f32.mrf.mxu0
  %388 = vmatprep.mubr.bf16.mxu0 0
  %389 = vmatmul.mubr.bf16.gmra.mxu0 %v252
  %v390 = vpop.f32.mrf.mxu0
  %v391 = vadd.f32 %v85, %v390
  %v392 = vpop.f32.mrf.mxu0
  %v393 = vpop.f32.mrf.mxu0
  %v394 = vadd.f32 %v85, %v393
  %v395 = vpop.f32.mrf.mxu0
  %396 = vmatprep.mubr.bf16.mxu0 0
  %397 = vmatmul.mubr.bf16.gmra.mxu0 %v255
  %v398 = vpop.f32.mrf.mxu0
  %v399 = vadd.f32 %v85, %v398
  %v400 = vpop.f32.mrf.mxu0
  %v401 = vpop.f32.mrf.mxu0
  %v402 = vadd.f32 %v85, %v401
  %v403 = vpop.f32.mrf.mxu0
  %404 = vmatprep.mubr.bf16.mxu0 0
  %405 = vmatmul.mubr.bf16.gmra.mxu0 %v258
  %v406 = vpop.f32.mrf.mxu0
  %v407 = vadd.f32 %v85, %v406
  %v408 = vpop.f32.mrf.mxu0
  %v409 = vpop.f32.mrf.mxu0
  %v410 = vadd.f32 %v85, %v409
  %v411 = vpop.f32.mrf.mxu0
  %412 = vmatprep.mubr.bf16.mxu0 0
  %413 = vmatmul.mubr.bf16.gmra.mxu0 %v261
  %v414 = vpop.f32.mrf.mxu0
  %v415 = vadd.f32 %v85, %v414
  %v416 = vpop.f32.mrf.mxu0
  %v417 = vpop.f32.mrf.mxu0
  %v418 = vadd.f32 %v85, %v417
  %v419 = vpop.f32.mrf.mxu0
  %420 = vmatprep.mubr.bf16.mxu0 0
  %421 = vmatmul.mubr.bf16.gmra.mxu0 %v264
  %v422 = vpop.f32.mrf.mxu0
  %v423 = vadd.f32 %v85, %v422
  %v424 = vpop.f32.mrf.mxu0
  %v425 = vpop.f32.mrf.mxu0
  %v426 = vadd.f32 %v85, %v425
  %v427 = vpop.f32.mrf.mxu0
  %428 = vmatprep.mubr.bf16.mxu0 0
  %429 = vmatmul.mubr.bf16.gmra.mxu0 %v267
  %v430 = vpop.f32.mrf.mxu0
  %v431 = vadd.f32 %v85, %v430
  %v432 = vpop.f32.mrf.mxu0
  %v433 = vpop.f32.mrf.mxu0
  %v434 = vadd.f32 %v85, %v433
  %v435 = vpop.f32.mrf.mxu0
  %436 = vmatprep.mubr.bf16.mxu0 0
  %437 = vmatmul.mubr.bf16.gmra.mxu0 %v270
  %v438 = vpop.f32.mrf.mxu0
  %v439 = vadd.f32 %v85, %v438
  %v440 = vpop.f32.mrf.mxu0
  %v441 = vpop.f32.mrf.mxu0
  %v442 = vadd.f32 %v85, %v441
  %v443 = vpop.f32.mrf.mxu0
  %444 = vmatprep.mubr.bf16.mxu0 0
  %445 = vmatmul.mubr.bf16.gmra.mxu0 %v273
  %v446 = vpop.f32.mrf.mxu0
  %v447 = vadd.f32 %v85, %v446
  %v448 = vpop.f32.mrf.mxu0
  %v449 = vpop.f32.mrf.mxu0
  %v450 = vadd.f32 %v85, %v449
  %v451 = vpop.f32.mrf.mxu0
  %452 = vmatprep.mubr.bf16.mxu0 0
  %453 = vmatmul.mubr.bf16.gmra.mxu0 %v276
  %v454 = vpop.f32.mrf.mxu0
  %v455 = vadd.f32 %v85, %v454
  %v456 = vpop.f32.mrf.mxu0
  %v457 = vpop.f32.mrf.mxu0
  %v458 = vadd.f32 %v85, %v457
  %v459 = vpop.f32.mrf.mxu0
  %460 = vmatprep.mubr.bf16.mxu0 0
  %461 = vmatmul.mubr.bf16.gmra.mxu0 %v279
  %v462 = vpop.f32.mrf.mxu0
  %v463 = vadd.f32 %v85, %v462
  %v464 = vpop.f32.mrf.mxu0
  %v465 = vpop.f32.mrf.mxu0
  %v466 = vadd.f32 %v85, %v465
  %v467 = vpop.f32.mrf.mxu0
  %468 = vmatprep.mubr.bf16.mxu0 0
  %469 = vmatmul.mubr.bf16.gmra.mxu0 %v282
  %v470 = vpop.f32.mrf.mxu0
  %v471 = vadd.f32 %v85, %v470
  %v472 = vpop.f32.mrf.mxu0
  %v473 = vpop.f32.mrf.mxu0
  %v474 = vadd.f32 %v85, %v473
  %v475 = vpop.f32.mrf.mxu0
  %476 = vmatprep.mubr.bf16.mxu0 0
  %477 = vmatmul.mubr.bf16.gmra.mxu0 %v285
  %v478 = vpop.f32.mrf.mxu0
  %v479 = vadd.f32 %v85, %v478
  %v480 = vpop.f32.mrf.mxu0
  %v481 = vpop.f32.mrf.mxu0
  %v482 = vadd.f32 %v85, %v481
  %v483 = vpop.f32.mrf.mxu0
  %484 = vmatprep.mubr.bf16.mxu0 0
  %485 = vmatmul.mubr.bf16.gmra.mxu0 %v288
  %v486 = vpop.f32.mrf.mxu0
  %v487 = vadd.f32 %v85, %v486
  %v488 = vpop.f32.mrf.mxu0
  %v489 = vpop.f32.mrf.mxu0
  %v490 = vadd.f32 %v85, %v489
  %v491 = vpop.f32.mrf.mxu0
  %492 = vmatprep.mubr.bf16.mxu0 0
  %493 = vmatmul.mubr.bf16.gmra.mxu0 %v291
  %v494 = vpop.f32.mrf.mxu0
  %v495 = vadd.f32 %v85, %v494
  %v496 = vpop.f32.mrf.mxu0
  %v497 = vpop.f32.mrf.mxu0
  %v498 = vadd.f32 %v85, %v497
  %v499 = vpop.f32.mrf.mxu0
  %500 = vmatprep.mubr.bf16.mxu0 0
  %501 = vmatmul.mubr.bf16.gmra.mxu0 %v294
  %v502 = vpop.f32.mrf.mxu0
  %v503 = vadd.f32 %v85, %v502
  %v504 = vpop.f32.mrf.mxu0
  %v505 = vpop.f32.mrf.mxu0
  %v506 = vadd.f32 %v85, %v505
  %v507 = vpop.f32.mrf.mxu0
  %508 = vmatprep.mubr.bf16.mxu0 0
  %509 = vmatmul.mubr.bf16.gmra.mxu0 %v297
  %v510 = vpop.f32.mrf.mxu0
  %v511 = vadd.f32 %v85, %v510
  %v512 = vpop.f32.mrf.mxu0
  %v513 = vpop.f32.mrf.mxu0
  %v514 = vadd.f32 %v85, %v513
  %v515 = vpop.f32.mrf.mxu0
  %516 = vmatprep.mubr.bf16.mxu0 0
  %517 = vmatmul.mubr.bf16.gmra.mxu0 %v300
  %v518 = vpop.f32.mrf.mxu0
  %v519 = vadd.f32 %v85, %v518
  %v520 = vpop.f32.mrf.mxu0
  %v521 = vpop.f32.mrf.mxu0
  %v522 = vadd.f32 %v85, %v521
  %v523 = vpop.f32.mrf.mxu0
  %524 = vmatprep.mubr.bf16.mxu0 0
  %525 = vmatmul.mubr.bf16.gmra.mxu0 %v303
  %v526 = vpop.f32.mrf.mxu0
  %v527 = vadd.f32 %v85, %v526
  %v528 = vpop.f32.mrf.mxu0
  %v529 = vpop.f32.mrf.mxu0
  %v530 = vadd.f32 %v85, %v529
  %v531 = vpop.f32.mrf.mxu0
  %532 = vmatprep.mubr.bf16.mxu0 0
  %533 = vmatmul.mubr.bf16.gmra.mxu0 %v306
  %v534 = vpop.f32.mrf.mxu0
  %v535 = vadd.f32 %v85, %v534
  %v536 = vpop.f32.mrf.mxu0
  %v537 = vpop.f32.mrf.mxu0
  %v538 = vadd.f32 %v85, %v537
  %v539 = vpop.f32.mrf.mxu0
  %540 = vmatprep.mubr.bf16.mxu0 0
  %541 = vmatmul.mubr.bf16.gmra.mxu0 %v309
  %v542 = vpop.f32.mrf.mxu0
  %v543 = vadd.f32 %v85, %v542
  %v544 = vpop.f32.mrf.mxu0
  %v545 = vpop.f32.mrf.mxu0
  %v546 = vadd.f32 %v85, %v545
  %v547 = vpop.f32.mrf.mxu0
  %548 = vmatprep.mubr.bf16.mxu0 0
  %549 = vmatmul.mubr.bf16.gmra.mxu0 %v312
  %v550 = vpop.f32.mrf.mxu0
  %v551 = vadd.f32 %v85, %v550
  %v552 = vpop.f32.mrf.mxu0
  %v553 = vpop.f32.mrf.mxu0
  %v554 = vadd.f32 %v85, %v553
  %v555 = vpop.f32.mrf.mxu0
  %556 = vmatprep.mubr.bf16.mxu0 0
  %557 = vmatmul.mubr.bf16.gmra.mxu0 %v315
  %v558 = vpop.f32.mrf.mxu0
  %v559 = vadd.f32 %v85, %v558
  %v560 = vpop.f32.mrf.mxu0
  %v561 = vpop.f32.mrf.mxu0
  %v562 = vadd.f32 %v85, %v561
  %v563 = vpop.f32.mrf.mxu0
  %564 = vmatprep.mubr.bf16.mxu0 0
  %565 = vmatmul.mubr.bf16.gmra.mxu0 %v318
  %v566 = vpop.f32.mrf.mxu0
  %v567 = vadd.f32 %v85, %v566
  %v568 = vpop.f32.mrf.mxu0
  %v569 = vpop.f32.mrf.mxu0
  %v570 = vadd.f32 %v85, %v569
  %v571 = vpop.f32.mrf.mxu0
  %572 = vmatprep.mubr.bf16.mxu0 0
  %573 = vmatmul.mubr.bf16.gmra.mxu0 %v321
  %v574 = vpop.f32.mrf.mxu0
  %v575 = vadd.f32 %v85, %v574
  %v576 = vpop.f32.mrf.mxu0
  %v577 = vpop.f32.mrf.mxu0
  %v578 = vadd.f32 %v85, %v577
  %v579 = vpop.f32.mrf.mxu0
  %580 = vmatprep.mubr.bf16.mxu0 0
  %581 = vmatmul.mubr.bf16.gmra.mxu0 %v324
  %v582 = vpop.f32.mrf.mxu0
  %v583 = vadd.f32 %v85, %v582
  %v584 = vpop.f32.mrf.mxu0
  %v585 = vpop.f32.mrf.mxu0
  %v586 = vadd.f32 %v85, %v585
  %v587 = vpop.f32.mrf.mxu0
  %588 = vmatprep.mubr.bf16.mxu0 0
  %589 = vmatmul.mubr.bf16.gmra.mxu0 %v327
  %v590 = vpop.f32.mrf.mxu0
  %v591 = vadd.f32 %v85, %v590
  %v592 = vpop.f32.mrf.mxu0
  %v593 = vpop.f32.mrf.mxu0
  %v594 = vadd.f32 %v85, %v593
  %v595 = vpop.f32.mrf.mxu0
  %596 = vmatprep.mubr.bf16.mxu0 0
  %597 = vmatmul.mubr.bf16.gmra.mxu0 %v330
  %v598 = vpop.f32.mrf.mxu0
  %v599 = vadd.f32 %v85, %v598
  %v600 = vpop.f32.mrf.mxu0
  %v601 = vpop.f32.mrf.mxu0
  %v602 = vadd.f32 %v85, %v601
  %v603 = vpop.f32.mrf.mxu0
  %604 = vmatprep.mubr.bf16.mxu0 0
  %605 = vmatmul.mubr.bf16.gmra.mxu0 %v333
  %v606 = vpop.f32.mrf.mxu0
  %v607 = vadd.f32 %v85, %v606
  %v608 = vpop.f32.mrf.mxu0
  %v609 = vpop.f32.mrf.mxu0
  %v610 = vadd.f32 %v85, %v609
  %v611 = vpop.f32.mrf.mxu0
  %612 = vmatprep.mubr.bf16.mxu0 0
  %613 = vmatmul.mubr.bf16.gmra.mxu0 %v336
  %v614 = vpop.f32.mrf.mxu0
  %v615 = vadd.f32 %v85, %v614
  %v616 = vpop.f32.mrf.mxu0
  %v617 = vpop.f32.mrf.mxu0
  %v618 = vadd.f32 %v85, %v617
  %v619 = vpop.f32.mrf.mxu0
  %620 = vmatprep.mubr.bf16.mxu0 0
  %621 = vmatmul.mubr.bf16.gmra.mxu0 %v339
  %v622 = vpop.f32.mrf.mxu0
  %v623 = vadd.f32 %v85, %v622
  %v624 = vpop.f32.mrf.mxu0
  %v625 = vpop.f32.mrf.mxu0
  %v626 = vadd.f32 %v85, %v625
  %v627 = vpop.f32.mrf.mxu0
  %628 = vmatprep.mubr.bf16.mxu0 0
  %629 = vmatmul.mubr.bf16.gmra.mxu0 %v342
  %v630 = vpop.f32.mrf.mxu0
  %v631 = vadd.f32 %v85, %v630
  %v632 = vpop.f32.mrf.mxu0
  %v633 = vpop.f32.mrf.mxu0
  %v634 = vadd.f32 %v85, %v633
  %v635 = vpop.f32.mrf.mxu0
  %636 = vdwg.mxu0
  %v637 = vxor.u32 %v383, 2147483648
  %v638 = vxor.u32 %v386, 2147483648
  %v639 = vxor.u32 %v391, 2147483648
  %v640 = vxor.u32 %v394, 2147483648
  %v641 = vxor.u32 %v399, 2147483648
  %v642 = vxor.u32 %v402, 2147483648
  %v643 = vxor.u32 %v407, 2147483648
  %v644 = vxor.u32 %v410, 2147483648
  %v645 = vxor.u32 %v415, 2147483648
  %v646 = vxor.u32 %v418, 2147483648
  %v647 = vxor.u32 %v423, 2147483648
  %v648 = vxor.u32 %v426, 2147483648
  %v649 = vxor.u32 %v431, 2147483648
  %v650 = vxor.u32 %v434, 2147483648
  %v651 = vxor.u32 %v439, 2147483648
  %v652 = vxor.u32 %v442, 2147483648
  %v653 = vxor.u32 %v447, 2147483648
  %v654 = vxor.u32 %v450, 2147483648
  %v655 = vxor.u32 %v455, 2147483648
  %v656 = vxor.u32 %v458, 2147483648
  %v657 = vxor.u32 %v463, 2147483648
  %v658 = vxor.u32 %v466, 2147483648
  %v659 = vxor.u32 %v471, 2147483648
  %v660 = vxor.u32 %v474, 2147483648
  %v661 = vxor.u32 %v479, 2147483648
  %v662 = vxor.u32 %v482, 2147483648
  %v663 = vxor.u32 %v487, 2147483648
  %v664 = vxor.u32 %v490, 2147483648
  %v665 = vxor.u32 %v495, 2147483648
  %v666 = vxor.u32 %v498, 2147483648
  %v667 = vxor.u32 %v503, 2147483648
  %v668 = vxor.u32 %v506, 2147483648
  %v669 = vxor.u32 %v511, 2147483648
  %v670 = vxor.u32 %v514, 2147483648
  %v671 = vxor.u32 %v519, 2147483648
  %v672 = vxor.u32 %v522, 2147483648
  %v673 = vxor.u32 %v527, 2147483648
  %v674 = vxor.u32 %v530, 2147483648
  %v675 = vxor.u32 %v535, 2147483648
  %v676 = vxor.u32 %v538, 2147483648
  %v677 = vxor.u32 %v543, 2147483648
  %v678 = vxor.u32 %v546, 2147483648
  %v679 = vxor.u32 %v551, 2147483648
  %v680 = vxor.u32 %v554, 2147483648
  %v681 = vxor.u32 %v559, 2147483648
  %v682 = vxor.u32 %v562, 2147483648
  %v683 = vxor.u32 %v567, 2147483648
  %v684 = vxor.u32 %v570, 2147483648
  %v685 = vxor.u32 %v575, 2147483648
  %v686 = vxor.u32 %v578, 2147483648
  %v687 = vxor.u32 %v583, 2147483648
  %v688 = vxor.u32 %v586, 2147483648
  %v689 = vxor.u32 %v591, 2147483648
  %v690 = vxor.u32 %v594, 2147483648
  %v691 = vxor.u32 %v599, 2147483648
  %v692 = vxor.u32 %v602, 2147483648
  %v693 = vxor.u32 %v607, 2147483648
  %v694 = vxor.u32 %v610, 2147483648
  %v695 = vxor.u32 %v615, 2147483648
  %v696 = vxor.u32 %v618, 2147483648
  %v697 = vxor.u32 %v623, 2147483648
  %v698 = vxor.u32 %v626, 2147483648
  %v699 = vxor.u32 %v631, 2147483648
  %v700 = vxor.u32 %v634, 2147483648
  %v701 = vmul.f32 %v637, 1.442695
  %v702 = vpow.pop %v701
  %v703 = vmul.f32 %v638, 1.442695
  %v704 = vpow.pop %v703
  %v705 = vmul.f32 %v639, 1.442695
  %v706 = vpow.pop %v705
  %v707 = vmul.f32 %v640, 1.442695
  %v708 = vpow.pop %v707
  %v709 = vmul.f32 %v641, 1.442695
  %v710 = vpow.pop %v709
  %v711 = vmul.f32 %v642, 1.442695
  %v712 = vpow.pop %v711
  %v713 = vmul.f32 %v643, 1.442695
  %v714 = vpow.pop %v713
  %v715 = vmul.f32 %v644, 1.442695
  %v716 = vpow.pop %v715
  %v717 = vmul.f32 %v645, 1.442695
  %v718 = vpow.pop %v717
  %v719 = vmul.f32 %v646, 1.442695
  %v720 = vpow.pop %v719
  %v721 = vmul.f32 %v647, 1.442695
  %v722 = vpow.pop %v721
  %v723 = vmul.f32 %v648, 1.442695
  %v724 = vpow.pop %v723
  %v725 = vmul.f32 %v649, 1.442695
  %v726 = vpow.pop %v725
  %v727 = vmul.f32 %v650, 1.442695
  %v728 = vpow.pop %v727
  %v729 = vmul.f32 %v651, 1.442695
  %v730 = vpow.pop %v729
  %v731 = vmul.f32 %v652, 1.442695
  %v732 = vpow.pop %v731
  %v733 = vmul.f32 %v653, 1.442695
  %v734 = vpow.pop %v733
  %v735 = vmul.f32 %v654, 1.442695
  %v736 = vpow.pop %v735
  %v737 = vmul.f32 %v655, 1.442695
  %v738 = vpow.pop %v737
  %v739 = vmul.f32 %v656, 1.442695
  %v740 = vpow.pop %v739
  %v741 = vmul.f32 %v657, 1.442695
  %v742 = vpow.pop %v741
  %v743 = vmul.f32 %v658, 1.442695
  %v744 = vpow.pop %v743
  %v745 = vmul.f32 %v659, 1.442695
  %v746 = vpow.pop %v745
  %v747 = vmul.f32 %v660, 1.442695
  %v748 = vpow.pop %v747
  %v749 = vmul.f32 %v661, 1.442695
  %v750 = vpow.pop %v749
  %v751 = vmul.f32 %v662, 1.442695
  %v752 = vpow.pop %v751
  %v753 = vmul.f32 %v663, 1.442695
  %v754 = vpow.pop %v753
  %v755 = vmul.f32 %v664, 1.442695
  %v756 = vpow.pop %v755
  %v757 = vmul.f32 %v665, 1.442695
  %v758 = vpow.pop %v757
  %v759 = vmul.f32 %v666, 1.442695
  %v760 = vpow.pop %v759
  %v761 = vmul.f32 %v667, 1.442695
  %v762 = vpow.pop %v761
  %v763 = vmul.f32 %v668, 1.442695
  %v764 = vpow.pop %v763
  %v765 = vmul.f32 %v669, 1.442695
  %v766 = vpow.pop %v765
  %v767 = vmul.f32 %v670, 1.442695
  %v768 = vpow.pop %v767
  %v769 = vmul.f32 %v671, 1.442695
  %v770 = vpow.pop %v769
  %v771 = vmul.f32 %v672, 1.442695
  %v772 = vpow.pop %v771
  %v773 = vmul.f32 %v673, 1.442695
  %v774 = vpow.pop %v773
  %v775 = vmul.f32 %v674, 1.442695
  %v776 = vpow.pop %v775
  %v777 = vmul.f32 %v675, 1.442695
  %v778 = vpow.pop %v777
  %v779 = vmul.f32 %v676, 1.442695
  %v780 = vpow.pop %v779
  %v781 = vmul.f32 %v677, 1.442695
  %v782 = vpow.pop %v781
  %v783 = vmul.f32 %v678, 1.442695
  %v784 = vpow.pop %v783
  %v785 = vmul.f32 %v679, 1.442695
  %v786 = vpow.pop %v785
  %v787 = vmul.f32 %v680, 1.442695
  %v788 = vpow.pop %v787
  %v789 = vmul.f32 %v681, 1.442695
  %v790 = vpow.pop %v789
  %v791 = vmul.f32 %v682, 1.442695
  %v792 = vpow.pop %v791
  %v793 = vmul.f32 %v683, 1.442695
  %v794 = vpow.pop %v793
  %v795 = vmul.f32 %v684, 1.442695
  %v796 = vpow.pop %v795
  %v797 = vmul.f32 %v685, 1.442695
  %v798 = vpow.pop %v797
  %v799 = vmul.f32 %v686, 1.442695
  %v800 = vpow.pop %v799
  %v801 = vmul.f32 %v687, 1.442695
  %v802 = vpow.pop %v801
  %v803 = vmul.f32 %v688, 1.442695
  %v804 = vpow.pop %v803
  %v805 = vmul.f32 %v689, 1.442695
  %v806 = vpow.pop %v805
  %v807 = vmul.f32 %v690, 1.442695
  %v808 = vpow.pop %v807
  %v809 = vmul.f32 %v691, 1.442695
  %v810 = vpow.pop %v809
  %v811 = vmul.f32 %v692, 1.442695
  %v812 = vpow.pop %v811
  %v813 = vmul.f32 %v693, 1.442695
  %v814 = vpow.pop %v813
  %v815 = vmul.f32 %v694, 1.442695
  %v816 = vpow.pop %v815
  %v817 = vmul.f32 %v695, 1.442695
  %v818 = vpow.pop %v817
  %v819 = vmul.f32 %v696, 1.442695
  %v820 = vpow.pop %v819
  %v821 = vmul.f32 %v697, 1.442695
  %v822 = vpow.pop %v821
  %v823 = vmul.f32 %v698, 1.442695
  %v824 = vpow.pop %v823
  %v825 = vmul.f32 %v699, 1.442695
  %v826 = vpow.pop %v825
  %v827 = vmul.f32 %v700, 1.442695
  %v828 = vpow.pop %v827
  %v829 = vadd.f32 %v702, 1.0
  %v830 = vadd.f32 %v704, 1.0
  %v831 = vadd.f32 %v706, 1.0
  %v832 = vadd.f32 %v708, 1.0
  %v833 = vadd.f32 %v710, 1.0
  %v834 = vadd.f32 %v712, 1.0
  %v835 = vadd.f32 %v714, 1.0
  %v836 = vadd.f32 %v716, 1.0
  %v837 = vadd.f32 %v718, 1.0
  %v838 = vadd.f32 %v720, 1.0
  %v839 = vadd.f32 %v722, 1.0
  %v840 = vadd.f32 %v724, 1.0
  %v841 = vadd.f32 %v726, 1.0
  %v842 = vadd.f32 %v728, 1.0
  %v843 = vadd.f32 %v730, 1.0
  %v844 = vadd.f32 %v732, 1.0
  %v845 = vadd.f32 %v734, 1.0
  %v846 = vadd.f32 %v736, 1.0
  %v847 = vadd.f32 %v738, 1.0
  %v848 = vadd.f32 %v740, 1.0
  %v849 = vadd.f32 %v742, 1.0
  %v850 = vadd.f32 %v744, 1.0
  %v851 = vadd.f32 %v746, 1.0
  %v852 = vadd.f32 %v748, 1.0
  %v853 = vadd.f32 %v750, 1.0
  %v854 = vadd.f32 %v752, 1.0
  %v855 = vadd.f32 %v754, 1.0
  %v856 = vadd.f32 %v756, 1.0
  %v857 = vadd.f32 %v758, 1.0
  %v858 = vadd.f32 %v760, 1.0
  %v859 = vadd.f32 %v762, 1.0
  %v860 = vadd.f32 %v764, 1.0
  %v861 = vadd.f32 %v766, 1.0
  %v862 = vadd.f32 %v768, 1.0
  %v863 = vadd.f32 %v770, 1.0
  %v864 = vadd.f32 %v772, 1.0
  %v865 = vadd.f32 %v774, 1.0
  %v866 = vadd.f32 %v776, 1.0
  %v867 = vadd.f32 %v778, 1.0
  %v868 = vadd.f32 %v780, 1.0
  %v869 = vadd.f32 %v782, 1.0
  %v870 = vadd.f32 %v784, 1.0
  %v871 = vadd.f32 %v786, 1.0
  %v872 = vadd.f32 %v788, 1.0
  %v873 = vadd.f32 %v790, 1.0
  %v874 = vadd.f32 %v792, 1.0
  %v875 = vadd.f32 %v794, 1.0
  %v876 = vadd.f32 %v796, 1.0
  %v877 = vadd.f32 %v798, 1.0
  %v878 = vadd.f32 %v800, 1.0
  %v879 = vadd.f32 %v802, 1.0
  %v880 = vadd.f32 %v804, 1.0
  %v881 = vadd.f32 %v806, 1.0
  %v882 = vadd.f32 %v808, 1.0
  %v883 = vadd.f32 %v810, 1.0
  %v884 = vadd.f32 %v812, 1.0
  %v885 = vadd.f32 %v814, 1.0
  %v886 = vadd.f32 %v816, 1.0
  %v887 = vadd.f32 %v818, 1.0
  %v888 = vadd.f32 %v820, 1.0
  %v889 = vadd.f32 %v822, 1.0
  %v890 = vadd.f32 %v824, 1.0
  %v891 = vadd.f32 %v826, 1.0
  %v892 = vadd.f32 %v828, 1.0
  %v893 = vrcp.pop %v829
  %v894 = vmul.f32 1.0, %v893
  %v895 = vrcp.pop %v830
  %v896 = vmul.f32 1.0, %v895
  %v897 = vrcp.pop %v831
  %v898 = vmul.f32 1.0, %v897
  %v899 = vrcp.pop %v832
  %v900 = vmul.f32 1.0, %v899
  %v901 = vrcp.pop %v833
  %v902 = vmul.f32 1.0, %v901
  %v903 = vrcp.pop %v834
  %v904 = vmul.f32 1.0, %v903
  %v905 = vrcp.pop %v835
  %v906 = vmul.f32 1.0, %v905
  %v907 = vrcp.pop %v836
  %v908 = vmul.f32 1.0, %v907
  %v909 = vrcp.pop %v837
  %v910 = vmul.f32 1.0, %v909
  %v911 = vrcp.pop %v838
  %v912 = vmul.f32 1.0, %v911
  %v913 = vrcp.pop %v839
  %v914 = vmul.f32 1.0, %v913
  %v915 = vrcp.pop %v840
  %v916 = vmul.f32 1.0, %v915
  %v917 = vrcp.pop %v841
  %v918 = vmul.f32 1.0, %v917
  %v919 = vrcp.pop %v842
  %v920 = vmul.f32 1.0, %v919
  %v921 = vrcp.pop %v843
  %v922 = vmul.f32 1.0, %v921
  %v923 = vrcp.pop %v844
  %v924 = vmul.f32 1.0, %v923
  %v925 = vrcp.pop %v845
  %v926 = vmul.f32 1.0, %v925
  %v927 = vrcp.pop %v846
  %v928 = vmul.f32 1.0, %v927
  %v929 = vrcp.pop %v847
  %v930 = vmul.f32 1.0, %v929
  %v931 = vrcp.pop %v848
  %v932 = vmul.f32 1.0, %v931
  %v933 = vrcp.pop %v849
  %v934 = vmul.f32 1.0, %v933
  %v935 = vrcp.pop %v850
  %v936 = vmul.f32 1.0, %v935
  %v937 = vrcp.pop %v851
  %v938 = vmul.f32 1.0, %v937
  %v939 = vrcp.pop %v852
  %v940 = vmul.f32 1.0, %v939
  %v941 = vrcp.pop %v853
  %v942 = vmul.f32 1.0, %v941
  %v943 = vrcp.pop %v854
  %v944 = vmul.f32 1.0, %v943
  %v945 = vrcp.pop %v855
  %v946 = vmul.f32 1.0, %v945
  %v947 = vrcp.pop %v856
  %v948 = vmul.f32 1.0, %v947
  %v949 = vrcp.pop %v857
  %v950 = vmul.f32 1.0, %v949
  %v951 = vrcp.pop %v858
  %v952 = vmul.f32 1.0, %v951
  %v953 = vrcp.pop %v859
  %v954 = vmul.f32 1.0, %v953
  %v955 = vrcp.pop %v860
  %v956 = vmul.f32 1.0, %v955
  %v957 = vrcp.pop %v861
  %v958 = vmul.f32 1.0, %v957
  %v959 = vrcp.pop %v862
  %v960 = vmul.f32 1.0, %v959
  %v961 = vrcp.pop %v863
  %v962 = vmul.f32 1.0, %v961
  %v963 = vrcp.pop %v864
  %v964 = vmul.f32 1.0, %v963
  %v965 = vrcp.pop %v865
  %v966 = vmul.f32 1.0, %v965
  %v967 = vrcp.pop %v866
  %v968 = vmul.f32 1.0, %v967
  %v969 = vrcp.pop %v867
  %v970 = vmul.f32 1.0, %v969
  %v971 = vrcp.pop %v868
  %v972 = vmul.f32 1.0, %v971
  %v973 = vrcp.pop %v869
  %v974 = vmul.f32 1.0, %v973
  %v975 = vrcp.pop %v870
  %v976 = vmul.f32 1.0, %v975
  %v977 = vrcp.pop %v871
  %v978 = vmul.f32 1.0, %v977
  %v979 = vrcp.pop %v872
  %v980 = vmul.f32 1.0, %v979
  %v981 = vrcp.pop %v873
  %v982 = vmul.f32 1.0, %v981
  %v983 = vrcp.pop %v874
  %v984 = vmul.f32 1.0, %v983
  %v985 = vrcp.pop %v875
  %v986 = vmul.f32 1.0, %v985
  %v987 = vrcp.pop %v876
  %v988 = vmul.f32 1.0, %v987
  %v989 = vrcp.pop %v877
  %v990 = vmul.f32 1.0, %v989
  %v991 = vrcp.pop %v878
  %v992 = vmul.f32 1.0, %v991
  %v993 = vrcp.pop %v879
  %v994 = vmul.f32 1.0, %v993
  %v995 = vrcp.pop %v880
  %v996 = vmul.f32 1.0, %v995
  %v997 = vrcp.pop %v881
  %v998 = vmul.f32 1.0, %v997
  %v999 = vrcp.pop %v882
  %v1000 = vmul.f32 1.0, %v999
  %v1001 = vrcp.pop %v883
  %v1002 = vmul.f32 1.0, %v1001
  %v1003 = vrcp.pop %v884
  %v1004 = vmul.f32 1.0, %v1003
  %v1005 = vrcp.pop %v885
  %v1006 = vmul.f32 1.0, %v1005
  %v1007 = vrcp.pop %v886
  %v1008 = vmul.f32 1.0, %v1007
  %v1009 = vrcp.pop %v887
  %v1010 = vmul.f32 1.0, %v1009
  %v1011 = vrcp.pop %v888
  %v1012 = vmul.f32 1.0, %v1011
  %v1013 = vrcp.pop %v889
  %v1014 = vmul.f32 1.0, %v1013
  %v1015 = vrcp.pop %v890
  %v1016 = vmul.f32 1.0, %v1015
  %v1017 = vrcp.pop %v891
  %v1018 = vmul.f32 1.0, %v1017
  %v1019 = vrcp.pop %v892
  %v1020 = vmul.f32 1.0, %v1019
  %v1021 = vmul.f32 %v383, %v894
  %v1022 = vmul.f32 %v386, %v896
  %v1023 = vmul.f32 %v391, %v898
  %v1024 = vmul.f32 %v394, %v900
  %v1025 = vmul.f32 %v399, %v902
  %v1026 = vmul.f32 %v402, %v904
  %v1027 = vmul.f32 %v407, %v906
  %v1028 = vmul.f32 %v410, %v908
  %v1029 = vmul.f32 %v415, %v910
  %v1030 = vmul.f32 %v418, %v912
  %v1031 = vmul.f32 %v423, %v914
  %v1032 = vmul.f32 %v426, %v916
  %v1033 = vmul.f32 %v431, %v918
  %v1034 = vmul.f32 %v434, %v920
  %v1035 = vmul.f32 %v439, %v922
  %v1036 = vmul.f32 %v442, %v924
  %v1037 = vmul.f32 %v447, %v926
  %v1038 = vmul.f32 %v450, %v928
  %v1039 = vmul.f32 %v455, %v930
  %v1040 = vmul.f32 %v458, %v932
  %v1041 = vmul.f32 %v463, %v934
  %v1042 = vmul.f32 %v466, %v936
  %v1043 = vmul.f32 %v471, %v938
  %v1044 = vmul.f32 %v474, %v940
  %v1045 = vmul.f32 %v479, %v942
  %v1046 = vmul.f32 %v482, %v944
  %v1047 = vmul.f32 %v487, %v946
  %v1048 = vmul.f32 %v490, %v948
  %v1049 = vmul.f32 %v495, %v950
  %v1050 = vmul.f32 %v498, %v952
  %v1051 = vmul.f32 %v503, %v954
  %v1052 = vmul.f32 %v506, %v956
  %v1053 = vmul.f32 %v511, %v958
  %v1054 = vmul.f32 %v514, %v960
  %v1055 = vmul.f32 %v519, %v962
  %v1056 = vmul.f32 %v522, %v964
  %v1057 = vmul.f32 %v527, %v966
  %v1058 = vmul.f32 %v530, %v968
  %v1059 = vmul.f32 %v535, %v970
  %v1060 = vmul.f32 %v538, %v972
  %v1061 = vmul.f32 %v543, %v974
  %v1062 = vmul.f32 %v546, %v976
  %v1063 = vmul.f32 %v551, %v978
  %v1064 = vmul.f32 %v554, %v980
  %v1065 = vmul.f32 %v559, %v982
  %v1066 = vmul.f32 %v562, %v984
  %v1067 = vmul.f32 %v567, %v986
  %v1068 = vmul.f32 %v570, %v988
  %v1069 = vmul.f32 %v575, %v990
  %v1070 = vmul.f32 %v578, %v992
  %v1071 = vmul.f32 %v583, %v994
  %v1072 = vmul.f32 %v586, %v996
  %v1073 = vmul.f32 %v591, %v998
  %v1074 = vmul.f32 %v594, %v1000
  %v1075 = vmul.f32 %v599, %v1002
  %v1076 = vmul.f32 %v602, %v1004
  %v1077 = vmul.f32 %v607, %v1006
  %v1078 = vmul.f32 %v610, %v1008
  %v1079 = vmul.f32 %v615, %v1010
  %v1080 = vmul.f32 %v618, %v1012
  %v1081 = vmul.f32 %v623, %v1014
  %v1082 = vmul.f32 %v626, %v1016
  %v1083 = vmul.f32 %v631, %v1018
  %v1084 = vmul.f32 %v634, %v1020
  %v1085 = vpack.c.bf16 %v1022, %v1021
  %v1086 = vpack.c.bf16 %v1024, %v1023
  %v1087 = vpack.c.bf16 %v1026, %v1025
  %v1088 = vpack.c.bf16 %v1028, %v1027
  %v1089 = vpack.c.bf16 %v1030, %v1029
  %v1090 = vpack.c.bf16 %v1032, %v1031
  %v1091 = vpack.c.bf16 %v1034, %v1033
  %v1092 = vpack.c.bf16 %v1036, %v1035
  %v1093 = vpack.c.bf16 %v1038, %v1037
  %v1094 = vpack.c.bf16 %v1040, %v1039
  %v1095 = vpack.c.bf16 %v1042, %v1041
  %v1096 = vpack.c.bf16 %v1044, %v1043
  %v1097 = vpack.c.bf16 %v1046, %v1045
  %v1098 = vpack.c.bf16 %v1048, %v1047
  %v1099 = vpack.c.bf16 %v1050, %v1049
  %v1100 = vpack.c.bf16 %v1052, %v1051
  %v1101 = vpack.c.bf16 %v1054, %v1053
  %v1102 = vpack.c.bf16 %v1056, %v1055
  %v1103 = vpack.c.bf16 %v1058, %v1057
  %v1104 = vpack.c.bf16 %v1060, %v1059
  %v1105 = vpack.c.bf16 %v1062, %v1061
  %v1106 = vpack.c.bf16 %v1064, %v1063
  %v1107 = vpack.c.bf16 %v1066, %v1065
  %v1108 = vpack.c.bf16 %v1068, %v1067
  %v1109 = vpack.c.bf16 %v1070, %v1069
  %v1110 = vpack.c.bf16 %v1072, %v1071
  %v1111 = vpack.c.bf16 %v1074, %v1073
  %v1112 = vpack.c.bf16 %v1076, %v1075
  %v1113 = vpack.c.bf16 %v1078, %v1077
  %v1114 = vpack.c.bf16 %v1080, %v1079
  %v1115 = vpack.c.bf16 %v1082, %v1081
  %v1116 = vpack.c.bf16 %v1084, %v1083
  %v1149 = vunpack.c.l.b16 %v1085
  %v1150 = vunpack.c.h.b16 %v1085
  %v1151 = vunpack.c.l.b16 %v1086
  %v1152 = vunpack.c.h.b16 %v1086
  %v1153 = vunpack.c.l.b16 %v1087
  %v1154 = vunpack.c.h.b16 %v1087
  %v1155 = vunpack.c.l.b16 %v1088
  %v1156 = vunpack.c.h.b16 %v1088
  %v1157 = vunpack.c.l.b16 %v1089
  %v1158 = vunpack.c.h.b16 %v1089
  %v1159 = vunpack.c.l.b16 %v1090
  %v1160 = vunpack.c.h.b16 %v1090
  %v1161 = vunpack.c.l.b16 %v1091
  %v1162 = vunpack.c.h.b16 %v1091
  %v1163 = vunpack.c.l.b16 %v1092
  %v1164 = vunpack.c.h.b16 %v1092
  %v1165 = vunpack.c.l.b16 %v1093
  %v1166 = vunpack.c.h.b16 %v1093
  %v1167 = vunpack.c.l.b16 %v1094
  %v1168 = vunpack.c.h.b16 %v1094
  %v1169 = vunpack.c.l.b16 %v1095
  %v1170 = vunpack.c.h.b16 %v1095
  %v1171 = vunpack.c.l.b16 %v1096
  %v1172 = vunpack.c.h.b16 %v1096
  %v1173 = vunpack.c.l.b16 %v1097
  %v1174 = vunpack.c.h.b16 %v1097
  %v1175 = vunpack.c.l.b16 %v1098
  %v1176 = vunpack.c.h.b16 %v1098
  %v1177 = vunpack.c.l.b16 %v1099
  %v1178 = vunpack.c.h.b16 %v1099
  %v1179 = vunpack.c.l.b16 %v1100
  %v1180 = vunpack.c.h.b16 %v1100
  %v1181 = vunpack.c.l.b16 %v1101
  %v1182 = vunpack.c.h.b16 %v1101
  %v1183 = vunpack.c.l.b16 %v1102
  %v1184 = vunpack.c.h.b16 %v1102
  %v1185 = vunpack.c.l.b16 %v1103
  %v1186 = vunpack.c.h.b16 %v1103
  %v1187 = vunpack.c.l.b16 %v1104
  %v1188 = vunpack.c.h.b16 %v1104
  %v1189 = vunpack.c.l.b16 %v1105
  %v1190 = vunpack.c.h.b16 %v1105
  %v1191 = vunpack.c.l.b16 %v1106
  %v1192 = vunpack.c.h.b16 %v1106
  %v1193 = vunpack.c.l.b16 %v1107
  %v1194 = vunpack.c.h.b16 %v1107
  %v1195 = vunpack.c.l.b16 %v1108
  %v1196 = vunpack.c.h.b16 %v1108
  %v1197 = vunpack.c.l.b16 %v1109
  %v1198 = vunpack.c.h.b16 %v1109
  %v1199 = vunpack.c.l.b16 %v1110
  %v1200 = vunpack.c.h.b16 %v1110
  %v1201 = vunpack.c.l.b16 %v1111
  %v1202 = vunpack.c.h.b16 %v1111
  %v1203 = vunpack.c.l.b16 %v1112
  %v1204 = vunpack.c.h.b16 %v1112
  %v1205 = vunpack.c.l.b16 %v1113
  %v1206 = vunpack.c.h.b16 %v1113
  %v1207 = vunpack.c.l.b16 %v1114
  %v1208 = vunpack.c.h.b16 %v1114
  %v1209 = vunpack.c.l.b16 %v1115
  %v1210 = vunpack.c.h.b16 %v1115
  %v1211 = vunpack.c.l.b16 %v1116
  %v1212 = vunpack.c.h.b16 %v1116
  %v1213 = vpack.c.b16 %v1149, %v1149
  %v1214 = vpack.c.b16 %v1150, %v1150
  %v1215 = vpack.c.b16 %v1151, %v1151
  %v1216 = vpack.c.b16 %v1152, %v1152
  %v1217 = vpack.c.b16 %v1153, %v1153
  %v1218 = vpack.c.b16 %v1154, %v1154
  %v1219 = vpack.c.b16 %v1155, %v1155
  %v1220 = vpack.c.b16 %v1156, %v1156
  %v1221 = vpack.c.b16 %v1157, %v1157
  %v1222 = vpack.c.b16 %v1158, %v1158
  %v1223 = vpack.c.b16 %v1159, %v1159
  %v1224 = vpack.c.b16 %v1160, %v1160
  %v1225 = vpack.c.b16 %v1161, %v1161
  %v1226 = vpack.c.b16 %v1162, %v1162
  %v1227 = vpack.c.b16 %v1163, %v1163
  %v1228 = vpack.c.b16 %v1164, %v1164
  %v1229 = vpack.c.b16 %v1165, %v1165
  %v1230 = vpack.c.b16 %v1166, %v1166
  %v1231 = vpack.c.b16 %v1167, %v1167
  %v1232 = vpack.c.b16 %v1168, %v1168
  %v1233 = vpack.c.b16 %v1169, %v1169
  %v1234 = vpack.c.b16 %v1170, %v1170
  %v1235 = vpack.c.b16 %v1171, %v1171
  %v1236 = vpack.c.b16 %v1172, %v1172
  %v1237 = vpack.c.b16 %v1173, %v1173
  %v1238 = vpack.c.b16 %v1174, %v1174
  %v1239 = vpack.c.b16 %v1175, %v1175
  %v1240 = vpack.c.b16 %v1176, %v1176
  %v1241 = vpack.c.b16 %v1177, %v1177
  %v1242 = vpack.c.b16 %v1178, %v1178
  %v1243 = vpack.c.b16 %v1179, %v1179
  %v1244 = vpack.c.b16 %v1180, %v1180
  %v1245 = vpack.c.b16 %v1181, %v1181
  %v1246 = vpack.c.b16 %v1182, %v1182
  %v1247 = vpack.c.b16 %v1183, %v1183
  %v1248 = vpack.c.b16 %v1184, %v1184
  %v1249 = vpack.c.b16 %v1185, %v1185
  %v1250 = vpack.c.b16 %v1186, %v1186
  %v1251 = vpack.c.b16 %v1187, %v1187
  %v1252 = vpack.c.b16 %v1188, %v1188
  %v1253 = vpack.c.b16 %v1189, %v1189
  %v1254 = vpack.c.b16 %v1190, %v1190
  %v1255 = vpack.c.b16 %v1191, %v1191
  %v1256 = vpack.c.b16 %v1192, %v1192
  %v1257 = vpack.c.b16 %v1193, %v1193
  %v1258 = vpack.c.b16 %v1194, %v1194
  %v1259 = vpack.c.b16 %v1195, %v1195
  %v1260 = vpack.c.b16 %v1196, %v1196
  %v1261 = vpack.c.b16 %v1197, %v1197
  %v1262 = vpack.c.b16 %v1198, %v1198
  %v1263 = vpack.c.b16 %v1199, %v1199
  %v1264 = vpack.c.b16 %v1200, %v1200
  %v1265 = vpack.c.b16 %v1201, %v1201
  %v1266 = vpack.c.b16 %v1202, %v1202
  %v1267 = vpack.c.b16 %v1203, %v1203
  %v1268 = vpack.c.b16 %v1204, %v1204
  %v1269 = vpack.c.b16 %v1205, %v1205
  %v1270 = vpack.c.b16 %v1206, %v1206
  %v1271 = vpack.c.b16 %v1207, %v1207
  %v1272 = vpack.c.b16 %v1208, %v1208
  %v1273 = vpack.c.b16 %v1209, %v1209
  %v1274 = vpack.c.b16 %v1210, %v1210
  %v1275 = vpack.c.b16 %v1211, %v1211
  %v1276 = vpack.c.b16 %v1212, %v1212
  %vm1341 = vcmask 27648
  %1342 = vst.msk [vmem:[%s3] sm:$0xf] %vm1341, %v1213
  %1343 = vst.msk [vmem:[%s3 + $0x4] sm:$0xf] %vm1341, %v1214
  %1344 = vst.msk [vmem:[%s3 + $0x8] sm:$0xf] %vm1341, %v1215
  %1345 = vst.msk [vmem:[%s3 + $0xc] sm:$0xf] %vm1341, %v1216
  %1346 = vst.msk [vmem:[%s3 + $0x10] sm:$0xf] %vm1341, %v1217
  %1347 = vst.msk [vmem:[%s3 + $0x14] sm:$0xf] %vm1341, %v1218
  %1348 = vst.msk [vmem:[%s3 + $0x18] sm:$0xf] %vm1341, %v1219
  %1349 = vst.msk [vmem:[%s3 + $0x1c] sm:$0xf] %vm1341, %v1220
  %1350 = vst.msk [vmem:[%s3 + $0x20] sm:$0xf] %vm1341, %v1221
  %1351 = vst.msk [vmem:[%s3 + $0x24] sm:$0xf] %vm1341, %v1222
  %1352 = vst.msk [vmem:[%s3 + $0x28] sm:$0xf] %vm1341, %v1223
  %1353 = vst.msk [vmem:[%s3 + $0x2c] sm:$0xf] %vm1341, %v1224
  %1354 = vst.msk [vmem:[%s3 + $0x30] sm:$0xf] %vm1341, %v1225
  %1355 = vst.msk [vmem:[%s3 + $0x34] sm:$0xf] %vm1341, %v1226
  %1356 = vst.msk [vmem:[%s3 + $0x38] sm:$0xf] %vm1341, %v1227
  %1357 = vst.msk [vmem:[%s3 + $0x3c] sm:$0xf] %vm1341, %v1228
  %1358 = vst.msk [vmem:[%s3 + $0x40] sm:$0xf] %vm1341, %v1229
  %1359 = vst.msk [vmem:[%s3 + $0x44] sm:$0xf] %vm1341, %v1230
  %1360 = vst.msk [vmem:[%s3 + $0x48] sm:$0xf] %vm1341, %v1231
  %1361 = vst.msk [vmem:[%s3 + $0x4c] sm:$0xf] %vm1341, %v1232
  %1362 = vst.msk [vmem:[%s3 + $0x50] sm:$0xf] %vm1341, %v1233
  %1363 = vst.msk [vmem:[%s3 + $0x54] sm:$0xf] %vm1341, %v1234
  %1364 = vst.msk [vmem:[%s3 + $0x58] sm:$0xf] %vm1341, %v1235
  %1365 = vst.msk [vmem:[%s3 + $0x5c] sm:$0xf] %vm1341, %v1236
  %1366 = vst.msk [vmem:[%s3 + $0x60] sm:$0xf] %vm1341, %v1237
  %1367 = vst.msk [vmem:[%s3 + $0x64] sm:$0xf] %vm1341, %v1238
  %1368 = vst.msk [vmem:[%s3 + $0x68] sm:$0xf] %vm1341, %v1239
  %1369 = vst.msk [vmem:[%s3 + $0x6c] sm:$0xf] %vm1341, %v1240
  %1370 = vst.msk [vmem:[%s3 + $0x70] sm:$0xf] %vm1341, %v1241
  %1371 = vst.msk [vmem:[%s3 + $0x74] sm:$0xf] %vm1341, %v1242
  %1372 = vst.msk [vmem:[%s3 + $0x78] sm:$0xf] %vm1341, %v1243
  %1373 = vst.msk [vmem:[%s3 + $0x7c] sm:$0xf] %vm1341, %v1244
  %1374 = vst.msk [vmem:[%s3 + $0x80] sm:$0xf] %vm1341, %v1245
  %1375 = vst.msk [vmem:[%s3 + $0x84] sm:$0xf] %vm1341, %v1246
  %1376 = vst.msk [vmem:[%s3 + $0x88] sm:$0xf] %vm1341, %v1247
  %1377 = vst.msk [vmem:[%s3 + $0x8c] sm:$0xf] %vm1341, %v1248
  %1378 = vst.msk [vmem:[%s3 + $0x90] sm:$0xf] %vm1341, %v1249
  %1379 = vst.msk [vmem:[%s3 + $0x94] sm:$0xf] %vm1341, %v1250
  %1380 = vst.msk [vmem:[%s3 + $0x98] sm:$0xf] %vm1341, %v1251
  %1381 = vst.msk [vmem:[%s3 + $0x9c] sm:$0xf] %vm1341, %v1252
  %1382 = vst.msk [vmem:[%s3 + $0xa0] sm:$0xf] %vm1341, %v1253
  %1383 = vst.msk [vmem:[%s3 + $0xa4] sm:$0xf] %vm1341, %v1254
  %1384 = vst.msk [vmem:[%s3 + $0xa8] sm:$0xf] %vm1341, %v1255
  %1385 = vst.msk [vmem:[%s3 + $0xac] sm:$0xf] %vm1341, %v1256
  %1386 = vst.msk [vmem:[%s3 + $0xb0] sm:$0xf] %vm1341, %v1257
  %1387 = vst.msk [vmem:[%s3 + $0xb4] sm:$0xf] %vm1341, %v1258
  %1388 = vst.msk [vmem:[%s3 + $0xb8] sm:$0xf] %vm1341, %v1259
  %1389 = vst.msk [vmem:[%s3 + $0xbc] sm:$0xf] %vm1341, %v1260
  %1390 = vst.msk [vmem:[%s3 + $0xc0] sm:$0xf] %vm1341, %v1261
  %1391 = vst.msk [vmem:[%s3 + $0xc4] sm:$0xf] %vm1341, %v1262
  %1392 = vst.msk [vmem:[%s3 + $0xc8] sm:$0xf] %vm1341, %v1263
  %1393 = vst.msk [vmem:[%s3 + $0xcc] sm:$0xf] %vm1341, %v1264
  %1394 = vst.msk [vmem:[%s3 + $0xd0] sm:$0xf] %vm1341, %v1265
  %1395 = vst.msk [vmem:[%s3 + $0xd4] sm:$0xf] %vm1341, %v1266
  %1396 = vst.msk [vmem:[%s3 + $0xd8] sm:$0xf] %vm1341, %v1267
  %1397 = vst.msk [vmem:[%s3 + $0xdc] sm:$0xf] %vm1341, %v1268
  %1398 = vst.msk [vmem:[%s3 + $0xe0] sm:$0xf] %vm1341, %v1269
  %1399 = vst.msk [vmem:[%s3 + $0xe4] sm:$0xf] %vm1341, %v1270
  %1400 = vst.msk [vmem:[%s3 + $0xe8] sm:$0xf] %vm1341, %v1271
  %1401 = vst.msk [vmem:[%s3 + $0xec] sm:$0xf] %vm1341, %v1272
  %1402 = vst.msk [vmem:[%s3 + $0xf0] sm:$0xf] %vm1341, %v1273
  %1403 = vst.msk [vmem:[%s3 + $0xf4] sm:$0xf] %vm1341, %v1274
  %1404 = vst.msk [vmem:[%s3 + $0xf8] sm:$0xf] %vm1341, %v1275
  %1405 = vst.msk [vmem:[%s3 + $0xfc] sm:$0xf] %vm1341, %v1276
  // Predicated region
  $region14: #{c2f_forward.3} parent=0 // pred_check
    _
  $region15: #{c2f_forward.3} parent=0 // pred_check_branch
    %1407 = sbr.rel (0) target = $region17
  $region16: #{c2f_forward.3} parent=0 // pred_region
    _
  $region17: #{c2f_forward.3} parent=0 // pred_fallthru
    _
  // Predicated region
  $region18: #{c2f_forward.3} parent=0 // pred_check
    _
  $region19: #{c2f_forward.3} parent=0 // pred_check_branch
    %1409 = sbr.rel (0) target = $region21
  $region20: #{c2f_forward.3} parent=0 // pred_region
    _
  $region21: #{c2f_forward.3} parent=0 // pred_fallthru
    _

// kernel: c2f_forward.5
$region0: #{c2f_forward.5}
  #allocation0 [shape = 'u32[]', space=smem, size = 0x4, offset = 0x4, fixed_abs, tag = 'smem constant byte address 0x4 - core index']
  #allocation1 [shape = 'u32[144,128]{1,0:T(1,128)}', space=vmem, size = 0x12000, scoped, tag = 'internal scratch']
  %s0 = inlined_call_operand.vmem [shape: bf16[512,4], index: 0, kind: input, shape index: {}]
  %s1 = inlined_call_operand.vmem [shape: bf16[512,2], index: 1, kind: input, shape index: {}]
  %s2 = inlined_call_operand.vmem [shape: bf16[4,4], index: 2, kind: input, shape index: {}]
  %s3 = inlined_call_operand.vmem [shape: bf16[2,4], index: 3, kind: input, shape index: {}]
  %s4 = inlined_call_operand.vmem [shape: f32[1,4], index: 4, kind: input, shape index: {}]
  %s5 = inlined_call_operand.vmem [shape: f32[512,4], index: 5, kind: output, shape index: {}]
  %s6 = sld [smem:[#allocation0]]
  $region30: #{c2f_forward.5} parent=0
    _
  %s8 = ssub.s32 1, %s6
  %s9 = scalar_select 0, %s8, %s6
  // Predicated region
  $region2: #{c2f_forward.5} parent=0 // pred_check
    _
  $region3: #{c2f_forward.5} parent=0 // pred_check_branch
    %11 = sbr.rel (0) target = $region5
  $region4: #{c2f_forward.5} parent=0 // pred_region
    _
  $region5: #{c2f_forward.5} parent=0 // pred_fallthru
    _
  // Predicated region
  $region6: #{c2f_forward.5} parent=0 // pred_check
    _
  $region7: #{c2f_forward.5} parent=0 // pred_check_branch
    %13 = sbr.rel (0) target = $region9
  $region8: #{c2f_forward.5} parent=0 // pred_region
    _
  $region9: #{c2f_forward.5} parent=0 // pred_fallthru
    _
  // Predicated region
  $region10: #{c2f_forward.5} parent=0 // pred_check
    _
  $region11: #{c2f_forward.5} parent=0 // pred_check_branch
    %15 = sbr.rel (0) target = $region13
  $region12: #{c2f_forward.5} parent=0 // pred_region
    _
  $region13: #{c2f_forward.5} parent=0 // pred_fallthru
    _
  // Predicated region
  $region14: #{c2f_forward.5} parent=0 // pred_check
    _
  $region15: #{c2f_forward.5} parent=0 // pred_check_branch
    %17 = sbr.rel (0) target = $region17
  $region16: #{c2f_forward.5} parent=0 // pred_region
    _
  $region17: #{c2f_forward.5} parent=0 // pred_fallthru
    _
  // Predicated region
  $region18: #{c2f_forward.5} parent=0 // pred_check
    _
  $region19: #{c2f_forward.5} parent=0 // pred_check_branch
    %19 = sbr.rel (0) target = $region21
  $region20: #{c2f_forward.5} parent=0 // pred_region
    _
  $region21: #{c2f_forward.5} parent=0 // pred_fallthru
    _
  %v21 = vld [vmem:[%s0] sm:$0xf]
  %v22 = vld [vmem:[%s0 + $0x4] sm:$0xf]
  %v23 = vld [vmem:[%s0 + $0x8] sm:$0xf]
  %v24 = vld [vmem:[%s0 + $0xc] sm:$0xf]
  %v25 = vld [vmem:[%s0 + $0x10] sm:$0xf]
  %v26 = vld [vmem:[%s0 + $0x14] sm:$0xf]
  %v27 = vld [vmem:[%s0 + $0x18] sm:$0xf]
  %v28 = vld [vmem:[%s0 + $0x1c] sm:$0xf]
  %v29 = vld [vmem:[%s0 + $0x20] sm:$0xf]
  %v30 = vld [vmem:[%s0 + $0x24] sm:$0xf]
  %v31 = vld [vmem:[%s0 + $0x28] sm:$0xf]
  %v32 = vld [vmem:[%s0 + $0x2c] sm:$0xf]
  %v33 = vld [vmem:[%s0 + $0x30] sm:$0xf]
  %v34 = vld [vmem:[%s0 + $0x34] sm:$0xf]
  %v35 = vld [vmem:[%s0 + $0x38] sm:$0xf]
  %v36 = vld [vmem:[%s0 + $0x3c] sm:$0xf]
  %v37 = vld [vmem:[%s0 + $0x40] sm:$0xf]
  %v38 = vld [vmem:[%s0 + $0x44] sm:$0xf]
  %v39 = vld [vmem:[%s0 + $0x48] sm:$0xf]
  %v40 = vld [vmem:[%s0 + $0x4c] sm:$0xf]
  %v41 = vld [vmem:[%s0 + $0x50] sm:$0xf]
  %v42 = vld [vmem:[%s0 + $0x54] sm:$0xf]
  %v43 = vld [vmem:[%s0 + $0x58] sm:$0xf]
  %v44 = vld [vmem:[%s0 + $0x5c] sm:$0xf]
  %v45 = vld [vmem:[%s0 + $0x60] sm:$0xf]
  %v46 = vld [vmem:[%s0 + $0x64] sm:$0xf]
  %v47 = vld [vmem:[%s0 + $0x68] sm:$0xf]
  %v48 = vld [vmem:[%s0 + $0x6c] sm:$0xf]
  %v49 = vld [vmem:[%s0 + $0x70] sm:$0xf]
  %v50 = vld [vmem:[%s0 + $0x74] sm:$0xf]
  %v51 = vld [vmem:[%s0 + $0x78] sm:$0xf]
  %v52 = vld [vmem:[%s0 + $0x7c] sm:$0xf]
  %v53 = vld [vmem:[%s0 + $0x80] sm:$0xf]
  %v54 = vld [vmem:[%s0 + $0x84] sm:$0xf]
  %v55 = vld [vmem:[%s0 + $0x88] sm:$0xf]
  %v56 = vld [vmem:[%s0 + $0x8c] sm:$0xf]
  %v57 = vld [vmem:[%s0 + $0x90] sm:$0xf]
  %v58 = vld [vmem:[%s0 + $0x94] sm:$0xf]
  %v59 = vld [vmem:[%s0 + $0x98] sm:$0xf]
  %v60 = vld [vmem:[%s0 + $0x9c] sm:$0xf]
  %v61 = vld [vmem:[%s0 + $0xa0] sm:$0xf]
  %v62 = vld [vmem:[%s0 + $0xa4] sm:$0xf]
  %v63 = vld [vmem:[%s0 + $0xa8] sm:$0xf]
  %v64 = vld [vmem:[%s0 + $0xac] sm:$0xf]
  %v65 = vld [vmem:[%s0 + $0xb0] sm:$0xf]
  %v66 = vld [vmem:[%s0 + $0xb4] sm:$0xf]
  %v67 = vld [vmem:[%s0 + $0xb8] sm:$0xf]
  %v68 = vld [vmem:[%s0 + $0xbc] sm:$0xf]
  %v69 = vld [vmem:[%s0 + $0xc0] sm:$0xf]
  %v70 = vld [vmem:[%s0 + $0xc4] sm:$0xf]
  %v71 = vld [vmem:[%s0 + $0xc8] sm:$0xf]
  %v72 = vld [vmem:[%s0 + $0xcc] sm:$0xf]
  %v73 = vld [vmem:[%s0 + $0xd0] sm:$0xf]
  %v74 = vld [vmem:[%s0 + $0xd4] sm:$0xf]
  %v75 = vld [vmem:[%s0 + $0xd8] sm:$0xf]
  %v76 = vld [vmem:[%s0 + $0xdc] sm:$0xf]
  %v77 = vld [vmem:[%s0 + $0xe0] sm:$0xf]
  %v78 = vld [vmem:[%s0 + $0xe4] sm:$0xf]
  %v79 = vld [vmem:[%s0 + $0xe8] sm:$0xf]
  %v80 = vld [vmem:[%s0 + $0xec] sm:$0xf]
  %v81 = vld [vmem:[%s0 + $0xf0] sm:$0xf]
  %v82 = vld [vmem:[%s0 + $0xf4] sm:$0xf]
  %v83 = vld [vmem:[%s0 + $0xf8] sm:$0xf]
  %v84 = vld [vmem:[%s0 + $0xfc] sm:$0xf]
  %v85 = vld [vmem:[%s2] sm:$0x3]
  %v86 = vld [vmem:[%s1] sm:$0xf]
  %v87 = vld [vmem:[%s1 + $0x4] sm:$0xf]
  %v88 = vld [vmem:[%s1 + $0x8] sm:$0xf]
  %v89 = vld [vmem:[%s1 + $0xc] sm:$0xf]
  %v90 = vld [vmem:[%s1 + $0x10] sm:$0xf]
  %v91 = vld [vmem:[%s1 + $0x14] sm:$0xf]
  %v92 = vld [vmem:[%s1 + $0x18] sm:$0xf]
  %v93 = vld [vmem:[%s1 + $0x1c] sm:$0xf]
  %v94 = vld [vmem:[%s1 + $0x20] sm:$0xf]
  %v95 = vld [vmem:[%s1 + $0x24] sm:$0xf]
  %v96 = vld [vmem:[%s1 + $0x28] sm:$0xf]
  %v97 = vld [vmem:[%s1 + $0x2c] sm:$0xf]
  %v98 = vld [vmem:[%s1 + $0x30] sm:$0xf]
  %v99 = vld [vmem:[%s1 + $0x34] sm:$0xf]
  %v100 = vld [vmem:[%s1 + $0x38] sm:$0xf]
  %v101 = vld [vmem:[%s1 + $0x3c] sm:$0xf]
  %v102 = vld [vmem:[%s1 + $0x40] sm:$0xf]
  %v103 = vld [vmem:[%s1 + $0x44] sm:$0xf]
  %v104 = vld [vmem:[%s1 + $0x48] sm:$0xf]
  %v105 = vld [vmem:[%s1 + $0x4c] sm:$0xf]
  %v106 = vld [vmem:[%s1 + $0x50] sm:$0xf]
  %v107 = vld [vmem:[%s1 + $0x54] sm:$0xf]
  %v108 = vld [vmem:[%s1 + $0x58] sm:$0xf]
  %v109 = vld [vmem:[%s1 + $0x5c] sm:$0xf]
  %v110 = vld [vmem:[%s1 + $0x60] sm:$0xf]
  %v111 = vld [vmem:[%s1 + $0x64] sm:$0xf]
  %v112 = vld [vmem:[%s1 + $0x68] sm:$0xf]
  %v113 = vld [vmem:[%s1 + $0x6c] sm:$0xf]
  %v114 = vld [vmem:[%s1 + $0x70] sm:$0xf]
  %v115 = vld [vmem:[%s1 + $0x74] sm:$0xf]
  %v116 = vld [vmem:[%s1 + $0x78] sm:$0xf]
  %v117 = vld [vmem:[%s1 + $0x7c] sm:$0xf]
  %v118 = vld [vmem:[%s1 + $0x80] sm:$0xf]
  %v119 = vld [vmem:[%s1 + $0x84] sm:$0xf]
  %v120 = vld [vmem:[%s1 + $0x88] sm:$0xf]
  %v121 = vld [vmem:[%s1 + $0x8c] sm:$0xf]
  %v122 = vld [vmem:[%s1 + $0x90] sm:$0xf]
  %v123 = vld [vmem:[%s1 + $0x94] sm:$0xf]
  %v124 = vld [vmem:[%s1 + $0x98] sm:$0xf]
  %v125 = vld [vmem:[%s1 + $0x9c] sm:$0xf]
  %v126 = vld [vmem:[%s1 + $0xa0] sm:$0xf]
  %v127 = vld [vmem:[%s1 + $0xa4] sm:$0xf]
  %v128 = vld [vmem:[%s1 + $0xa8] sm:$0xf]
  %v129 = vld [vmem:[%s1 + $0xac] sm:$0xf]
  %v130 = vld [vmem:[%s1 + $0xb0] sm:$0xf]
  %v131 = vld [vmem:[%s1 + $0xb4] sm:$0xf]
  %v132 = vld [vmem:[%s1 + $0xb8] sm:$0xf]
  %v133 = vld [vmem:[%s1 + $0xbc] sm:$0xf]
  %v134 = vld [vmem:[%s1 + $0xc0] sm:$0xf]
  %v135 = vld [vmem:[%s1 + $0xc4] sm:$0xf]
  %v136 = vld [vmem:[%s1 + $0xc8] sm:$0xf]
  %v137 = vld [vmem:[%s1 + $0xcc] sm:$0xf]
  %v138 = vld [vmem:[%s1 + $0xd0] sm:$0xf]
  %v139 = vld [vmem:[%s1 + $0xd4] sm:$0xf]
  %v140 = vld [vmem:[%s1 + $0xd8] sm:$0xf]
  %v141 = vld [vmem:[%s1 + $0xdc] sm:$0xf]
  %v142 = vld [vmem:[%s1 + $0xe0] sm:$0xf]
  %v143 = vld [vmem:[%s1 + $0xe4] sm:$0xf]
  %v144 = vld [vmem:[%s1 + $0xe8] sm:$0xf]
  %v145 = vld [vmem:[%s1 + $0xec] sm:$0xf]
  %v146 = vld [vmem:[%s1 + $0xf0] sm:$0xf]
  %v147 = vld [vmem:[%s1 + $0xf4] sm:$0xf]
  %v148 = vld [vmem:[%s1 + $0xf8] sm:$0xf]
  %v149 = vld [vmem:[%s1 + $0xfc] sm:$0xf]
  %v150 = vld [vmem:[%s3] sm:$0x1]
  %v215 = vunpack.c.l.b16 %v86
  %v216 = vunpack.c.l.b16 %v87
  %v217 = vunpack.c.l.b16 %v88
  %v218 = vunpack.c.l.b16 %v89
  %v219 = vunpack.c.l.b16 %v90
  %v220 = vunpack.c.l.b16 %v91
  %v221 = vunpack.c.l.b16 %v92
  %v222 = vunpack.c.l.b16 %v93
  %v223 = vunpack.c.l.b16 %v94
  %v224 = vunpack.c.l.b16 %v95
  %v225 = vunpack.c.l.b16 %v96
  %v226 = vunpack.c.l.b16 %v97
  %v227 = vunpack.c.l.b16 %v98
  %v228 = vunpack.c.l.b16 %v99
  %v229 = vunpack.c.l.b16 %v100
  %v230 = vunpack.c.l.b16 %v101
  %v231 = vunpack.c.l.b16 %v102
  %v232 = vunpack.c.l.b16 %v103
  %v233 = vunpack.c.l.b16 %v104
  %v234 = vunpack.c.l.b16 %v105
  %v235 = vunpack.c.l.b16 %v106
  %v236 = vunpack.c.l.b16 %v107
  %v237 = vunpack.c.l.b16 %v108
  %v238 = vunpack.c.l.b16 %v109
  %v239 = vunpack.c.l.b16 %v110
  %v240 = vunpack.c.l.b16 %v111
  %v241 = vunpack.c.l.b16 %v112
  %v242 = vunpack.c.l.b16 %v113
  %v243 = vunpack.c.l.b16 %v114
  %v244 = vunpack.c.l.b16 %v115
  %v245 = vunpack.c.l.b16 %v116
  %v246 = vunpack.c.l.b16 %v117
  %v247 = vunpack.c.l.b16 %v118
  %v248 = vunpack.c.l.b16 %v119
  %v249 = vunpack.c.l.b16 %v120
  %v250 = vunpack.c.l.b16 %v121
  %v251 = vunpack.c.l.b16 %v122
  %v252 = vunpack.c.l.b16 %v123
  %v253 = vunpack.c.l.b16 %v124
  %v254 = vunpack.c.l.b16 %v125
  %v255 = vunpack.c.l.b16 %v126
  %v256 = vunpack.c.l.b16 %v127
  %v257 = vunpack.c.l.b16 %v128
  %v258 = vunpack.c.l.b16 %v129
  %v259 = vunpack.c.l.b16 %v130
  %v260 = vunpack.c.l.b16 %v131
  %v261 = vunpack.c.l.b16 %v132
  %v262 = vunpack.c.l.b16 %v133
  %v263 = vunpack.c.l.b16 %v134
  %v264 = vunpack.c.l.b16 %v135
  %v265 = vunpack.c.l.b16 %v136
  %v266 = vunpack.c.l.b16 %v137
  %v267 = vunpack.c.l.b16 %v138
  %v268 = vunpack.c.l.b16 %v139
  %v269 = vunpack.c.l.b16 %v140
  %v270 = vunpack.c.l.b16 %v141
  %v271 = vunpack.c.l.b16 %v142
  %v272 = vunpack.c.l.b16 %v143
  %v273 = vunpack.c.l.b16 %v144
  %v274 = vunpack.c.l.b16 %v145
  %v275 = vunpack.c.l.b16 %v146
  %v276 = vunpack.c.l.b16 %v147
  %v277 = vunpack.c.l.b16 %v148
  %v278 = vunpack.c.l.b16 %v149
  %v279 = vpack.c.b16 %v216, %v215
  %v280 = vpack.c.b16 %v218, %v217
  %v281 = vpack.c.b16 %v220, %v219
  %v282 = vpack.c.b16 %v222, %v221
  %v283 = vpack.c.b16 %v224, %v223
  %v284 = vpack.c.b16 %v226, %v225
  %v285 = vpack.c.b16 %v228, %v227
  %v286 = vpack.c.b16 %v230, %v229
  %v287 = vpack.c.b16 %v232, %v231
  %v288 = vpack.c.b16 %v234, %v233
  %v289 = vpack.c.b16 %v236, %v235
  %v290 = vpack.c.b16 %v238, %v237
  %v291 = vpack.c.b16 %v240, %v239
  %v292 = vpack.c.b16 %v242, %v241
  %v293 = vpack.c.b16 %v244, %v243
  %v294 = vpack.c.b16 %v246, %v245
  %v295 = vpack.c.b16 %v248, %v247
  %v296 = vpack.c.b16 %v250, %v249
  %v297 = vpack.c.b16 %v252, %v251
  %v298 = vpack.c.b16 %v254, %v253
  %v299 = vpack.c.b16 %v256, %v255
  %v300 = vpack.c.b16 %v258, %v257
  %v301 = vpack.c.b16 %v260, %v259
  %v302 = vpack.c.b16 %v262, %v261
  %v303 = vpack.c.b16 %v264, %v263
  %v304 = vpack.c.b16 %v266, %v265
  %v305 = vpack.c.b16 %v268, %v267
  %v306 = vpack.c.b16 %v270, %v269
  %v307 = vpack.c.b16 %v272, %v271
  %v308 = vpack.c.b16 %v274, %v273
  %v309 = vpack.c.b16 %v276, %v275
  %v310 = vpack.c.b16 %v278, %v277
  %vm311 = vcmask 15360
  %v313 = vsel %vm311, %v279, 0
  %v316 = vsel %vm311, %v280, 0
  %v319 = vsel %vm311, %v281, 0
  %v322 = vsel %vm311, %v282, 0
  %v325 = vsel %vm311, %v283, 0
  %v328 = vsel %vm311, %v284, 0
  %v331 = vsel %vm311, %v285, 0
  %v334 = vsel %vm311, %v286, 0
  %v337 = vsel %vm311, %v287, 0
  %v340 = vsel %vm311, %v288, 0
  %v343 = vsel %vm311, %v289, 0
  %v346 = vsel %vm311, %v290, 0
  %v349 = vsel %vm311, %v291, 0
  %v352 = vsel %vm311, %v292, 0
  %v355 = vsel %vm311, %v293, 0
  %v358 = vsel %vm311, %v294, 0
  %v361 = vsel %vm311, %v295, 0
  %v364 = vsel %vm311, %v296, 0
  %v367 = vsel %vm311, %v297, 0
  %v370 = vsel %vm311, %v298, 0
  %v373 = vsel %vm311, %v299, 0
  %v376 = vsel %vm311, %v300, 0
  %v379 = vsel %vm311, %v301, 0
  %v382 = vsel %vm311, %v302, 0
  %v385 = vsel %vm311, %v303, 0
  %v388 = vsel %vm311, %v304, 0
  %v391 = vsel %vm311, %v305, 0
  %v394 = vsel %vm311, %v306, 0
  %v397 = vsel %vm311, %v307, 0
  %v400 = vsel %vm311, %v308, 0
  %v403 = vsel %vm311, %v309, 0
  %v406 = vsel %vm311, %v310, 0
  %vm408 = vcmask 1040384
  %v410 = vsel %vm408, %v150, 0
  %412 = vmatprep.subr.bf16.mxu0 0
  %413 = vmatpush1.bf16.msra.mxu0 0
  %414 = vmatprep.subr.bf16.mxu0 0
  %415 = vmatpush1.bf16.msra.mxu0 0
  %416 = vmatprep.subr.bf16.mxu0 0
  %417 = vmatpush1.bf16.msra.mxu0 0
  %418 = vmatprep.subr.bf16.mxu0 0
  %419 = vmatpush1.bf16.msra.mxu0 0
  %420 = vmatprep.subr.bf16.mxu0 0
  %421 = vmatpush1.bf16.msra.mxu0 0
  %422 = vmatprep.subr.bf16.mxu0 0
  %423 = vmatpush1.bf16.msra.mxu0 0
  %424 = vmatprep.subr.bf16.mxu0 0
  %425 = vmatpush1.bf16.msra.mxu0 0
  %426 = vmatprep.subr.bf16.mxu0 0
  %427 = vmatpush1.bf16.msra.mxu0 %v410
  %428 = vmatprep.subr.bf16.mxu0 0
  %429 = vmatpush2.bf16.msra.mxu0 0
  %430 = vmatprep.subr.bf16.mxu0 0
  %431 = vmatpush2.bf16.msra.mxu0 0
  %432 = vmatprep.subr.bf16.mxu0 0
  %433 = vmatpush2.bf16.msra.mxu0 0
  %434 = vmatprep.subr.bf16.mxu0 0
  %435 = vmatpush2.bf16.msra.mxu0 0
  %436 = vmatprep.subr.bf16.mxu0 0
  %437 = vmatpush2.bf16.msra.mxu0 0
  %438 = vmatprep.subr.bf16.mxu0 0
  %439 = vmatpush2.bf16.msra.mxu0 0
  %440 = vmatprep.subr.bf16.mxu0 0
  %441 = vmatpush2.bf16.msra.mxu0 0
  %442 = vmatprep.subr.bf16.mxu0 0
  %443 = vmatpush2.bf16.msra.mxu0 0
  %444 = vmatprep.mubr.bf16.mxu0 0
  %445 = vmatmul.mubr.bf16.gmra.mxu0 %v313
  %v446 = vpop.f32.mrf.mxu0
  %v447 = vadd.f32 0.0, %v446
  %v448 = vpop.f32.mrf.mxu0
  %v449 = vpop.f32.mrf.mxu0
  %v450 = vadd.f32 0.0, %v449
  %v451 = vpop.f32.mrf.mxu0
  %452 = vmatprep.mubr.bf16.mxu0 0
  %453 = vmatmul.mubr.bf16.gmra.mxu0 %v316
  %v454 = vpop.f32.mrf.mxu0
  %v455 = vadd.f32 0.0, %v454
  %v456 = vpop.f32.mrf.mxu0
  %v457 = vpop.f32.mrf.mxu0
  %v458 = vadd.f32 0.0, %v457
  %v459 = vpop.f32.mrf.mxu0
  %460 = vmatprep.mubr.bf16.mxu0 0
  %461 = vmatmul.mubr.bf16.gmra.mxu0 %v319
  %v462 = vpop.f32.mrf.mxu0
  %v463 = vadd.f32 0.0, %v462
  %v464 = vpop.f32.mrf.mxu0
  %v465 = vpop.f32.mrf.mxu0
  %v466 = vadd.f32 0.0, %v465
  %v467 = vpop.f32.mrf.mxu0
  %468 = vmatprep.mubr.bf16.mxu0 0
  %469 = vmatmul.mubr.bf16.gmra.mxu0 %v322
  %v470 = vpop.f32.mrf.mxu0
  %v471 = vadd.f32 0.0, %v470
  %v472 = vpop.f32.mrf.mxu0
  %v473 = vpop.f32.mrf.mxu0
  %v474 = vadd.f32 0.0, %v473
  %v475 = vpop.f32.mrf.mxu0
  %476 = vmatprep.mubr.bf16.mxu0 0
  %477 = vmatmul.mubr.bf16.gmra.mxu0 %v325
  %v478 = vpop.f32.mrf.mxu0
  %v479 = vadd.f32 0.0, %v478
  %v480 = vpop.f32.mrf.mxu0
  %v481 = vpop.f32.mrf.mxu0
  %v482 = vadd.f32 0.0, %v481
  %v483 = vpop.f32.mrf.mxu0
  %484 = vmatprep.mubr.bf16.mxu0 0
  %485 = vmatmul.mubr.bf16.gmra.mxu0 %v328
  %v486 = vpop.f32.mrf.mxu0
  %v487 = vadd.f32 0.0, %v486
  %v488 = vpop.f32.mrf.mxu0
  %v489 = vpop.f32.mrf.mxu0
  %v490 = vadd.f32 0.0, %v489
  %v491 = vpop.f32.mrf.mxu0
  %492 = vmatprep.mubr.bf16.mxu0 0
  %493 = vmatmul.mubr.bf16.gmra.mxu0 %v331
  %v494 = vpop.f32.mrf.mxu0
  %v495 = vadd.f32 0.0, %v494
  %v496 = vpop.f32.mrf.mxu0
  %v497 = vpop.f32.mrf.mxu0
  %v498 = vadd.f32 0.0, %v497
  %v499 = vpop.f32.mrf.mxu0
  %500 = vmatprep.mubr.bf16.mxu0 0
  %501 = vmatmul.mubr.bf16.gmra.mxu0 %v334
  %v502 = vpop.f32.mrf.mxu0
  %v503 = vadd.f32 0.0, %v502
  %v504 = vpop.f32.mrf.mxu0
  %v505 = vpop.f32.mrf.mxu0
  %v506 = vadd.f32 0.0, %v505
  %v507 = vpop.f32.mrf.mxu0
  %508 = vmatprep.mubr.bf16.mxu0 0
  %509 = vmatmul.mubr.bf16.gmra.mxu0 %v337
  %v510 = vpop.f32.mrf.mxu0
  %v511 = vadd.f32 0.0, %v510
  %v512 = vpop.f32.mrf.mxu0
  %v513 = vpop.f32.mrf.mxu0
  %v514 = vadd.f32 0.0, %v513
  %v515 = vpop.f32.mrf.mxu0
  %516 = vmatprep.mubr.bf16.mxu0 0
  %517 = vmatmul.mubr.bf16.gmra.mxu0 %v340
  %v518 = vpop.f32.mrf.mxu0
  %v519 = vadd.f32 0.0, %v518
  %v520 = vpop.f32.mrf.mxu0
  %v521 = vpop.f32.mrf.mxu0
  %v522 = vadd.f32 0.0, %v521
  %v523 = vpop.f32.mrf.mxu0
  %524 = vmatprep.mubr.bf16.mxu0 0
  %525 = vmatmul.mubr.bf16.gmra.mxu0 %v343
  %v526 = vpop.f32.mrf.mxu0
  %v527 = vadd.f32 0.0, %v526
  %v528 = vpop.f32.mrf.mxu0
  %v529 = vpop.f32.mrf.mxu0
  %v530 = vadd.f32 0.0, %v529
  %v531 = vpop.f32.mrf.mxu0
  %532 = vmatprep.mubr.bf16.mxu0 0
  %533 = vmatmul.mubr.bf16.gmra.mxu0 %v346
  %v534 = vpop.f32.mrf.mxu0
  %v535 = vadd.f32 0.0, %v534
  %v536 = vpop.f32.mrf.mxu0
  %v537 = vpop.f32.mrf.mxu0
  %v538 = vadd.f32 0.0, %v537
  %v539 = vpop.f32.mrf.mxu0
  %540 = vmatprep.mubr.bf16.mxu0 0
  %541 = vmatmul.mubr.bf16.gmra.mxu0 %v349
  %v542 = vpop.f32.mrf.mxu0
  %v543 = vadd.f32 0.0, %v542
  %v544 = vpop.f32.mrf.mxu0
  %v545 = vpop.f32.mrf.mxu0
  %v546 = vadd.f32 0.0, %v545
  %v547 = vpop.f32.mrf.mxu0
  %548 = vmatprep.mubr.bf16.mxu0 0
  %549 = vmatmul.mubr.bf16.gmra.mxu0 %v352
  %v550 = vpop.f32.mrf.mxu0
  %v551 = vadd.f32 0.0, %v550
  %v552 = vpop.f32.mrf.mxu0
  %v553 = vpop.f32.mrf.mxu0
  %v554 = vadd.f32 0.0, %v553
  %v555 = vpop.f32.mrf.mxu0
  %556 = vmatprep.mubr.bf16.mxu0 0
  %557 = vmatmul.mubr.bf16.gmra.mxu0 %v355
  %v558 = vpop.f32.mrf.mxu0
  %v559 = vadd.f32 0.0, %v558
  %v560 = vpop.f32.mrf.mxu0
  %v561 = vpop.f32.mrf.mxu0
  %v562 = vadd.f32 0.0, %v561
  %v563 = vpop.f32.mrf.mxu0
  %564 = vmatprep.mubr.bf16.mxu0 0
  %565 = vmatmul.mubr.bf16.gmra.mxu0 %v358
  %v566 = vpop.f32.mrf.mxu0
  %v567 = vadd.f32 0.0, %v566
  %v568 = vpop.f32.mrf.mxu0
  %v569 = vpop.f32.mrf.mxu0
  %v570 = vadd.f32 0.0, %v569
  %v571 = vpop.f32.mrf.mxu0
  %572 = vmatprep.mubr.bf16.mxu0 0
  %573 = vmatmul.mubr.bf16.gmra.mxu0 %v361
  %v574 = vpop.f32.mrf.mxu0
  %v575 = vadd.f32 0.0, %v574
  %v576 = vpop.f32.mrf.mxu0
  %v577 = vpop.f32.mrf.mxu0
  %v578 = vadd.f32 0.0, %v577
  %v579 = vpop.f32.mrf.mxu0
  %580 = vmatprep.mubr.bf16.mxu0 0
  %581 = vmatmul.mubr.bf16.gmra.mxu0 %v364
  %v582 = vpop.f32.mrf.mxu0
  %v583 = vadd.f32 0.0, %v582
  %v584 = vpop.f32.mrf.mxu0
  %v585 = vpop.f32.mrf.mxu0
  %v586 = vadd.f32 0.0, %v585
  %v587 = vpop.f32.mrf.mxu0
  %588 = vmatprep.mubr.bf16.mxu0 0
  %589 = vmatmul.mubr.bf16.gmra.mxu0 %v367
  %v590 = vpop.f32.mrf.mxu0
  %v591 = vadd.f32 0.0, %v590
  %v592 = vpop.f32.mrf.mxu0
  %v593 = vpop.f32.mrf.mxu0
  %v594 = vadd.f32 0.0, %v593
  %v595 = vpop.f32.mrf.mxu0
  %596 = vmatprep.mubr.bf16.mxu0 0
  %597 = vmatmul.mubr.bf16.gmra.mxu0 %v370
  %v598 = vpop.f32.mrf.mxu0
  %v599 = vadd.f32 0.0, %v598
  %v600 = vpop.f32.mrf.mxu0
  %v601 = vpop.f32.mrf.mxu0
  %v602 = vadd.f32 0.0, %v601
  %v603 = vpop.f32.mrf.mxu0
  %604 = vmatprep.mubr.bf16.mxu0 0
  %605 = vmatmul.mubr.bf16.gmra.mxu0 %v373
  %v606 = vpop.f32.mrf.mxu0
  %v607 = vadd.f32 0.0, %v606
  %v608 = vpop.f32.mrf.mxu0
  %v609 = vpop.f32.mrf.mxu0
  %v610 = vadd.f32 0.0, %v609
  %v611 = vpop.f32.mrf.mxu0
  %612 = vmatprep.mubr.bf16.mxu0 0
  %613 = vmatmul.mubr.bf16.gmra.mxu0 %v376
  %v614 = vpop.f32.mrf.mxu0
  %v615 = vadd.f32 0.0, %v614
  %v616 = vpop.f32.mrf.mxu0
  %v617 = vpop.f32.mrf.mxu0
  %v618 = vadd.f32 0.0, %v617
  %v619 = vpop.f32.mrf.mxu0
  %620 = vmatprep.mubr.bf16.mxu0 0
  %621 = vmatmul.mubr.bf16.gmra.mxu0 %v379
  %v622 = vpop.f32.mrf.mxu0
  %v623 = vadd.f32 0.0, %v622
  %v624 = vpop.f32.mrf.mxu0
  %v625 = vpop.f32.mrf.mxu0
  %v626 = vadd.f32 0.0, %v625
  %v627 = vpop.f32.mrf.mxu0
  %628 = vmatprep.mubr.bf16.mxu0 0
  %629 = vmatmul.mubr.bf16.gmra.mxu0 %v382
  %v630 = vpop.f32.mrf.mxu0
  %v631 = vadd.f32 0.0, %v630
  %v632 = vpop.f32.mrf.mxu0
  %v633 = vpop.f32.mrf.mxu0
  %v634 = vadd.f32 0.0, %v633
  %v635 = vpop.f32.mrf.mxu0
  %636 = vmatprep.mubr.bf16.mxu0 0
  %637 = vmatmul.mubr.bf16.gmra.mxu0 %v385
  %v638 = vpop.f32.mrf.mxu0
  %v639 = vadd.f32 0.0, %v638
  %v640 = vpop.f32.mrf.mxu0
  %v641 = vpop.f32.mrf.mxu0
  %v642 = vadd.f32 0.0, %v641
  %v643 = vpop.f32.mrf.mxu0
  %644 = vmatprep.mubr.bf16.mxu0 0
  %645 = vmatmul.mubr.bf16.gmra.mxu0 %v388
  %v646 = vpop.f32.mrf.mxu0
  %v647 = vadd.f32 0.0, %v646
  %v648 = vpop.f32.mrf.mxu0
  %v649 = vpop.f32.mrf.mxu0
  %v650 = vadd.f32 0.0, %v649
  %v651 = vpop.f32.mrf.mxu0
  %652 = vmatprep.mubr.bf16.mxu0 0
  %653 = vmatmul.mubr.bf16.gmra.mxu0 %v391
  %v654 = vpop.f32.mrf.mxu0
  %v655 = vadd.f32 0.0, %v654
  %v656 = vpop.f32.mrf.mxu0
  %v657 = vpop.f32.mrf.mxu0
  %v658 = vadd.f32 0.0, %v657
  %v659 = vpop.f32.mrf.mxu0
  %660 = vmatprep.mubr.bf16.mxu0 0
  %661 = vmatmul.mubr.bf16.gmra.mxu0 %v394
  %v662 = vpop.f32.mrf.mxu0
  %v663 = vadd.f32 0.0, %v662
  %v664 = vpop.f32.mrf.mxu0
  %v665 = vpop.f32.mrf.mxu0
  %v666 = vadd.f32 0.0, %v665
  %v667 = vpop.f32.mrf.mxu0
  %668 = vmatprep.mubr.bf16.mxu0 0
  %669 = vmatmul.mubr.bf16.gmra.mxu0 %v397
  %v670 = vpop.f32.mrf.mxu0
  %v671 = vadd.f32 0.0, %v670
  %v672 = vpop.f32.mrf.mxu0
  %v673 = vpop.f32.mrf.mxu0
  %v674 = vadd.f32 0.0, %v673
  %v675 = vpop.f32.mrf.mxu0
  %676 = vmatprep.mubr.bf16.mxu0 0
  %677 = vmatmul.mubr.bf16.gmra.mxu0 %v400
  %v678 = vpop.f32.mrf.mxu0
  %v679 = vadd.f32 0.0, %v678
  %v680 = vpop.f32.mrf.mxu0
  %v681 = vpop.f32.mrf.mxu0
  %v682 = vadd.f32 0.0, %v681
  %v683 = vpop.f32.mrf.mxu0
  %684 = vmatprep.mubr.bf16.mxu0 0
  %685 = vmatmul.mubr.bf16.gmra.mxu0 %v403
  %v686 = vpop.f32.mrf.mxu0
  %v687 = vadd.f32 0.0, %v686
  %v688 = vpop.f32.mrf.mxu0
  %v689 = vpop.f32.mrf.mxu0
  %v690 = vadd.f32 0.0, %v689
  %v691 = vpop.f32.mrf.mxu0
  %692 = vmatprep.mubr.bf16.mxu0 0
  %693 = vmatmul.mubr.bf16.gmra.mxu0 %v406
  %v694 = vpop.f32.mrf.mxu0
  %v695 = vadd.f32 0.0, %v694
  %v696 = vpop.f32.mrf.mxu0
  %v697 = vpop.f32.mrf.mxu0
  %v698 = vadd.f32 0.0, %v697
  %v699 = vpop.f32.mrf.mxu0
  %700 = vdwg.mxu0
  %v765 = vunpack.c.l.b16 %v21
  %v766 = vunpack.c.l.b16 %v22
  %v767 = vunpack.c.l.b16 %v23
  %v768 = vunpack.c.l.b16 %v24
  %v769 = vunpack.c.l.b16 %v25
  %v770 = vunpack.c.l.b16 %v26
  %v771 = vunpack.c.l.b16 %v27
  %v772 = vunpack.c.l.b16 %v28
  %v773 = vunpack.c.l.b16 %v29
  %v774 = vunpack.c.l.b16 %v30
  %v775 = vunpack.c.l.b16 %v31
  %v776 = vunpack.c.l.b16 %v32
  %v777 = vunpack.c.l.b16 %v33
  %v778 = vunpack.c.l.b16 %v34
  %v779 = vunpack.c.l.b16 %v35
  %v780 = vunpack.c.l.b16 %v36
  %v781 = vunpack.c.l.b16 %v37
  %v782 = vunpack.c.l.b16 %v38
  %v783 = vunpack.c.l.b16 %v39
  %v784 = vunpack.c.l.b16 %v40
  %v785 = vunpack.c.l.b16 %v41
  %v786 = vunpack.c.l.b16 %v42
  %v787 = vunpack.c.l.b16 %v43
  %v788 = vunpack.c.l.b16 %v44
  %v789 = vunpack.c.l.b16 %v45
  %v790 = vunpack.c.l.b16 %v46
  %v791 = vunpack.c.l.b16 %v47
  %v792 = vunpack.c.l.b16 %v48
  %v793 = vunpack.c.l.b16 %v49
  %v794 = vunpack.c.l.b16 %v50
  %v795 = vunpack.c.l.b16 %v51
  %v796 = vunpack.c.l.b16 %v52
  %v797 = vunpack.c.l.b16 %v53
  %v798 = vunpack.c.l.b16 %v54
  %v799 = vunpack.c.l.b16 %v55
  %v800 = vunpack.c.l.b16 %v56
  %v801 = vunpack.c.l.b16 %v57
  %v802 = vunpack.c.l.b16 %v58
  %v803 = vunpack.c.l.b16 %v59
  %v804 = vunpack.c.l.b16 %v60
  %v805 = vunpack.c.l.b16 %v61
  %v806 = vunpack.c.l.b16 %v62
  %v807 = vunpack.c.l.b16 %v63
  %v808 = vunpack.c.l.b16 %v64
  %v809 = vunpack.c.l.b16 %v65
  %v810 = vunpack.c.l.b16 %v66
  %v811 = vunpack.c.l.b16 %v67
  %v812 = vunpack.c.l.b16 %v68
  %v813 = vunpack.c.l.b16 %v69
  %v814 = vunpack.c.l.b16 %v70
  %v815 = vunpack.c.l.b16 %v71
  %v816 = vunpack.c.l.b16 %v72
  %v817 = vunpack.c.l.b16 %v73
  %v818 = vunpack.c.l.b16 %v74
  %v819 = vunpack.c.l.b16 %v75
  %v820 = vunpack.c.l.b16 %v76
  %v821 = vunpack.c.l.b16 %v77
  %v822 = vunpack.c.l.b16 %v78
  %v823 = vunpack.c.l.b16 %v79
  %v824 = vunpack.c.l.b16 %v80
  %v825 = vunpack.c.l.b16 %v81
  %v826 = vunpack.c.l.b16 %v82
  %v827 = vunpack.c.l.b16 %v83
  %v828 = vunpack.c.l.b16 %v84
  %v829 = vpack.c.b16 %v766, %v765
  %v830 = vpack.c.b16 %v768, %v767
  %v831 = vpack.c.b16 %v770, %v769
  %v832 = vpack.c.b16 %v772, %v771
  %v833 = vpack.c.b16 %v774, %v773
  %v834 = vpack.c.b16 %v776, %v775
  %v835 = vpack.c.b16 %v778, %v777
  %v836 = vpack.c.b16 %v780, %v779
  %v837 = vpack.c.b16 %v782, %v781
  %v838 = vpack.c.b16 %v784, %v783
  %v839 = vpack.c.b16 %v786, %v785
  %v840 = vpack.c.b16 %v788, %v787
  %v841 = vpack.c.b16 %v790, %v789
  %v842 = vpack.c.b16 %v792, %v791
  %v843 = vpack.c.b16 %v794, %v793
  %v844 = vpack.c.b16 %v796, %v795
  %v845 = vpack.c.b16 %v798, %v797
  %v846 = vpack.c.b16 %v800, %v799
  %v847 = vpack.c.b16 %v802, %v801
  %v848 = vpack.c.b16 %v804, %v803
  %v849 = vpack.c.b16 %v806, %v805
  %v850 = vpack.c.b16 %v808, %v807
  %v851 = vpack.c.b16 %v810, %v809
  %v852 = vpack.c.b16 %v812, %v811
  %v853 = vpack.c.b16 %v814, %v813
  %v854 = vpack.c.b16 %v816, %v815
  %v855 = vpack.c.b16 %v818, %v817
  %v856 = vpack.c.b16 %v820, %v819
  %v857 = vpack.c.b16 %v822, %v821
  %v858 = vpack.c.b16 %v824, %v823
  %v859 = vpack.c.b16 %v826, %v825
  %v860 = vpack.c.b16 %v828, %v827
  %vm861 = vcmask 31744
  %v863 = vsel %vm861, %v829, 0
  %v866 = vsel %vm861, %v830, 0
  %v869 = vsel %vm861, %v831, 0
  %v872 = vsel %vm861, %v832, 0
  %v875 = vsel %vm861, %v833, 0
  %v878 = vsel %vm861, %v834, 0
  %v881 = vsel %vm861, %v835, 0
  %v884 = vsel %vm861, %v836, 0
  %v887 = vsel %vm861, %v837, 0
  %v890 = vsel %vm861, %v838, 0
  %v893 = vsel %vm861, %v839, 0
  %v896 = vsel %vm861, %v840, 0
  %v899 = vsel %vm861, %v841, 0
  %v902 = vsel %vm861, %v842, 0
  %v905 = vsel %vm861, %v843, 0
  %v908 = vsel %vm861, %v844, 0
  %v911 = vsel %vm861, %v845, 0
  %v914 = vsel %vm861, %v846, 0
  %v917 = vsel %vm861, %v847, 0
  %v920 = vsel %vm861, %v848, 0
  %v923 = vsel %vm861, %v849, 0
  %v926 = vsel %vm861, %v850, 0
  %v929 = vsel %vm861, %v851, 0
  %v932 = vsel %vm861, %v852, 0
  %v935 = vsel %vm861, %v853, 0
  %v938 = vsel %vm861, %v854, 0
  %v941 = vsel %vm861, %v855, 0
  %v944 = vsel %vm861, %v856, 0
  %v947 = vsel %vm861, %v857, 0
  %v950 = vsel %vm861, %v858, 0
  %v953 = vsel %vm861, %v859, 0
  %v956 = vsel %vm861, %v860, 0
  %vm958 = vcmask 1041408
  %v960 = vsel %vm958, %v85, 0
  %962 = vmatprep.subr.bf16.mxu0 0
  %963 = vmatpush1.bf16.msra.mxu0 0
  %964 = vmatprep.subr.bf16.mxu0 0
  %965 = vmatpush1.bf16.msra.mxu0 0
  %966 = vmatprep.subr.bf16.mxu0 0
  %967 = vmatpush1.bf16.msra.mxu0 0
  %968 = vmatprep.subr.bf16.mxu0 0
  %969 = vmatpush1.bf16.msra.mxu0 0
  %970 = vmatprep.subr.bf16.mxu0 0
  %971 = vmatpush1.bf16.msra.mxu0 0
  %972 = vmatprep.subr.bf16.mxu0 0
  %973 = vmatpush1.bf16.msra.mxu0 0
  %974 = vmatprep.subr.bf16.mxu0 0
  %975 = vmatpush1.bf16.msra.mxu0 0
  %976 = vmatprep.subr.bf16.mxu0 0
  %977 = vmatpush1.bf16.msra.mxu0 %v960
  %978 = vmatprep.subr.bf16.mxu0 0
  %979 = vmatpush2.bf16.msra.mxu0 0
  %980 = vmatprep.subr.bf16.mxu0 0
  %981 = vmatpush2.bf16.msra.mxu0 0
  %982 = vmatprep.subr.bf16.mxu0 0
  %983 = vmatpush2.bf16.msra.mxu0 0
  %984 = vmatprep.subr.bf16.mxu0 0
  %985 = vmatpush2.bf16.msra.mxu0 0
  %986 = vmatprep.subr.bf16.mxu0 0
  %987 = vmatpush2.bf16.msra.mxu0 0
  %988 = vmatprep.subr.bf16.mxu0 0
  %989 = vmatpush2.bf16.msra.mxu0 0
  %990 = vmatprep.subr.bf16.mxu0 0
  %991 = vmatpush2.bf16.msra.mxu0 0
  %992 = vmatprep.subr.bf16.mxu0 0
  %993 = vmatpush2.bf16.msra.mxu0 0
  %994 = vmatprep.mubr.bf16.mxu0 0
  %995 = vmatmul.mubr.bf16.gmra.mxu0 %v863
  %v996 = vpop.f32.mrf.mxu0
  %v997 = vadd.f32 %v447, %v996
  %v998 = vpop.f32.mrf.mxu0
  %v999 = vpop.f32.mrf.mxu0
  %v1000 = vadd.f32 %v450, %v999
  %v1001 = vpop.f32.mrf.mxu0
  %1002 = vmatprep.mubr.bf16.mxu0 0
  %1003 = vmatmul.mubr.bf16.gmra.mxu0 %v866
  %v1004 = vpop.f32.mrf.mxu0
  %v1005 = vadd.f32 %v455, %v1004
  %v1006 = vpop.f32.mrf.mxu0
  %v1007 = vpop.f32.mrf.mxu0
  %v1008 = vadd.f32 %v458, %v1007
  %v1009 = vpop.f32.mrf.mxu0
  %1010 = vmatprep.mubr.bf16.mxu0 0
  %1011 = vmatmul.mubr.bf16.gmra.mxu0 %v869
  %v1012 = vpop.f32.mrf.mxu0
  %v1013 = vadd.f32 %v463, %v1012
  %v1014 = vpop.f32.mrf.mxu0
  %v1015 = vpop.f32.mrf.mxu0
  %v1016 = vadd.f32 %v466, %v1015
  %v1017 = vpop.f32.mrf.mxu0
  %1018 = vmatprep.mubr.bf16.mxu0 0
  %1019 = vmatmul.mubr.bf16.gmra.mxu0 %v872
  %v1020 = vpop.f32.mrf.mxu0
  %v1021 = vadd.f32 %v471, %v1020
  %v1022 = vpop.f32.mrf.mxu0
  %v1023 = vpop.f32.mrf.mxu0
  %v1024 = vadd.f32 %v474, %v1023
  %v1025 = vpop.f32.mrf.mxu0
  %1026 = vmatprep.mubr.bf16.mxu0 0
  %1027 = vmatmul.mubr.bf16.gmra.mxu0 %v875
  %v1028 = vpop.f32.mrf.mxu0
  %v1029 = vadd.f32 %v479, %v1028
  %v1030 = vpop.f32.mrf.mxu0
  %v1031 = vpop.f32.mrf.mxu0
  %v1032 = vadd.f32 %v482, %v1031
  %v1033 = vpop.f32.mrf.mxu0
  %1034 = vmatprep.mubr.bf16.mxu0 0
  %1035 = vmatmul.mubr.bf16.gmra.mxu0 %v878
  %v1036 = vpop.f32.mrf.mxu0
  %v1037 = vadd.f32 %v487, %v1036
  %v1038 = vpop.f32.mrf.mxu0
  %v1039 = vpop.f32.mrf.mxu0
  %v1040 = vadd.f32 %v490, %v1039
  %v1041 = vpop.f32.mrf.mxu0
  %1042 = vmatprep.mubr.bf16.mxu0 0
  %1043 = vmatmul.mubr.bf16.gmra.mxu0 %v881
  %v1044 = vpop.f32.mrf.mxu0
  %v1045 = vadd.f32 %v495, %v1044
  %v1046 = vpop.f32.mrf.mxu0
  %v1047 = vpop.f32.mrf.mxu0
  %v1048 = vadd.f32 %v498, %v1047
  %v1049 = vpop.f32.mrf.mxu0
  %1050 = vmatprep.mubr.bf16.mxu0 0
  %1051 = vmatmul.mubr.bf16.gmra.mxu0 %v884
  %v1052 = vpop.f32.mrf.mxu0
  %v1053 = vadd.f32 %v503, %v1052
  %v1054 = vpop.f32.mrf.mxu0
  %v1055 = vpop.f32.mrf.mxu0
  %v1056 = vadd.f32 %v506, %v1055
  %v1057 = vpop.f32.mrf.mxu0
  %1058 = vmatprep.mubr.bf16.mxu0 0
  %1059 = vmatmul.mubr.bf16.gmra.mxu0 %v887
  %v1060 = vpop.f32.mrf.mxu0
  %v1061 = vadd.f32 %v511, %v1060
  %v1062 = vpop.f32.mrf.mxu0
  %v1063 = vpop.f32.mrf.mxu0
  %v1064 = vadd.f32 %v514, %v1063
  %v1065 = vpop.f32.mrf.mxu0
  %1066 = vmatprep.mubr.bf16.mxu0 0
  %1067 = vmatmul.mubr.bf16.gmra.mxu0 %v890
  %v1068 = vpop.f32.mrf.mxu0
  %v1069 = vadd.f32 %v519, %v1068
  %v1070 = vpop.f32.mrf.mxu0
  %v1071 = vpop.f32.mrf.mxu0
  %v1072 = vadd.f32 %v522, %v1071
  %v1073 = vpop.f32.mrf.mxu0
  %1074 = vmatprep.mubr.bf16.mxu0 0
  %1075 = vmatmul.mubr.bf16.gmra.mxu0 %v893
  %v1076 = vpop.f32.mrf.mxu0
  %v1077 = vadd.f32 %v527, %v1076
  %v1078 = vpop.f32.mrf.mxu0
  %v1079 = vpop.f32.mrf.mxu0
  %v1080 = vadd.f32 %v530, %v1079
  %v1081 = vpop.f32.mrf.mxu0
  %1082 = vmatprep.mubr.bf16.mxu0 0
  %1083 = vmatmul.mubr.bf16.gmra.mxu0 %v896
  %v1084 = vpop.f32.mrf.mxu0
  %v1085 = vadd.f32 %v535, %v1084
  %v1086 = vpop.f32.mrf.mxu0
  %v1087 = vpop.f32.mrf.mxu0
  %v1088 = vadd.f32 %v538, %v1087
  %v1089 = vpop.f32.mrf.mxu0
  %1090 = vmatprep.mubr.bf16.mxu0 0
  %1091 = vmatmul.mubr.bf16.gmra.mxu0 %v899
  %v1092 = vpop.f32.mrf.mxu0
  %v1093 = vadd.f32 %v543, %v1092
  %v1094 = vpop.f32.mrf.mxu0
  %v1095 = vpop.f32.mrf.mxu0
  %v1096 = vadd.f32 %v546, %v1095
  %v1097 = vpop.f32.mrf.mxu0
  %1098 = vmatprep.mubr.bf16.mxu0 0
  %1099 = vmatmul.mubr.bf16.gmra.mxu0 %v902
  %v1100 = vpop.f32.mrf.mxu0
  %v1101 = vadd.f32 %v551, %v1100
  %v1102 = vpop.f32.mrf.mxu0
  %v1103 = vpop.f32.mrf.mxu0
  %v1104 = vadd.f32 %v554, %v1103
  %v1105 = vpop.f32.mrf.mxu0
  %1106 = vmatprep.mubr.bf16.mxu0 0
  %1107 = vmatmul.mubr.bf16.gmra.mxu0 %v905
  %v1108 = vpop.f32.mrf.mxu0
  %v1109 = vadd.f32 %v559, %v1108
  %v1110 = vpop.f32.mrf.mxu0
  %v1111 = vpop.f32.mrf.mxu0
  %v1112 = vadd.f32 %v562, %v1111
  %v1113 = vpop.f32.mrf.mxu0
  %1114 = vmatprep.mubr.bf16.mxu0 0
  %1115 = vmatmul.mubr.bf16.gmra.mxu0 %v908
  %v1116 = vpop.f32.mrf.mxu0
  %v1117 = vadd.f32 %v567, %v1116
  %v1118 = vpop.f32.mrf.mxu0
  %v1119 = vpop.f32.mrf.mxu0
  %v1120 = vadd.f32 %v570, %v1119
  %v1121 = vpop.f32.mrf.mxu0
  %1122 = vmatprep.mubr.bf16.mxu0 0
  %1123 = vmatmul.mubr.bf16.gmra.mxu0 %v911
  %v1124 = vpop.f32.mrf.mxu0
  %v1125 = vadd.f32 %v575, %v1124
  %v1126 = vpop.f32.mrf.mxu0
  %v1127 = vpop.f32.mrf.mxu0
  %v1128 = vadd.f32 %v578, %v1127
  %v1129 = vpop.f32.mrf.mxu0
  %1130 = vmatprep.mubr.bf16.mxu0 0
  %1131 = vmatmul.mubr.bf16.gmra.mxu0 %v914
  %v1132 = vpop.f32.mrf.mxu0
  %v1133 = vadd.f32 %v583, %v1132
  %v1134 = vpop.f32.mrf.mxu0
  %v1135 = vpop.f32.mrf.mxu0
  %v1136 = vadd.f32 %v586, %v1135
  %v1137 = vpop.f32.mrf.mxu0
  %1138 = vmatprep.mubr.bf16.mxu0 0
  %1139 = vmatmul.mubr.bf16.gmra.mxu0 %v917
  %v1140 = vpop.f32.mrf.mxu0
  %v1141 = vadd.f32 %v591, %v1140
  %v1142 = vpop.f32.mrf.mxu0
  %v1143 = vpop.f32.mrf.mxu0
  %v1144 = vadd.f32 %v594, %v1143
  %v1145 = vpop.f32.mrf.mxu0
  %1146 = vmatprep.mubr.bf16.mxu0 0
  %1147 = vmatmul.mubr.bf16.gmra.mxu0 %v920
  %v1148 = vpop.f32.mrf.mxu0
  %v1149 = vadd.f32 %v599, %v1148
  %v1150 = vpop.f32.mrf.mxu0
  %v1151 = vpop.f32.mrf.mxu0
  %v1152 = vadd.f32 %v602, %v1151
  %v1153 = vpop.f32.mrf.mxu0
  %1154 = vmatprep.mubr.bf16.mxu0 0
  %1155 = vmatmul.mubr.bf16.gmra.mxu0 %v923
  %v1156 = vpop.f32.mrf.mxu0
  %v1157 = vadd.f32 %v607, %v1156
  %v1158 = vpop.f32.mrf.mxu0
  %v1159 = vpop.f32.mrf.mxu0
  %v1160 = vadd.f32 %v610, %v1159
  %v1161 = vpop.f32.mrf.mxu0
  %1162 = vmatprep.mubr.bf16.mxu0 0
  %1163 = vmatmul.mubr.bf16.gmra.mxu0 %v926
  %v1164 = vpop.f32.mrf.mxu0
  %v1165 = vadd.f32 %v615, %v1164
  %v1166 = vpop.f32.mrf.mxu0
  %v1167 = vpop.f32.mrf.mxu0
  %v1168 = vadd.f32 %v618, %v1167
  %v1169 = vpop.f32.mrf.mxu0
  %1170 = vmatprep.mubr.bf16.mxu0 0
  %1171 = vmatmul.mubr.bf16.gmra.mxu0 %v929
  %v1172 = vpop.f32.mrf.mxu0
  %v1173 = vadd.f32 %v623, %v1172
  %v1174 = vpop.f32.mrf.mxu0
  %v1175 = vpop.f32.mrf.mxu0
  %v1176 = vadd.f32 %v626, %v1175
  %v1177 = vpop.f32.mrf.mxu0
  %1178 = vmatprep.mubr.bf16.mxu0 0
  %1179 = vmatmul.mubr.bf16.gmra.mxu0 %v932
  %v1180 = vpop.f32.mrf.mxu0
  %v1181 = vadd.f32 %v631, %v1180
  %v1182 = vpop.f32.mrf.mxu0
  %v1183 = vpop.f32.mrf.mxu0
  %v1184 = vadd.f32 %v634, %v1183
  %v1185 = vpop.f32.mrf.mxu0
  %1186 = vmatprep.mubr.bf16.mxu0 0
  %1187 = vmatmul.mubr.bf16.gmra.mxu0 %v935
  %v1188 = vpop.f32.mrf.mxu0
  %v1189 = vadd.f32 %v639, %v1188
  %v1190 = vpop.f32.mrf.mxu0
  %v1191 = vpop.f32.mrf.mxu0
  %v1192 = vadd.f32 %v642, %v1191
  %v1193 = vpop.f32.mrf.mxu0
  %1194 = vmatprep.mubr.bf16.mxu0 0
  %1195 = vmatmul.mubr.bf16.gmra.mxu0 %v938
  %v1196 = vpop.f32.mrf.mxu0
  %v1197 = vadd.f32 %v647, %v1196
  %v1198 = vpop.f32.mrf.mxu0
  %v1199 = vpop.f32.mrf.mxu0
  %v1200 = vadd.f32 %v650, %v1199
  %v1201 = vpop.f32.mrf.mxu0
  %1202 = vmatprep.mubr.bf16.mxu0 0
  %1203 = vmatmul.mubr.bf16.gmra.mxu0 %v941
  %v1204 = vpop.f32.mrf.mxu0
  %v1205 = vadd.f32 %v655, %v1204
  %v1206 = vpop.f32.mrf.mxu0
  %v1207 = vpop.f32.mrf.mxu0
  %v1208 = vadd.f32 %v658, %v1207
  %v1209 = vpop.f32.mrf.mxu0
  %1210 = vmatprep.mubr.bf16.mxu0 0
  %1211 = vmatmul.mubr.bf16.gmra.mxu0 %v944
  %v1212 = vpop.f32.mrf.mxu0
  %v1213 = vadd.f32 %v663, %v1212
  %v1214 = vpop.f32.mrf.mxu0
  %v1215 = vpop.f32.mrf.mxu0
  %v1216 = vadd.f32 %v666, %v1215
  %v1217 = vpop.f32.mrf.mxu0
  %1218 = vmatprep.mubr.bf16.mxu0 0
  %1219 = vmatmul.mubr.bf16.gmra.mxu0 %v947
  %v1220 = vpop.f32.mrf.mxu0
  %v1221 = vadd.f32 %v671, %v1220
  %v1222 = vpop.f32.mrf.mxu0
  %v1223 = vpop.f32.mrf.mxu0
  %v1224 = vadd.f32 %v674, %v1223
  %v1225 = vpop.f32.mrf.mxu0
  %1226 = vmatprep.mubr.bf16.mxu0 0
  %1227 = vmatmul.mubr.bf16.gmra.mxu0 %v950
  %v1228 = vpop.f32.mrf.mxu0
  %v1229 = vadd.f32 %v679, %v1228
  %v1230 = vpop.f32.mrf.mxu0
  %v1231 = vpop.f32.mrf.mxu0
  %v1232 = vadd.f32 %v682, %v1231
  %v1233 = vpop.f32.mrf.mxu0
  %1234 = vmatprep.mubr.bf16.mxu0 0
  %1235 = vmatmul.mubr.bf16.gmra.mxu0 %v953
  %v1236 = vpop.f32.mrf.mxu0
  %v1237 = vadd.f32 %v687, %v1236
  %v1238 = vpop.f32.mrf.mxu0
  %v1239 = vpop.f32.mrf.mxu0
  %v1240 = vadd.f32 %v690, %v1239
  %v1241 = vpop.f32.mrf.mxu0
  %1242 = vmatprep.mubr.bf16.mxu0 0
  %1243 = vmatmul.mubr.bf16.gmra.mxu0 %v956
  %v1244 = vpop.f32.mrf.mxu0
  %v1245 = vadd.f32 %v695, %v1244
  %v1246 = vpop.f32.mrf.mxu0
  %v1247 = vpop.f32.mrf.mxu0
  %v1248 = vadd.f32 %v698, %v1247
  %v1249 = vpop.f32.mrf.mxu0
  %1250 = vdwg.mxu0
  %v1251 = vld [vmem:[%s4] sm:$0x1]
  %v1253 = vlaneseq
  %v1254 = vshrl.u32 %v1253, 7
  %v1255 = vsub.s32 0, %v1254
  %v1256 = vrot.slane %v1251, %v1255
  %v1258 = vadd.f32 %v997, %v1256
  %v1259 = vadd.f32 %v1000, %v1256
  %v1260 = vadd.f32 %v1005, %v1256
  %v1261 = vadd.f32 %v1008, %v1256
  %v1262 = vadd.f32 %v1013, %v1256
  %v1263 = vadd.f32 %v1016, %v1256
  %v1264 = vadd.f32 %v1021, %v1256
  %v1265 = vadd.f32 %v1024, %v1256
  %v1266 = vadd.f32 %v1029, %v1256
  %v1267 = vadd.f32 %v1032, %v1256
  %v1268 = vadd.f32 %v1037, %v1256
  %v1269 = vadd.f32 %v1040, %v1256
  %v1270 = vadd.f32 %v1045, %v1256
  %v1271 = vadd.f32 %v1048, %v1256
  %v1272 = vadd.f32 %v1053, %v1256
  %v1273 = vadd.f32 %v1056, %v1256
  %v1274 = vadd.f32 %v1061, %v1256
  %v1275 = vadd.f32 %v1064, %v1256
  %v1276 = vadd.f32 %v1069, %v1256
  %v1277 = vadd.f32 %v1072, %v1256
  %v1278 = vadd.f32 %v1077, %v1256
  %v1279 = vadd.f32 %v1080, %v1256
  %v1280 = vadd.f32 %v1085, %v1256
  %v1281 = vadd.f32 %v1088, %v1256
  %v1282 = vadd.f32 %v1093, %v1256
  %v1283 = vadd.f32 %v1096, %v1256
  %v1284 = vadd.f32 %v1101, %v1256
  %v1285 = vadd.f32 %v1104, %v1256
  %v1286 = vadd.f32 %v1109, %v1256
  %v1287 = vadd.f32 %v1112, %v1256
  %v1288 = vadd.f32 %v1117, %v1256
  %v1289 = vadd.f32 %v1120, %v1256
  %v1290 = vadd.f32 %v1125, %v1256
  %v1291 = vadd.f32 %v1128, %v1256
  %v1292 = vadd.f32 %v1133, %v1256
  %v1293 = vadd.f32 %v1136, %v1256
  %v1294 = vadd.f32 %v1141, %v1256
  %v1295 = vadd.f32 %v1144, %v1256
  %v1296 = vadd.f32 %v1149, %v1256
  %v1297 = vadd.f32 %v1152, %v1256
  %v1298 = vadd.f32 %v1157, %v1256
  %v1299 = vadd.f32 %v1160, %v1256
  %v1300 = vadd.f32 %v1165, %v1256
  %v1301 = vadd.f32 %v1168, %v1256
  %v1302 = vadd.f32 %v1173, %v1256
  %v1303 = vadd.f32 %v1176, %v1256
  %v1304 = vadd.f32 %v1181, %v1256
  %v1305 = vadd.f32 %v1184, %v1256
  %v1306 = vadd.f32 %v1189, %v1256
  %v1307 = vadd.f32 %v1192, %v1256
  %v1308 = vadd.f32 %v1197, %v1256
  %v1309 = vadd.f32 %v1200, %v1256
  %v1310 = vadd.f32 %v1205, %v1256
  %v1311 = vadd.f32 %v1208, %v1256
  %v1312 = vadd.f32 %v1213, %v1256
  %v1313 = vadd.f32 %v1216, %v1256
  %v1314 = vadd.f32 %v1221, %v1256
  %v1315 = vadd.f32 %v1224, %v1256
  %v1316 = vadd.f32 %v1229, %v1256
  %v1317 = vadd.f32 %v1232, %v1256
  %v1318 = vadd.f32 %v1237, %v1256
  %v1319 = vadd.f32 %v1240, %v1256
  %v1320 = vadd.f32 %v1245, %v1256
  %v1321 = vadd.f32 %v1248, %v1256
  %v1322 = vxor.u32 %v1258, 2147483648
  %v1323 = vxor.u32 %v1259, 2147483648
  %v1324 = vxor.u32 %v1260, 2147483648
  %v1325 = vxor.u32 %v1261, 2147483648
  %v1326 = vxor.u32 %v1262, 2147483648
  %v1327 = vxor.u32 %v1263, 2147483648
  %v1328 = vxor.u32 %v1264, 2147483648
  %v1329 = vxor.u32 %v1265, 2147483648
  %v1330 = vxor.u32 %v1266, 2147483648
  %v1331 = vxor.u32 %v1267, 2147483648
  %v1332 = vxor.u32 %v1268, 2147483648
  %v1333 = vxor.u32 %v1269, 2147483648
  %v1334 = vxor.u32 %v1270, 2147483648
  %v1335 = vxor.u32 %v1271, 2147483648
  %v1336 = vxor.u32 %v1272, 2147483648
  %v1337 = vxor.u32 %v1273, 2147483648
  %v1338 = vxor.u32 %v1274, 2147483648
  %v1339 = vxor.u32 %v1275, 2147483648
  %v1340 = vxor.u32 %v1276, 2147483648
  %v1341 = vxor.u32 %v1277, 2147483648
  %v1342 = vxor.u32 %v1278, 2147483648
  %v1343 = vxor.u32 %v1279, 2147483648
  %v1344 = vxor.u32 %v1280, 2147483648
  %v1345 = vxor.u32 %v1281, 2147483648
  %v1346 = vxor.u32 %v1282, 2147483648
  %v1347 = vxor.u32 %v1283, 2147483648
  %v1348 = vxor.u32 %v1284, 2147483648
  %v1349 = vxor.u32 %v1285, 2147483648
  %v1350 = vxor.u32 %v1286, 2147483648
  %v1351 = vxor.u32 %v1287, 2147483648
  %v1352 = vxor.u32 %v1288, 2147483648
  %v1353 = vxor.u32 %v1289, 2147483648
  %v1354 = vxor.u32 %v1290, 2147483648
  %v1355 = vxor.u32 %v1291, 2147483648
  %v1356 = vxor.u32 %v1292, 2147483648
  %v1357 = vxor.u32 %v1293, 2147483648
  %v1358 = vxor.u32 %v1294, 2147483648
  %v1359 = vxor.u32 %v1295, 2147483648
  %v1360 = vxor.u32 %v1296, 2147483648
  %v1361 = vxor.u32 %v1297, 2147483648
  %v1362 = vxor.u32 %v1298, 2147483648
  %v1363 = vxor.u32 %v1299, 2147483648
  %v1364 = vxor.u32 %v1300, 2147483648
  %v1365 = vxor.u32 %v1301, 2147483648
  %v1366 = vxor.u32 %v1302, 2147483648
  %v1367 = vxor.u32 %v1303, 2147483648
  %v1368 = vxor.u32 %v1304, 2147483648
  %v1369 = vxor.u32 %v1305, 2147483648
  %v1370 = vxor.u32 %v1306, 2147483648
  %v1371 = vxor.u32 %v1307, 2147483648
  %v1372 = vxor.u32 %v1308, 2147483648
  %v1373 = vxor.u32 %v1309, 2147483648
  %v1374 = vxor.u32 %v1310, 2147483648
  %v1375 = vxor.u32 %v1311, 2147483648
  %v1376 = vxor.u32 %v1312, 2147483648
  %v1377 = vxor.u32 %v1313, 2147483648
  %v1378 = vxor.u32 %v1314, 2147483648
  %v1379 = vxor.u32 %v1315, 2147483648
  %v1380 = vxor.u32 %v1316, 2147483648
  %v1381 = vxor.u32 %v1317, 2147483648
  %v1382 = vxor.u32 %v1318, 2147483648
  %v1383 = vxor.u32 %v1319, 2147483648
  %v1384 = vxor.u32 %v1320, 2147483648
  %v1385 = vxor.u32 %v1321, 2147483648
  %v1386 = vmul.f32 %v1322, 1.442695
  %v1387 = vpow.pop %v1386
  %v1388 = vmul.f32 %v1323, 1.442695
  %v1389 = vpow.pop %v1388
  %v1390 = vmul.f32 %v1324, 1.442695
  %v1391 = vpow.pop %v1390
  %v1392 = vmul.f32 %v1325, 1.442695
  %v1393 = vpow.pop %v1392
  %v1394 = vmul.f32 %v1326, 1.442695
  %v1395 = vpow.pop %v1394
  %v1396 = vmul.f32 %v1327, 1.442695
  %v1397 = vpow.pop %v1396
  %v1398 = vmul.f32 %v1328, 1.442695
  %v1399 = vpow.pop %v1398
  %v1400 = vmul.f32 %v1329, 1.442695
  %v1401 = vpow.pop %v1400
  %v1402 = vmul.f32 %v1330, 1.442695
  %v1403 = vpow.pop %v1402
  %v1404 = vmul.f32 %v1331, 1.442695
  %v1405 = vpow.pop %v1404
  %v1406 = vmul.f32 %v1332, 1.442695
  %v1407 = vpow.pop %v1406
  %v1408 = vmul.f32 %v1333, 1.442695
  %v1409 = vpow.pop %v1408
  %v1410 = vmul.f32 %v1334, 1.442695
  %v1411 = vpow.pop %v1410
  %v1412 = vmul.f32 %v1335, 1.442695
  %v1413 = vpow.pop %v1412
  %v1414 = vmul.f32 %v1336, 1.442695
  %v1415 = vpow.pop %v1414
  %v1416 = vmul.f32 %v1337, 1.442695
  %v1417 = vpow.pop %v1416
  %v1418 = vmul.f32 %v1338, 1.442695
  %v1419 = vpow.pop %v1418
  %v1420 = vmul.f32 %v1339, 1.442695
  %v1421 = vpow.pop %v1420
  %v1422 = vmul.f32 %v1340, 1.442695
  %v1423 = vpow.pop %v1422
  %v1424 = vmul.f32 %v1341, 1.442695
  %v1425 = vpow.pop %v1424
  %v1426 = vmul.f32 %v1342, 1.442695
  %v1427 = vpow.pop %v1426
  %v1428 = vmul.f32 %v1343, 1.442695
  %v1429 = vpow.pop %v1428
  %v1430 = vmul.f32 %v1344, 1.442695
  %v1431 = vpow.pop %v1430
  %v1432 = vmul.f32 %v1345, 1.442695
  %v1433 = vpow.pop %v1432
  %v1434 = vmul.f32 %v1346, 1.442695
  %v1435 = vpow.pop %v1434
  %v1436 = vmul.f32 %v1347, 1.442695
  %v1437 = vpow.pop %v1436
  %v1438 = vmul.f32 %v1348, 1.442695
  %v1439 = vpow.pop %v1438
  %v1440 = vmul.f32 %v1349, 1.442695
  %v1441 = vpow.pop %v1440
  %v1442 = vmul.f32 %v1350, 1.442695
  %v1443 = vpow.pop %v1442
  %v1444 = vmul.f32 %v1351, 1.442695
  %v1445 = vpow.pop %v1444
  %v1446 = vmul.f32 %v1352, 1.442695
  %v1447 = vpow.pop %v1446
  %v1448 = vmul.f32 %v1353, 1.442695
  %v1449 = vpow.pop %v1448
  %v1450 = vmul.f32 %v1354, 1.442695
  %v1451 = vpow.pop %v1450
  %v1452 = vmul.f32 %v1355, 1.442695
  %v1453 = vpow.pop %v1452
  %v1454 = vmul.f32 %v1356, 1.442695
  %v1455 = vpow.pop %v1454
  %v1456 = vmul.f32 %v1357, 1.442695
  %v1457 = vpow.pop %v1456
  %v1458 = vmul.f32 %v1358, 1.442695
  %v1459 = vpow.pop %v1458
  %v1460 = vmul.f32 %v1359, 1.442695
  %v1461 = vpow.pop %v1460
  %v1462 = vmul.f32 %v1360, 1.442695
  %v1463 = vpow.pop %v1462
  %v1464 = vmul.f32 %v1361, 1.442695
  %v1465 = vpow.pop %v1464
  %v1466 = vmul.f32 %v1362, 1.442695
  %v1467 = vpow.pop %v1466
  %v1468 = vmul.f32 %v1363, 1.442695
  %v1469 = vpow.pop %v1468
  %v1470 = vmul.f32 %v1364, 1.442695
  %v1471 = vpow.pop %v1470
  %v1472 = vmul.f32 %v1365, 1.442695
  %v1473 = vpow.pop %v1472
  %v1474 = vmul.f32 %v1366, 1.442695
  %v1475 = vpow.pop %v1474
  %v1476 = vmul.f32 %v1367, 1.442695
  %v1477 = vpow.pop %v1476
  %v1478 = vmul.f32 %v1368, 1.442695
  %v1479 = vpow.pop %v1478
  %v1480 = vmul.f32 %v1369, 1.442695
  %v1481 = vpow.pop %v1480
  %v1482 = vmul.f32 %v1370, 1.442695
  %v1483 = vpow.pop %v1482
  %v1484 = vmul.f32 %v1371, 1.442695
  %v1485 = vpow.pop %v1484
  %v1486 = vmul.f32 %v1372, 1.442695
  %v1487 = vpow.pop %v1486
  %v1488 = vmul.f32 %v1373, 1.442695
  %v1489 = vpow.pop %v1488
  %v1490 = vmul.f32 %v1374, 1.442695
  %v1491 = vpow.pop %v1490
  %v1492 = vmul.f32 %v1375, 1.442695
  %v1493 = vpow.pop %v1492
  %v1494 = vmul.f32 %v1376, 1.442695
  %v1495 = vpow.pop %v1494
  %v1496 = vmul.f32 %v1377, 1.442695
  %v1497 = vpow.pop %v1496
  %v1498 = vmul.f32 %v1378, 1.442695
  %v1499 = vpow.pop %v1498
  %v1500 = vmul.f32 %v1379, 1.442695
  %v1501 = vpow.pop %v1500
  %v1502 = vmul.f32 %v1380, 1.442695
  %v1503 = vpow.pop %v1502
  %v1504 = vmul.f32 %v1381, 1.442695
  %v1505 = vpow.pop %v1504
  %v1506 = vmul.f32 %v1382, 1.442695
  %v1507 = vpow.pop %v1506
  %v1508 = vmul.f32 %v1383, 1.442695
  %v1509 = vpow.pop %v1508
  %v1510 = vmul.f32 %v1384, 1.442695
  %v1511 = vpow.pop %v1510
  %v1512 = vmul.f32 %v1385, 1.442695
  %v1513 = vpow.pop %v1512
  %v1514 = vadd.f32 %v1387, 1.0
  %v1515 = vadd.f32 %v1389, 1.0
  %v1516 = vadd.f32 %v1391, 1.0
  %v1517 = vadd.f32 %v1393, 1.0
  %v1518 = vadd.f32 %v1395, 1.0
  %v1519 = vadd.f32 %v1397, 1.0
  %v1520 = vadd.f32 %v1399, 1.0
  %v1521 = vadd.f32 %v1401, 1.0
  %v1522 = vadd.f32 %v1403, 1.0
  %v1523 = vadd.f32 %v1405, 1.0
  %v1524 = vadd.f32 %v1407, 1.0
  %v1525 = vadd.f32 %v1409, 1.0
  %v1526 = vadd.f32 %v1411, 1.0
  %v1527 = vadd.f32 %v1413, 1.0
  %v1528 = vadd.f32 %v1415, 1.0
  %v1529 = vadd.f32 %v1417, 1.0
  %v1530 = vadd.f32 %v1419, 1.0
  %v1531 = vadd.f32 %v1421, 1.0
  %v1532 = vadd.f32 %v1423, 1.0
  %v1533 = vadd.f32 %v1425, 1.0
  %v1534 = vadd.f32 %v1427, 1.0
  %v1535 = vadd.f32 %v1429, 1.0
  %v1536 = vadd.f32 %v1431, 1.0
  %v1537 = vadd.f32 %v1433, 1.0
  %v1538 = vadd.f32 %v1435, 1.0
  %v1539 = vadd.f32 %v1437, 1.0
  %v1540 = vadd.f32 %v1439, 1.0
  %v1541 = vadd.f32 %v1441, 1.0
  %v1542 = vadd.f32 %v1443, 1.0
  %v1543 = vadd.f32 %v1445, 1.0
  %v1544 = vadd.f32 %v1447, 1.0
  %v1545 = vadd.f32 %v1449, 1.0
  %v1546 = vadd.f32 %v1451, 1.0
  %v1547 = vadd.f32 %v1453, 1.0
  %v1548 = vadd.f32 %v1455, 1.0
  %v1549 = vadd.f32 %v1457, 1.0
  %v1550 = vadd.f32 %v1459, 1.0
  %v1551 = vadd.f32 %v1461, 1.0
  %v1552 = vadd.f32 %v1463, 1.0
  %v1553 = vadd.f32 %v1465, 1.0
  %v1554 = vadd.f32 %v1467, 1.0
  %v1555 = vadd.f32 %v1469, 1.0
  %v1556 = vadd.f32 %v1471, 1.0
  %v1557 = vadd.f32 %v1473, 1.0
  %v1558 = vadd.f32 %v1475, 1.0
  %v1559 = vadd.f32 %v1477, 1.0
  %v1560 = vadd.f32 %v1479, 1.0
  %v1561 = vadd.f32 %v1481, 1.0
  %v1562 = vadd.f32 %v1483, 1.0
  %v1563 = vadd.f32 %v1485, 1.0
  %v1564 = vadd.f32 %v1487, 1.0
  %v1565 = vadd.f32 %v1489, 1.0
  %v1566 = vadd.f32 %v1491, 1.0
  %v1567 = vadd.f32 %v1493, 1.0
  %v1568 = vadd.f32 %v1495, 1.0
  %v1569 = vadd.f32 %v1497, 1.0
  %v1570 = vadd.f32 %v1499, 1.0
  %v1571 = vadd.f32 %v1501, 1.0
  %v1572 = vadd.f32 %v1503, 1.0
  %v1573 = vadd.f32 %v1505, 1.0
  %v1574 = vadd.f32 %v1507, 1.0
  %v1575 = vadd.f32 %v1509, 1.0
  %v1576 = vadd.f32 %v1511, 1.0
  %v1577 = vadd.f32 %v1513, 1.0
  %v1578 = vrcp.pop %v1514
  %v1579 = vmul.f32 1.0, %v1578
  %v1580 = vrcp.pop %v1515
  %v1581 = vmul.f32 1.0, %v1580
  %v1582 = vrcp.pop %v1516
  %v1583 = vmul.f32 1.0, %v1582
  %v1584 = vrcp.pop %v1517
  %v1585 = vmul.f32 1.0, %v1584
  %v1586 = vrcp.pop %v1518
  %v1587 = vmul.f32 1.0, %v1586
  %v1588 = vrcp.pop %v1519
  %v1589 = vmul.f32 1.0, %v1588
  %v1590 = vrcp.pop %v1520
  %v1591 = vmul.f32 1.0, %v1590
  %v1592 = vrcp.pop %v1521
  %v1593 = vmul.f32 1.0, %v1592
  %v1594 = vrcp.pop %v1522
  %v1595 = vmul.f32 1.0, %v1594
  %v1596 = vrcp.pop %v1523
  %v1597 = vmul.f32 1.0, %v1596
  %v1598 = vrcp.pop %v1524
  %v1599 = vmul.f32 1.0, %v1598
  %v1600 = vrcp.pop %v1525
  %v1601 = vmul.f32 1.0, %v1600
  %v1602 = vrcp.pop %v1526
  %v1603 = vmul.f32 1.0, %v1602
  %v1604 = vrcp.pop %v1527
  %v1605 = vmul.f32 1.0, %v1604
  %v1606 = vrcp.pop %v1528
  %v1607 = vmul.f32 1.0, %v1606
  %v1608 = vrcp.pop %v1529
  %v1609 = vmul.f32 1.0, %v1608
  %v1610 = vrcp.pop %v1530
  %v1611 = vmul.f32 1.0, %v1610
  %v1612 = vrcp.pop %v1531
  %v1613 = vmul.f32 1.0, %v1612
  %v1614 = vrcp.pop %v1532
  %v1615 = vmul.f32 1.0, %v1614
  %v1616 = vrcp.pop %v1533
  %v1617 = vmul.f32 1.0, %v1616
  %v1618 = vrcp.pop %v1534
  %v1619 = vmul.f32 1.0, %v1618
  %v1620 = vrcp.pop %v1535
  %v1621 = vmul.f32 1.0, %v1620
  %v1622 = vrcp.pop %v1536
  %v1623 = vmul.f32 1.0, %v1622
  %v1624 = vrcp.pop %v1537
  %v1625 = vmul.f32 1.0, %v1624
  %v1626 = vrcp.pop %v1538
  %v1627 = vmul.f32 1.0, %v1626
  %v1628 = vrcp.pop %v1539
  %v1629 = vmul.f32 1.0, %v1628
  %v1630 = vrcp.pop %v1540
  %v1631 = vmul.f32 1.0, %v1630
  %v1632 = vrcp.pop %v1541
  %v1633 = vmul.f32 1.0, %v1632
  %v1634 = vrcp.pop %v1542
  %v1635 = vmul.f32 1.0, %v1634
  %v1636 = vrcp.pop %v1543
  %v1637 = vmul.f32 1.0, %v1636
  %v1638 = vrcp.pop %v1544
  %v1639 = vmul.f32 1.0, %v1638
  %v1640 = vrcp.pop %v1545
  %v1641 = vmul.f32 1.0, %v1640
  %v1642 = vrcp.pop %v1546
  %v1643 = vmul.f32 1.0, %v1642
  %v1644 = vrcp.pop %v1547
  %v1645 = vmul.f32 1.0, %v1644
  %v1646 = vrcp.pop %v1548
  %v1647 = vmul.f32 1.0, %v1646
  %v1648 = vrcp.pop %v1549
  %v1649 = vmul.f32 1.0, %v1648
  %v1650 = vrcp.pop %v1550
  %v1651 = vmul.f32 1.0, %v1650
  %v1652 = vrcp.pop %v1551
  %v1653 = vmul.f32 1.0, %v1652
  %v1654 = vrcp.pop %v1552
  %v1655 = vmul.f32 1.0, %v1654
  %v1656 = vrcp.pop %v1553
  %v1657 = vmul.f32 1.0, %v1656
  %v1658 = vrcp.pop %v1554
  %v1659 = vmul.f32 1.0, %v1658
  %v1660 = vrcp.pop %v1555
  %v1661 = vmul.f32 1.0, %v1660
  %v1662 = vrcp.pop %v1556
  %v1663 = vmul.f32 1.0, %v1662
  %v1664 = vrcp.pop %v1557
  %v1665 = vmul.f32 1.0, %v1664
  %v1666 = vrcp.pop %v1558
  %v1667 = vmul.f32 1.0, %v1666
  %v1668 = vrcp.pop %v1559
  %v1669 = vmul.f32 1.0, %v1668
  %v1670 = vrcp.pop %v1560
  %v1671 = vmul.f32 1.0, %v1670
  %v1672 = vrcp.pop %v1561
  %v1673 = vmul.f32 1.0, %v1672
  %v1674 = vrcp.pop %v1562
  %v1675 = vmul.f32 1.0, %v1674
  %v1676 = vrcp.pop %v1563
  %v1677 = vmul.f32 1.0, %v1676
  %v1678 = vrcp.pop %v1564
  %v1679 = vmul.f32 1.0, %v1678
  %v1680 = vrcp.pop %v1565
  %v1681 = vmul.f32 1.0, %v1680
  %v1682 = vrcp.pop %v1566
  %v1683 = vmul.f32 1.0, %v1682
  %v1684 = vrcp.pop %v1567
  %v1685 = vmul.f32 1.0, %v1684
  %v1686 = vrcp.pop %v1568
  %v1687 = vmul.f32 1.0, %v1686
  %v1688 = vrcp.pop %v1569
  %v1689 = vmul.f32 1.0, %v1688
  %v1690 = vrcp.pop %v1570
  %v1691 = vmul.f32 1.0, %v1690
  %v1692 = vrcp.pop %v1571
  %v1693 = vmul.f32 1.0, %v1692
  %v1694 = vrcp.pop %v1572
  %v1695 = vmul.f32 1.0, %v1694
  %v1696 = vrcp.pop %v1573
  %v1697 = vmul.f32 1.0, %v1696
  %v1698 = vrcp.pop %v1574
  %v1699 = vmul.f32 1.0, %v1698
  %v1700 = vrcp.pop %v1575
  %v1701 = vmul.f32 1.0, %v1700
  %v1702 = vrcp.pop %v1576
  %v1703 = vmul.f32 1.0, %v1702
  %v1704 = vrcp.pop %v1577
  %v1705 = vmul.f32 1.0, %v1704
  %v1706 = vmul.f32 %v1258, %v1579
  %v1707 = vmul.f32 %v1259, %v1581
  %v1708 = vmul.f32 %v1260, %v1583
  %v1709 = vmul.f32 %v1261, %v1585
  %v1710 = vmul.f32 %v1262, %v1587
  %v1711 = vmul.f32 %v1263, %v1589
  %v1712 = vmul.f32 %v1264, %v1591
  %v1713 = vmul.f32 %v1265, %v1593
  %v1714 = vmul.f32 %v1266, %v1595
  %v1715 = vmul.f32 %v1267, %v1597
  %v1716 = vmul.f32 %v1268, %v1599
  %v1717 = vmul.f32 %v1269, %v1601
  %v1718 = vmul.f32 %v1270, %v1603
  %v1719 = vmul.f32 %v1271, %v1605
  %v1720 = vmul.f32 %v1272, %v1607
  %v1721 = vmul.f32 %v1273, %v1609
  %v1722 = vmul.f32 %v1274, %v1611
  %v1723 = vmul.f32 %v1275, %v1613
  %v1724 = vmul.f32 %v1276, %v1615
  %v1725 = vmul.f32 %v1277, %v1617
  %v1726 = vmul.f32 %v1278, %v1619
  %v1727 = vmul.f32 %v1279, %v1621
  %v1728 = vmul.f32 %v1280, %v1623
  %v1729 = vmul.f32 %v1281, %v1625
  %v1730 = vmul.f32 %v1282, %v1627
  %v1731 = vmul.f32 %v1283, %v1629
  %v1732 = vmul.f32 %v1284, %v1631
  %v1733 = vmul.f32 %v1285, %v1633
  %v1734 = vmul.f32 %v1286, %v1635
  %v1735 = vmul.f32 %v1287, %v1637
  %v1736 = vmul.f32 %v1288, %v1639
  %v1737 = vmul.f32 %v1289, %v1641
  %v1738 = vmul.f32 %v1290, %v1643
  %v1739 = vmul.f32 %v1291, %v1645
  %v1740 = vmul.f32 %v1292, %v1647
  %v1741 = vmul.f32 %v1293, %v1649
  %v1742 = vmul.f32 %v1294, %v1651
  %v1743 = vmul.f32 %v1295, %v1653
  %v1744 = vmul.f32 %v1296, %v1655
  %v1745 = vmul.f32 %v1297, %v1657
  %v1746 = vmul.f32 %v1298, %v1659
  %v1747 = vmul.f32 %v1299, %v1661
  %v1748 = vmul.f32 %v1300, %v1663
  %v1749 = vmul.f32 %v1301, %v1665
  %v1750 = vmul.f32 %v1302, %v1667
  %v1751 = vmul.f32 %v1303, %v1669
  %v1752 = vmul.f32 %v1304, %v1671
  %v1753 = vmul.f32 %v1305, %v1673
  %v1754 = vmul.f32 %v1306, %v1675
  %v1755 = vmul.f32 %v1307, %v1677
  %v1756 = vmul.f32 %v1308, %v1679
  %v1757 = vmul.f32 %v1309, %v1681
  %v1758 = vmul.f32 %v1310, %v1683
  %v1759 = vmul.f32 %v1311, %v1685
  %v1760 = vmul.f32 %v1312, %v1687
  %v1761 = vmul.f32 %v1313, %v1689
  %v1762 = vmul.f32 %v1314, %v1691
  %v1763 = vmul.f32 %v1315, %v1693
  %v1764 = vmul.f32 %v1316, %v1695
  %v1765 = vmul.f32 %v1317, %v1697
  %v1766 = vmul.f32 %v1318, %v1699
  %v1767 = vmul.f32 %v1319, %v1701
  %v1768 = vmul.f32 %v1320, %v1703
  %v1769 = vmul.f32 %v1321, %v1705
  %1770 = vst.msk [vmem:[%s5] sm:$0xff] %vm861, %v1706
  %1771 = vst.msk [vmem:[%s5 + $0x8] sm:$0xff] %vm861, %v1707
  %1772 = vst.msk [vmem:[%s5 + $0x10] sm:$0xff] %vm861, %v1708
  %1773 = vst.msk [vmem:[%s5 + $0x18] sm:$0xff] %vm861, %v1709
  %1774 = vst.msk [vmem:[%s5 + $0x20] sm:$0xff] %vm861, %v1710
  %1775 = vst.msk [vmem:[%s5 + $0x28] sm:$0xff] %vm861, %v1711
  %1776 = vst.msk [vmem:[%s5 + $0x30] sm:$0xff] %vm861, %v1712
  %1777 = vst.msk [vmem:[%s5 + $0x38] sm:$0xff] %vm861, %v1713
  %1778 = vst.msk [vmem:[%s5 + $0x40] sm:$0xff] %vm861, %v1714
  %1779 = vst.msk [vmem:[%s5 + $0x48] sm:$0xff] %vm861, %v1715
  %1780 = vst.msk [vmem:[%s5 + $0x50] sm:$0xff] %vm861, %v1716
  %1781 = vst.msk [vmem:[%s5 + $0x58] sm:$0xff] %vm861, %v1717
  %1782 = vst.msk [vmem:[%s5 + $0x60] sm:$0xff] %vm861, %v1718
  %1783 = vst.msk [vmem:[%s5 + $0x68] sm:$0xff] %vm861, %v1719
  %1784 = vst.msk [vmem:[%s5 + $0x70] sm:$0xff] %vm861, %v1720
  %1785 = vst.msk [vmem:[%s5 + $0x78] sm:$0xff] %vm861, %v1721
  %1786 = vst.msk [vmem:[%s5 + $0x80] sm:$0xff] %vm861, %v1722
  %1787 = vst.msk [vmem:[%s5 + $0x88] sm:$0xff] %vm861, %v1723
  %1788 = vst.msk [vmem:[%s5 + $0x90] sm:$0xff] %vm861, %v1724
  %1789 = vst.msk [vmem:[%s5 + $0x98] sm:$0xff] %vm861, %v1725
  %1790 = vst.msk [vmem:[%s5 + $0xa0] sm:$0xff] %vm861, %v1726
  %1791 = vst.msk [vmem:[%s5 + $0xa8] sm:$0xff] %vm861, %v1727
  %1792 = vst.msk [vmem:[%s5 + $0xb0] sm:$0xff] %vm861, %v1728
  %1793 = vst.msk [vmem:[%s5 + $0xb8] sm:$0xff] %vm861, %v1729
  %1794 = vst.msk [vmem:[%s5 + $0xc0] sm:$0xff] %vm861, %v1730
  %1795 = vst.msk [vmem:[%s5 + $0xc8] sm:$0xff] %vm861, %v1731
  %1796 = vst.msk [vmem:[%s5 + $0xd0] sm:$0xff] %vm861, %v1732
  %1797 = vst.msk [vmem:[%s5 + $0xd8] sm:$0xff] %vm861, %v1733
  %1798 = vst.msk [vmem:[%s5 + $0xe0] sm:$0xff] %vm861, %v1734
  %1799 = vst.msk [vmem:[%s5 + $0xe8] sm:$0xff] %vm861, %v1735
  %1800 = vst.msk [vmem:[%s5 + $0xf0] sm:$0xff] %vm861, %v1736
  %1801 = vst.msk [vmem:[%s5 + $0xf8] sm:$0xff] %vm861, %v1737
  %1802 = vst.msk [vmem:[%s5 + $0x100] sm:$0xff] %vm861, %v1738
  %1803 = vst.msk [vmem:[%s5 + $0x108] sm:$0xff] %vm861, %v1739
  %1804 = vst.msk [vmem:[%s5 + $0x110] sm:$0xff] %vm861, %v1740
  %1805 = vst.msk [vmem:[%s5 + $0x118] sm:$0xff] %vm861, %v1741
  %1806 = vst.msk [vmem:[%s5 + $0x120] sm:$0xff] %vm861, %v1742
  %1807 = vst.msk [vmem:[%s5 + $0x128] sm:$0xff] %vm861, %v1743
  %1808 = vst.msk [vmem:[%s5 + $0x130] sm:$0xff] %vm861, %v1744
  %1809 = vst.msk [vmem:[%s5 + $0x138] sm:$0xff] %vm861, %v1745
  %1810 = vst.msk [vmem:[%s5 + $0x140] sm:$0xff] %vm861, %v1746
  %1811 = vst.msk [vmem:[%s5 + $0x148] sm:$0xff] %vm861, %v1747
  %1812 = vst.msk [vmem:[%s5 + $0x150] sm:$0xff] %vm861, %v1748
  %1813 = vst.msk [vmem:[%s5 + $0x158] sm:$0xff] %vm861, %v1749
  %1814 = vst.msk [vmem:[%s5 + $0x160] sm:$0xff] %vm861, %v1750
  %1815 = vst.msk [vmem:[%s5 + $0x168] sm:$0xff] %vm861, %v1751
  %1816 = vst.msk [vmem:[%s5 + $0x170] sm:$0xff] %vm861, %v1752
  %1817 = vst.msk [vmem:[%s5 + $0x178] sm:$0xff] %vm861, %v1753
  %1818 = vst.msk [vmem:[%s5 + $0x180] sm:$0xff] %vm861, %v1754
  %1819 = vst.msk [vmem:[%s5 + $0x188] sm:$0xff] %vm861, %v1755
  %1820 = vst.msk [vmem:[%s5 + $0x190] sm:$0xff] %vm861, %v1756
  %1821 = vst.msk [vmem:[%s5 + $0x198] sm:$0xff] %vm861, %v1757
  %1822 = vst.msk [vmem:[%s5 + $0x1a0] sm:$0xff] %vm861, %v1758
  %1823 = vst.msk [vmem:[%s5 + $0x1a8] sm:$0xff] %vm861, %v1759
  %1824 = vst.msk [vmem:[%s5 + $0x1b0] sm:$0xff] %vm861, %v1760
  %1825 = vst.msk [vmem:[%s5 + $0x1b8] sm:$0xff] %vm861, %v1761
  %1826 = vst.msk [vmem:[%s5 + $0x1c0] sm:$0xff] %vm861, %v1762
  %1827 = vst.msk [vmem:[%s5 + $0x1c8] sm:$0xff] %vm861, %v1763
  %1828 = vst.msk [vmem:[%s5 + $0x1d0] sm:$0xff] %vm861, %v1764
  %1829 = vst.msk [vmem:[%s5 + $0x1d8] sm:$0xff] %vm861, %v1765
  %1830 = vst.msk [vmem:[%s5 + $0x1e0] sm:$0xff] %vm861, %v1766
  %1831 = vst.msk [vmem:[%s5 + $0x1e8] sm:$0xff] %vm861, %v1767
  %1832 = vst.msk [vmem:[%s5 + $0x1f0] sm:$0xff] %vm861, %v1768
  %1833 = vst.msk [vmem:[%s5 + $0x1f8] sm:$0xff] %vm861, %v1769
  // Predicated region
  $region22: #{c2f_forward.5} parent=0 // pred_check
    _
  $region23: #{c2f_forward.5} parent=0 // pred_check_branch
    %1835 = sbr.rel (0) target = $region25
  $region24: #{c2f_forward.5} parent=0 // pred_region
    _
  $region25: #{c2f_forward.5} parent=0 // pred_fallthru
    _
  // Predicated region
  $region26: #{c2f_forward.5} parent=0 // pred_check
    _
  $region27: #{c2f_forward.5} parent=0 // pred_check_branch
    %1837 = sbr.rel (0) target = $region29
  $region28: #{c2f_forward.5} parent=0 // pred_region
    _
  $region29: #{c2f_forward.5} parent=0 // pred_fallthru
    _

// kernel: c2f_forward.4
$region0: #{c2f_forward.4}
  #allocation0 [shape = 'u32[]', space=smem, size = 0x4, offset = 0x4, fixed_abs, tag = 'smem constant byte address 0x4 - core index']
  #allocation1 [shape = 'u32[144,128]{1,0:T(1,128)}', space=vmem, size = 0x12000, scoped, tag = 'internal scratch']
  #allocation2 [shape = 'bf16[346,2]{1,0:T(8,128)(2,1)}', space=vmem, size = 0x16000, scoped, tag = 'scratch operand']
  %s0 = inlined_call_operand.vmem [shape: bf16[2,332,2], index: 0, kind: input, shape index: {}]
  %s1 = inlined_call_operand.vmem [shape: bf16[9,2,2], index: 1, kind: input, shape index: {}]
  %s2 = inlined_call_operand.vmem [shape: f32[1,2], index: 2, kind: input, shape index: {}]
  %s3 = inlined_call_operand.vmem [shape: bf16[9,2,2], index: 3, kind: input, shape index: {}]
  %s4 = inlined_call_operand.vmem [shape: f32[1,2], index: 4, kind: input, shape index: {}]
  %s5 = inlined_call_operand.vmem [shape: bf16[2,288,2], index: 5, kind: output, shape index: {}]
  %s6 = sld [smem:[#allocation0]]
  $region57: #{c2f_forward.4} parent=0
    _
  %s8 = ssub.s32 1, %s6
  %s9 = scalar_select 0, %s8, %s6
  loop: start=0, step=1, limit=4
  $region2: #{c2f_forward.4} parent=0 // loop_pre_header
    _
  $region3: #{c2f_forward.4} parent=0 // loop_header
    %s11 = sphi 0, %s15
    %p12 = scmp.ge.s32.totalorder %s11, 4
    %s21 = sphi 0, %s23
    %s24 = sphi 0, %s21
    %s25 = sphi 0, %s24
    %s41 = sphi 0, %s25
    %s45 = sphi 0, %s45
    %s47 = sphi 0, %s45
    %s48 = sphi 0, %s47
    %s62 = sphi 0, %s48
    %s66 = sphi 0, %s66
    %s68 = sphi 0, %s66
    %s69 = sphi 0, %s68
    %s83 = sphi 0, %s69
    %s87 = sphi 0, %s87
    %s89 = sphi 0, %s87
    %s90 = sphi 0, %s89
    %s104 = sphi 0, %s90
    %s108 = sphi 0, %s108
    %s110 = sphi 0, %s108
    %s111 = sphi 0, %s110
    %s125 = sphi 0, %s111
    %s131 = sphi 0, %s133
    %s134 = sphi 0, %s131
    %s135 = sphi 0, %s134
    %s151 = sphi 0, %s135
  $region4: #{c2f_forward.4} parent=0 // loop_header_branch
    %14 = sbr.rel (%p12) target = $region8
  $region5: #{c2f_forward.4} parent=0 // loop_body
    %s16 = ssub.s32 %s11, 1
    %s17 = ssub.s32 %s11, 2
    %s18 = sadd.s32 %s11, 1
    %s19 = ssub.s32 %s11, %s18
    %p20 = scmp.eq.s32.totalorder %s19, 0
    %s22 = sadd.s32 %s21, 1
    %s23 = scalar_select %p20, %s21, %s22
    %p26 = pneg %p20
    %p27 = scmp.eq.s32.totalorder %s11, 1
    %p28 = por %p26, %p27
    %p29 = scmp.ne.s32.totalorder %s21, %s24
    %p30 = scmp.eq.s32.totalorder %s11, 0
    %p31 = por %p29, %p30
    %p32 = scmp.ne.s32.totalorder %s21, %s24
    %p33 = scmp.eq.s32.totalorder %s16, 1
    %p34 = por %p32, %p33
    %p35 = scmp.ne.s32.totalorder %s24, %s25
    %p36 = scmp.eq.s32.totalorder %s16, 0
    %p37 = por %p35, %p36
    %p38 = scmp.ne.s32.totalorder %s24, %s25
    %p39 = scmp.eq.s32.totalorder %s17, 1
    %p40 = por %p38, %p39
    %p42 = scmp.ne.s32.totalorder %s25, %s41
    %p43 = scmp.eq.s32.totalorder %s17, 0
    %p44 = por %p42, %p43
    %s46 = sadd.s32 %s45, 1
    %p49 = scmp.eq.s32.totalorder %s11, 1
    %p50 = scmp.ne.s32.totalorder %s45, %s47
    %p51 = scmp.eq.s32.totalorder %s11, 0
    %p52 = por %p50, %p51
    %p53 = scmp.ne.s32.totalorder %s45, %s47
    %p54 = scmp.eq.s32.totalorder %s16, 1
    %p55 = por %p53, %p54
    %p56 = scmp.ne.s32.totalorder %s47, %s48
    %p57 = scmp.eq.s32.totalorder %s16, 0
    %p58 = por %p56, %p57
    %p59 = scmp.ne.s32.totalorder %s47, %s48
    %p60 = scmp.eq.s32.totalorder %s17, 1
    %p61 = por %p59, %p60
    %p63 = scmp.ne.s32.totalorder %s48, %s62
    %p64 = scmp.eq.s32.totalorder %s17, 0
    %p65 = por %p63, %p64
    %s67 = sadd.s32 %s66, 1
    %p70 = scmp.eq.s32.totalorder %s11, 1
    %p71 = scmp.ne.s32.totalorder %s66, %s68
    %p72 = scmp.eq.s32.totalorder %s11, 0
    %p73 = por %p71, %p72
    %p74 = scmp.ne.s32.totalorder %s66, %s68
    %p75 = scmp.eq.s32.totalorder %s16, 1
    %p76 = por %p74, %p75
    %p77 = scmp.ne.s32.totalorder %s68, %s69
    %p78 = scmp.eq.s32.totalorder %s16, 0
    %p79 = por %p77, %p78
    %p80 = scmp.ne.s32.totalorder %s68, %s69
    %p81 = scmp.eq.s32.totalorder %s17, 1
    %p82 = por %p80, %p81
    %p84 = scmp.ne.s32.totalorder %s69, %s83
    %p85 = scmp.eq.s32.totalorder %s17, 0
    %p86 = por %p84, %p85
    %s88 = sadd.s32 %s87, 1
    %p91 = scmp.eq.s32.totalorder %s11, 1
    %p92 = scmp.ne.s32.totalorder %s87, %s89
    %p93 = scmp.eq.s32.totalorder %s11, 0
    %p94 = por %p92, %p93
    %p95 = scmp.ne.s32.totalorder %s87, %s89
    %p96 = scmp.eq.s32.totalorder %s16, 1
    %p97 = por %p95, %p96
    %p98 = scmp.ne.s32.totalorder %s89, %s90
    %p99 = scmp.eq.s32.totalorder %s16, 0
    %p100 = por %p98, %p99
    %p101 = scmp.ne.s32.totalorder %s89, %s90
    %p102 = scmp.eq.s32.totalorder %s17, 1
    %p103 = por %p101, %p102
    %p105 = scmp.ne.s32.totalorder %s90, %s104
    %p106 = scmp.eq.s32.totalorder %s17, 0
    %p107 = por %p105, %p106
    %s109 = sadd.s32 %s108, 1
    %p112 = scmp.eq.s32.totalorder %s11, 1
    %p113 = scmp.ne.s32.totalorder %s108, %s110
    %p114 = scmp.eq.s32.totalorder %s11, 0
    %p115 = por %p113, %p114
    %p116 = scmp.ne.s32.totalorder %s108, %s110
    %p117 = scmp.eq.s32.totalorder %s16, 1
    %p118 = por %p116, %p117
    %p119 = scmp.ne.s32.totalorder %s110, %s111
    %p120 = scmp.eq.s32.totalorder %s16, 0
    %p121 = por %p119, %p120
    %p122 = scmp.ne.s32.totalorder %s110, %s111
    %p123 = scmp.eq.s32.totalorder %s17, 1
    %p124 = por %p122, %p123
    %p126 = scmp.ne.s32.totalorder %s111, %s125
    %p127 = scmp.eq.s32.totalorder %s17, 0
    %p128 = por %p126, %p127
    %s129 = ssub.s32 %s11, %s18
    %p130 = scmp.eq.s32.totalorder %s129, 0
    %s132 = sadd.s32 %s131, 1
    %s133 = scalar_select %p130, %s131, %s132
    %p136 = pneg %p130
    %p137 = scmp.eq.s32.totalorder %s11, 1
    %p138 = por %p136, %p137
    %p139 = scmp.ne.s32.totalorder %s131, %s134
    %p140 = scmp.eq.s32.totalorder %s11, 0
    %p141 = por %p139, %p140
    %p142 = scmp.ne.s32.totalorder %s131, %s134
    %p143 = scmp.eq.s32.totalorder %s16, 1
    %p144 = por %p142, %p143
    %p145 = scmp.ne.s32.totalorder %s134, %s135
    %p146 = scmp.eq.s32.totalorder %s16, 0
    %p147 = por %p145, %p146
    %p148 = scmp.ne.s32.totalorder %s134, %s135
    %p149 = scmp.eq.s32.totalorder %s17, 1
    %p150 = por %p148, %p149
    %p152 = scmp.ne.s32.totalorder %s135, %s151
    %p153 = scmp.eq.s32.totalorder %s17, 0
    %p154 = por %p152, %p153
    %p155 = scmp.le.s32.totalorder 1, %s11
    %p156 = scmp.lt.s32.totalorder %s11, 3
    %p157 = pnand %p155, %p156
    %p158 = pneg %p157
    // Predicated region
    $region9: #{c2f_forward.4} parent=5 // pred_check
      _
    $region10: #{c2f_forward.4} parent=5 // pred_check_branch
      %160 = sbr.rel (%p157) target = $region12
    $region11: #{c2f_forward.4} parent=5 // pred_region
      %s161 = ssub.s32 %s11, 1
      // Predicated region
      $region13: #{c2f_forward.4} parent=11 // pred_check
        %p162 = pneg %p58
      $region14: #{c2f_forward.4} parent=11 // pred_check_branch
        %164 = sbr.rel (%p162) target = $region16
      $region15: #{c2f_forward.4} parent=11 // pred_region
        _
      $region16: #{c2f_forward.4} parent=11 // pred_fallthru
        _
      // Predicated region
      $region17: #{c2f_forward.4} parent=11 // pred_check
        %p165 = pneg %p79
      $region18: #{c2f_forward.4} parent=11 // pred_check_branch
        %167 = sbr.rel (%p165) target = $region20
      $region19: #{c2f_forward.4} parent=11 // pred_region
        _
      $region20: #{c2f_forward.4} parent=11 // pred_fallthru
        _
      // Predicated region
      $region21: #{c2f_forward.4} parent=11 // pred_check
        %p168 = pneg %p100
      $region22: #{c2f_forward.4} parent=11 // pred_check_branch
        %170 = sbr.rel (%p168) target = $region24
      $region23: #{c2f_forward.4} parent=11 // pred_region
        _
      $region24: #{c2f_forward.4} parent=11 // pred_fallthru
        _
      // Predicated region
      $region25: #{c2f_forward.4} parent=11 // pred_check
        %p171 = pneg %p121
      $region26: #{c2f_forward.4} parent=11 // pred_check_branch
        %173 = sbr.rel (%p171) target = $region28
      $region27: #{c2f_forward.4} parent=11 // pred_region
        _
      $region28: #{c2f_forward.4} parent=11 // pred_fallthru
        _
    $region12: #{c2f_forward.4} parent=5 // pred_fallthru
      _
    %p174 = scmp.lt.s32.totalorder %s11, 2
    // Predicated region
    $region29: #{c2f_forward.4} parent=5 // pred_check
      %p175 = pneg %p174
    $region30: #{c2f_forward.4} parent=5 // pred_check_branch
      %177 = sbr.rel (%p175) target = $region32
    $region31: #{c2f_forward.4} parent=5 // pred_region
      // Predicated region
      $region33: #{c2f_forward.4} parent=31 // pred_check
        %p178 = pneg %p31
      $region34: #{c2f_forward.4} parent=31 // pred_check_branch
        %180 = sbr.rel (%p178) target = $region36
      $region35: #{c2f_forward.4} parent=31 // pred_region
        %p181 = scmp.lt.s32.totalorder %s11, 1
        %s182 = scalar_select %p181, %s11, 1
        %s183 = smul.addr %s182, 42
        %s184 = smul.addr %s183, 4
        %s185 = scalar_lea.vmem %s0, %s184
      $region36: #{c2f_forward.4} parent=31 // pred_fallthru
        _
    $region32: #{c2f_forward.4} parent=5 // pred_fallthru
      _
    %p186 = scmp.le.s32.totalorder 1, %s11
    %p187 = scmp.lt.s32.totalorder %s11, 3
    %p188 = pnand %p186, %p187
    %p189 = pneg %p188
    // Predicated region
    $region37: #{c2f_forward.4} parent=5 // pred_check
      _
    $region38: #{c2f_forward.4} parent=5 // pred_check_branch
      %191 = sbr.rel (%p188) target = $region40
    $region39: #{c2f_forward.4} parent=5 // pred_region
      %s192 = ssub.s32 %s11, 1
      %p193 = scmp.lt.s32.totalorder %s16, 1
      %s194 = scalar_select %p193, %s16, 1
      %s195 = smul.addr %s194, 42
      %s196 = smul.addr %s195, 4
      %s197 = scalar_lea.vmem %s0, %s196
      %p198 = pneg %p37
      %p199 = pneg %p34
      %p200 = pneg %p58
      %p201 = pneg %p55
      %p202 = pneg %p79
      %p203 = pneg %p76
      %p204 = pneg %p100
      %p205 = pneg %p97
      %p206 = pneg %p121
      %p207 = pneg %p118
      %p208 = pneg %p147
      %p209 = pneg %p144
      %p210 = scmp.lt.s32.totalorder %s16, 1
      %s211 = scalar_select %p210, %s16, 1
      %s212 = smul.addr %s211, 36
      %s213 = smul.addr %s212, 4
      %s214 = scalar_lea.vmem %s5, %s213
      %p215 = scmp.lt.s32.totalorder %s16, 1
      %s216 = scalar_select %p215, %s16, 1
      %s217 = smul.addr %s216, 42
      %s218 = smul.addr %s217, 4
      %s219 = scalar_lea.vmem %s0, %s218
      %p220 = scmp.lt.s32.totalorder %s16, 1
      %s221 = scalar_select %p220, %s16, 1
      %s222 = smul.addr %s221, 36
      %s223 = smul.addr %s222, 4
      %s224 = scalar_lea.vmem %s5, %s223
      %p226 = scmp.eq.s32.totalorder %s16, 0
      // Predicated region
      $region41: #{c2f_forward.4} parent=39 // pred_check
        %p227 = pneg %p226
      $region42: #{c2f_forward.4} parent=39 // pred_check_branch
        %229 = sbr.rel (%p227) target = $region44
      $region43: #{c2f_forward.4} parent=39 // pred_region
        %vm230 = vcmask 11264
        %231 = vst.msk [vmem:[#allocation2] sm:$0xf] %vm230, 0
        %232 = vst.msk [vmem:[#allocation2 + $0x4] sm:$0xf] %vm230, 0
        %233 = vst.msk [vmem:[#allocation2 + $0x8] sm:$0xf] %vm230, 0
        %234 = vst.msk [vmem:[#allocation2 + $0xc] sm:$0xf] %vm230, 0
        %235 = vst.msk [vmem:[#allocation2 + $0x10] sm:$0xf] %vm230, 0
        %236 = vst.msk [vmem:[#allocation2 + $0x14] sm:$0xf] %vm230, 0
        %237 = vst.msk [vmem:[#allocation2 + $0x18] sm:$0xf] %vm230, 0
        %238 = vst.msk [vmem:[#allocation2 + $0x1c] sm:$0xf] %vm230, 0
        %239 = vst.msk [vmem:[#allocation2 + $0x20] sm:$0xf] %vm230, 0
        %240 = vst.msk [vmem:[#allocation2 + $0x24] sm:$0xf] %vm230, 0
        %241 = vst.msk [vmem:[#allocation2 + $0x28] sm:$0xf] %vm230, 0
        %242 = vst.msk [vmem:[#allocation2 + $0x2c] sm:$0xf] %vm230, 0
        %243 = vst.msk [vmem:[#allocation2 + $0x30] sm:$0xf] %vm230, 0
        %244 = vst.msk [vmem:[#allocation2 + $0x34] sm:$0xf] %vm230, 0
        %245 = vst.msk [vmem:[#allocation2 + $0x38] sm:$0xf] %vm230, 0
        %246 = vst.msk [vmem:[#allocation2 + $0x3c] sm:$0xf] %vm230, 0
        %247 = vst.msk [vmem:[#allocation2 + $0x40] sm:$0xf] %vm230, 0
        %248 = vst.msk [vmem:[#allocation2 + $0x44] sm:$0xf] %vm230, 0
        %249 = vst.msk [vmem:[#allocation2 + $0x48] sm:$0xf] %vm230, 0
        %250 = vst.msk [vmem:[#allocation2 + $0x4c] sm:$0xf] %vm230, 0
        %251 = vst.msk [vmem:[#allocation2 + $0x50] sm:$0xf] %vm230, 0
        %252 = vst.msk [vmem:[#allocation2 + $0x54] sm:$0xf] %vm230, 0
        %253 = vst.msk [vmem:[#allocation2 + $0x58] sm:$0xf] %vm230, 0
        %254 = vst.msk [vmem:[#allocation2 + $0x5c] sm:$0xf] %vm230, 0
        %255 = vst.msk [vmem:[#allocation2 + $0x60] sm:$0xf] %vm230, 0
        %256 = vst.msk [vmem:[#allocation2 + $0x64] sm:$0xf] %vm230, 0
        %257 = vst.msk [vmem:[#allocation2 + $0x68] sm:$0xf] %vm230, 0
        %258 = vst.msk [vmem:[#allocation2 + $0x6c] sm:$0xf] %vm230, 0
        %259 = vst.msk [vmem:[#allocation2 + $0x70] sm:$0xf] %vm230, 0
        %260 = vst.msk [vmem:[#allocation2 + $0x74] sm:$0xf] %vm230, 0
        %261 = vst.msk [vmem:[#allocation2 + $0x78] sm:$0xf] %vm230, 0
        %262 = vst.msk [vmem:[#allocation2 + $0x7c] sm:$0xf] %vm230, 0
        %263 = vst.msk [vmem:[#allocation2 + $0x80] sm:$0xf] %vm230, 0
        %264 = vst.msk [vmem:[#allocation2 + $0x84] sm:$0xf] %vm230, 0
        %265 = vst.msk [vmem:[#allocation2 + $0x88] sm:$0xf] %vm230, 0
        %266 = vst.msk [vmem:[#allocation2 + $0x8c] sm:$0xf] %vm230, 0
        %267 = vst.msk [vmem:[#allocation2 + $0x90] sm:$0xf] %vm230, 0
        %268 = vst.msk [vmem:[#allocation2 + $0x94] sm:$0xf] %vm230, 0
        %269 = vst.msk [vmem:[#allocation2 + $0x98] sm:$0xf] %vm230, 0
        %270 = vst.msk [vmem:[#allocation2 + $0x9c] sm:$0xf] %vm230, 0
        %271 = vst.msk [vmem:[#allocation2 + $0xa0] sm:$0xf] %vm230, 0
        %272 = vst.msk [vmem:[#allocation2 + $0xa4] sm:$0xf] %vm230, 0
        %273 = vst.msk [vmem:[#allocation2 + $0xa8] sm:$0xf] %vm230, 0
        %vm274 = vcmask 8192
        %275 = vst.msk [vmem:[#allocation2 + $0xac] sm:$0x1] %vm274, 0
      $region44: #{c2f_forward.4} parent=39 // pred_fallthru
        _
      %v276 = vlaneseq
      %v277 = vshrl.u32 %v276, 7
      %v278 = vadd.s32 %v277, 8
      %v279 = vadd.s32 %v277, 16
      %v280 = vadd.s32 %v277, 24
      %v281 = vadd.s32 %v277, 32
      %v282 = vadd.s32 %v277, 40
      %v283 = vadd.s32 %v277, 48
      %v284 = vadd.s32 %v277, 56
      %v285 = vadd.s32 %v277, 64
      %v286 = vadd.s32 %v277, 72
      %v287 = vadd.s32 %v277, 80
      %v288 = vadd.s32 %v277, 88
      %v289 = vadd.s32 %v277, 96
      %v290 = vadd.s32 %v277, 104
      %v291 = vadd.s32 %v277, 112
      %v292 = vadd.s32 %v277, 120
      %v293 = vadd.s32 %v277, 128
      %v294 = vadd.s32 %v277, 136
      %v295 = vadd.s32 %v277, 144
      %v296 = vadd.s32 %v277, 152
      %v297 = vadd.s32 %v277, 160
      %v298 = vadd.s32 %v277, 168
      %v299 = vadd.s32 %v277, 176
      %v300 = vadd.s32 %v277, 184
      %v301 = vadd.s32 %v277, 192
      %v302 = vadd.s32 %v277, 200
      %v303 = vadd.s32 %v277, 208
      %v304 = vadd.s32 %v277, 216
      %v305 = vadd.s32 %v277, 224
      %v306 = vadd.s32 %v277, 232
      %v307 = vadd.s32 %v277, 240
      %v308 = vadd.s32 %v277, 248
      %v309 = vadd.s32 %v277, 256
      %v310 = vadd.s32 %v277, 264
      %v311 = vadd.s32 %v277, 272
      %v312 = vadd.s32 %v277, 280
      %vm313 = vcmp.lt.s32.totalorder %v277, 0
      %v314 = vsub.s32 0, %v277
      %v315 = vsel %vm313, %v314, %v277
      %v316 = vmul.u32.u64.compose %v315, 3817748708
      %v317 = vextract.low.u32 %v316
      %v318 = vextract.high.u32 %v316
      %v319 = vshrl.u32 %v318, 4
      %v320 = vmul.u32 %v319, 18
      %v321 = vsub.s32 %v315, %v320
      %v322 = vsub.s32 0, %v321
      %v323 = vsel %vm313, %v322, %v321
      %vm324 = vcmp.lt.s32.totalorder %v278, 0
      %v325 = vsub.s32 0, %v278
      %v326 = vsel %vm324, %v325, %v278
      %v327 = vmul.u32.u64.compose %v326, 3817748708
      %v328 = vextract.low.u32 %v327
      %v329 = vextract.high.u32 %v327
      %v330 = vshrl.u32 %v329, 4
      %v331 = vmul.u32 %v330, 18
      %v332 = vsub.s32 %v326, %v331
      %v333 = vsub.s32 0, %v332
      %v334 = vsel %vm324, %v333, %v332
      %vm335 = vcmp.lt.s32.totalorder %v279, 0
      %v336 = vsub.s32 0, %v279
      %v337 = vsel %vm335, %v336, %v279
      %v338 = vmul.u32.u64.compose %v337, 3817748708
      %v339 = vextract.low.u32 %v338
      %v340 = vextract.high.u32 %v338
      %v341 = vshrl.u32 %v340, 4
      %v342 = vmul.u32 %v341, 18
      %v343 = vsub.s32 %v337, %v342
      %v344 = vsub.s32 0, %v343
      %v345 = vsel %vm335, %v344, %v343
      %vm346 = vcmp.lt.s32.totalorder %v280, 0
      %v347 = vsub.s32 0, %v280
      %v348 = vsel %vm346, %v347, %v280
      %v349 = vmul.u32.u64.compose %v348, 3817748708
      %v350 = vextract.low.u32 %v349
      %v351 = vextract.high.u32 %v349
      %v352 = vshrl.u32 %v351, 4
      %v353 = vmul.u32 %v352, 18
      %v354 = vsub.s32 %v348, %v353
      %v355 = vsub.s32 0, %v354
      %v356 = vsel %vm346, %v355, %v354
      %vm357 = vcmp.lt.s32.totalorder %v281, 0
      %v358 = vsub.s32 0, %v281
      %v359 = vsel %vm357, %v358, %v281
      %v360 = vmul.u32.u64.compose %v359, 3817748708
      %v361 = vextract.low.u32 %v360
      %v362 = vextract.high.u32 %v360
      %v363 = vshrl.u32 %v362, 4
      %v364 = vmul.u32 %v363, 18
      %v365 = vsub.s32 %v359, %v364
      %v366 = vsub.s32 0, %v365
      %v367 = vsel %vm357, %v366, %v365
      %vm368 = vcmp.lt.s32.totalorder %v282, 0
      %v369 = vsub.s32 0, %v282
      %v370 = vsel %vm368, %v369, %v282
      %v371 = vmul.u32.u64.compose %v370, 3817748708
      %v372 = vextract.low.u32 %v371
      %v373 = vextract.high.u32 %v371
      %v374 = vshrl.u32 %v373, 4
      %v375 = vmul.u32 %v374, 18
      %v376 = vsub.s32 %v370, %v375
      %v377 = vsub.s32 0, %v376
      %v378 = vsel %vm368, %v377, %v376
      %vm379 = vcmp.lt.s32.totalorder %v283, 0
      %v380 = vsub.s32 0, %v283
      %v381 = vsel %vm379, %v380, %v283
      %v382 = vmul.u32.u64.compose %v381, 3817748708
      %v383 = vextract.low.u32 %v382
      %v384 = vextract.high.u32 %v382
      %v385 = vshrl.u32 %v384, 4
      %v386 = vmul.u32 %v385, 18
      %v387 = vsub.s32 %v381, %v386
      %v388 = vsub.s32 0, %v387
      %v389 = vsel %vm379, %v388, %v387
      %vm390 = vcmp.lt.s32.totalorder %v284, 0
      %v391 = vsub.s32 0, %v284
      %v392 = vsel %vm390, %v391, %v284
      %v393 = vmul.u32.u64.compose %v392, 3817748708
      %v394 = vextract.low.u32 %v393
      %v395 = vextract.high.u32 %v393
      %v396 = vshrl.u32 %v395, 4
      %v397 = vmul.u32 %v396, 18
      %v398 = vsub.s32 %v392, %v397
      %v399 = vsub.s32 0, %v398
      %v400 = vsel %vm390, %v399, %v398
      %vm401 = vcmp.lt.s32.totalorder %v285, 0
      %v402 = vsub.s32 0, %v285
      %v403 = vsel %vm401, %v402, %v285
      %v404 = vmul.u32.u64.compose %v403, 3817748708
      %v405 = vextract.low.u32 %v404
      %v406 = vextract.high.u32 %v404
      %v407 = vshrl.u32 %v406, 4
      %v408 = vmul.u32 %v407, 18
      %v409 = vsub.s32 %v403, %v408
      %v410 = vsub.s32 0, %v409
      %v411 = vsel %vm401, %v410, %v409
      %vm412 = vcmp.lt.s32.totalorder %v286, 0
      %v413 = vsub.s32 0, %v286
      %v414 = vsel %vm412, %v413, %v286
      %v415 = vmul.u32.u64.compose %v414, 3817748708
      %v416 = vextract.low.u32 %v415
      %v417 = vextract.high.u32 %v415
      %v418 = vshrl.u32 %v417, 4
      %v419 = vmul.u32 %v418, 18
      %v420 = vsub.s32 %v414, %v419
      %v421 = vsub.s32 0, %v420
      %v422 = vsel %vm412, %v421, %v420
      %vm423 = vcmp.lt.s32.totalorder %v287, 0
      %v424 = vsub.s32 0, %v287
      %v425 = vsel %vm423, %v424, %v287
      %v426 = vmul.u32.u64.compose %v425, 3817748708
      %v427 = vextract.low.u32 %v426
      %v428 = vextract.high.u32 %v426
      %v429 = vshrl.u32 %v428, 4
      %v430 = vmul.u32 %v429, 18
      %v431 = vsub.s32 %v425, %v430
      %v432 = vsub.s32 0, %v431
      %v433 = vsel %vm423, %v432, %v431
      %vm434 = vcmp.lt.s32.totalorder %v288, 0
      %v435 = vsub.s32 0, %v288
      %v436 = vsel %vm434, %v435, %v288
      %v437 = vmul.u32.u64.compose %v436, 3817748708
      %v438 = vextract.low.u32 %v437
      %v439 = vextract.high.u32 %v437
      %v440 = vshrl.u32 %v439, 4
      %v441 = vmul.u32 %v440, 18
      %v442 = vsub.s32 %v436, %v441
      %v443 = vsub.s32 0, %v442
      %v444 = vsel %vm434, %v443, %v442
      %vm445 = vcmp.lt.s32.totalorder %v289, 0
      %v446 = vsub.s32 0, %v289
      %v447 = vsel %vm445, %v446, %v289
      %v448 = vmul.u32.u64.compose %v447, 3817748708
      %v449 = vextract.low.u32 %v448
      %v450 = vextract.high.u32 %v448
      %v451 = vshrl.u32 %v450, 4
      %v452 = vmul.u32 %v451, 18
      %v453 = vsub.s32 %v447, %v452
      %v454 = vsub.s32 0, %v453
      %v455 = vsel %vm445, %v454, %v453
      %vm456 = vcmp.lt.s32.totalorder %v290, 0
      %v457 = vsub.s32 0, %v290
      %v458 = vsel %vm456, %v457, %v290
      %v459 = vmul.u32.u64.compose %v458, 3817748708
      %v460 = vextract.low.u32 %v459
      %v461 = vextract.high.u32 %v459
      %v462 = vshrl.u32 %v461, 4
      %v463 = vmul.u32 %v462, 18
      %v464 = vsub.s32 %v458, %v463
      %v465 = vsub.s32 0, %v464
      %v466 = vsel %vm456, %v465, %v464
      %vm467 = vcmp.lt.s32.totalorder %v291, 0
      %v468 = vsub.s32 0, %v291
      %v469 = vsel %vm467, %v468, %v291
      %v470 = vmul.u32.u64.compose %v469, 3817748708
      %v471 = vextract.low.u32 %v470
      %v472 = vextract.high.u32 %v470
      %v473 = vshrl.u32 %v472, 4
      %v474 = vmul.u32 %v473, 18
      %v475 = vsub.s32 %v469, %v474
      %v476 = vsub.s32 0, %v475
      %v477 = vsel %vm467, %v476, %v475
      %vm478 = vcmp.lt.s32.totalorder %v292, 0
      %v479 = vsub.s32 0, %v292
      %v480 = vsel %vm478, %v479, %v292
      %v481 = vmul.u32.u64.compose %v480, 3817748708
      %v482 = vextract.low.u32 %v481
      %v483 = vextract.high.u32 %v481
      %v484 = vshrl.u32 %v483, 4
      %v485 = vmul.u32 %v484, 18
      %v486 = vsub.s32 %v480, %v485
      %v487 = vsub.s32 0, %v486
      %v488 = vsel %vm478, %v487, %v486
      %vm489 = vcmp.lt.s32.totalorder %v293, 0
      %v490 = vsub.s32 0, %v293
      %v491 = vsel %vm489, %v490, %v293
      %v492 = vmul.u32.u64.compose %v491, 3817748708
      %v493 = vextract.low.u32 %v492
      %v494 = vextract.high.u32 %v492
      %v495 = vshrl.u32 %v494, 4
      %v496 = vmul.u32 %v495, 18
      %v497 = vsub.s32 %v491, %v496
      %v498 = vsub.s32 0, %v497
      %v499 = vsel %vm489, %v498, %v497
      %vm500 = vcmp.lt.s32.totalorder %v294, 0
      %v501 = vsub.s32 0, %v294
      %v502 = vsel %vm500, %v501, %v294
      %v503 = vmul.u32.u64.compose %v502, 3817748708
      %v504 = vextract.low.u32 %v503
      %v505 = vextract.high.u32 %v503
      %v506 = vshrl.u32 %v505, 4
      %v507 = vmul.u32 %v506, 18
      %v508 = vsub.s32 %v502, %v507
      %v509 = vsub.s32 0, %v508
      %v510 = vsel %vm500, %v509, %v508
      %vm511 = vcmp.lt.s32.totalorder %v295, 0
      %v512 = vsub.s32 0, %v295
      %v513 = vsel %vm511, %v512, %v295
      %v514 = vmul.u32.u64.compose %v513, 3817748708
      %v515 = vextract.low.u32 %v514
      %v516 = vextract.high.u32 %v514
      %v517 = vshrl.u32 %v516, 4
      %v518 = vmul.u32 %v517, 18
      %v519 = vsub.s32 %v513, %v518
      %v520 = vsub.s32 0, %v519
      %v521 = vsel %vm511, %v520, %v519
      %vm522 = vcmp.lt.s32.totalorder %v296, 0
      %v523 = vsub.s32 0, %v296
      %v524 = vsel %vm522, %v523, %v296
      %v525 = vmul.u32.u64.compose %v524, 3817748708
      %v526 = vextract.low.u32 %v525
      %v527 = vextract.high.u32 %v525
      %v528 = vshrl.u32 %v527, 4
      %v529 = vmul.u32 %v528, 18
      %v530 = vsub.s32 %v524, %v529
      %v531 = vsub.s32 0, %v530
      %v532 = vsel %vm522, %v531, %v530
      %vm533 = vcmp.lt.s32.totalorder %v297, 0
      %v534 = vsub.s32 0, %v297
      %v535 = vsel %vm533, %v534, %v297
      %v536 = vmul.u32.u64.compose %v535, 3817748708
      %v537 = vextract.low.u32 %v536
      %v538 = vextract.high.u32 %v536
      %v539 = vshrl.u32 %v538, 4
      %v540 = vmul.u32 %v539, 18
      %v541 = vsub.s32 %v535, %v540
      %v542 = vsub.s32 0, %v541
      %v543 = vsel %vm533, %v542, %v541
      %vm544 = vcmp.lt.s32.totalorder %v298, 0
      %v545 = vsub.s32 0, %v298
      %v546 = vsel %vm544, %v545, %v298
      %v547 = vmul.u32.u64.compose %v546, 3817748708
      %v548 = vextract.low.u32 %v547
      %v549 = vextract.high.u32 %v547
      %v550 = vshrl.u32 %v549, 4
      %v551 = vmul.u32 %v550, 18
      %v552 = vsub.s32 %v546, %v551
      %v553 = vsub.s32 0, %v552
      %v554 = vsel %vm544, %v553, %v552
      %vm555 = vcmp.lt.s32.totalorder %v299, 0
      %v556 = vsub.s32 0, %v299
      %v557 = vsel %vm555, %v556, %v299
      %v558 = vmul.u32.u64.compose %v557, 3817748708
      %v559 = vextract.low.u32 %v558
      %v560 = vextract.high.u32 %v558
      %v561 = vshrl.u32 %v560, 4
      %v562 = vmul.u32 %v561, 18
      %v563 = vsub.s32 %v557, %v562
      %v564 = vsub.s32 0, %v563
      %v565 = vsel %vm555, %v564, %v563
      %vm566 = vcmp.lt.s32.totalorder %v300, 0
      %v567 = vsub.s32 0, %v300
      %v568 = vsel %vm566, %v567, %v300
      %v569 = vmul.u32.u64.compose %v568, 3817748708
      %v570 = vextract.low.u32 %v569
      %v571 = vextract.high.u32 %v569
      %v572 = vshrl.u32 %v571, 4
      %v573 = vmul.u32 %v572, 18
      %v574 = vsub.s32 %v568, %v573
      %v575 = vsub.s32 0, %v574
      %v576 = vsel %vm566, %v575, %v574
      %vm577 = vcmp.lt.s32.totalorder %v301, 0
      %v578 = vsub.s32 0, %v301
      %v579 = vsel %vm577, %v578, %v301
      %v580 = vmul.u32.u64.compose %v579, 3817748708
      %v581 = vextract.low.u32 %v580
      %v582 = vextract.high.u32 %v580
      %v583 = vshrl.u32 %v582, 4
      %v584 = vmul.u32 %v583, 18
      %v585 = vsub.s32 %v579, %v584
      %v586 = vsub.s32 0, %v585
      %v587 = vsel %vm577, %v586, %v585
      %vm588 = vcmp.lt.s32.totalorder %v302, 0
      %v589 = vsub.s32 0, %v302
      %v590 = vsel %vm588, %v589, %v302
      %v591 = vmul.u32.u64.compose %v590, 3817748708
      %v592 = vextract.low.u32 %v591
      %v593 = vextract.high.u32 %v591
      %v594 = vshrl.u32 %v593, 4
      %v595 = vmul.u32 %v594, 18
      %v596 = vsub.s32 %v590, %v595
      %v597 = vsub.s32 0, %v596
      %v598 = vsel %vm588, %v597, %v596
      %vm599 = vcmp.lt.s32.totalorder %v303, 0
      %v600 = vsub.s32 0, %v303
      %v601 = vsel %vm599, %v600, %v303
      %v602 = vmul.u32.u64.compose %v601, 3817748708
      %v603 = vextract.low.u32 %v602
      %v604 = vextract.high.u32 %v602
      %v605 = vshrl.u32 %v604, 4
      %v606 = vmul.u32 %v605, 18
      %v607 = vsub.s32 %v601, %v606
      %v608 = vsub.s32 0, %v607
      %v609 = vsel %vm599, %v608, %v607
      %vm610 = vcmp.lt.s32.totalorder %v304, 0
      %v611 = vsub.s32 0, %v304
      %v612 = vsel %vm610, %v611, %v304
      %v613 = vmul.u32.u64.compose %v612, 3817748708
      %v614 = vextract.low.u32 %v613
      %v615 = vextract.high.u32 %v613
      %v616 = vshrl.u32 %v615, 4
      %v617 = vmul.u32 %v616, 18
      %v618 = vsub.s32 %v612, %v617
      %v619 = vsub.s32 0, %v618
      %v620 = vsel %vm610, %v619, %v618
      %vm621 = vcmp.lt.s32.totalorder %v305, 0
      %v622 = vsub.s32 0, %v305
      %v623 = vsel %vm621, %v622, %v305
      %v624 = vmul.u32.u64.compose %v623, 3817748708
      %v625 = vextract.low.u32 %v624
      %v626 = vextract.high.u32 %v624
      %v627 = vshrl.u32 %v626, 4
      %v628 = vmul.u32 %v627, 18
      %v629 = vsub.s32 %v623, %v628
      %v630 = vsub.s32 0, %v629
      %v631 = vsel %vm621, %v630, %v629
      %vm632 = vcmp.lt.s32.totalorder %v306, 0
      %v633 = vsub.s32 0, %v306
      %v634 = vsel %vm632, %v633, %v306
      %v635 = vmul.u32.u64.compose %v634, 3817748708
      %v636 = vextract.low.u32 %v635
      %v637 = vextract.high.u32 %v635
      %v638 = vshrl.u32 %v637, 4
      %v639 = vmul.u32 %v638, 18
      %v640 = vsub.s32 %v634, %v639
      %v641 = vsub.s32 0, %v640
      %v642 = vsel %vm632, %v641, %v640
      %vm643 = vcmp.lt.s32.totalorder %v307, 0
      %v644 = vsub.s32 0, %v307
      %v645 = vsel %vm643, %v644, %v307
      %v646 = vmul.u32.u64.compose %v645, 3817748708
      %v647 = vextract.low.u32 %v646
      %v648 = vextract.high.u32 %v646
      %v649 = vshrl.u32 %v648, 4
      %v650 = vmul.u32 %v649, 18
      %v651 = vsub.s32 %v645, %v650
      %v652 = vsub.s32 0, %v651
      %v653 = vsel %vm643, %v652, %v651
      %vm654 = vcmp.lt.s32.totalorder %v308, 0
      %v655 = vsub.s32 0, %v308
      %v656 = vsel %vm654, %v655, %v308
      %v657 = vmul.u32.u64.compose %v656, 3817748708
      %v658 = vextract.low.u32 %v657
      %v659 = vextract.high.u32 %v657
      %v660 = vshrl.u32 %v659, 4
      %v661 = vmul.u32 %v660, 18
      %v662 = vsub.s32 %v656, %v661
      %v663 = vsub.s32 0, %v662
      %v664 = vsel %vm654, %v663, %v662
      %vm665 = vcmp.lt.s32.totalorder %v309, 0
      %v666 = vsub.s32 0, %v309
      %v667 = vsel %vm665, %v666, %v309
      %v668 = vmul.u32.u64.compose %v667, 3817748708
      %v669 = vextract.low.u32 %v668
      %v670 = vextract.high.u32 %v668
      %v671 = vshrl.u32 %v670, 4
      %v672 = vmul.u32 %v671, 18
      %v673 = vsub.s32 %v667, %v672
      %v674 = vsub.s32 0, %v673
      %v675 = vsel %vm665, %v674, %v673
      %vm676 = vcmp.lt.s32.totalorder %v310, 0
      %v677 = vsub.s32 0, %v310
      %v678 = vsel %vm676, %v677, %v310
      %v679 = vmul.u32.u64.compose %v678, 3817748708
      %v680 = vextract.low.u32 %v679
      %v681 = vextract.high.u32 %v679
      %v682 = vshrl.u32 %v681, 4
      %v683 = vmul.u32 %v682, 18
      %v684 = vsub.s32 %v678, %v683
      %v685 = vsub.s32 0, %v684
      %v686 = vsel %vm676, %v685, %v684
      %vm687 = vcmp.lt.s32.totalorder %v311, 0
      %v688 = vsub.s32 0, %v311
      %v689 = vsel %vm687, %v688, %v311
      %v690 = vmul.u32.u64.compose %v689, 3817748708
      %v691 = vextract.low.u32 %v690
      %v692 = vextract.high.u32 %v690
      %v693 = vshrl.u32 %v692, 4
      %v694 = vmul.u32 %v693, 18
      %v695 = vsub.s32 %v689, %v694
      %v696 = vsub.s32 0, %v695
      %v697 = vsel %vm687, %v696, %v695
      %vm698 = vcmp.lt.s32.totalorder %v312, 0
      %v699 = vsub.s32 0, %v312
      %v700 = vsel %vm698, %v699, %v312
      %v701 = vmul.u32.u64.compose %v700, 3817748708
      %v702 = vextract.low.u32 %v701
      %v703 = vextract.high.u32 %v701
      %v704 = vshrl.u32 %v703, 4
      %v705 = vmul.u32 %v704, 18
      %v706 = vsub.s32 %v700, %v705
      %v707 = vsub.s32 0, %v706
      %v708 = vsel %vm698, %v707, %v706
      %vm709 = vcmp.ne.s32.totalorder %v323, 0
      %vm710 = vcmp.ne.s32.totalorder %v334, 0
      %vm711 = vcmp.ne.s32.totalorder %v345, 0
      %vm712 = vcmp.ne.s32.totalorder %v356, 0
      %vm713 = vcmp.ne.s32.totalorder %v367, 0
      %vm714 = vcmp.ne.s32.totalorder %v378, 0
      %vm715 = vcmp.ne.s32.totalorder %v389, 0
      %vm716 = vcmp.ne.s32.totalorder %v400, 0
      %vm717 = vcmp.ne.s32.totalorder %v411, 0
      %vm718 = vcmp.ne.s32.totalorder %v422, 0
      %vm719 = vcmp.ne.s32.totalorder %v433, 0
      %vm720 = vcmp.ne.s32.totalorder %v444, 0
      %vm721 = vcmp.ne.s32.totalorder %v455, 0
      %vm722 = vcmp.ne.s32.totalorder %v466, 0
      %vm723 = vcmp.ne.s32.totalorder %v477, 0
      %vm724 = vcmp.ne.s32.totalorder %v488, 0
      %vm725 = vcmp.ne.s32.totalorder %v499, 0
      %vm726 = vcmp.ne.s32.totalorder %v510, 0
      %vm727 = vcmp.ne.s32.totalorder %v521, 0
      %vm728 = vcmp.ne.s32.totalorder %v532, 0
      %vm729 = vcmp.ne.s32.totalorder %v543, 0
      %vm730 = vcmp.ne.s32.totalorder %v554, 0
      %vm731 = vcmp.ne.s32.totalorder %v565, 0
      %vm732 = vcmp.ne.s32.totalorder %v576, 0
      %vm733 = vcmp.ne.s32.totalorder %v587, 0
      %vm734 = vcmp.ne.s32.totalorder %v598, 0
      %vm735 = vcmp.ne.s32.totalorder %v609, 0
      %vm736 = vcmp.ne.s32.totalorder %v620, 0
      %vm737 = vcmp.ne.s32.totalorder %v631, 0
      %vm738 = vcmp.ne.s32.totalorder %v642, 0
      %vm739 = vcmp.ne.s32.totalorder %v653, 0
      %vm740 = vcmp.ne.s32.totalorder %v664, 0
      %vm741 = vcmp.ne.s32.totalorder %v675, 0
      %vm742 = vcmp.ne.s32.totalorder %v686, 0
      %vm743 = vcmp.ne.s32.totalorder %v697, 0
      %vm744 = vcmp.ne.s32.totalorder %v708, 0
      %vm745 = vcmp.lt.s32.totalorder %v323, 0
      %vm746 = vcmp.lt.s32.totalorder %v334, 0
      %vm747 = vcmp.lt.s32.totalorder %v345, 0
      %vm748 = vcmp.lt.s32.totalorder %v356, 0
      %vm749 = vcmp.lt.s32.totalorder %v367, 0
      %vm750 = vcmp.lt.s32.totalorder %v378, 0
      %vm751 = vcmp.lt.s32.totalorder %v389, 0
      %vm752 = vcmp.lt.s32.totalorder %v400, 0
      %vm753 = vcmp.lt.s32.totalorder %v411, 0
      %vm754 = vcmp.lt.s32.totalorder %v422, 0
      %vm755 = vcmp.lt.s32.totalorder %v433, 0
      %vm756 = vcmp.lt.s32.totalorder %v444, 0
      %vm757 = vcmp.lt.s32.totalorder %v455, 0
      %vm758 = vcmp.lt.s32.totalorder %v466, 0
      %vm759 = vcmp.lt.s32.totalorder %v477, 0
      %vm760 = vcmp.lt.s32.totalorder %v488, 0
      %vm761 = vcmp.lt.s32.totalorder %v499, 0
      %vm762 = vcmp.lt.s32.totalorder %v510, 0
      %vm763 = vcmp.lt.s32.totalorder %v521, 0
      %vm764 = vcmp.lt.s32.totalorder %v532, 0
      %vm765 = vcmp.lt.s32.totalorder %v543, 0
      %vm766 = vcmp.lt.s32.totalorder %v554, 0
      %vm767 = vcmp.lt.s32.totalorder %v565, 0
      %vm768 = vcmp.lt.s32.totalorder %v576, 0
      %vm769 = vcmp.lt.s32.totalorder %v587, 0
      %vm770 = vcmp.lt.s32.totalorder %v598, 0
      %vm771 = vcmp.lt.s32.totalorder %v609, 0
      %vm772 = vcmp.lt.s32.totalorder %v620, 0
      %vm773 = vcmp.lt.s32.totalorder %v631, 0
      %vm774 = vcmp.lt.s32.totalorder %v642, 0
      %vm775 = vcmp.lt.s32.totalorder %v653, 0
      %vm776 = vcmp.lt.s32.totalorder %v664, 0
      %vm777 = vcmp.lt.s32.totalorder %v675, 0
      %vm778 = vcmp.lt.s32.totalorder %v686, 0
      %vm779 = vcmp.lt.s32.totalorder %v697, 0
      %vm780 = vcmp.lt.s32.totalorder %v708, 0
      %vm781 = vmand %vm745, %vm709
      %vm782 = vmand %vm746, %vm710
      %vm783 = vmand %vm747, %vm711
      %vm784 = vmand %vm748, %vm712
      %vm785 = vmand %vm749, %vm713
      %vm786 = vmand %vm750, %vm714
      %vm787 = vmand %vm751, %vm715
      %vm788 = vmand %vm752, %vm716
      %vm789 = vmand %vm753, %vm717
      %vm790 = vmand %vm754, %vm718
      %vm791 = vmand %vm755, %vm719
      %vm792 = vmand %vm756, %vm720
      %vm793 = vmand %vm757, %vm721
      %vm794 = vmand %vm758, %vm722
      %vm795 = vmand %vm759, %vm723
      %vm796 = vmand %vm760, %vm724
      %vm797 = vmand %vm761, %vm725
      %vm798 = vmand %vm762, %vm726
      %vm799 = vmand %vm763, %vm727
      %vm800 = vmand %vm764, %vm728
      %vm801 = vmand %vm765, %vm729
      %vm802 = vmand %vm766, %vm730
      %vm803 = vmand %vm767, %vm731
      %vm804 = vmand %vm768, %vm732
      %vm805 = vmand %vm769, %vm733
      %vm806 = vmand %vm770, %vm734
      %vm807 = vmand %vm771, %vm735
      %vm808 = vmand %vm772, %vm736
      %vm809 = vmand %vm773, %vm737
      %vm810 = vmand %vm774, %vm738
      %vm811 = vmand %vm775, %vm739
      %vm812 = vmand %vm776, %vm740
      %vm813 = vmand %vm777, %vm741
      %vm814 = vmand %vm778, %vm742
      %vm815 = vmand %vm779, %vm743
      %vm816 = vmand %vm780, %vm744
      %v817 = vadd.s32 %v323, 18
      %v818 = vadd.s32 %v334, 18
      %v819 = vadd.s32 %v345, 18
      %v820 = vadd.s32 %v356, 18
      %v821 = vadd.s32 %v367, 18
      %v822 = vadd.s32 %v378, 18
      %v823 = vadd.s32 %v389, 18
      %v824 = vadd.s32 %v400, 18
      %v825 = vadd.s32 %v411, 18
      %v826 = vadd.s32 %v422, 18
      %v827 = vadd.s32 %v433, 18
      %v828 = vadd.s32 %v444, 18
      %v829 = vadd.s32 %v455, 18
      %v830 = vadd.s32 %v466, 18
      %v831 = vadd.s32 %v477, 18
      %v832 = vadd.s32 %v488, 18
      %v833 = vadd.s32 %v499, 18
      %v834 = vadd.s32 %v510, 18
      %v835 = vadd.s32 %v521, 18
      %v836 = vadd.s32 %v532, 18
      %v837 = vadd.s32 %v543, 18
      %v838 = vadd.s32 %v554, 18
      %v839 = vadd.s32 %v565, 18
      %v840 = vadd.s32 %v576, 18
      %v841 = vadd.s32 %v587, 18
      %v842 = vadd.s32 %v598, 18
      %v843 = vadd.s32 %v609, 18
      %v844 = vadd.s32 %v620, 18
      %v845 = vadd.s32 %v631, 18
      %v846 = vadd.s32 %v642, 18
      %v847 = vadd.s32 %v653, 18
      %v848 = vadd.s32 %v664, 18
      %v849 = vadd.s32 %v675, 18
      %v850 = vadd.s32 %v686, 18
      %v851 = vadd.s32 %v697, 18
      %v852 = vadd.s32 %v708, 18
      %v853 = vsel %vm781, %v817, %v323
      %v854 = vsel %vm782, %v818, %v334
      %v855 = vsel %vm783, %v819, %v345
      %v856 = vsel %vm784, %v820, %v356
      %v857 = vsel %vm785, %v821, %v367
      %v858 = vsel %vm786, %v822, %v378
      %v859 = vsel %vm787, %v823, %v389
      %v860 = vsel %vm788, %v824, %v400
      %v861 = vsel %vm789, %v825, %v411
      %v862 = vsel %vm790, %v826, %v422
      %v863 = vsel %vm791, %v827, %v433
      %v864 = vsel %vm792, %v828, %v444
      %v865 = vsel %vm793, %v829, %v455
      %v866 = vsel %vm794, %v830, %v466
      %v867 = vsel %vm795, %v831, %v477
      %v868 = vsel %vm796, %v832, %v488
      %v869 = vsel %vm797, %v833, %v499
      %v870 = vsel %vm798, %v834, %v510
      %v871 = vsel %vm799, %v835, %v521
      %v872 = vsel %vm800, %v836, %v532
      %v873 = vsel %vm801, %v837, %v543
      %v874 = vsel %vm802, %v838, %v554
      %v875 = vsel %vm803, %v839, %v565
      %v876 = vsel %vm804, %v840, %v576
      %v877 = vsel %vm805, %v841, %v587
      %v878 = vsel %vm806, %v842, %v598
      %v879 = vsel %vm807, %v843, %v609
      %v880 = vsel %vm808, %v844, %v620
      %v881 = vsel %vm809, %v845, %v631
      %v882 = vsel %vm810, %v846, %v642
      %v883 = vsel %vm811, %v847, %v653
      %v884 = vsel %vm812, %v848, %v664
      %v885 = vsel %vm813, %v849, %v675
      %v886 = vsel %vm814, %v850, %v686
      %v887 = vsel %vm815, %v851, %v697
      %v888 = vsel %vm816, %v852, %v708
      %vm889 = vcmp.lt.s32.totalorder %v853, 16
      %vm890 = vcmp.lt.s32.totalorder %v854, 16
      %vm891 = vcmp.lt.s32.totalorder %v855, 16
      %vm892 = vcmp.lt.s32.totalorder %v856, 16
      %vm893 = vcmp.lt.s32.totalorder %v857, 16
      %vm894 = vcmp.lt.s32.totalorder %v858, 16
      %vm895 = vcmp.lt.s32.totalorder %v859, 16
      %vm896 = vcmp.lt.s32.totalorder %v860, 16
      %vm897 = vcmp.lt.s32.totalorder %v861, 16
      %vm898 = vcmp.lt.s32.totalorder %v862, 16
      %vm899 = vcmp.lt.s32.totalorder %v863, 16
      %vm900 = vcmp.lt.s32.totalorder %v864, 16
      %vm901 = vcmp.lt.s32.totalorder %v865, 16
      %vm902 = vcmp.lt.s32.totalorder %v866, 16
      %vm903 = vcmp.lt.s32.totalorder %v867, 16
      %vm904 = vcmp.lt.s32.totalorder %v868, 16
      %vm905 = vcmp.lt.s32.totalorder %v869, 16
      %vm906 = vcmp.lt.s32.totalorder %v870, 16
      %vm907 = vcmp.lt.s32.totalorder %v871, 16
      %vm908 = vcmp.lt.s32.totalorder %v872, 16
      %vm909 = vcmp.lt.s32.totalorder %v873, 16
      %vm910 = vcmp.lt.s32.totalorder %v874, 16
      %vm911 = vcmp.lt.s32.totalorder %v875, 16
      %vm912 = vcmp.lt.s32.totalorder %v876, 16
      %vm913 = vcmp.lt.s32.totalorder %v877, 16
      %vm914 = vcmp.lt.s32.totalorder %v878, 16
      %vm915 = vcmp.lt.s32.totalorder %v879, 16
      %vm916 = vcmp.lt.s32.totalorder %v880, 16
      %vm917 = vcmp.lt.s32.totalorder %v881, 16
      %vm918 = vcmp.lt.s32.totalorder %v882, 16
      %vm919 = vcmp.lt.s32.totalorder %v883, 16
      %vm920 = vcmp.lt.s32.totalorder %v884, 16
      %vm921 = vcmp.lt.s32.totalorder %v885, 16
      %vm922 = vcmp.lt.s32.totalorder %v886, 16
      %vm923 = vcmp.lt.s32.totalorder %v887, 16
      %vm924 = vcmp.lt.s32.totalorder %v888, 16
      %v925 = vld [vmem:[%s219] sm:$0xf]
      %v926 = vld [vmem:[%s219 + $0x4] sm:$0xf]
      %v927 = vld [vmem:[%s219 + $0x8] sm:$0xf]
      %v928 = vld [vmem:[%s219 + $0xc] sm:$0xf]
      %v929 = vld [vmem:[%s219 + $0x10] sm:$0xf]
      %v930 = vld [vmem:[%s219 + $0x14] sm:$0xf]
      %v931 = vld [vmem:[%s219 + $0x18] sm:$0xf]
      %v932 = vld [vmem:[%s219 + $0x1c] sm:$0xf]
      %v933 = vld [vmem:[%s219 + $0x20] sm:$0xf]
      %v934 = vld [vmem:[%s219 + $0x24] sm:$0xf]
      %v935 = vld [vmem:[%s219 + $0x28] sm:$0xf]
      %v936 = vld [vmem:[%s219 + $0x2c] sm:$0xf]
      %v937 = vld [vmem:[%s219 + $0x30] sm:$0xf]
      %v938 = vld [vmem:[%s219 + $0x34] sm:$0xf]
      %v939 = vld [vmem:[%s219 + $0x38] sm:$0xf]
      %v940 = vld [vmem:[%s219 + $0x3c] sm:$0xf]
      %v941 = vld [vmem:[%s219 + $0x40] sm:$0xf]
      %v942 = vld [vmem:[%s219 + $0x44] sm:$0xf]
      %v943 = vld [vmem:[%s219 + $0x48] sm:$0xf]
      %v944 = vld [vmem:[%s219 + $0x4c] sm:$0xf]
      %v945 = vld [vmem:[%s219 + $0x50] sm:$0xf]
      %v946 = vld [vmem:[%s219 + $0x54] sm:$0xf]
      %v947 = vld [vmem:[%s219 + $0x58] sm:$0xf]
      %v948 = vld [vmem:[%s219 + $0x5c] sm:$0xf]
      %v949 = vld [vmem:[%s219 + $0x60] sm:$0xf]
      %v950 = vld [vmem:[%s219 + $0x64] sm:$0xf]
      %v951 = vld [vmem:[%s219 + $0x68] sm:$0xf]
      %v952 = vld [vmem:[%s219 + $0x6c] sm:$0xf]
      %v953 = vld [vmem:[%s219 + $0x70] sm:$0xf]
      %v954 = vld [vmem:[%s219 + $0x74] sm:$0xf]
      %v955 = vld [vmem:[%s219 + $0x78] sm:$0xf]
      %v956 = vld [vmem:[%s219 + $0x7c] sm:$0xf]
      %v957 = vld [vmem:[%s219 + $0x80] sm:$0xf]
      %v958 = vld [vmem:[%s219 + $0x84] sm:$0xf]
      %v959 = vld [vmem:[%s219 + $0x88] sm:$0xf]
      %v960 = vld [vmem:[%s219 + $0x8c] sm:$0xf]
      %v961 = vld [vmem:[%s1] sm:$0x1]
      %v962 = vld [vmem:[%s219 + $0x90] sm:$0x1]
      %s963 = scalar_lea.vmem %s1, 1
      %v964 = vld [vmem:[%s963] sm:$0x1]
      %v1002 = vunpack.c.l.b16 %v925
      %v1003 = vunpack.c.l.b16 %v926
      %v1004 = vunpack.c.l.b16 %v927
      %v1005 = vunpack.c.l.b16 %v928
      %v1006 = vunpack.c.l.b16 %v929
      %v1007 = vunpack.c.l.b16 %v930
      %v1008 = vunpack.c.l.b16 %v931
      %v1009 = vunpack.c.l.b16 %v932
      %v1010 = vunpack.c.l.b16 %v933
      %v1011 = vunpack.c.l.b16 %v934
      %v1012 = vunpack.c.l.b16 %v935
      %v1013 = vunpack.c.l.b16 %v936
      %v1014 = vunpack.c.l.b16 %v937
      %v1015 = vunpack.c.l.b16 %v938
      %v1016 = vunpack.c.l.b16 %v939
      %v1017 = vunpack.c.l.b16 %v940
      %v1018 = vunpack.c.l.b16 %v941
      %v1019 = vunpack.c.l.b16 %v942
      %v1020 = vunpack.c.l.b16 %v943
      %v1021 = vunpack.c.l.b16 %v944
      %v1022 = vunpack.c.l.b16 %v945
      %v1023 = vunpack.c.l.b16 %v946
      %v1024 = vunpack.c.l.b16 %v947
      %v1025 = vunpack.c.l.b16 %v948
      %v1026 = vunpack.c.l.b16 %v949
      %v1027 = vunpack.c.l.b16 %v950
      %v1028 = vunpack.c.l.b16 %v951
      %v1029 = vunpack.c.l.b16 %v952
      %v1030 = vunpack.c.l.b16 %v953
      %v1031 = vunpack.c.l.b16 %v954
      %v1032 = vunpack.c.l.b16 %v955
      %v1033 = vunpack.c.l.b16 %v956
      %v1034 = vunpack.c.l.b16 %v957
      %v1035 = vunpack.c.l.b16 %v958
      %v1036 = vunpack.c.l.b16 %v959
      %v1037 = vunpack.c.l.b16 %v960
      %v1038 = vunpack.c.l.b16 %v962
      %v1039 = vpack.c.b16 %v1003, %v1002
      %v1040 = vpack.c.b16 %v1005, %v1004
      %v1041 = vpack.c.b16 %v1007, %v1006
      %v1042 = vpack.c.b16 %v1009, %v1008
      %v1043 = vpack.c.b16 %v1011, %v1010
      %v1044 = vpack.c.b16 %v1013, %v1012
      %v1045 = vpack.c.b16 %v1015, %v1014
      %v1046 = vpack.c.b16 %v1017, %v1016
      %v1047 = vpack.c.b16 %v1019, %v1018
      %v1048 = vpack.c.b16 %v1021, %v1020
      %v1049 = vpack.c.b16 %v1023, %v1022
      %v1050 = vpack.c.b16 %v1025, %v1024
      %v1051 = vpack.c.b16 %v1027, %v1026
      %v1052 = vpack.c.b16 %v1029, %v1028
      %v1053 = vpack.c.b16 %v1031, %v1030
      %v1054 = vpack.c.b16 %v1033, %v1032
      %v1055 = vpack.c.b16 %v1035, %v1034
      %v1056 = vpack.c.b16 %v1037, %v1036
      %v1057 = vpack.c.b16 %v1038, %v1038
      %vm1058 = vsmask.f32 7424
      %v1060 = vshrl.u32 %v1039, 16
      %v1062 = vshll.u32 %v1039, 16
      %v1064 = vrot.slane %v1062, 1
      %v1065 = vor.u32 %v1060, %v1064
      %v1067 = vshll.u32 %v1040, 16
      %v1069 = vrot.slane %v1067, 1
      %v1070 = vsel %vm1058, %v1065, %v1069
      %v1071 = vshrl.u32 %v1040, 16
      %v1073 = vor.u32 %v1071, %v1069
      %v1075 = vshll.u32 %v1041, 16
      %v1077 = vrot.slane %v1075, 1
      %v1078 = vsel %vm1058, %v1073, %v1077
      %v1079 = vshrl.u32 %v1041, 16
      %v1081 = vor.u32 %v1079, %v1077
      %v1083 = vshll.u32 %v1042, 16
      %v1085 = vrot.slane %v1083, 1
      %v1086 = vsel %vm1058, %v1081, %v1085
      %v1087 = vshrl.u32 %v1042, 16
      %v1089 = vor.u32 %v1087, %v1085
      %v1091 = vshll.u32 %v1043, 16
      %v1093 = vrot.slane %v1091, 1
      %v1094 = vsel %vm1058, %v1089, %v1093
      %v1095 = vshrl.u32 %v1043, 16
      %v1097 = vor.u32 %v1095, %v1093
      %v1099 = vshll.u32 %v1044, 16
      %v1101 = vrot.slane %v1099, 1
      %v1102 = vsel %vm1058, %v1097, %v1101
      %v1103 = vshrl.u32 %v1044, 16
      %v1105 = vor.u32 %v1103, %v1101
      %v1107 = vshll.u32 %v1045, 16
      %v1109 = vrot.slane %v1107, 1
      %v1110 = vsel %vm1058, %v1105, %v1109
      %v1111 = vshrl.u32 %v1045, 16
      %v1113 = vor.u32 %v1111, %v1109
      %v1115 = vshll.u32 %v1046, 16
      %v1117 = vrot.slane %v1115, 1
      %v1118 = vsel %vm1058, %v1113, %v1117
      %v1119 = vshrl.u32 %v1046, 16
      %v1121 = vor.u32 %v1119, %v1117
      %v1123 = vshll.u32 %v1047, 16
      %v1125 = vrot.slane %v1123, 1
      %v1126 = vsel %vm1058, %v1121, %v1125
      %v1127 = vshrl.u32 %v1047, 16
      %v1129 = vor.u32 %v1127, %v1125
      %v1131 = vshll.u32 %v1048, 16
      %v1133 = vrot.slane %v1131, 1
      %v1134 = vsel %vm1058, %v1129, %v1133
      %v1135 = vshrl.u32 %v1048, 16
      %v1137 = vor.u32 %v1135, %v1133
      %v1139 = vshll.u32 %v1049, 16
      %v1141 = vrot.slane %v1139, 1
      %v1142 = vsel %vm1058, %v1137, %v1141
      %v1143 = vshrl.u32 %v1049, 16
      %v1145 = vor.u32 %v1143, %v1141
      %v1147 = vshll.u32 %v1050, 16
      %v1149 = vrot.slane %v1147, 1
      %v1150 = vsel %vm1058, %v1145, %v1149
      %v1151 = vshrl.u32 %v1050, 16
      %v1153 = vor.u32 %v1151, %v1149
      %v1155 = vshll.u32 %v1051, 16
      %v1157 = vrot.slane %v1155, 1
      %v1158 = vsel %vm1058, %v1153, %v1157
      %v1159 = vshrl.u32 %v1051, 16
      %v1161 = vor.u32 %v1159, %v1157
      %v1163 = vshll.u32 %v1052, 16
      %v1165 = vrot.slane %v1163, 1
      %v1166 = vsel %vm1058, %v1161, %v1165
      %v1167 = vshrl.u32 %v1052, 16
      %v1169 = vor.u32 %v1167, %v1165
      %v1171 = vshll.u32 %v1053, 16
      %v1173 = vrot.slane %v1171, 1
      %v1174 = vsel %vm1058, %v1169, %v1173
      %v1175 = vshrl.u32 %v1053, 16
      %v1177 = vor.u32 %v1175, %v1173
      %v1179 = vshll.u32 %v1054, 16
      %v1181 = vrot.slane %v1179, 1
      %v1182 = vsel %vm1058, %v1177, %v1181
      %v1183 = vshrl.u32 %v1054, 16
      %v1185 = vor.u32 %v1183, %v1181
      %v1187 = vshll.u32 %v1055, 16
      %v1189 = vrot.slane %v1187, 1
      %v1190 = vsel %vm1058, %v1185, %v1189
      %v1191 = vshrl.u32 %v1055, 16
      %v1193 = vor.u32 %v1191, %v1189
      %v1195 = vshll.u32 %v1056, 16
      %v1197 = vrot.slane %v1195, 1
      %v1198 = vsel %vm1058, %v1193, %v1197
      %v1199 = vshrl.u32 %v1056, 16
      %v1201 = vor.u32 %v1199, %v1197
      %v1203 = vshll.u32 %v1057, 16
      %v1205 = vrot.slane %v1203, 1
      %v1206 = vsel %vm1058, %v1201, %v1205
      %vm1207 = vcmask 15360
      %v1209 = vsel %vm1207, %v1070, 0
      %v1212 = vsel %vm1207, %v1078, 0
      %v1215 = vsel %vm1207, %v1086, 0
      %v1218 = vsel %vm1207, %v1094, 0
      %v1221 = vsel %vm1207, %v1102, 0
      %v1224 = vsel %vm1207, %v1110, 0
      %v1227 = vsel %vm1207, %v1118, 0
      %v1230 = vsel %vm1207, %v1126, 0
      %v1233 = vsel %vm1207, %v1134, 0
      %v1236 = vsel %vm1207, %v1142, 0
      %v1239 = vsel %vm1207, %v1150, 0
      %v1242 = vsel %vm1207, %v1158, 0
      %v1245 = vsel %vm1207, %v1166, 0
      %v1248 = vsel %vm1207, %v1174, 0
      %v1251 = vsel %vm1207, %v1182, 0
      %v1254 = vsel %vm1207, %v1190, 0
      %v1257 = vsel %vm1207, %v1198, 0
      %v1260 = vsel %vm1207, %v1206, 0
      %vm1262 = vcmask 1040384
      %v1264 = vsel %vm1262, %v964, 0
      %1266 = vmatprep.subr.bf16.mxu0 0
      %1267 = vmatpush1.bf16.msra.mxu0 0
      %1268 = vmatprep.subr.bf16.mxu0 0
      %1269 = vmatpush1.bf16.msra.mxu0 0
      %1270 = vmatprep.subr.bf16.mxu0 0
      %1271 = vmatpush1.bf16.msra.mxu0 0
      %1272 = vmatprep.subr.bf16.mxu0 0
      %1273 = vmatpush1.bf16.msra.mxu0 0
      %1274 = vmatprep.subr.bf16.mxu0 0
      %1275 = vmatpush1.bf16.msra.mxu0 0
      %1276 = vmatprep.subr.bf16.mxu0 0
      %1277 = vmatpush1.bf16.msra.mxu0 0
      %1278 = vmatprep.subr.bf16.mxu0 0
      %1279 = vmatpush1.bf16.msra.mxu0 0
      %1280 = vmatprep.subr.bf16.mxu0 0
      %1281 = vmatpush1.bf16.msra.mxu0 %v1264
      %1282 = vmatprep.subr.bf16.mxu0 0
      %1283 = vmatpush2.bf16.msra.mxu0 0
      %1284 = vmatprep.subr.bf16.mxu0 0
      %1285 = vmatpush2.bf16.msra.mxu0 0
      %1286 = vmatprep.subr.bf16.mxu0 0
      %1287 = vmatpush2.bf16.msra.mxu0 0
      %1288 = vmatprep.subr.bf16.mxu0 0
      %1289 = vmatpush2.bf16.msra.mxu0 0
      %1290 = vmatprep.subr.bf16.mxu0 0
      %1291 = vmatpush2.bf16.msra.mxu0 0
      %1292 = vmatprep.subr.bf16.mxu0 0
      %1293 = vmatpush2.bf16.msra.mxu0 0
      %1294 = vmatprep.subr.bf16.mxu0 0
      %1295 = vmatpush2.bf16.msra.mxu0 0
      %1296 = vmatprep.subr.bf16.mxu0 0
      %1297 = vmatpush2.bf16.msra.mxu0 0
      %1298 = vmatprep.mubr.bf16.mxu0 0
      %1299 = vmatmul.mubr.bf16.gmra.mxu0 %v1209
      %v1300 = vpop.f32.mrf.mxu0
      %v1301 = vadd.f32 0.0, %v1300
      %v1302 = vpop.f32.mrf.mxu0
      %v1303 = vpop.f32.mrf.mxu0
      %v1304 = vadd.f32 0.0, %v1303
      %v1305 = vpop.f32.mrf.mxu0
      %1306 = vmatprep.mubr.bf16.mxu0 0
      %1307 = vmatmul.mubr.bf16.gmra.mxu0 %v1212
      %v1308 = vpop.f32.mrf.mxu0
      %v1309 = vadd.f32 0.0, %v1308
      %v1310 = vpop.f32.mrf.mxu0
      %v1311 = vpop.f32.mrf.mxu0
      %v1312 = vadd.f32 0.0, %v1311
      %v1313 = vpop.f32.mrf.mxu0
      %1314 = vmatprep.mubr.bf16.mxu0 0
      %1315 = vmatmul.mubr.bf16.gmra.mxu0 %v1215
      %v1316 = vpop.f32.mrf.mxu0
      %v1317 = vadd.f32 0.0, %v1316
      %v1318 = vpop.f32.mrf.mxu0
      %v1319 = vpop.f32.mrf.mxu0
      %v1320 = vadd.f32 0.0, %v1319
      %v1321 = vpop.f32.mrf.mxu0
      %1322 = vmatprep.mubr.bf16.mxu0 0
      %1323 = vmatmul.mubr.bf16.gmra.mxu0 %v1218
      %v1324 = vpop.f32.mrf.mxu0
      %v1325 = vadd.f32 0.0, %v1324
      %v1326 = vpop.f32.mrf.mxu0
      %v1327 = vpop.f32.mrf.mxu0
      %v1328 = vadd.f32 0.0, %v1327
      %v1329 = vpop.f32.mrf.mxu0
      %1330 = vmatprep.mubr.bf16.mxu0 0
      %1331 = vmatmul.mubr.bf16.gmra.mxu0 %v1221
      %v1332 = vpop.f32.mrf.mxu0
      %v1333 = vadd.f32 0.0, %v1332
      %v1334 = vpop.f32.mrf.mxu0
      %v1335 = vpop.f32.mrf.mxu0
      %v1336 = vadd.f32 0.0, %v1335
      %v1337 = vpop.f32.mrf.mxu0
      %1338 = vmatprep.mubr.bf16.mxu0 0
      %1339 = vmatmul.mubr.bf16.gmra.mxu0 %v1224
      %v1340 = vpop.f32.mrf.mxu0
      %v1341 = vadd.f32 0.0, %v1340
      %v1342 = vpop.f32.mrf.mxu0
      %v1343 = vpop.f32.mrf.mxu0
      %v1344 = vadd.f32 0.0, %v1343
      %v1345 = vpop.f32.mrf.mxu0
      %1346 = vmatprep.mubr.bf16.mxu0 0
      %1347 = vmatmul.mubr.bf16.gmra.mxu0 %v1227
      %v1348 = vpop.f32.mrf.mxu0
      %v1349 = vadd.f32 0.0, %v1348
      %v1350 = vpop.f32.mrf.mxu0
      %v1351 = vpop.f32.mrf.mxu0
      %v1352 = vadd.f32 0.0, %v1351
      %v1353 = vpop.f32.mrf.mxu0
      %1354 = vmatprep.mubr.bf16.mxu0 0
      %1355 = vmatmul.mubr.bf16.gmra.mxu0 %v1230
      %v1356 = vpop.f32.mrf.mxu0
      %v1357 = vadd.f32 0.0, %v1356
      %v1358 = vpop.f32.mrf.mxu0
      %v1359 = vpop.f32.mrf.mxu0
      %v1360 = vadd.f32 0.0, %v1359
      %v1361 = vpop.f32.mrf.mxu0
      %1362 = vmatprep.mubr.bf16.mxu0 0
      %1363 = vmatmul.mubr.bf16.gmra.mxu0 %v1233
      %v1364 = vpop.f32.mrf.mxu0
      %v1365 = vadd.f32 0.0, %v1364
      %v1366 = vpop.f32.mrf.mxu0
      %v1367 = vpop.f32.mrf.mxu0
      %v1368 = vadd.f32 0.0, %v1367
      %v1369 = vpop.f32.mrf.mxu0
      %1370 = vmatprep.mubr.bf16.mxu0 0
      %1371 = vmatmul.mubr.bf16.gmra.mxu0 %v1236
      %v1372 = vpop.f32.mrf.mxu0
      %v1373 = vadd.f32 0.0, %v1372
      %v1374 = vpop.f32.mrf.mxu0
      %v1375 = vpop.f32.mrf.mxu0
      %v1376 = vadd.f32 0.0, %v1375
      %v1377 = vpop.f32.mrf.mxu0
      %1378 = vmatprep.mubr.bf16.mxu0 0
      %1379 = vmatmul.mubr.bf16.gmra.mxu0 %v1239
      %v1380 = vpop.f32.mrf.mxu0
      %v1381 = vadd.f32 0.0, %v1380
      %v1382 = vpop.f32.mrf.mxu0
      %v1383 = vpop.f32.mrf.mxu0
      %v1384 = vadd.f32 0.0, %v1383
      %v1385 = vpop.f32.mrf.mxu0
      %1386 = vmatprep.mubr.bf16.mxu0 0
      %1387 = vmatmul.mubr.bf16.gmra.mxu0 %v1242
      %v1388 = vpop.f32.mrf.mxu0
      %v1389 = vadd.f32 0.0, %v1388
      %v1390 = vpop.f32.mrf.mxu0
      %v1391 = vpop.f32.mrf.mxu0
      %v1392 = vadd.f32 0.0, %v1391
      %v1393 = vpop.f32.mrf.mxu0
      %1394 = vmatprep.mubr.bf16.mxu0 0
      %1395 = vmatmul.mubr.bf16.gmra.mxu0 %v1245
      %v1396 = vpop.f32.mrf.mxu0
      %v1397 = vadd.f32 0.0, %v1396
      %v1398 = vpop.f32.mrf.mxu0
      %v1399 = vpop.f32.mrf.mxu0
      %v1400 = vadd.f32 0.0, %v1399
      %v1401 = vpop.f32.mrf.mxu0
      %1402 = vmatprep.mubr.bf16.mxu0 0
      %1403 = vmatmul.mubr.bf16.gmra.mxu0 %v1248
      %v1404 = vpop.f32.mrf.mxu0
      %v1405 = vadd.f32 0.0, %v1404
      %v1406 = vpop.f32.mrf.mxu0
      %v1407 = vpop.f32.mrf.mxu0
      %v1408 = vadd.f32 0.0, %v1407
      %v1409 = vpop.f32.mrf.mxu0
      %1410 = vmatprep.mubr.bf16.mxu0 0
      %1411 = vmatmul.mubr.bf16.gmra.mxu0 %v1251
      %v1412 = vpop.f32.mrf.mxu0
      %v1413 = vadd.f32 0.0, %v1412
      %v1414 = vpop.f32.mrf.mxu0
      %v1415 = vpop.f32.mrf.mxu0
      %v1416 = vadd.f32 0.0, %v1415
      %v1417 = vpop.f32.mrf.mxu0
      %1418 = vmatprep.mubr.bf16.mxu0 0
      %1419 = vmatmul.mubr.bf16.gmra.mxu0 %v1254
      %v1420 = vpop.f32.mrf.mxu0
      %v1421 = vadd.f32 0.0, %v1420
      %v1422 = vpop.f32.mrf.mxu0
      %v1423 = vpop.f32.mrf.mxu0
      %v1424 = vadd.f32 0.0, %v1423
      %v1425 = vpop.f32.mrf.mxu0
      %1426 = vmatprep.mubr.bf16.mxu0 0
      %1427 = vmatmul.mubr.bf16.gmra.mxu0 %v1257
      %v1428 = vpop.f32.mrf.mxu0
      %v1429 = vadd.f32 0.0, %v1428
      %v1430 = vpop.f32.mrf.mxu0
      %v1431 = vpop.f32.mrf.mxu0
      %v1432 = vadd.f32 0.0, %v1431
      %v1433 = vpop.f32.mrf.mxu0
      %1434 = vmatprep.mubr.bf16.mxu0 0
      %1435 = vmatmul.mubr.bf16.gmra.mxu0 %v1260
      %v1436 = vpop.f32.mrf.mxu0
      %v1437 = vadd.f32 0.0, %v1436
      %v1438 = vpop.f32.mrf.mxu0
      %v1439 = vpop.f32.mrf.mxu0
      %v1440 = vadd.f32 0.0, %v1439
      %v1441 = vpop.f32.mrf.mxu0
      %1442 = vdwg.mxu0
      %v1443 = vsel %vm1207, %v1039, 0
      %v1445 = vsel %vm1207, %v1040, 0
      %v1447 = vsel %vm1207, %v1041, 0
      %v1449 = vsel %vm1207, %v1042, 0
      %v1451 = vsel %vm1207, %v1043, 0
      %v1453 = vsel %vm1207, %v1044, 0
      %v1455 = vsel %vm1207, %v1045, 0
      %v1457 = vsel %vm1207, %v1046, 0
      %v1459 = vsel %vm1207, %v1047, 0
      %v1461 = vsel %vm1207, %v1048, 0
      %v1463 = vsel %vm1207, %v1049, 0
      %v1465 = vsel %vm1207, %v1050, 0
      %v1467 = vsel %vm1207, %v1051, 0
      %v1469 = vsel %vm1207, %v1052, 0
      %v1471 = vsel %vm1207, %v1053, 0
      %v1473 = vsel %vm1207, %v1054, 0
      %v1475 = vsel %vm1207, %v1055, 0
      %v1477 = vsel %vm1207, %v1056, 0
      %v1480 = vsel %vm1262, %v961, 0
      %1482 = vmatprep.subr.bf16.mxu0 0
      %1483 = vmatpush1.bf16.msra.mxu0 0
      %1484 = vmatprep.subr.bf16.mxu0 0
      %1485 = vmatpush1.bf16.msra.mxu0 0
      %1486 = vmatprep.subr.bf16.mxu0 0
      %1487 = vmatpush1.bf16.msra.mxu0 0
      %1488 = vmatprep.subr.bf16.mxu0 0
      %1489 = vmatpush1.bf16.msra.mxu0 0
      %1490 = vmatprep.subr.bf16.mxu0 0
      %1491 = vmatpush1.bf16.msra.mxu0 0
      %1492 = vmatprep.subr.bf16.mxu0 0
      %1493 = vmatpush1.bf16.msra.mxu0 0
      %1494 = vmatprep.subr.bf16.mxu0 0
      %1495 = vmatpush1.bf16.msra.mxu0 0
      %1496 = vmatprep.subr.bf16.mxu0 0
      %1497 = vmatpush1.bf16.msra.mxu0 %v1480
      %1498 = vmatprep.subr.bf16.mxu0 0
      %1499 = vmatpush2.bf16.msra.mxu0 0
      %1500 = vmatprep.subr.bf16.mxu0 0
      %1501 = vmatpush2.bf16.msra.mxu0 0
      %1502 = vmatprep.subr.bf16.mxu0 0
      %1503 = vmatpush2.bf16.msra.mxu0 0
      %1504 = vmatprep.subr.bf16.mxu0 0
      %1505 = vmatpush2.bf16.msra.mxu0 0
      %1506 = vmatprep.subr.bf16.mxu0 0
      %1507 = vmatpush2.bf16.msra.mxu0 0
      %1508 = vmatprep.subr.bf16.mxu0 0
      %1509 = vmatpush2.bf16.msra.mxu0 0
      %1510 = vmatprep.subr.bf16.mxu0 0
      %1511 = vmatpush2.bf16.msra.mxu0 0
      %1512 = vmatprep.subr.bf16.mxu0 0
      %1513 = vmatpush2.bf16.msra.mxu0 0
      %1514 = vmatprep.mubr.bf16.mxu0 0
      %1515 = vmatmul.mubr.bf16.gmra.mxu0 %v1443
      %v1516 = vpop.f32.mrf.mxu0
      %v1517 = vadd.f32 %v1301, %v1516
      %v1518 = vpop.f32.mrf.mxu0
      %v1519 = vpop.f32.mrf.mxu0
      %v1520 = vadd.f32 %v1304, %v1519
      %v1521 = vpop.f32.mrf.mxu0
      %1522 = vmatprep.mubr.bf16.mxu0 0
      %1523 = vmatmul.mubr.bf16.gmra.mxu0 %v1445
      %v1524 = vpop.f32.mrf.mxu0
      %v1525 = vadd.f32 %v1309, %v1524
      %v1526 = vpop.f32.mrf.mxu0
      %v1527 = vpop.f32.mrf.mxu0
      %v1528 = vadd.f32 %v1312, %v1527
      %v1529 = vpop.f32.mrf.mxu0
      %1530 = vmatprep.mubr.bf16.mxu0 0
      %1531 = vmatmul.mubr.bf16.gmra.mxu0 %v1447
      %v1532 = vpop.f32.mrf.mxu0
      %v1533 = vadd.f32 %v1317, %v1532
      %v1534 = vpop.f32.mrf.mxu0
      %v1535 = vpop.f32.mrf.mxu0
      %v1536 = vadd.f32 %v1320, %v1535
      %v1537 = vpop.f32.mrf.mxu0
      %1538 = vmatprep.mubr.bf16.mxu0 0
      %1539 = vmatmul.mubr.bf16.gmra.mxu0 %v1449
      %v1540 = vpop.f32.mrf.mxu0
      %v1541 = vadd.f32 %v1325, %v1540
      %v1542 = vpop.f32.mrf.mxu0
      %v1543 = vpop.f32.mrf.mxu0
      %v1544 = vadd.f32 %v1328, %v1543
      %v1545 = vpop.f32.mrf.mxu0
      %1546 = vmatprep.mubr.bf16.mxu0 0
      %1547 = vmatmul.mubr.bf16.gmra.mxu0 %v1451
      %v1548 = vpop.f32.mrf.mxu0
      %v1549 = vadd.f32 %v1333, %v1548
      %v1550 = vpop.f32.mrf.mxu0
      %v1551 = vpop.f32.mrf.mxu0
      %v1552 = vadd.f32 %v1336, %v1551
      %v1553 = vpop.f32.mrf.mxu0
      %1554 = vmatprep.mubr.bf16.mxu0 0
      %1555 = vmatmul.mubr.bf16.gmra.mxu0 %v1453
      %v1556 = vpop.f32.mrf.mxu0
      %v1557 = vadd.f32 %v1341, %v1556
      %v1558 = vpop.f32.mrf.mxu0
      %v1559 = vpop.f32.mrf.mxu0
      %v1560 = vadd.f32 %v1344, %v1559
      %v1561 = vpop.f32.mrf.mxu0
      %1562 = vmatprep.mubr.bf16.mxu0 0
      %1563 = vmatmul.mubr.bf16.gmra.mxu0 %v1455
      %v1564 = vpop.f32.mrf.mxu0
      %v1565 = vadd.f32 %v1349, %v1564
      %v1566 = vpop.f32.mrf.mxu0
      %v1567 = vpop.f32.mrf.mxu0
      %v1568 = vadd.f32 %v1352, %v1567
      %v1569 = vpop.f32.mrf.mxu0
      %1570 = vmatprep.mubr.bf16.mxu0 0
      %1571 = vmatmul.mubr.bf16.gmra.mxu0 %v1457
      %v1572 = vpop.f32.mrf.mxu0
      %v1573 = vadd.f32 %v1357, %v1572
      %v1574 = vpop.f32.mrf.mxu0
      %v1575 = vpop.f32.mrf.mxu0
      %v1576 = vadd.f32 %v1360, %v1575
      %v1577 = vpop.f32.mrf.mxu0
      %1578 = vmatprep.mubr.bf16.mxu0 0
      %1579 = vmatmul.mubr.bf16.gmra.mxu0 %v1459
      %v1580 = vpop.f32.mrf.mxu0
      %v1581 = vadd.f32 %v1365, %v1580
      %v1582 = vpop.f32.mrf.mxu0
      %v1583 = vpop.f32.mrf.mxu0
      %v1584 = vadd.f32 %v1368, %v1583
      %v1585 = vpop.f32.mrf.mxu0
      %1586 = vmatprep.mubr.bf16.mxu0 0
      %1587 = vmatmul.mubr.bf16.gmra.mxu0 %v1461
      %v1588 = vpop.f32.mrf.mxu0
      %v1589 = vadd.f32 %v1373, %v1588
      %v1590 = vpop.f32.mrf.mxu0
      %v1591 = vpop.f32.mrf.mxu0
      %v1592 = vadd.f32 %v1376, %v1591
      %v1593 = vpop.f32.mrf.mxu0
      %1594 = vmatprep.mubr.bf16.mxu0 0
      %1595 = vmatmul.mubr.bf16.gmra.mxu0 %v1463
      %v1596 = vpop.f32.mrf.mxu0
      %v1597 = vadd.f32 %v1381, %v1596
      %v1598 = vpop.f32.mrf.mxu0
      %v1599 = vpop.f32.mrf.mxu0
      %v1600 = vadd.f32 %v1384, %v1599
      %v1601 = vpop.f32.mrf.mxu0
      %1602 = vmatprep.mubr.bf16.mxu0 0
      %1603 = vmatmul.mubr.bf16.gmra.mxu0 %v1465
      %v1604 = vpop.f32.mrf.mxu0
      %v1605 = vadd.f32 %v1389, %v1604
      %v1606 = vpop.f32.mrf.mxu0
      %v1607 = vpop.f32.mrf.mxu0
      %v1608 = vadd.f32 %v1392, %v1607
      %v1609 = vpop.f32.mrf.mxu0
      %1610 = vmatprep.mubr.bf16.mxu0 0
      %1611 = vmatmul.mubr.bf16.gmra.mxu0 %v1467
      %v1612 = vpop.f32.mrf.mxu0
      %v1613 = vadd.f32 %v1397, %v1612
      %v1614 = vpop.f32.mrf.mxu0
      %v1615 = vpop.f32.mrf.mxu0
      %v1616 = vadd.f32 %v1400, %v1615
      %v1617 = vpop.f32.mrf.mxu0
      %1618 = vmatprep.mubr.bf16.mxu0 0
      %1619 = vmatmul.mubr.bf16.gmra.mxu0 %v1469
      %v1620 = vpop.f32.mrf.mxu0
      %v1621 = vadd.f32 %v1405, %v1620
      %v1622 = vpop.f32.mrf.mxu0
      %v1623 = vpop.f32.mrf.mxu0
      %v1624 = vadd.f32 %v1408, %v1623
      %v1625 = vpop.f32.mrf.mxu0
      %1626 = vmatprep.mubr.bf16.mxu0 0
      %1627 = vmatmul.mubr.bf16.gmra.mxu0 %v1471
      %v1628 = vpop.f32.mrf.mxu0
      %v1629 = vadd.f32 %v1413, %v1628
      %v1630 = vpop.f32.mrf.mxu0
      %v1631 = vpop.f32.mrf.mxu0
      %v1632 = vadd.f32 %v1416, %v1631
      %v1633 = vpop.f32.mrf.mxu0
      %1634 = vmatprep.mubr.bf16.mxu0 0
      %1635 = vmatmul.mubr.bf16.gmra.mxu0 %v1473
      %v1636 = vpop.f32.mrf.mxu0
      %v1637 = vadd.f32 %v1421, %v1636
      %v1638 = vpop.f32.mrf.mxu0
      %v1639 = vpop.f32.mrf.mxu0
      %v1640 = vadd.f32 %v1424, %v1639
      %v1641 = vpop.f32.mrf.mxu0
      %1642 = vmatprep.mubr.bf16.mxu0 0
      %1643 = vmatmul.mubr.bf16.gmra.mxu0 %v1475
      %v1644 = vpop.f32.mrf.mxu0
      %v1645 = vadd.f32 %v1429, %v1644
      %v1646 = vpop.f32.mrf.mxu0
      %v1647 = vpop.f32.mrf.mxu0
      %v1648 = vadd.f32 %v1432, %v1647
      %v1649 = vpop.f32.mrf.mxu0
      %1650 = vmatprep.mubr.bf16.mxu0 0
      %1651 = vmatmul.mubr.bf16.gmra.mxu0 %v1477
      %v1652 = vpop.f32.mrf.mxu0
      %v1653 = vadd.f32 %v1437, %v1652
      %v1654 = vpop.f32.mrf.mxu0
      %v1655 = vpop.f32.mrf.mxu0
      %v1656 = vadd.f32 %v1440, %v1655
      %v1657 = vpop.f32.mrf.mxu0
      %1658 = vdwg.mxu0
      %v1659 = vld [vmem:[%s219] sm:$0xe]
      %s1660 = scalar_lea.vmem %s1, 2
      %v1661 = vld [vmem:[%s1660] sm:$0x1]
      %v1663 = vunpack.c.l.b16 %v1659
      %v1664 = vpack.c.b16 %v1003, %v1663
      %vm1665 = vcmask 1046528
      %v1666 = vrot.slane %v1664, 1
      %v1667 = vrot.slane %v1040, 1
      %v1668 = vsel %vm1665, %v1666, %v1667
      %v1669 = vrot.slane %v1041, 1
      %v1670 = vsel %vm1665, %v1667, %v1669
      %v1671 = vrot.slane %v1042, 1
      %v1672 = vsel %vm1665, %v1669, %v1671
      %v1673 = vrot.slane %v1043, 1
      %v1674 = vsel %vm1665, %v1671, %v1673
      %v1675 = vrot.slane %v1044, 1
      %v1676 = vsel %vm1665, %v1673, %v1675
      %v1677 = vrot.slane %v1045, 1
      %v1678 = vsel %vm1665, %v1675, %v1677
      %v1679 = vrot.slane %v1046, 1
      %v1680 = vsel %vm1665, %v1677, %v1679
      %v1681 = vrot.slane %v1047, 1
      %v1682 = vsel %vm1665, %v1679, %v1681
      %v1683 = vrot.slane %v1048, 1
      %v1684 = vsel %vm1665, %v1681, %v1683
      %v1685 = vrot.slane %v1049, 1
      %v1686 = vsel %vm1665, %v1683, %v1685
      %v1687 = vrot.slane %v1050, 1
      %v1688 = vsel %vm1665, %v1685, %v1687
      %v1689 = vrot.slane %v1051, 1
      %v1690 = vsel %vm1665, %v1687, %v1689
      %v1691 = vrot.slane %v1052, 1
      %v1692 = vsel %vm1665, %v1689, %v1691
      %v1693 = vrot.slane %v1053, 1
      %v1694 = vsel %vm1665, %v1691, %v1693
      %v1695 = vrot.slane %v1054, 1
      %v1696 = vsel %vm1665, %v1693, %v1695
      %v1697 = vrot.slane %v1055, 1
      %v1698 = vsel %vm1665, %v1695, %v1697
      %v1699 = vrot.slane %v1056, 1
      %v1700 = vsel %vm1665, %v1697, %v1699
      %v1701 = vrot.slane %v1057, 1
      %v1702 = vsel %vm1665, %v1699, %v1701
      %v1704 = vsel %vm1207, %v1668, 0
      %v1707 = vsel %vm1207, %v1670, 0
      %v1710 = vsel %vm1207, %v1672, 0
      %v1713 = vsel %vm1207, %v1674, 0
      %v1716 = vsel %vm1207, %v1676, 0
      %v1719 = vsel %vm1207, %v1678, 0
      %v1722 = vsel %vm1207, %v1680, 0
      %v1725 = vsel %vm1207, %v1682, 0
      %v1728 = vsel %vm1207, %v1684, 0
      %v1731 = vsel %vm1207, %v1686, 0
      %v1734 = vsel %vm1207, %v1688, 0
      %v1737 = vsel %vm1207, %v1690, 0
      %v1740 = vsel %vm1207, %v1692, 0
      %v1743 = vsel %vm1207, %v1694, 0
      %v1746 = vsel %vm1207, %v1696, 0
      %v1749 = vsel %vm1207, %v1698, 0
      %v1752 = vsel %vm1207, %v1700, 0
      %v1755 = vsel %vm1207, %v1702, 0
      %v1758 = vsel %vm1262, %v1661, 0
      %1760 = vmatprep.subr.bf16.mxu0 0
      %1761 = vmatpush1.bf16.msra.mxu0 0
      %1762 = vmatprep.subr.bf16.mxu0 0
      %1763 = vmatpush1.bf16.msra.mxu0 0
      %1764 = vmatprep.subr.bf16.mxu0 0
      %1765 = vmatpush1.bf16.msra.mxu0 0
      %1766 = vmatprep.subr.bf16.mxu0 0
      %1767 = vmatpush1.bf16.msra.mxu0 0
      %1768 = vmatprep.subr.bf16.mxu0 0
      %1769 = vmatpush1.bf16.msra.mxu0 0
      %1770 = vmatprep.subr.bf16.mxu0 0
      %1771 = vmatpush1.bf16.msra.mxu0 0
      %1772 = vmatprep.subr.bf16.mxu0 0
      %1773 = vmatpush1.bf16.msra.mxu0 0
      %1774 = vmatprep.subr.bf16.mxu0 0
      %1775 = vmatpush1.bf16.msra.mxu0 %v1758
      %1776 = vmatprep.subr.bf16.mxu0 0
      %1777 = vmatpush2.bf16.msra.mxu0 0
      %1778 = vmatprep.subr.bf16.mxu0 0
      %1779 = vmatpush2.bf16.msra.mxu0 0
      %1780 = vmatprep.subr.bf16.mxu0 0
      %1781 = vmatpush2.bf16.msra.mxu0 0
      %1782 = vmatprep.subr.bf16.mxu0 0
      %1783 = vmatpush2.bf16.msra.mxu0 0
      %1784 = vmatprep.subr.bf16.mxu0 0
      %1785 = vmatpush2.bf16.msra.mxu0 0
      %1786 = vmatprep.subr.bf16.mxu0 0
      %1787 = vmatpush2.bf16.msra.mxu0 0
      %1788 = vmatprep.subr.bf16.mxu0 0
      %1789 = vmatpush2.bf16.msra.mxu0 0
      %1790 = vmatprep.subr.bf16.mxu0 0
      %1791 = vmatpush2.bf16.msra.mxu0 0
      %1792 = vmatprep.mubr.bf16.mxu0 0
      %1793 = vmatmul.mubr.bf16.gmra.mxu0 %v1704
      %v1794 = vpop.f32.mrf.mxu0
      %v1795 = vadd.f32 0.0, %v1794
      %v1796 = vpop.f32.mrf.mxu0
      %v1797 = vpop.f32.mrf.mxu0
      %v1798 = vadd.f32 0.0, %v1797
      %v1799 = vpop.f32.mrf.mxu0
      %1800 = vmatprep.mubr.bf16.mxu0 0
      %1801 = vmatmul.mubr.bf16.gmra.mxu0 %v1707
      %v1802 = vpop.f32.mrf.mxu0
      %v1803 = vadd.f32 0.0, %v1802
      %v1804 = vpop.f32.mrf.mxu0
      %v1805 = vpop.f32.mrf.mxu0
      %v1806 = vadd.f32 0.0, %v1805
      %v1807 = vpop.f32.mrf.mxu0
      %1808 = vmatprep.mubr.bf16.mxu0 0
      %1809 = vmatmul.mubr.bf16.gmra.mxu0 %v1710
      %v1810 = vpop.f32.mrf.mxu0
      %v1811 = vadd.f32 0.0, %v1810
      %v1812 = vpop.f32.mrf.mxu0
      %v1813 = vpop.f32.mrf.mxu0
      %v1814 = vadd.f32 0.0, %v1813
      %v1815 = vpop.f32.mrf.mxu0
      %1816 = vmatprep.mubr.bf16.mxu0 0
      %1817 = vmatmul.mubr.bf16.gmra.mxu0 %v1713
      %v1818 = vpop.f32.mrf.mxu0
      %v1819 = vadd.f32 0.0, %v1818
      %v1820 = vpop.f32.mrf.mxu0
      %v1821 = vpop.f32.mrf.mxu0
      %v1822 = vadd.f32 0.0, %v1821
      %v1823 = vpop.f32.mrf.mxu0
      %1824 = vmatprep.mubr.bf16.mxu0 0
      %1825 = vmatmul.mubr.bf16.gmra.mxu0 %v1716
      %v1826 = vpop.f32.mrf.mxu0
      %v1827 = vadd.f32 0.0, %v1826
      %v1828 = vpop.f32.mrf.mxu0
      %v1829 = vpop.f32.mrf.mxu0
      %v1830 = vadd.f32 0.0, %v1829
      %v1831 = vpop.f32.mrf.mxu0
      %1832 = vmatprep.mubr.bf16.mxu0 0
      %1833 = vmatmul.mubr.bf16.gmra.mxu0 %v1719
      %v1834 = vpop.f32.mrf.mxu0
      %v1835 = vadd.f32 0.0, %v1834
      %v1836 = vpop.f32.mrf.mxu0
      %v1837 = vpop.f32.mrf.mxu0
      %v1838 = vadd.f32 0.0, %v1837
      %v1839 = vpop.f32.mrf.mxu0
      %1840 = vmatprep.mubr.bf16.mxu0 0
      %1841 = vmatmul.mubr.bf16.gmra.mxu0 %v1722
      %v1842 = vpop.f32.mrf.mxu0
      %v1843 = vadd.f32 0.0, %v1842
      %v1844 = vpop.f32.mrf.mxu0
      %v1845 = vpop.f32.mrf.mxu0
      %v1846 = vadd.f32 0.0, %v1845
      %v1847 = vpop.f32.mrf.mxu0
      %1848 = vmatprep.mubr.bf16.mxu0 0
      %1849 = vmatmul.mubr.bf16.gmra.mxu0 %v1725
      %v1850 = vpop.f32.mrf.mxu0
      %v1851 = vadd.f32 0.0, %v1850
      %v1852 = vpop.f32.mrf.mxu0
      %v1853 = vpop.f32.mrf.mxu0
      %v1854 = vadd.f32 0.0, %v1853
      %v1855 = vpop.f32.mrf.mxu0
      %1856 = vmatprep.mubr.bf16.mxu0 0
      %1857 = vmatmul.mubr.bf16.gmra.mxu0 %v1728
      %v1858 = vpop.f32.mrf.mxu0
      %v1859 = vadd.f32 0.0, %v1858
      %v1860 = vpop.f32.mrf.mxu0
      %v1861 = vpop.f32.mrf.mxu0
      %v1862 = vadd.f32 0.0, %v1861
      %v1863 = vpop.f32.mrf.mxu0
      %1864 = vmatprep.mubr.bf16.mxu0 0
      %1865 = vmatmul.mubr.bf16.gmra.mxu0 %v1731
      %v1866 = vpop.f32.mrf.mxu0
      %v1867 = vadd.f32 0.0, %v1866
      %v1868 = vpop.f32.mrf.mxu0
      %v1869 = vpop.f32.mrf.mxu0
      %v1870 = vadd.f32 0.0, %v1869
      %v1871 = vpop.f32.mrf.mxu0
      %1872 = vmatprep.mubr.bf16.mxu0 0
      %1873 = vmatmul.mubr.bf16.gmra.mxu0 %v1734
      %v1874 = vpop.f32.mrf.mxu0
      %v1875 = vadd.f32 0.0, %v1874
      %v1876 = vpop.f32.mrf.mxu0
      %v1877 = vpop.f32.mrf.mxu0
      %v1878 = vadd.f32 0.0, %v1877
      %v1879 = vpop.f32.mrf.mxu0
      %1880 = vmatprep.mubr.bf16.mxu0 0
      %1881 = vmatmul.mubr.bf16.gmra.mxu0 %v1737
      %v1882 = vpop.f32.mrf.mxu0
      %v1883 = vadd.f32 0.0, %v1882
      %v1884 = vpop.f32.mrf.mxu0
      %v1885 = vpop.f32.mrf.mxu0
      %v1886 = vadd.f32 0.0, %v1885
      %v1887 = vpop.f32.mrf.mxu0
      %1888 = vmatprep.mubr.bf16.mxu0 0
      %1889 = vmatmul.mubr.bf16.gmra.mxu0 %v1740
      %v1890 = vpop.f32.mrf.mxu0
      %v1891 = vadd.f32 0.0, %v1890
      %v1892 = vpop.f32.mrf.mxu0
      %v1893 = vpop.f32.mrf.mxu0
      %v1894 = vadd.f32 0.0, %v1893
      %v1895 = vpop.f32.mrf.mxu0
      %1896 = vmatprep.mubr.bf16.mxu0 0
      %1897 = vmatmul.mubr.bf16.gmra.mxu0 %v1743
      %v1898 = vpop.f32.mrf.mxu0
      %v1899 = vadd.f32 0.0, %v1898
      %v1900 = vpop.f32.mrf.mxu0
      %v1901 = vpop.f32.mrf.mxu0
      %v1902 = vadd.f32 0.0, %v1901
      %v1903 = vpop.f32.mrf.mxu0
      %1904 = vmatprep.mubr.bf16.mxu0 0
      %1905 = vmatmul.mubr.bf16.gmra.mxu0 %v1746
      %v1906 = vpop.f32.mrf.mxu0
      %v1907 = vadd.f32 0.0, %v1906
      %v1908 = vpop.f32.mrf.mxu0
      %v1909 = vpop.f32.mrf.mxu0
      %v1910 = vadd.f32 0.0, %v1909
      %v1911 = vpop.f32.mrf.mxu0
      %1912 = vmatprep.mubr.bf16.mxu0 0
      %1913 = vmatmul.mubr.bf16.gmra.mxu0 %v1749
      %v1914 = vpop.f32.mrf.mxu0
      %v1915 = vadd.f32 0.0, %v1914
      %v1916 = vpop.f32.mrf.mxu0
      %v1917 = vpop.f32.mrf.mxu0
      %v1918 = vadd.f32 0.0, %v1917
      %v1919 = vpop.f32.mrf.mxu0
      %1920 = vmatprep.mubr.bf16.mxu0 0
      %1921 = vmatmul.mubr.bf16.gmra.mxu0 %v1752
      %v1922 = vpop.f32.mrf.mxu0
      %v1923 = vadd.f32 0.0, %v1922
      %v1924 = vpop.f32.mrf.mxu0
      %v1925 = vpop.f32.mrf.mxu0
      %v1926 = vadd.f32 0.0, %v1925
      %v1927 = vpop.f32.mrf.mxu0
      %1928 = vmatprep.mubr.bf16.mxu0 0
      %1929 = vmatmul.mubr.bf16.gmra.mxu0 %v1755
      %v1930 = vpop.f32.mrf.mxu0
      %v1931 = vadd.f32 0.0, %v1930
      %v1932 = vpop.f32.mrf.mxu0
      %v1933 = vpop.f32.mrf.mxu0
      %v1934 = vadd.f32 0.0, %v1933
      %v1935 = vpop.f32.mrf.mxu0
      %1936 = vdwg.mxu0
      %v1937 = vadd.f32 %v1517, %v1795
      %v1938 = vadd.f32 %v1520, %v1798
      %v1939 = vadd.f32 %v1525, %v1803
      %v1940 = vadd.f32 %v1528, %v1806
      %v1941 = vadd.f32 %v1533, %v1811
      %v1942 = vadd.f32 %v1536, %v1814
      %v1943 = vadd.f32 %v1541, %v1819
      %v1944 = vadd.f32 %v1544, %v1822
      %v1945 = vadd.f32 %v1549, %v1827
      %v1946 = vadd.f32 %v1552, %v1830
      %v1947 = vadd.f32 %v1557, %v1835
      %v1948 = vadd.f32 %v1560, %v1838
      %v1949 = vadd.f32 %v1565, %v1843
      %v1950 = vadd.f32 %v1568, %v1846
      %v1951 = vadd.f32 %v1573, %v1851
      %v1952 = vadd.f32 %v1576, %v1854
      %v1953 = vadd.f32 %v1581, %v1859
      %v1954 = vadd.f32 %v1584, %v1862
      %v1955 = vadd.f32 %v1589, %v1867
      %v1956 = vadd.f32 %v1592, %v1870
      %v1957 = vadd.f32 %v1597, %v1875
      %v1958 = vadd.f32 %v1600, %v1878
      %v1959 = vadd.f32 %v1605, %v1883
      %v1960 = vadd.f32 %v1608, %v1886
      %v1961 = vadd.f32 %v1613, %v1891
      %v1962 = vadd.f32 %v1616, %v1894
      %v1963 = vadd.f32 %v1621, %v1899
      %v1964 = vadd.f32 %v1624, %v1902
      %v1965 = vadd.f32 %v1629, %v1907
      %v1966 = vadd.f32 %v1632, %v1910
      %v1967 = vadd.f32 %v1637, %v1915
      %v1968 = vadd.f32 %v1640, %v1918
      %v1969 = vadd.f32 %v1645, %v1923
      %v1970 = vadd.f32 %v1648, %v1926
      %v1971 = vadd.f32 %v1653, %v1931
      %v1972 = vadd.f32 %v1656, %v1934
      %v1973 = vld [vmem:[%s219 + $0x8] sm:$0xe]
      %v1974 = vld [vmem:[%s219 + $0xc] sm:$0xf]
      %v1975 = vld [vmem:[%s219 + $0x10] sm:$0xf]
      %v1976 = vld [vmem:[%s219 + $0x14] sm:$0xf]
      %v1977 = vld [vmem:[%s219 + $0x18] sm:$0xf]
      %v1978 = vld [vmem:[%s219 + $0x1c] sm:$0xf]
      %v1979 = vld [vmem:[%s219 + $0x20] sm:$0xf]
      %v1980 = vld [vmem:[%s219 + $0x24] sm:$0xf]
      %v1981 = vld [vmem:[%s219 + $0x28] sm:$0xf]
      %v1982 = vld [vmem:[%s219 + $0x2c] sm:$0xf]
      %v1983 = vld [vmem:[%s219 + $0x30] sm:$0xf]
      %v1984 = vld [vmem:[%s219 + $0x34] sm:$0xf]
      %v1985 = vld [vmem:[%s219 + $0x38] sm:$0xf]
      %v1986 = vld [vmem:[%s219 + $0x3c] sm:$0xf]
      %v1987 = vld [vmem:[%s219 + $0x40] sm:$0xf]
      %v1988 = vld [vmem:[%s219 + $0x44] sm:$0xf]
      %v1989 = vld [vmem:[%s219 + $0x48] sm:$0xf]
      %v1990 = vld [vmem:[%s219 + $0x4c] sm:$0xf]
      %v1991 = vld [vmem:[%s219 + $0x50] sm:$0xf]
      %v1992 = vld [vmem:[%s219 + $0x54] sm:$0xf]
      %v1993 = vld [vmem:[%s219 + $0x58] sm:$0xf]
      %v1994 = vld [vmem:[%s219 + $0x5c] sm:$0xf]
      %v1995 = vld [vmem:[%s219 + $0x60] sm:$0xf]
      %v1996 = vld [vmem:[%s219 + $0x64] sm:$0xf]
      %v1997 = vld [vmem:[%s219 + $0x68] sm:$0xf]
      %v1998 = vld [vmem:[%s219 + $0x6c] sm:$0xf]
      %v1999 = vld [vmem:[%s219 + $0x70] sm:$0xf]
      %v2000 = vld [vmem:[%s219 + $0x74] sm:$0xf]
      %v2001 = vld [vmem:[%s219 + $0x78] sm:$0xf]
      %v2002 = vld [vmem:[%s219 + $0x7c] sm:$0xf]
      %v2003 = vld [vmem:[%s219 + $0x80] sm:$0xf]
      %v2004 = vld [vmem:[%s219 + $0x84] sm:$0xf]
      %v2005 = vld [vmem:[%s219 + $0x88] sm:$0xf]
      %v2006 = vld [vmem:[%s219 + $0x8c] sm:$0xf]
      %v2007 = vld [vmem:[%s219 + $0x90] sm:$0xf]
      %v2008 = vld [vmem:[%s219 + $0x94] sm:$0xf]
      %v2009 = vld [vmem:[%s219 + $0x98] sm:$0x1]
      %s2010 = scalar_lea.vmem %s1, 3
      %v2011 = vld [vmem:[%s2010] sm:$0x1]
      %v2049 = vunpack.c.l.b16 %v1973
      %v2050 = vunpack.c.l.b16 %v1974
      %v2051 = vunpack.c.l.b16 %v1975
      %v2052 = vunpack.c.l.b16 %v1976
      %v2053 = vunpack.c.l.b16 %v1977
      %v2054 = vunpack.c.l.b16 %v1978
      %v2055 = vunpack.c.l.b16 %v1979
      %v2056 = vunpack.c.l.b16 %v1980
      %v2057 = vunpack.c.l.b16 %v1981
      %v2058 = vunpack.c.l.b16 %v1982
      %v2059 = vunpack.c.l.b16 %v1983
      %v2060 = vunpack.c.l.b16 %v1984
      %v2061 = vunpack.c.l.b16 %v1985
      %v2062 = vunpack.c.l.b16 %v1986
      %v2063 = vunpack.c.l.b16 %v1987
      %v2064 = vunpack.c.l.b16 %v1988
      %v2065 = vunpack.c.l.b16 %v1989
      %v2066 = vunpack.c.l.b16 %v1990
      %v2067 = vunpack.c.l.b16 %v1991
      %v2068 = vunpack.c.l.b16 %v1992
      %v2069 = vunpack.c.l.b16 %v1993
      %v2070 = vunpack.c.l.b16 %v1994
      %v2071 = vunpack.c.l.b16 %v1995
      %v2072 = vunpack.c.l.b16 %v1996
      %v2073 = vunpack.c.l.b16 %v1997
      %v2074 = vunpack.c.l.b16 %v1998
      %v2075 = vunpack.c.l.b16 %v1999
      %v2076 = vunpack.c.l.b16 %v2000
      %v2077 = vunpack.c.l.b16 %v2001
      %v2078 = vunpack.c.l.b16 %v2002
      %v2079 = vunpack.c.l.b16 %v2003
      %v2080 = vunpack.c.l.b16 %v2004
      %v2081 = vunpack.c.l.b16 %v2005
      %v2082 = vunpack.c.l.b16 %v2006
      %v2083 = vunpack.c.l.b16 %v2007
      %v2084 = vunpack.c.l.b16 %v2008
      %v2085 = vunpack.c.l.b16 %v2009
      %v2086 = vpack.c.b16 %v2050, %v2049
      %v2087 = vpack.c.b16 %v2052, %v2051
      %v2088 = vpack.c.b16 %v2054, %v2053
      %v2089 = vpack.c.b16 %v2056, %v2055
      %v2090 = vpack.c.b16 %v2058, %v2057
      %v2091 = vpack.c.b16 %v2060, %v2059
      %v2092 = vpack.c.b16 %v2062, %v2061
      %v2093 = vpack.c.b16 %v2064, %v2063
      %v2094 = vpack.c.b16 %v2066, %v2065
      %v2095 = vpack.c.b16 %v2068, %v2067
      %v2096 = vpack.c.b16 %v2070, %v2069
      %v2097 = vpack.c.b16 %v2072, %v2071
      %v2098 = vpack.c.b16 %v2074, %v2073
      %v2099 = vpack.c.b16 %v2076, %v2075
      %v2100 = vpack.c.b16 %v2078, %v2077
      %v2101 = vpack.c.b16 %v2080, %v2079
      %v2102 = vpack.c.b16 %v2082, %v2081
      %v2103 = vpack.c.b16 %v2084, %v2083
      %v2104 = vpack.c.b16 %v2085, %v2085
      %v2105 = vrot.slane %v2086, 1
      %v2106 = vrot.slane %v2087, 1
      %v2107 = vsel %vm1665, %v2105, %v2106
      %v2108 = vrot.slane %v2088, 1
      %v2109 = vsel %vm1665, %v2106, %v2108
      %v2110 = vrot.slane %v2089, 1
      %v2111 = vsel %vm1665, %v2108, %v2110
      %v2112 = vrot.slane %v2090, 1
      %v2113 = vsel %vm1665, %v2110, %v2112
      %v2114 = vrot.slane %v2091, 1
      %v2115 = vsel %vm1665, %v2112, %v2114
      %v2116 = vrot.slane %v2092, 1
      %v2117 = vsel %vm1665, %v2114, %v2116
      %v2118 = vrot.slane %v2093, 1
      %v2119 = vsel %vm1665, %v2116, %v2118
      %v2120 = vrot.slane %v2094, 1
      %v2121 = vsel %vm1665, %v2118, %v2120
      %v2122 = vrot.slane %v2095, 1
      %v2123 = vsel %vm1665, %v2120, %v2122
      %v2124 = vrot.slane %v2096, 1
      %v2125 = vsel %vm1665, %v2122, %v2124
      %v2126 = vrot.slane %v2097, 1
      %v2127 = vsel %vm1665, %v2124, %v2126
      %v2128 = vrot.slane %v2098, 1
      %v2129 = vsel %vm1665, %v2126, %v2128
      %v2130 = vrot.slane %v2099, 1
      %v2131 = vsel %vm1665, %v2128, %v2130
      %v2132 = vrot.slane %v2100, 1
      %v2133 = vsel %vm1665, %v2130, %v2132
      %v2134 = vrot.slane %v2101, 1
      %v2135 = vsel %vm1665, %v2132, %v2134
      %v2136 = vrot.slane %v2102, 1
      %v2137 = vsel %vm1665, %v2134, %v2136
      %v2138 = vrot.slane %v2103, 1
      %v2139 = vsel %vm1665, %v2136, %v2138
      %v2140 = vrot.slane %v2104, 1
      %v2141 = vsel %vm1665, %v2138, %v2140
      %v2143 = vsel %vm1207, %v2107, 0
      %v2146 = vsel %vm1207, %v2109, 0
      %v2149 = vsel %vm1207, %v2111, 0
      %v2152 = vsel %vm1207, %v2113, 0
      %v2155 = vsel %vm1207, %v2115, 0
      %v2158 = vsel %vm1207, %v2117, 0
      %v2161 = vsel %vm1207, %v2119, 0
      %v2164 = vsel %vm1207, %v2121, 0
      %v2167 = vsel %vm1207, %v2123, 0
      %v2170 = vsel %vm1207, %v2125, 0
      %v2173 = vsel %vm1207, %v2127, 0
      %v2176 = vsel %vm1207, %v2129, 0
      %v2179 = vsel %vm1207, %v2131, 0
      %v2182 = vsel %vm1207, %v2133, 0
      %v2185 = vsel %vm1207, %v2135, 0
      %v2188 = vsel %vm1207, %v2137, 0
      %v2191 = vsel %vm1207, %v2139, 0
      %v2194 = vsel %vm1207, %v2141, 0
      %v2197 = vsel %vm1262, %v2011, 0
      %2199 = vmatprep.subr.bf16.mxu0 0
      %2200 = vmatpush1.bf16.msra.mxu0 0
      %2201 = vmatprep.subr.bf16.mxu0 0
      %2202 = vmatpush1.bf16.msra.mxu0 0
      %2203 = vmatprep.subr.bf16.mxu0 0
      %2204 = vmatpush1.bf16.msra.mxu0 0
      %2205 = vmatprep.subr.bf16.mxu0 0
      %2206 = vmatpush1.bf16.msra.mxu0 0
      %2207 = vmatprep.subr.bf16.mxu0 0
      %2208 = vmatpush1.bf16.msra.mxu0 0
      %2209 = vmatprep.subr.bf16.mxu0 0
      %2210 = vmatpush1.bf16.msra.mxu0 0
      %2211 = vmatprep.subr.bf16.mxu0 0
      %2212 = vmatpush1.bf16.msra.mxu0 0
      %2213 = vmatprep.subr.bf16.mxu0 0
      %2214 = vmatpush1.bf16.msra.mxu0 %v2197
      %2215 = vmatprep.subr.bf16.mxu0 0
      %2216 = vmatpush2.bf16.msra.mxu0 0
      %2217 = vmatprep.subr.bf16.mxu0 0
      %2218 = vmatpush2.bf16.msra.mxu0 0
      %2219 = vmatprep.subr.bf16.mxu0 0
      %2220 = vmatpush2.bf16.msra.mxu0 0
      %2221 = vmatprep.subr.bf16.mxu0 0
      %2222 = vmatpush2.bf16.msra.mxu0 0
      %2223 = vmatprep.subr.bf16.mxu0 0
      %2224 = vmatpush2.bf16.msra.mxu0 0
      %2225 = vmatprep.subr.bf16.mxu0 0
      %2226 = vmatpush2.bf16.msra.mxu0 0
      %2227 = vmatprep.subr.bf16.mxu0 0
      %2228 = vmatpush2.bf16.msra.mxu0 0
      %2229 = vmatprep.subr.bf16.mxu0 0
      %2230 = vmatpush2.bf16.msra.mxu0 0
      %2231 = vmatprep.mubr.bf16.mxu0 0
      %2232 = vmatmul.mubr.bf16.gmra.mxu0 %v2143
      %v2233 = vpop.f32.mrf.mxu0
      %v2234 = vadd.f32 0.0, %v2233
      %v2235 = vpop.f32.mrf.mxu0
      %v2236 = vpop.f32.mrf.mxu0
      %v2237 = vadd.f32 0.0, %v2236
      %v2238 = vpop.f32.mrf.mxu0
      %2239 = vmatprep.mubr.bf16.mxu0 0
      %2240 = vmatmul.mubr.bf16.gmra.mxu0 %v2146
      %v2241 = vpop.f32.mrf.mxu0
      %v2242 = vadd.f32 0.0, %v2241
      %v2243 = vpop.f32.mrf.mxu0
      %v2244 = vpop.f32.mrf.mxu0
      %v2245 = vadd.f32 0.0, %v2244
      %v2246 = vpop.f32.mrf.mxu0
      %2247 = vmatprep.mubr.bf16.mxu0 0
      %2248 = vmatmul.mubr.bf16.gmra.mxu0 %v2149
      %v2249 = vpop.f32.mrf.mxu0
      %v2250 = vadd.f32 0.0, %v2249
      %v2251 = vpop.f32.mrf.mxu0
      %v2252 = vpop.f32.mrf.mxu0
      %v2253 = vadd.f32 0.0, %v2252
      %v2254 = vpop.f32.mrf.mxu0
      %2255 = vmatprep.mubr.bf16.mxu0 0
      %2256 = vmatmul.mubr.bf16.gmra.mxu0 %v2152
      %v2257 = vpop.f32.mrf.mxu0
      %v2258 = vadd.f32 0.0, %v2257
      %v2259 = vpop.f32.mrf.mxu0
      %v2260 = vpop.f32.mrf.mxu0
      %v2261 = vadd.f32 0.0, %v2260
      %v2262 = vpop.f32.mrf.mxu0
      %2263 = vmatprep.mubr.bf16.mxu0 0
      %2264 = vmatmul.mubr.bf16.gmra.mxu0 %v2155
      %v2265 = vpop.f32.mrf.mxu0
      %v2266 = vadd.f32 0.0, %v2265
      %v2267 = vpop.f32.mrf.mxu0
      %v2268 = vpop.f32.mrf.mxu0
      %v2269 = vadd.f32 0.0, %v2268
      %v2270 = vpop.f32.mrf.mxu0
      %2271 = vmatprep.mubr.bf16.mxu0 0
      %2272 = vmatmul.mubr.bf16.gmra.mxu0 %v2158
      %v2273 = vpop.f32.mrf.mxu0
      %v2274 = vadd.f32 0.0, %v2273
      %v2275 = vpop.f32.mrf.mxu0
      %v2276 = vpop.f32.mrf.mxu0
      %v2277 = vadd.f32 0.0, %v2276
      %v2278 = vpop.f32.mrf.mxu0
      %2279 = vmatprep.mubr.bf16.mxu0 0
      %2280 = vmatmul.mubr.bf16.gmra.mxu0 %v2161
      %v2281 = vpop.f32.mrf.mxu0
      %v2282 = vadd.f32 0.0, %v2281
      %v2283 = vpop.f32.mrf.mxu0
      %v2284 = vpop.f32.mrf.mxu0
      %v2285 = vadd.f32 0.0, %v2284
      %v2286 = vpop.f32.mrf.mxu0
      %2287 = vmatprep.mubr.bf16.mxu0 0
      %2288 = vmatmul.mubr.bf16.gmra.mxu0 %v2164
      %v2289 = vpop.f32.mrf.mxu0
      %v2290 = vadd.f32 0.0, %v2289
      %v2291 = vpop.f32.mrf.mxu0
      %v2292 = vpop.f32.mrf.mxu0
      %v2293 = vadd.f32 0.0, %v2292
      %v2294 = vpop.f32.mrf.mxu0
      %2295 = vmatprep.mubr.bf16.mxu0 0
      %2296 = vmatmul.mubr.bf16.gmra.mxu0 %v2167
      %v2297 = vpop.f32.mrf.mxu0
      %v2298 = vadd.f32 0.0, %v2297
      %v2299 = vpop.f32.mrf.mxu0
      %v2300 = vpop.f32.mrf.mxu0
      %v2301 = vadd.f32 0.0, %v2300
      %v2302 = vpop.f32.mrf.mxu0
      %2303 = vmatprep.mubr.bf16.mxu0 0
      %2304 = vmatmul.mubr.bf16.gmra.mxu0 %v2170
      %v2305 = vpop.f32.mrf.mxu0
      %v2306 = vadd.f32 0.0, %v2305
      %v2307 = vpop.f32.mrf.mxu0
      %v2308 = vpop.f32.mrf.mxu0
      %v2309 = vadd.f32 0.0, %v2308
      %v2310 = vpop.f32.mrf.mxu0
      %2311 = vmatprep.mubr.bf16.mxu0 0
      %2312 = vmatmul.mubr.bf16.gmra.mxu0 %v2173
      %v2313 = vpop.f32.mrf.mxu0
      %v2314 = vadd.f32 0.0, %v2313
      %v2315 = vpop.f32.mrf.mxu0
      %v2316 = vpop.f32.mrf.mxu0
      %v2317 = vadd.f32 0.0, %v2316
      %v2318 = vpop.f32.mrf.mxu0
      %2319 = vmatprep.mubr.bf16.mxu0 0
      %2320 = vmatmul.mubr.bf16.gmra.mxu0 %v2176
      %v2321 = vpop.f32.mrf.mxu0
      %v2322 = vadd.f32 0.0, %v2321
      %v2323 = vpop.f32.mrf.mxu0
      %v2324 = vpop.f32.mrf.mxu0
      %v2325 = vadd.f32 0.0, %v2324
      %v2326 = vpop.f32.mrf.mxu0
      %2327 = vmatprep.mubr.bf16.mxu0 0
      %2328 = vmatmul.mubr.bf16.gmra.mxu0 %v2179
      %v2329 = vpop.f32.mrf.mxu0
      %v2330 = vadd.f32 0.0, %v2329
      %v2331 = vpop.f32.mrf.mxu0
      %v2332 = vpop.f32.mrf.mxu0
      %v2333 = vadd.f32 0.0, %v2332
      %v2334 = vpop.f32.mrf.mxu0
      %2335 = vmatprep.mubr.bf16.mxu0 0
      %2336 = vmatmul.mubr.bf16.gmra.mxu0 %v2182
      %v2337 = vpop.f32.mrf.mxu0
      %v2338 = vadd.f32 0.0, %v2337
      %v2339 = vpop.f32.mrf.mxu0
      %v2340 = vpop.f32.mrf.mxu0
      %v2341 = vadd.f32 0.0, %v2340
      %v2342 = vpop.f32.mrf.mxu0
      %2343 = vmatprep.mubr.bf16.mxu0 0
      %2344 = vmatmul.mubr.bf16.gmra.mxu0 %v2185
      %v2345 = vpop.f32.mrf.mxu0
      %v2346 = vadd.f32 0.0, %v2345
      %v2347 = vpop.f32.mrf.mxu0
      %v2348 = vpop.f32.mrf.mxu0
      %v2349 = vadd.f32 0.0, %v2348
      %v2350 = vpop.f32.mrf.mxu0
      %2351 = vmatprep.mubr.bf16.mxu0 0
      %2352 = vmatmul.mubr.bf16.gmra.mxu0 %v2188
      %v2353 = vpop.f32.mrf.mxu0
      %v2354 = vadd.f32 0.0, %v2353
      %v2355 = vpop.f32.mrf.mxu0
      %v2356 = vpop.f32.mrf.mxu0
      %v2357 = vadd.f32 0.0, %v2356
      %v2358 = vpop.f32.mrf.mxu0
      %2359 = vmatprep.mubr.bf16.mxu0 0
      %2360 = vmatmul.mubr.bf16.gmra.mxu0 %v2191
      %v2361 = vpop.f32.mrf.mxu0
      %v2362 = vadd.f32 0.0, %v2361
      %v2363 = vpop.f32.mrf.mxu0
      %v2364 = vpop.f32.mrf.mxu0
      %v2365 = vadd.f32 0.0, %v2364
      %v2366 = vpop.f32.mrf.mxu0
      %2367 = vmatprep.mubr.bf16.mxu0 0
      %2368 = vmatmul.mubr.bf16.gmra.mxu0 %v2194
      %v2369 = vpop.f32.mrf.mxu0
      %v2370 = vadd.f32 0.0, %v2369
      %v2371 = vpop.f32.mrf.mxu0
      %v2372 = vpop.f32.mrf.mxu0
      %v2373 = vadd.f32 0.0, %v2372
      %v2374 = vpop.f32.mrf.mxu0
      %2375 = vdwg.mxu0
      %v2376 = vadd.f32 %v1937, %v2234
      %v2377 = vadd.f32 %v1938, %v2237
      %v2378 = vadd.f32 %v1939, %v2242
      %v2379 = vadd.f32 %v1940, %v2245
      %v2380 = vadd.f32 %v1941, %v2250
      %v2381 = vadd.f32 %v1942, %v2253
      %v2382 = vadd.f32 %v1943, %v2258
      %v2383 = vadd.f32 %v1944, %v2261
      %v2384 = vadd.f32 %v1945, %v2266
      %v2385 = vadd.f32 %v1946, %v2269
      %v2386 = vadd.f32 %v1947, %v2274
      %v2387 = vadd.f32 %v1948, %v2277
      %v2388 = vadd.f32 %v1949, %v2282
      %v2389 = vadd.f32 %v1950, %v2285
      %v2390 = vadd.f32 %v1951, %v2290
      %v2391 = vadd.f32 %v1952, %v2293
      %v2392 = vadd.f32 %v1953, %v2298
      %v2393 = vadd.f32 %v1954, %v2301
      %v2394 = vadd.f32 %v1955, %v2306
      %v2395 = vadd.f32 %v1956, %v2309
      %v2396 = vadd.f32 %v1957, %v2314
      %v2397 = vadd.f32 %v1958, %v2317
      %v2398 = vadd.f32 %v1959, %v2322
      %v2399 = vadd.f32 %v1960, %v2325
      %v2400 = vadd.f32 %v1961, %v2330
      %v2401 = vadd.f32 %v1962, %v2333
      %v2402 = vadd.f32 %v1963, %v2338
      %v2403 = vadd.f32 %v1964, %v2341
      %v2404 = vadd.f32 %v1965, %v2346
      %v2405 = vadd.f32 %v1966, %v2349
      %v2406 = vadd.f32 %v1967, %v2354
      %v2407 = vadd.f32 %v1968, %v2357
      %v2408 = vadd.f32 %v1969, %v2362
      %v2409 = vadd.f32 %v1970, %v2365
      %v2410 = vadd.f32 %v1971, %v2370
      %v2411 = vadd.f32 %v1972, %v2373
      %v2412 = vld [vmem:[%s219 + $0x98] sm:$0x3]
      %s2413 = scalar_lea.vmem %s1, 4
      %v2414 = vld [vmem:[%s2413] sm:$0x1]
      %v2416 = vunpack.c.l.b16 %v2412
      %v2417 = vpack.c.b16 %v2416, %v2416
      %vm2418 = vsmask.f32 6400
      %v2420 = vshrl.u32 %v2086, 16
      %v2422 = vrot.slane %v2420, 1
      %v2423 = vshll.u32 %v2086, 16
      %v2425 = vrot.slane %v2423, 2
      %v2426 = vor.u32 %v2422, %v2425
      %v2428 = vshrl.u32 %v2087, 16
      %v2430 = vrot.slane %v2428, 1
      %v2431 = vshll.u32 %v2087, 16
      %v2433 = vrot.slane %v2431, 2
      %v2434 = vor.u32 %v2430, %v2433
      %v2435 = vsel %vm2418, %v2426, %v2434
      %v2437 = vshrl.u32 %v2088, 16
      %v2439 = vrot.slane %v2437, 1
      %v2440 = vshll.u32 %v2088, 16
      %v2442 = vrot.slane %v2440, 2
      %v2443 = vor.u32 %v2439, %v2442
      %v2444 = vsel %vm2418, %v2434, %v2443
      %v2446 = vshrl.u32 %v2089, 16
      %v2448 = vrot.slane %v2446, 1
      %v2449 = vshll.u32 %v2089, 16
      %v2451 = vrot.slane %v2449, 2
      %v2452 = vor.u32 %v2448, %v2451
      %v2453 = vsel %vm2418, %v2443, %v2452
      %v2455 = vshrl.u32 %v2090, 16
      %v2457 = vrot.slane %v2455, 1
      %v2458 = vshll.u32 %v2090, 16
      %v2460 = vrot.slane %v2458, 2
      %v2461 = vor.u32 %v2457, %v2460
      %v2462 = vsel %vm2418, %v2452, %v2461
      %v2464 = vshrl.u32 %v2091, 16
      %v2466 = vrot.slane %v2464, 1
      %v2467 = vshll.u32 %v2091, 16
      %v2469 = vrot.slane %v2467, 2
      %v2470 = vor.u32 %v2466, %v2469
      %v2471 = vsel %vm2418, %v2461, %v2470
      %v2473 = vshrl.u32 %v2092, 16
      %v2475 = vrot.slane %v2473, 1
      %v2476 = vshll.u32 %v2092, 16
      %v2478 = vrot.slane %v2476, 2
      %v2479 = vor.u32 %v2475, %v2478
      %v2480 = vsel %vm2418, %v2470, %v2479
      %v2482 = vshrl.u32 %v2093, 16
      %v2484 = vrot.slane %v2482, 1
      %v2485 = vshll.u32 %v2093, 16
      %v2487 = vrot.slane %v2485, 2
      %v2488 = vor.u32 %v2484, %v2487
      %v2489 = vsel %vm2418, %v2479, %v2488
      %v2491 = vshrl.u32 %v2094, 16
      %v2493 = vrot.slane %v2491, 1
      %v2494 = vshll.u32 %v2094, 16
      %v2496 = vrot.slane %v2494, 2
      %v2497 = vor.u32 %v2493, %v2496
      %v2498 = vsel %vm2418, %v2488, %v2497
      %v2500 = vshrl.u32 %v2095, 16
      %v2502 = vrot.slane %v2500, 1
      %v2503 = vshll.u32 %v2095, 16
      %v2505 = vrot.slane %v2503, 2
      %v2506 = vor.u32 %v2502, %v2505
      %v2507 = vsel %vm2418, %v2497, %v2506
      %v2509 = vshrl.u32 %v2096, 16
      %v2511 = vrot.slane %v2509, 1
      %v2512 = vshll.u32 %v2096, 16
      %v2514 = vrot.slane %v2512, 2
      %v2515 = vor.u32 %v2511, %v2514
      %v2516 = vsel %vm2418, %v2506, %v2515
      %v2518 = vshrl.u32 %v2097, 16
      %v2520 = vrot.slane %v2518, 1
      %v2521 = vshll.u32 %v2097, 16
      %v2523 = vrot.slane %v2521, 2
      %v2524 = vor.u32 %v2520, %v2523
      %v2525 = vsel %vm2418, %v2515, %v2524
      %v2527 = vshrl.u32 %v2098, 16
      %v2529 = vrot.slane %v2527, 1
      %v2530 = vshll.u32 %v2098, 16
      %v2532 = vrot.slane %v2530, 2
      %v2533 = vor.u32 %v2529, %v2532
      %v2534 = vsel %vm2418, %v2524, %v2533
      %v2536 = vshrl.u32 %v2099, 16
      %v2538 = vrot.slane %v2536, 1
      %v2539 = vshll.u32 %v2099, 16
      %v2541 = vrot.slane %v2539, 2
      %v2542 = vor.u32 %v2538, %v2541
      %v2543 = vsel %vm2418, %v2533, %v2542
      %v2545 = vshrl.u32 %v2100, 16
      %v2547 = vrot.slane %v2545, 1
      %v2548 = vshll.u32 %v2100, 16
      %v2550 = vrot.slane %v2548, 2
      %v2551 = vor.u32 %v2547, %v2550
      %v2552 = vsel %vm2418, %v2542, %v2551
      %v2554 = vshrl.u32 %v2101, 16
      %v2556 = vrot.slane %v2554, 1
      %v2557 = vshll.u32 %v2101, 16
      %v2559 = vrot.slane %v2557, 2
      %v2560 = vor.u32 %v2556, %v2559
      %v2561 = vsel %vm2418, %v2551, %v2560
      %v2563 = vshrl.u32 %v2102, 16
      %v2565 = vrot.slane %v2563, 1
      %v2566 = vshll.u32 %v2102, 16
      %v2568 = vrot.slane %v2566, 2
      %v2569 = vor.u32 %v2565, %v2568
      %v2570 = vsel %vm2418, %v2560, %v2569
      %v2572 = vshrl.u32 %v2103, 16
      %v2574 = vrot.slane %v2572, 1
      %v2575 = vshll.u32 %v2103, 16
      %v2577 = vrot.slane %v2575, 2
      %v2578 = vor.u32 %v2574, %v2577
      %v2579 = vsel %vm2418, %v2569, %v2578
      %v2581 = vshrl.u32 %v2417, 16
      %v2583 = vrot.slane %v2581, 1
      %v2584 = vshll.u32 %v2417, 16
      %v2586 = vrot.slane %v2584, 2
      %v2587 = vor.u32 %v2583, %v2586
      %v2588 = vsel %vm2418, %v2578, %v2587
      %v2590 = vsel %vm1207, %v2435, 0
      %v2593 = vsel %vm1207, %v2444, 0
      %v2596 = vsel %vm1207, %v2453, 0
      %v2599 = vsel %vm1207, %v2462, 0
      %v2602 = vsel %vm1207, %v2471, 0
      %v2605 = vsel %vm1207, %v2480, 0
      %v2608 = vsel %vm1207, %v2489, 0
      %v2611 = vsel %vm1207, %v2498, 0
      %v2614 = vsel %vm1207, %v2507, 0
      %v2617 = vsel %vm1207, %v2516, 0
      %v2620 = vsel %vm1207, %v2525, 0
      %v2623 = vsel %vm1207, %v2534, 0
      %v2626 = vsel %vm1207, %v2543, 0
      %v2629 = vsel %vm1207, %v2552, 0
      %v2632 = vsel %vm1207, %v2561, 0
      %v2635 = vsel %vm1207, %v2570, 0
      %v2638 = vsel %vm1207, %v2579, 0
      %v2641 = vsel %vm1207, %v2588, 0
      %v2644 = vsel %vm1262, %v2414, 0
      %2646 = vmatprep.subr.bf16.mxu0 0
      %2647 = vmatpush1.bf16.msra.mxu0 0
      %2648 = vmatprep.subr.bf16.mxu0 0
      %2649 = vmatpush1.bf16.msra.mxu0 0
      %2650 = vmatprep.subr.bf16.mxu0 0
      %2651 = vmatpush1.bf16.msra.mxu0 0
      %2652 = vmatprep.subr.bf16.mxu0 0
      %2653 = vmatpush1.bf16.msra.mxu0 0
      %2654 = vmatprep.subr.bf16.mxu0 0
      %2655 = vmatpush1.bf16.msra.mxu0 0
      %2656 = vmatprep.subr.bf16.mxu0 0
      %2657 = vmatpush1.bf16.msra.mxu0 0
      %2658 = vmatprep.subr.bf16.mxu0 0
      %2659 = vmatpush1.bf16.msra.mxu0 0
      %2660 = vmatprep.subr.bf16.mxu0 0
      %2661 = vmatpush1.bf16.msra.mxu0 %v2644
      %2662 = vmatprep.subr.bf16.mxu0 0
      %2663 = vmatpush2.bf16.msra.mxu0 0
      %2664 = vmatprep.subr.bf16.mxu0 0
      %2665 = vmatpush2.bf16.msra.mxu0 0
      %2666 = vmatprep.subr.bf16.mxu0 0
      %2667 = vmatpush2.bf16.msra.mxu0 0
      %2668 = vmatprep.subr.bf16.mxu0 0
      %2669 = vmatpush2.bf16.msra.mxu0 0
      %2670 = vmatprep.subr.bf16.mxu0 0
      %2671 = vmatpush2.bf16.msra.mxu0 0
      %2672 = vmatprep.subr.bf16.mxu0 0
      %2673 = vmatpush2.bf16.msra.mxu0 0
      %2674 = vmatprep.subr.bf16.mxu0 0
      %2675 = vmatpush2.bf16.msra.mxu0 0
      %2676 = vmatprep.subr.bf16.mxu0 0
      %2677 = vmatpush2.bf16.msra.mxu0 0
      %2678 = vmatprep.mubr.bf16.mxu0 0
      %2679 = vmatmul.mubr.bf16.gmra.mxu0 %v2590
      %v2680 = vpop.f32.mrf.mxu0
      %v2681 = vadd.f32 0.0, %v2680
      %v2682 = vpop.f32.mrf.mxu0
      %v2683 = vpop.f32.mrf.mxu0
      %v2684 = vadd.f32 0.0, %v2683
      %v2685 = vpop.f32.mrf.mxu0
      %2686 = vmatprep.mubr.bf16.mxu0 0
      %2687 = vmatmul.mubr.bf16.gmra.mxu0 %v2593
      %v2688 = vpop.f32.mrf.mxu0
      %v2689 = vadd.f32 0.0, %v2688
      %v2690 = vpop.f32.mrf.mxu0
      %v2691 = vpop.f32.mrf.mxu0
      %v2692 = vadd.f32 0.0, %v2691
      %v2693 = vpop.f32.mrf.mxu0
      %2694 = vmatprep.mubr.bf16.mxu0 0
      %2695 = vmatmul.mubr.bf16.gmra.mxu0 %v2596
      %v2696 = vpop.f32.mrf.mxu0
      %v2697 = vadd.f32 0.0, %v2696
      %v2698 = vpop.f32.mrf.mxu0
      %v2699 = vpop.f32.mrf.mxu0
      %v2700 = vadd.f32 0.0, %v2699
      %v2701 = vpop.f32.mrf.mxu0
      %2702 = vmatprep.mubr.bf16.mxu0 0
      %2703 = vmatmul.mubr.bf16.gmra.mxu0 %v2599
      %v2704 = vpop.f32.mrf.mxu0
      %v2705 = vadd.f32 0.0, %v2704
      %v2706 = vpop.f32.mrf.mxu0
      %v2707 = vpop.f32.mrf.mxu0
      %v2708 = vadd.f32 0.0, %v2707
      %v2709 = vpop.f32.mrf.mxu0
      %2710 = vmatprep.mubr.bf16.mxu0 0
      %2711 = vmatmul.mubr.bf16.gmra.mxu0 %v2602
      %v2712 = vpop.f32.mrf.mxu0
      %v2713 = vadd.f32 0.0, %v2712
      %v2714 = vpop.f32.mrf.mxu0
      %v2715 = vpop.f32.mrf.mxu0
      %v2716 = vadd.f32 0.0, %v2715
      %v2717 = vpop.f32.mrf.mxu0
      %2718 = vmatprep.mubr.bf16.mxu0 0
      %2719 = vmatmul.mubr.bf16.gmra.mxu0 %v2605
      %v2720 = vpop.f32.mrf.mxu0
      %v2721 = vadd.f32 0.0, %v2720
      %v2722 = vpop.f32.mrf.mxu0
      %v2723 = vpop.f32.mrf.mxu0
      %v2724 = vadd.f32 0.0, %v2723
      %v2725 = vpop.f32.mrf.mxu0
      %2726 = vmatprep.mubr.bf16.mxu0 0
      %2727 = vmatmul.mubr.bf16.gmra.mxu0 %v2608
      %v2728 = vpop.f32.mrf.mxu0
      %v2729 = vadd.f32 0.0, %v2728
      %v2730 = vpop.f32.mrf.mxu0
      %v2731 = vpop.f32.mrf.mxu0
      %v2732 = vadd.f32 0.0, %v2731
      %v2733 = vpop.f32.mrf.mxu0
      %2734 = vmatprep.mubr.bf16.mxu0 0
      %2735 = vmatmul.mubr.bf16.gmra.mxu0 %v2611
      %v2736 = vpop.f32.mrf.mxu0
      %v2737 = vadd.f32 0.0, %v2736
      %v2738 = vpop.f32.mrf.mxu0
      %v2739 = vpop.f32.mrf.mxu0
      %v2740 = vadd.f32 0.0, %v2739
      %v2741 = vpop.f32.mrf.mxu0
      %2742 = vmatprep.mubr.bf16.mxu0 0
      %2743 = vmatmul.mubr.bf16.gmra.mxu0 %v2614
      %v2744 = vpop.f32.mrf.mxu0
      %v2745 = vadd.f32 0.0, %v2744
      %v2746 = vpop.f32.mrf.mxu0
      %v2747 = vpop.f32.mrf.mxu0
      %v2748 = vadd.f32 0.0, %v2747
      %v2749 = vpop.f32.mrf.mxu0
      %2750 = vmatprep.mubr.bf16.mxu0 0
      %2751 = vmatmul.mubr.bf16.gmra.mxu0 %v2617
      %v2752 = vpop.f32.mrf.mxu0
      %v2753 = vadd.f32 0.0, %v2752
      %v2754 = vpop.f32.mrf.mxu0
      %v2755 = vpop.f32.mrf.mxu0
      %v2756 = vadd.f32 0.0, %v2755
      %v2757 = vpop.f32.mrf.mxu0
      %2758 = vmatprep.mubr.bf16.mxu0 0
      %2759 = vmatmul.mubr.bf16.gmra.mxu0 %v2620
      %v2760 = vpop.f32.mrf.mxu0
      %v2761 = vadd.f32 0.0, %v2760
      %v2762 = vpop.f32.mrf.mxu0
      %v2763 = vpop.f32.mrf.mxu0
      %v2764 = vadd.f32 0.0, %v2763
      %v2765 = vpop.f32.mrf.mxu0
      %2766 = vmatprep.mubr.bf16.mxu0 0
      %2767 = vmatmul.mubr.bf16.gmra.mxu0 %v2623
      %v2768 = vpop.f32.mrf.mxu0
      %v2769 = vadd.f32 0.0, %v2768
      %v2770 = vpop.f32.mrf.mxu0
      %v2771 = vpop.f32.mrf.mxu0
      %v2772 = vadd.f32 0.0, %v2771
      %v2773 = vpop.f32.mrf.mxu0
      %2774 = vmatprep.mubr.bf16.mxu0 0
      %2775 = vmatmul.mubr.bf16.gmra.mxu0 %v2626
      %v2776 = vpop.f32.mrf.mxu0
      %v2777 = vadd.f32 0.0, %v2776
      %v2778 = vpop.f32.mrf.mxu0
      %v2779 = vpop.f32.mrf.mxu0
      %v2780 = vadd.f32 0.0, %v2779
      %v2781 = vpop.f32.mrf.mxu0
      %2782 = vmatprep.mubr.bf16.mxu0 0
      %2783 = vmatmul.mubr.bf16.gmra.mxu0 %v2629
      %v2784 = vpop.f32.mrf.mxu0
      %v2785 = vadd.f32 0.0, %v2784
      %v2786 = vpop.f32.mrf.mxu0
      %v2787 = vpop.f32.mrf.mxu0
      %v2788 = vadd.f32 0.0, %v2787
      %v2789 = vpop.f32.mrf.mxu0
      %2790 = vmatprep.mubr.bf16.mxu0 0
      %2791 = vmatmul.mubr.bf16.gmra.mxu0 %v2632
      %v2792 = vpop.f32.mrf.mxu0
      %v2793 = vadd.f32 0.0, %v2792
      %v2794 = vpop.f32.mrf.mxu0
      %v2795 = vpop.f32.mrf.mxu0
      %v2796 = vadd.f32 0.0, %v2795
      %v2797 = vpop.f32.mrf.mxu0
      %2798 = vmatprep.mubr.bf16.mxu0 0
      %2799 = vmatmul.mubr.bf16.gmra.mxu0 %v2635
      %v2800 = vpop.f32.mrf.mxu0
      %v2801 = vadd.f32 0.0, %v2800
      %v2802 = vpop.f32.mrf.mxu0
      %v2803 = vpop.f32.mrf.mxu0
      %v2804 = vadd.f32 0.0, %v2803
      %v2805 = vpop.f32.mrf.mxu0
      %2806 = vmatprep.mubr.bf16.mxu0 0
      %2807 = vmatmul.mubr.bf16.gmra.mxu0 %v2638
      %v2808 = vpop.f32.mrf.mxu0
      %v2809 = vadd.f32 0.0, %v2808
      %v2810 = vpop.f32.mrf.mxu0
      %v2811 = vpop.f32.mrf.mxu0
      %v2812 = vadd.f32 0.0, %v2811
      %v2813 = vpop.f32.mrf.mxu0
      %2814 = vmatprep.mubr.bf16.mxu0 0
      %2815 = vmatmul.mubr.bf16.gmra.mxu0 %v2641
      %v2816 = vpop.f32.mrf.mxu0
      %v2817 = vadd.f32 0.0, %v2816
      %v2818 = vpop.f32.mrf.mxu0
      %v2819 = vpop.f32.mrf.mxu0
      %v2820 = vadd.f32 0.0, %v2819
      %v2821 = vpop.f32.mrf.mxu0
      %2822 = vdwg.mxu0
      %v2823 = vadd.f32 %v2376, %v2681
      %v2824 = vadd.f32 %v2377, %v2684
      %v2825 = vadd.f32 %v2378, %v2689
      %v2826 = vadd.f32 %v2379, %v2692
      %v2827 = vadd.f32 %v2380, %v2697
      %v2828 = vadd.f32 %v2381, %v2700
      %v2829 = vadd.f32 %v2382, %v2705
      %v2830 = vadd.f32 %v2383, %v2708
      %v2831 = vadd.f32 %v2384, %v2713
      %v2832 = vadd.f32 %v2385, %v2716
      %v2833 = vadd.f32 %v2386, %v2721
      %v2834 = vadd.f32 %v2387, %v2724
      %v2835 = vadd.f32 %v2388, %v2729
      %v2836 = vadd.f32 %v2389, %v2732
      %v2837 = vadd.f32 %v2390, %v2737
      %v2838 = vadd.f32 %v2391, %v2740
      %v2839 = vadd.f32 %v2392, %v2745
      %v2840 = vadd.f32 %v2393, %v2748
      %v2841 = vadd.f32 %v2394, %v2753
      %v2842 = vadd.f32 %v2395, %v2756
      %v2843 = vadd.f32 %v2396, %v2761
      %v2844 = vadd.f32 %v2397, %v2764
      %v2845 = vadd.f32 %v2398, %v2769
      %v2846 = vadd.f32 %v2399, %v2772
      %v2847 = vadd.f32 %v2400, %v2777
      %v2848 = vadd.f32 %v2401, %v2780
      %v2849 = vadd.f32 %v2402, %v2785
      %v2850 = vadd.f32 %v2403, %v2788
      %v2851 = vadd.f32 %v2404, %v2793
      %v2852 = vadd.f32 %v2405, %v2796
      %v2853 = vadd.f32 %v2406, %v2801
      %v2854 = vadd.f32 %v2407, %v2804
      %v2855 = vadd.f32 %v2408, %v2809
      %v2856 = vadd.f32 %v2409, %v2812
      %v2857 = vadd.f32 %v2410, %v2817
      %v2858 = vadd.f32 %v2411, %v2820
      %v2859 = vld [vmem:[%s219 + $0x8] sm:$0xc]
      %s2860 = scalar_lea.vmem %s1, 5
      %v2861 = vld [vmem:[%s2860] sm:$0x1]
      %v2863 = vunpack.c.l.b16 %v2859
      %v2864 = vpack.c.b16 %v2050, %v2863
      %vm2865 = vcmask 1045504
      %v2866 = vrot.slane %v2864, 2
      %v2867 = vrot.slane %v2087, 2
      %v2868 = vsel %vm2865, %v2866, %v2867
      %v2869 = vrot.slane %v2088, 2
      %v2870 = vsel %vm2865, %v2867, %v2869
      %v2871 = vrot.slane %v2089, 2
      %v2872 = vsel %vm2865, %v2869, %v2871
      %v2873 = vrot.slane %v2090, 2
      %v2874 = vsel %vm2865, %v2871, %v2873
      %v2875 = vrot.slane %v2091, 2
      %v2876 = vsel %vm2865, %v2873, %v2875
      %v2877 = vrot.slane %v2092, 2
      %v2878 = vsel %vm2865, %v2875, %v2877
      %v2879 = vrot.slane %v2093, 2
      %v2880 = vsel %vm2865, %v2877, %v2879
      %v2881 = vrot.slane %v2094, 2
      %v2882 = vsel %vm2865, %v2879, %v2881
      %v2883 = vrot.slane %v2095, 2
      %v2884 = vsel %vm2865, %v2881, %v2883
      %v2885 = vrot.slane %v2096, 2
      %v2886 = vsel %vm2865, %v2883, %v2885
      %v2887 = vrot.slane %v2097, 2
      %v2888 = vsel %vm2865, %v2885, %v2887
      %v2889 = vrot.slane %v2098, 2
      %v2890 = vsel %vm2865, %v2887, %v2889
      %v2891 = vrot.slane %v2099, 2
      %v2892 = vsel %vm2865, %v2889, %v2891
      %v2893 = vrot.slane %v2100, 2
      %v2894 = vsel %vm2865, %v2891, %v2893
      %v2895 = vrot.slane %v2101, 2
      %v2896 = vsel %vm2865, %v2893, %v2895
      %v2897 = vrot.slane %v2102, 2
      %v2898 = vsel %vm2865, %v2895, %v2897
      %v2899 = vrot.slane %v2103, 2
      %v2900 = vsel %vm2865, %v2897, %v2899
      %v2901 = vrot.slane %v2417, 2
      %v2902 = vsel %vm2865, %v2899, %v2901
      %v2904 = vsel %vm1207, %v2868, 0
      %v2907 = vsel %vm1207, %v2870, 0
      %v2910 = vsel %vm1207, %v2872, 0
      %v2913 = vsel %vm1207, %v2874, 0
      %v2916 = vsel %vm1207, %v2876, 0
      %v2919 = vsel %vm1207, %v2878, 0
      %v2922 = vsel %vm1207, %v2880, 0
      %v2925 = vsel %vm1207, %v2882, 0
      %v2928 = vsel %vm1207, %v2884, 0
      %v2931 = vsel %vm1207, %v2886, 0
      %v2934 = vsel %vm1207, %v2888, 0
      %v2937 = vsel %vm1207, %v2890, 0
      %v2940 = vsel %vm1207, %v2892, 0
      %v2943 = vsel %vm1207, %v2894, 0
      %v2946 = vsel %vm1207, %v2896, 0
      %v2949 = vsel %vm1207, %v2898, 0
      %v2952 = vsel %vm1207, %v2900, 0
      %v2955 = vsel %vm1207, %v2902, 0
      %v2958 = vsel %vm1262, %v2861, 0
      %2960 = vmatprep.subr.bf16.mxu0 0
      %2961 = vmatpush1.bf16.msra.mxu0 0
      %2962 = vmatprep.subr.bf16.mxu0 0
      %2963 = vmatpush1.bf16.msra.mxu0 0
      %2964 = vmatprep.subr.bf16.mxu0 0
      %2965 = vmatpush1.bf16.msra.mxu0 0
      %2966 = vmatprep.subr.bf16.mxu0 0
      %2967 = vmatpush1.bf16.msra.mxu0 0
      %2968 = vmatprep.subr.bf16.mxu0 0
      %2969 = vmatpush1.bf16.msra.mxu0 0
      %2970 = vmatprep.subr.bf16.mxu0 0
      %2971 = vmatpush1.bf16.msra.mxu0 0
      %2972 = vmatprep.subr.bf16.mxu0 0
      %2973 = vmatpush1.bf16.msra.mxu0 0
      %2974 = vmatprep.subr.bf16.mxu0 0
      %2975 = vmatpush1.bf16.msra.mxu0 %v2958
      %2976 = vmatprep.subr.bf16.mxu0 0
      %2977 = vmatpush2.bf16.msra.mxu0 0
      %2978 = vmatprep.subr.bf16.mxu0 0
      %2979 = vmatpush2.bf16.msra.mxu0 0
      %2980 = vmatprep.subr.bf16.mxu0 0
      %2981 = vmatpush2.bf16.msra.mxu0 0
      %2982 = vmatprep.subr.bf16.mxu0 0
      %2983 = vmatpush2.bf16.msra.mxu0 0
      %2984 = vmatprep.subr.bf16.mxu0 0
      %2985 = vmatpush2.bf16.msra.mxu0 0
      %2986 = vmatprep.subr.bf16.mxu0 0
      %2987 = vmatpush2.bf16.msra.mxu0 0
      %2988 = vmatprep.subr.bf16.mxu0 0
      %2989 = vmatpush2.bf16.msra.mxu0 0
      %2990 = vmatprep.subr.bf16.mxu0 0
      %2991 = vmatpush2.bf16.msra.mxu0 0
      %2992 = vmatprep.mubr.bf16.mxu0 0
      %2993 = vmatmul.mubr.bf16.gmra.mxu0 %v2904
      %v2994 = vpop.f32.mrf.mxu0
      %v2995 = vadd.f32 0.0, %v2994
      %v2996 = vpop.f32.mrf.mxu0
      %v2997 = vpop.f32.mrf.mxu0
      %v2998 = vadd.f32 0.0, %v2997
      %v2999 = vpop.f32.mrf.mxu0
      %3000 = vmatprep.mubr.bf16.mxu0 0
      %3001 = vmatmul.mubr.bf16.gmra.mxu0 %v2907
      %v3002 = vpop.f32.mrf.mxu0
      %v3003 = vadd.f32 0.0, %v3002
      %v3004 = vpop.f32.mrf.mxu0
      %v3005 = vpop.f32.mrf.mxu0
      %v3006 = vadd.f32 0.0, %v3005
      %v3007 = vpop.f32.mrf.mxu0
      %3008 = vmatprep.mubr.bf16.mxu0 0
      %3009 = vmatmul.mubr.bf16.gmra.mxu0 %v2910
      %v3010 = vpop.f32.mrf.mxu0
      %v3011 = vadd.f32 0.0, %v3010
      %v3012 = vpop.f32.mrf.mxu0
      %v3013 = vpop.f32.mrf.mxu0
      %v3014 = vadd.f32 0.0, %v3013
      %v3015 = vpop.f32.mrf.mxu0
      %3016 = vmatprep.mubr.bf16.mxu0 0
      %3017 = vmatmul.mubr.bf16.gmra.mxu0 %v2913
      %v3018 = vpop.f32.mrf.mxu0
      %v3019 = vadd.f32 0.0, %v3018
      %v3020 = vpop.f32.mrf.mxu0
      %v3021 = vpop.f32.mrf.mxu0
      %v3022 = vadd.f32 0.0, %v3021
      %v3023 = vpop.f32.mrf.mxu0
      %3024 = vmatprep.mubr.bf16.mxu0 0
      %3025 = vmatmul.mubr.bf16.gmra.mxu0 %v2916
      %v3026 = vpop.f32.mrf.mxu0
      %v3027 = vadd.f32 0.0, %v3026
      %v3028 = vpop.f32.mrf.mxu0
      %v3029 = vpop.f32.mrf.mxu0
      %v3030 = vadd.f32 0.0, %v3029
      %v3031 = vpop.f32.mrf.mxu0
      %3032 = vmatprep.mubr.bf16.mxu0 0
      %3033 = vmatmul.mubr.bf16.gmra.mxu0 %v2919
      %v3034 = vpop.f32.mrf.mxu0
      %v3035 = vadd.f32 0.0, %v3034
      %v3036 = vpop.f32.mrf.mxu0
      %v3037 = vpop.f32.mrf.mxu0
      %v3038 = vadd.f32 0.0, %v3037
      %v3039 = vpop.f32.mrf.mxu0
      %3040 = vmatprep.mubr.bf16.mxu0 0
      %3041 = vmatmul.mubr.bf16.gmra.mxu0 %v2922
      %v3042 = vpop.f32.mrf.mxu0
      %v3043 = vadd.f32 0.0, %v3042
      %v3044 = vpop.f32.mrf.mxu0
      %v3045 = vpop.f32.mrf.mxu0
      %v3046 = vadd.f32 0.0, %v3045
      %v3047 = vpop.f32.mrf.mxu0
      %3048 = vmatprep.mubr.bf16.mxu0 0
      %3049 = vmatmul.mubr.bf16.gmra.mxu0 %v2925
      %v3050 = vpop.f32.mrf.mxu0
      %v3051 = vadd.f32 0.0, %v3050
      %v3052 = vpop.f32.mrf.mxu0
      %v3053 = vpop.f32.mrf.mxu0
      %v3054 = vadd.f32 0.0, %v3053
      %v3055 = vpop.f32.mrf.mxu0
      %3056 = vmatprep.mubr.bf16.mxu0 0
      %3057 = vmatmul.mubr.bf16.gmra.mxu0 %v2928
      %v3058 = vpop.f32.mrf.mxu0
      %v3059 = vadd.f32 0.0, %v3058
      %v3060 = vpop.f32.mrf.mxu0
      %v3061 = vpop.f32.mrf.mxu0
      %v3062 = vadd.f32 0.0, %v3061
      %v3063 = vpop.f32.mrf.mxu0
      %3064 = vmatprep.mubr.bf16.mxu0 0
      %3065 = vmatmul.mubr.bf16.gmra.mxu0 %v2931
      %v3066 = vpop.f32.mrf.mxu0
      %v3067 = vadd.f32 0.0, %v3066
      %v3068 = vpop.f32.mrf.mxu0
      %v3069 = vpop.f32.mrf.mxu0
      %v3070 = vadd.f32 0.0, %v3069
      %v3071 = vpop.f32.mrf.mxu0
      %3072 = vmatprep.mubr.bf16.mxu0 0
      %3073 = vmatmul.mubr.bf16.gmra.mxu0 %v2934
      %v3074 = vpop.f32.mrf.mxu0
      %v3075 = vadd.f32 0.0, %v3074
      %v3076 = vpop.f32.mrf.mxu0
      %v3077 = vpop.f32.mrf.mxu0
      %v3078 = vadd.f32 0.0, %v3077
      %v3079 = vpop.f32.mrf.mxu0
      %3080 = vmatprep.mubr.bf16.mxu0 0
      %3081 = vmatmul.mubr.bf16.gmra.mxu0 %v2937
      %v3082 = vpop.f32.mrf.mxu0
      %v3083 = vadd.f32 0.0, %v3082
      %v3084 = vpop.f32.mrf.mxu0
      %v3085 = vpop.f32.mrf.mxu0
      %v3086 = vadd.f32 0.0, %v3085
      %v3087 = vpop.f32.mrf.mxu0
      %3088 = vmatprep.mubr.bf16.mxu0 0
      %3089 = vmatmul.mubr.bf16.gmra.mxu0 %v2940
      %v3090 = vpop.f32.mrf.mxu0
      %v3091 = vadd.f32 0.0, %v3090
      %v3092 = vpop.f32.mrf.mxu0
      %v3093 = vpop.f32.mrf.mxu0
      %v3094 = vadd.f32 0.0, %v3093
      %v3095 = vpop.f32.mrf.mxu0
      %3096 = vmatprep.mubr.bf16.mxu0 0
      %3097 = vmatmul.mubr.bf16.gmra.mxu0 %v2943
      %v3098 = vpop.f32.mrf.mxu0
      %v3099 = vadd.f32 0.0, %v3098
      %v3100 = vpop.f32.mrf.mxu0
      %v3101 = vpop.f32.mrf.mxu0
      %v3102 = vadd.f32 0.0, %v3101
      %v3103 = vpop.f32.mrf.mxu0
      %3104 = vmatprep.mubr.bf16.mxu0 0
      %3105 = vmatmul.mubr.bf16.gmra.mxu0 %v2946
      %v3106 = vpop.f32.mrf.mxu0
      %v3107 = vadd.f32 0.0, %v3106
      %v3108 = vpop.f32.mrf.mxu0
      %v3109 = vpop.f32.mrf.mxu0
      %v3110 = vadd.f32 0.0, %v3109
      %v3111 = vpop.f32.mrf.mxu0
      %3112 = vmatprep.mubr.bf16.mxu0 0
      %3113 = vmatmul.mubr.bf16.gmra.mxu0 %v2949
      %v3114 = vpop.f32.mrf.mxu0
      %v3115 = vadd.f32 0.0, %v3114
      %v3116 = vpop.f32.mrf.mxu0
      %v3117 = vpop.f32.mrf.mxu0
      %v3118 = vadd.f32 0.0, %v3117
      %v3119 = vpop.f32.mrf.mxu0
      %3120 = vmatprep.mubr.bf16.mxu0 0
      %3121 = vmatmul.mubr.bf16.gmra.mxu0 %v2952
      %v3122 = vpop.f32.mrf.mxu0
      %v3123 = vadd.f32 0.0, %v3122
      %v3124 = vpop.f32.mrf.mxu0
      %v3125 = vpop.f32.mrf.mxu0
      %v3126 = vadd.f32 0.0, %v3125
      %v3127 = vpop.f32.mrf.mxu0
      %3128 = vmatprep.mubr.bf16.mxu0 0
      %3129 = vmatmul.mubr.bf16.gmra.mxu0 %v2955
      %v3130 = vpop.f32.mrf.mxu0
      %v3131 = vadd.f32 0.0, %v3130
      %v3132 = vpop.f32.mrf.mxu0
      %v3133 = vpop.f32.mrf.mxu0
      %v3134 = vadd.f32 0.0, %v3133
      %v3135 = vpop.f32.mrf.mxu0
      %3136 = vdwg.mxu0
      %v3137 = vadd.f32 %v2823, %v2995
      %v3138 = vadd.f32 %v2824, %v2998
      %v3139 = vadd.f32 %v2825, %v3003
      %v3140 = vadd.f32 %v2826, %v3006
      %v3141 = vadd.f32 %v2827, %v3011
      %v3142 = vadd.f32 %v2828, %v3014
      %v3143 = vadd.f32 %v2829, %v3019
      %v3144 = vadd.f32 %v2830, %v3022
      %v3145 = vadd.f32 %v2831, %v3027
      %v3146 = vadd.f32 %v2832, %v3030
      %v3147 = vadd.f32 %v2833, %v3035
      %v3148 = vadd.f32 %v2834, %v3038
      %v3149 = vadd.f32 %v2835, %v3043
      %v3150 = vadd.f32 %v2836, %v3046
      %v3151 = vadd.f32 %v2837, %v3051
      %v3152 = vadd.f32 %v2838, %v3054
      %v3153 = vadd.f32 %v2839, %v3059
      %v3154 = vadd.f32 %v2840, %v3062
      %v3155 = vadd.f32 %v2841, %v3067
      %v3156 = vadd.f32 %v2842, %v3070
      %v3157 = vadd.f32 %v2843, %v3075
      %v3158 = vadd.f32 %v2844, %v3078
      %v3159 = vadd.f32 %v2845, %v3083
      %v3160 = vadd.f32 %v2846, %v3086
      %v3161 = vadd.f32 %v2847, %v3091
      %v3162 = vadd.f32 %v2848, %v3094
      %v3163 = vadd.f32 %v2849, %v3099
      %v3164 = vadd.f32 %v2850, %v3102
      %v3165 = vadd.f32 %v2851, %v3107
      %v3166 = vadd.f32 %v2852, %v3110
      %v3167 = vadd.f32 %v2853, %v3115
      %v3168 = vadd.f32 %v2854, %v3118
      %v3169 = vadd.f32 %v2855, %v3123
      %v3170 = vadd.f32 %v2856, %v3126
      %v3171 = vadd.f32 %v2857, %v3131
      %v3172 = vadd.f32 %v2858, %v3134
      %v3173 = vld [vmem:[%s219 + $0x10] sm:$0xc]
      %v3174 = vld [vmem:[%s219 + $0x14] sm:$0xf]
      %v3175 = vld [vmem:[%s219 + $0x18] sm:$0xf]
      %v3176 = vld [vmem:[%s219 + $0x1c] sm:$0xf]
      %v3177 = vld [vmem:[%s219 + $0x20] sm:$0xf]
      %v3178 = vld [vmem:[%s219 + $0x24] sm:$0xf]
      %v3179 = vld [vmem:[%s219 + $0x28] sm:$0xf]
      %v3180 = vld [vmem:[%s219 + $0x2c] sm:$0xf]
      %v3181 = vld [vmem:[%s219 + $0x30] sm:$0xf]
      %v3182 = vld [vmem:[%s219 + $0x34] sm:$0xf]
      %v3183 = vld [vmem:[%s219 + $0x38] sm:$0xf]
      %v3184 = vld [vmem:[%s219 + $0x3c] sm:$0xf]
      %v3185 = vld [vmem:[%s219 + $0x40] sm:$0xf]
      %v3186 = vld [vmem:[%s219 + $0x44] sm:$0xf]
      %v3187 = vld [vmem:[%s219 + $0x48] sm:$0xf]
      %v3188 = vld [vmem:[%s219 + $0x4c] sm:$0xf]
      %v3189 = vld [vmem:[%s219 + $0x50] sm:$0xf]
      %v3190 = vld [vmem:[%s219 + $0x54] sm:$0xf]
      %v3191 = vld [vmem:[%s219 + $0x58] sm:$0xf]
      %v3192 = vld [vmem:[%s219 + $0x5c] sm:$0xf]
      %v3193 = vld [vmem:[%s219 + $0x60] sm:$0xf]
      %v3194 = vld [vmem:[%s219 + $0x64] sm:$0xf]
      %v3195 = vld [vmem:[%s219 + $0x68] sm:$0xf]
      %v3196 = vld [vmem:[%s219 + $0x6c] sm:$0xf]
      %v3197 = vld [vmem:[%s219 + $0x70] sm:$0xf]
      %v3198 = vld [vmem:[%s219 + $0x74] sm:$0xf]
      %v3199 = vld [vmem:[%s219 + $0x78] sm:$0xf]
      %v3200 = vld [vmem:[%s219 + $0x7c] sm:$0xf]
      %v3201 = vld [vmem:[%s219 + $0x80] sm:$0xf]
      %v3202 = vld [vmem:[%s219 + $0x84] sm:$0xf]
      %v3203 = vld [vmem:[%s219 + $0x88] sm:$0xf]
      %v3204 = vld [vmem:[%s219 + $0x8c] sm:$0xf]
      %v3205 = vld [vmem:[%s219 + $0x90] sm:$0xf]
      %v3206 = vld [vmem:[%s219 + $0x94] sm:$0xf]
      %v3207 = vld [vmem:[%s219 + $0x98] sm:$0xf]
      %v3208 = vld [vmem:[%s219 + $0x9c] sm:$0xf]
      %v3209 = vld [vmem:[%s219 + $0xa0] sm:$0x3]
      %s3210 = scalar_lea.vmem %s1, 6
      %v3211 = vld [vmem:[%s3210] sm:$0x1]
      %v3249 = vunpack.c.l.b16 %v3173
      %v3250 = vunpack.c.l.b16 %v3174
      %v3251 = vunpack.c.l.b16 %v3175
      %v3252 = vunpack.c.l.b16 %v3176
      %v3253 = vunpack.c.l.b16 %v3177
      %v3254 = vunpack.c.l.b16 %v3178
      %v3255 = vunpack.c.l.b16 %v3179
      %v3256 = vunpack.c.l.b16 %v3180
      %v3257 = vunpack.c.l.b16 %v3181
      %v3258 = vunpack.c.l.b16 %v3182
      %v3259 = vunpack.c.l.b16 %v3183
      %v3260 = vunpack.c.l.b16 %v3184
      %v3261 = vunpack.c.l.b16 %v3185
      %v3262 = vunpack.c.l.b16 %v3186
      %v3263 = vunpack.c.l.b16 %v3187
      %v3264 = vunpack.c.l.b16 %v3188
      %v3265 = vunpack.c.l.b16 %v3189
      %v3266 = vunpack.c.l.b16 %v3190
      %v3267 = vunpack.c.l.b16 %v3191
      %v3268 = vunpack.c.l.b16 %v3192
      %v3269 = vunpack.c.l.b16 %v3193
      %v3270 = vunpack.c.l.b16 %v3194
      %v3271 = vunpack.c.l.b16 %v3195
      %v3272 = vunpack.c.l.b16 %v3196
      %v3273 = vunpack.c.l.b16 %v3197
      %v3274 = vunpack.c.l.b16 %v3198
      %v3275 = vunpack.c.l.b16 %v3199
      %v3276 = vunpack.c.l.b16 %v3200
      %v3277 = vunpack.c.l.b16 %v3201
      %v3278 = vunpack.c.l.b16 %v3202
      %v3279 = vunpack.c.l.b16 %v3203
      %v3280 = vunpack.c.l.b16 %v3204
      %v3281 = vunpack.c.l.b16 %v3205
      %v3282 = vunpack.c.l.b16 %v3206
      %v3283 = vunpack.c.l.b16 %v3207
      %v3284 = vunpack.c.l.b16 %v3208
      %v3285 = vunpack.c.l.b16 %v3209
      %v3286 = vpack.c.b16 %v3250, %v3249
      %v3287 = vpack.c.b16 %v3252, %v3251
      %v3288 = vpack.c.b16 %v3254, %v3253
      %v3289 = vpack.c.b16 %v3256, %v3255
      %v3290 = vpack.c.b16 %v3258, %v3257
      %v3291 = vpack.c.b16 %v3260, %v3259
      %v3292 = vpack.c.b16 %v3262, %v3261
      %v3293 = vpack.c.b16 %v3264, %v3263
      %v3294 = vpack.c.b16 %v3266, %v3265
      %v3295 = vpack.c.b16 %v3268, %v3267
      %v3296 = vpack.c.b16 %v3270, %v3269
      %v3297 = vpack.c.b16 %v3272, %v3271
      %v3298 = vpack.c.b16 %v3274, %v3273
      %v3299 = vpack.c.b16 %v3276, %v3275
      %v3300 = vpack.c.b16 %v3278, %v3277
      %v3301 = vpack.c.b16 %v3280, %v3279
      %v3302 = vpack.c.b16 %v3282, %v3281
      %v3303 = vpack.c.b16 %v3284, %v3283
      %v3304 = vpack.c.b16 %v3285, %v3285
      %v3305 = vrot.slane %v3286, 2
      %v3306 = vrot.slane %v3287, 2
      %v3307 = vsel %vm2865, %v3305, %v3306
      %v3308 = vrot.slane %v3288, 2
      %v3309 = vsel %vm2865, %v3306, %v3308
      %v3310 = vrot.slane %v3289, 2
      %v3311 = vsel %vm2865, %v3308, %v3310
      %v3312 = vrot.slane %v3290, 2
      %v3313 = vsel %vm2865, %v3310, %v3312
      %v3314 = vrot.slane %v3291, 2
      %v3315 = vsel %vm2865, %v3312, %v3314
      %v3316 = vrot.slane %v3292, 2
      %v3317 = vsel %vm2865, %v3314, %v3316
      %v3318 = vrot.slane %v3293, 2
      %v3319 = vsel %vm2865, %v3316, %v3318
      %v3320 = vrot.slane %v3294, 2
      %v3321 = vsel %vm2865, %v3318, %v3320
      %v3322 = vrot.slane %v3295, 2
      %v3323 = vsel %vm2865, %v3320, %v3322
      %v3324 = vrot.slane %v3296, 2
      %v3325 = vsel %vm2865, %v3322, %v3324
      %v3326 = vrot.slane %v3297, 2
      %v3327 = vsel %vm2865, %v3324, %v3326
      %v3328 = vrot.slane %v3298, 2
      %v3329 = vsel %vm2865, %v3326, %v3328
      %v3330 = vrot.slane %v3299, 2
      %v3331 = vsel %vm2865, %v3328, %v3330
      %v3332 = vrot.slane %v3300, 2
      %v3333 = vsel %vm2865, %v3330, %v3332
      %v3334 = vrot.slane %v3301, 2
      %v3335 = vsel %vm2865, %v3332, %v3334
      %v3336 = vrot.slane %v3302, 2
      %v3337 = vsel %vm2865, %v3334, %v3336
      %v3338 = vrot.slane %v3303, 2
      %v3339 = vsel %vm2865, %v3336, %v3338
      %v3340 = vrot.slane %v3304, 2
      %v3341 = vsel %vm2865, %v3338, %v3340
      %v3343 = vsel %vm1207, %v3307, 0
      %v3346 = vsel %vm1207, %v3309, 0
      %v3349 = vsel %vm1207, %v3311, 0
      %v3352 = vsel %vm1207, %v3313, 0
      %v3355 = vsel %vm1207, %v3315, 0
      %v3358 = vsel %vm1207, %v3317, 0
      %v3361 = vsel %vm1207, %v3319, 0
      %v3364 = vsel %vm1207, %v3321, 0
      %v3367 = vsel %vm1207, %v3323, 0
      %v3370 = vsel %vm1207, %v3325, 0
      %v3373 = vsel %vm1207, %v3327, 0
      %v3376 = vsel %vm1207, %v3329, 0
      %v3379 = vsel %vm1207, %v3331, 0
      %v3382 = vsel %vm1207, %v3333, 0
      %v3385 = vsel %vm1207, %v3335, 0
      %v3388 = vsel %vm1207, %v3337, 0
      %v3391 = vsel %vm1207, %v3339, 0
      %v3394 = vsel %vm1207, %v3341, 0
      %v3397 = vsel %vm1262, %v3211, 0
      %3399 = vmatprep.subr.bf16.mxu0 0
      %3400 = vmatpush1.bf16.msra.mxu0 0
      %3401 = vmatprep.subr.bf16.mxu0 0
      %3402 = vmatpush1.bf16.msra.mxu0 0
      %3403 = vmatprep.subr.bf16.mxu0 0
      %3404 = vmatpush1.bf16.msra.mxu0 0
      %3405 = vmatprep.subr.bf16.mxu0 0
      %3406 = vmatpush1.bf16.msra.mxu0 0
      %3407 = vmatprep.subr.bf16.mxu0 0
      %3408 = vmatpush1.bf16.msra.mxu0 0
      %3409 = vmatprep.subr.bf16.mxu0 0
      %3410 = vmatpush1.bf16.msra.mxu0 0
      %3411 = vmatprep.subr.bf16.mxu0 0
      %3412 = vmatpush1.bf16.msra.mxu0 0
      %3413 = vmatprep.subr.bf16.mxu0 0
      %3414 = vmatpush1.bf16.msra.mxu0 %v3397
      %3415 = vmatprep.subr.bf16.mxu0 0
      %3416 = vmatpush2.bf16.msra.mxu0 0
      %3417 = vmatprep.subr.bf16.mxu0 0
      %3418 = vmatpush2.bf16.msra.mxu0 0
      %3419 = vmatprep.subr.bf16.mxu0 0
      %3420 = vmatpush2.bf16.msra.mxu0 0
      %3421 = vmatprep.subr.bf16.mxu0 0
      %3422 = vmatpush2.bf16.msra.mxu0 0
      %3423 = vmatprep.subr.bf16.mxu0 0
      %3424 = vmatpush2.bf16.msra.mxu0 0
      %3425 = vmatprep.subr.bf16.mxu0 0
      %3426 = vmatpush2.bf16.msra.mxu0 0
      %3427 = vmatprep.subr.bf16.mxu0 0
      %3428 = vmatpush2.bf16.msra.mxu0 0
      %3429 = vmatprep.subr.bf16.mxu0 0
      %3430 = vmatpush2.bf16.msra.mxu0 0
      %3431 = vmatprep.mubr.bf16.mxu0 0
      %3432 = vmatmul.mubr.bf16.gmra.mxu0 %v3343
      %v3433 = vpop.f32.mrf.mxu0
      %v3434 = vadd.f32 0.0, %v3433
      %v3435 = vpop.f32.mrf.mxu0
      %v3436 = vpop.f32.mrf.mxu0
      %v3437 = vadd.f32 0.0, %v3436
      %v3438 = vpop.f32.mrf.mxu0
      %3439 = vmatprep.mubr.bf16.mxu0 0
      %3440 = vmatmul.mubr.bf16.gmra.mxu0 %v3346
      %v3441 = vpop.f32.mrf.mxu0
      %v3442 = vadd.f32 0.0, %v3441
      %v3443 = vpop.f32.mrf.mxu0
      %v3444 = vpop.f32.mrf.mxu0
      %v3445 = vadd.f32 0.0, %v3444
      %v3446 = vpop.f32.mrf.mxu0
      %3447 = vmatprep.mubr.bf16.mxu0 0
      %3448 = vmatmul.mubr.bf16.gmra.mxu0 %v3349
      %v3449 = vpop.f32.mrf.mxu0
      %v3450 = vadd.f32 0.0, %v3449
      %v3451 = vpop.f32.mrf.mxu0
      %v3452 = vpop.f32.mrf.mxu0
      %v3453 = vadd.f32 0.0, %v3452
      %v3454 = vpop.f32.mrf.mxu0
      %3455 = vmatprep.mubr.bf16.mxu0 0
      %3456 = vmatmul.mubr.bf16.gmra.mxu0 %v3352
      %v3457 = vpop.f32.mrf.mxu0
      %v3458 = vadd.f32 0.0, %v3457
      %v3459 = vpop.f32.mrf.mxu0
      %v3460 = vpop.f32.mrf.mxu0
      %v3461 = vadd.f32 0.0, %v3460
      %v3462 = vpop.f32.mrf.mxu0
      %3463 = vmatprep.mubr.bf16.mxu0 0
      %3464 = vmatmul.mubr.bf16.gmra.mxu0 %v3355
      %v3465 = vpop.f32.mrf.mxu0
      %v3466 = vadd.f32 0.0, %v3465
      %v3467 = vpop.f32.mrf.mxu0
      %v3468 = vpop.f32.mrf.mxu0
      %v3469 = vadd.f32 0.0, %v3468
      %v3470 = vpop.f32.mrf.mxu0
      %3471 = vmatprep.mubr.bf16.mxu0 0
      %3472 = vmatmul.mubr.bf16.gmra.mxu0 %v3358
      %v3473 = vpop.f32.mrf.mxu0
      %v3474 = vadd.f32 0.0, %v3473
      %v3475 = vpop.f32.mrf.mxu0
      %v3476 = vpop.f32.mrf.mxu0
      %v3477 = vadd.f32 0.0, %v3476
      %v3478 = vpop.f32.mrf.mxu0
      %3479 = vmatprep.mubr.bf16.mxu0 0
      %3480 = vmatmul.mubr.bf16.gmra.mxu0 %v3361
      %v3481 = vpop.f32.mrf.mxu0
      %v3482 = vadd.f32 0.0, %v3481
      %v3483 = vpop.f32.mrf.mxu0
      %v3484 = vpop.f32.mrf.mxu0
      %v3485 = vadd.f32 0.0, %v3484
      %v3486 = vpop.f32.mrf.mxu0
      %3487 = vmatprep.mubr.bf16.mxu0 0
      %3488 = vmatmul.mubr.bf16.gmra.mxu0 %v3364
      %v3489 = vpop.f32.mrf.mxu0
      %v3490 = vadd.f32 0.0, %v3489
      %v3491 = vpop.f32.mrf.mxu0
      %v3492 = vpop.f32.mrf.mxu0
      %v3493 = vadd.f32 0.0, %v3492
      %v3494 = vpop.f32.mrf.mxu0
      %3495 = vmatprep.mubr.bf16.mxu0 0
      %3496 = vmatmul.mubr.bf16.gmra.mxu0 %v3367
      %v3497 = vpop.f32.mrf.mxu0
      %v3498 = vadd.f32 0.0, %v3497
      %v3499 = vpop.f32.mrf.mxu0
      %v3500 = vpop.f32.mrf.mxu0
      %v3501 = vadd.f32 0.0, %v3500
      %v3502 = vpop.f32.mrf.mxu0
      %3503 = vmatprep.mubr.bf16.mxu0 0
      %3504 = vmatmul.mubr.bf16.gmra.mxu0 %v3370
      %v3505 = vpop.f32.mrf.mxu0
      %v3506 = vadd.f32 0.0, %v3505
      %v3507 = vpop.f32.mrf.mxu0
      %v3508 = vpop.f32.mrf.mxu0
      %v3509 = vadd.f32 0.0, %v3508
      %v3510 = vpop.f32.mrf.mxu0
      %3511 = vmatprep.mubr.bf16.mxu0 0
      %3512 = vmatmul.mubr.bf16.gmra.mxu0 %v3373
      %v3513 = vpop.f32.mrf.mxu0
      %v3514 = vadd.f32 0.0, %v3513
      %v3515 = vpop.f32.mrf.mxu0
      %v3516 = vpop.f32.mrf.mxu0
      %v3517 = vadd.f32 0.0, %v3516
      %v3518 = vpop.f32.mrf.mxu0
      %3519 = vmatprep.mubr.bf16.mxu0 0
      %3520 = vmatmul.mubr.bf16.gmra.mxu0 %v3376
      %v3521 = vpop.f32.mrf.mxu0
      %v3522 = vadd.f32 0.0, %v3521
      %v3523 = vpop.f32.mrf.mxu0
      %v3524 = vpop.f32.mrf.mxu0
      %v3525 = vadd.f32 0.0, %v3524
      %v3526 = vpop.f32.mrf.mxu0
      %3527 = vmatprep.mubr.bf16.mxu0 0
      %3528 = vmatmul.mubr.bf16.gmra.mxu0 %v3379
      %v3529 = vpop.f32.mrf.mxu0
      %v3530 = vadd.f32 0.0, %v3529
      %v3531 = vpop.f32.mrf.mxu0
      %v3532 = vpop.f32.mrf.mxu0
      %v3533 = vadd.f32 0.0, %v3532
      %v3534 = vpop.f32.mrf.mxu0
      %3535 = vmatprep.mubr.bf16.mxu0 0
      %3536 = vmatmul.mubr.bf16.gmra.mxu0 %v3382
      %v3537 = vpop.f32.mrf.mxu0
      %v3538 = vadd.f32 0.0, %v3537
      %v3539 = vpop.f32.mrf.mxu0
      %v3540 = vpop.f32.mrf.mxu0
      %v3541 = vadd.f32 0.0, %v3540
      %v3542 = vpop.f32.mrf.mxu0
      %3543 = vmatprep.mubr.bf16.mxu0 0
      %3544 = vmatmul.mubr.bf16.gmra.mxu0 %v3385
      %v3545 = vpop.f32.mrf.mxu0
      %v3546 = vadd.f32 0.0, %v3545
      %v3547 = vpop.f32.mrf.mxu0
      %v3548 = vpop.f32.mrf.mxu0
      %v3549 = vadd.f32 0.0, %v3548
      %v3550 = vpop.f32.mrf.mxu0
      %3551 = vmatprep.mubr.bf16.mxu0 0
      %3552 = vmatmul.mubr.bf16.gmra.mxu0 %v3388
      %v3553 = vpop.f32.mrf.mxu0
      %v3554 = vadd.f32 0.0, %v3553
      %v3555 = vpop.f32.mrf.mxu0
      %v3556 = vpop.f32.mrf.mxu0
      %v3557 = vadd.f32 0.0, %v3556
      %v3558 = vpop.f32.mrf.mxu0
      %3559 = vmatprep.mubr.bf16.mxu0 0
      %3560 = vmatmul.mubr.bf16.gmra.mxu0 %v3391
      %v3561 = vpop.f32.mrf.mxu0
      %v3562 = vadd.f32 0.0, %v3561
      %v3563 = vpop.f32.mrf.mxu0
      %v3564 = vpop.f32.mrf.mxu0
      %v3565 = vadd.f32 0.0, %v3564
      %v3566 = vpop.f32.mrf.mxu0
      %3567 = vmatprep.mubr.bf16.mxu0 0
      %3568 = vmatmul.mubr.bf16.gmra.mxu0 %v3394
      %v3569 = vpop.f32.mrf.mxu0
      %v3570 = vadd.f32 0.0, %v3569
      %v3571 = vpop.f32.mrf.mxu0
      %v3572 = vpop.f32.mrf.mxu0
      %v3573 = vadd.f32 0.0, %v3572
      %v3574 = vpop.f32.mrf.mxu0
      %3575 = vdwg.mxu0
      %v3576 = vadd.f32 %v3137, %v3434
      %v3577 = vadd.f32 %v3138, %v3437
      %v3578 = vadd.f32 %v3139, %v3442
      %v3579 = vadd.f32 %v3140, %v3445
      %v3580 = vadd.f32 %v3141, %v3450
      %v3581 = vadd.f32 %v3142, %v3453
      %v3582 = vadd.f32 %v3143, %v3458
      %v3583 = vadd.f32 %v3144, %v3461
      %v3584 = vadd.f32 %v3145, %v3466
      %v3585 = vadd.f32 %v3146, %v3469
      %v3586 = vadd.f32 %v3147, %v3474
      %v3587 = vadd.f32 %v3148, %v3477
      %v3588 = vadd.f32 %v3149, %v3482
      %v3589 = vadd.f32 %v3150, %v3485
      %v3590 = vadd.f32 %v3151, %v3490
      %v3591 = vadd.f32 %v3152, %v3493
      %v3592 = vadd.f32 %v3153, %v3498
      %v3593 = vadd.f32 %v3154, %v3501
      %v3594 = vadd.f32 %v3155, %v3506
      %v3595 = vadd.f32 %v3156, %v3509
      %v3596 = vadd.f32 %v3157, %v3514
      %v3597 = vadd.f32 %v3158, %v3517
      %v3598 = vadd.f32 %v3159, %v3522
      %v3599 = vadd.f32 %v3160, %v3525
      %v3600 = vadd.f32 %v3161, %v3530
      %v3601 = vadd.f32 %v3162, %v3533
      %v3602 = vadd.f32 %v3163, %v3538
      %v3603 = vadd.f32 %v3164, %v3541
      %v3604 = vadd.f32 %v3165, %v3546
      %v3605 = vadd.f32 %v3166, %v3549
      %v3606 = vadd.f32 %v3167, %v3554
      %v3607 = vadd.f32 %v3168, %v3557
      %v3608 = vadd.f32 %v3169, %v3562
      %v3609 = vadd.f32 %v3170, %v3565
      %v3610 = vadd.f32 %v3171, %v3570
      %v3611 = vadd.f32 %v3172, %v3573
      %v3612 = vld [vmem:[%s219 + $0xa0] sm:$0x7]
      %s3613 = scalar_lea.vmem %s1, 7
      %v3614 = vld [vmem:[%s3613] sm:$0x1]
      %v3616 = vunpack.c.l.b16 %v3612
      %v3617 = vpack.c.b16 %v3616, %v3616
      %vm3618 = vsmask.f32 5376
      %v3620 = vshrl.u32 %v3286, 16
      %v3622 = vrot.slane %v3620, 2
      %v3623 = vshll.u32 %v3286, 16
      %v3625 = vrot.slane %v3623, 3
      %v3626 = vor.u32 %v3622, %v3625
      %v3628 = vshrl.u32 %v3287, 16
      %v3630 = vrot.slane %v3628, 2
      %v3631 = vshll.u32 %v3287, 16
      %v3633 = vrot.slane %v3631, 3
      %v3634 = vor.u32 %v3630, %v3633
      %v3635 = vsel %vm3618, %v3626, %v3634
      %v3637 = vshrl.u32 %v3288, 16
      %v3639 = vrot.slane %v3637, 2
      %v3640 = vshll.u32 %v3288, 16
      %v3642 = vrot.slane %v3640, 3
      %v3643 = vor.u32 %v3639, %v3642
      %v3644 = vsel %vm3618, %v3634, %v3643
      %v3646 = vshrl.u32 %v3289, 16
      %v3648 = vrot.slane %v3646, 2
      %v3649 = vshll.u32 %v3289, 16
      %v3651 = vrot.slane %v3649, 3
      %v3652 = vor.u32 %v3648, %v3651
      %v3653 = vsel %vm3618, %v3643, %v3652
      %v3655 = vshrl.u32 %v3290, 16
      %v3657 = vrot.slane %v3655, 2
      %v3658 = vshll.u32 %v3290, 16
      %v3660 = vrot.slane %v3658, 3
      %v3661 = vor.u32 %v3657, %v3660
      %v3662 = vsel %vm3618, %v3652, %v3661
      %v3664 = vshrl.u32 %v3291, 16
      %v3666 = vrot.slane %v3664, 2
      %v3667 = vshll.u32 %v3291, 16
      %v3669 = vrot.slane %v3667, 3
      %v3670 = vor.u32 %v3666, %v3669
      %v3671 = vsel %vm3618, %v3661, %v3670
      %v3673 = vshrl.u32 %v3292, 16
      %v3675 = vrot.slane %v3673, 2
      %v3676 = vshll.u32 %v3292, 16
      %v3678 = vrot.slane %v3676, 3
      %v3679 = vor.u32 %v3675, %v3678
      %v3680 = vsel %vm3618, %v3670, %v3679
      %v3682 = vshrl.u32 %v3293, 16
      %v3684 = vrot.slane %v3682, 2
      %v3685 = vshll.u32 %v3293, 16
      %v3687 = vrot.slane %v3685, 3
      %v3688 = vor.u32 %v3684, %v3687
      %v3689 = vsel %vm3618, %v3679, %v3688
      %v3691 = vshrl.u32 %v3294, 16
      %v3693 = vrot.slane %v3691, 2
      %v3694 = vshll.u32 %v3294, 16
      %v3696 = vrot.slane %v3694, 3
      %v3697 = vor.u32 %v3693, %v3696
      %v3698 = vsel %vm3618, %v3688, %v3697
      %v3700 = vshrl.u32 %v3295, 16
      %v3702 = vrot.slane %v3700, 2
      %v3703 = vshll.u32 %v3295, 16
      %v3705 = vrot.slane %v3703, 3
      %v3706 = vor.u32 %v3702, %v3705
      %v3707 = vsel %vm3618, %v3697, %v3706
      %v3709 = vshrl.u32 %v3296, 16
      %v3711 = vrot.slane %v3709, 2
      %v3712 = vshll.u32 %v3296, 16
      %v3714 = vrot.slane %v3712, 3
      %v3715 = vor.u32 %v3711, %v3714
      %v3716 = vsel %vm3618, %v3706, %v3715
      %v3718 = vshrl.u32 %v3297, 16
      %v3720 = vrot.slane %v3718, 2
      %v3721 = vshll.u32 %v3297, 16
      %v3723 = vrot.slane %v3721, 3
      %v3724 = vor.u32 %v3720, %v3723
      %v3725 = vsel %vm3618, %v3715, %v3724
      %v3727 = vshrl.u32 %v3298, 16
      %v3729 = vrot.slane %v3727, 2
      %v3730 = vshll.u32 %v3298, 16
      %v3732 = vrot.slane %v3730, 3
      %v3733 = vor.u32 %v3729, %v3732
      %v3734 = vsel %vm3618, %v3724, %v3733
      %v3736 = vshrl.u32 %v3299, 16
      %v3738 = vrot.slane %v3736, 2
      %v3739 = vshll.u32 %v3299, 16
      %v3741 = vrot.slane %v3739, 3
      %v3742 = vor.u32 %v3738, %v3741
      %v3743 = vsel %vm3618, %v3733, %v3742
      %v3745 = vshrl.u32 %v3300, 16
      %v3747 = vrot.slane %v3745, 2
      %v3748 = vshll.u32 %v3300, 16
      %v3750 = vrot.slane %v3748, 3
      %v3751 = vor.u32 %v3747, %v3750
      %v3752 = vsel %vm3618, %v3742, %v3751
      %v3754 = vshrl.u32 %v3301, 16
      %v3756 = vrot.slane %v3754, 2
      %v3757 = vshll.u32 %v3301, 16
      %v3759 = vrot.slane %v3757, 3
      %v3760 = vor.u32 %v3756, %v3759
      %v3761 = vsel %vm3618, %v3751, %v3760
      %v3763 = vshrl.u32 %v3302, 16
      %v3765 = vrot.slane %v3763, 2
      %v3766 = vshll.u32 %v3302, 16
      %v3768 = vrot.slane %v3766, 3
      %v3769 = vor.u32 %v3765, %v3768
      %v3770 = vsel %vm3618, %v3760, %v3769
      %v3772 = vshrl.u32 %v3303, 16
      %v3774 = vrot.slane %v3772, 2
      %v3775 = vshll.u32 %v3303, 16
      %v3777 = vrot.slane %v3775, 3
      %v3778 = vor.u32 %v3774, %v3777
      %v3779 = vsel %vm3618, %v3769, %v3778
      %v3781 = vshrl.u32 %v3617, 16
      %v3783 = vrot.slane %v3781, 2
      %v3784 = vshll.u32 %v3617, 16
      %v3786 = vrot.slane %v3784, 3
      %v3787 = vor.u32 %v3783, %v3786
      %v3788 = vsel %vm3618, %v3778, %v3787
      %v3790 = vsel %vm1207, %v3635, 0
      %v3793 = vsel %vm1207, %v3644, 0
      %v3796 = vsel %vm1207, %v3653, 0
      %v3799 = vsel %vm1207, %v3662, 0
      %v3802 = vsel %vm1207, %v3671, 0
      %v3805 = vsel %vm1207, %v3680, 0
      %v3808 = vsel %vm1207, %v3689, 0
      %v3811 = vsel %vm1207, %v3698, 0
      %v3814 = vsel %vm1207, %v3707, 0
      %v3817 = vsel %vm1207, %v3716, 0
      %v3820 = vsel %vm1207, %v3725, 0
      %v3823 = vsel %vm1207, %v3734, 0
      %v3826 = vsel %vm1207, %v3743, 0
      %v3829 = vsel %vm1207, %v3752, 0
      %v3832 = vsel %vm1207, %v3761, 0
      %v3835 = vsel %vm1207, %v3770, 0
      %v3838 = vsel %vm1207, %v3779, 0
      %v3841 = vsel %vm1207, %v3788, 0
      %v3844 = vsel %vm1262, %v3614, 0
      %3846 = vmatprep.subr.bf16.mxu0 0
      %3847 = vmatpush1.bf16.msra.mxu0 0
      %3848 = vmatprep.subr.bf16.mxu0 0
      %3849 = vmatpush1.bf16.msra.mxu0 0
      %3850 = vmatprep.subr.bf16.mxu0 0
      %3851 = vmatpush1.bf16.msra.mxu0 0
      %3852 = vmatprep.subr.bf16.mxu0 0
      %3853 = vmatpush1.bf16.msra.mxu0 0
      %3854 = vmatprep.subr.bf16.mxu0 0
      %3855 = vmatpush1.bf16.msra.mxu0 0
      %3856 = vmatprep.subr.bf16.mxu0 0
      %3857 = vmatpush1.bf16.msra.mxu0 0
      %3858 = vmatprep.subr.bf16.mxu0 0
      %3859 = vmatpush1.bf16.msra.mxu0 0
      %3860 = vmatprep.subr.bf16.mxu0 0
      %3861 = vmatpush1.bf16.msra.mxu0 %v3844
      %3862 = vmatprep.subr.bf16.mxu0 0
      %3863 = vmatpush2.bf16.msra.mxu0 0
      %3864 = vmatprep.subr.bf16.mxu0 0
      %3865 = vmatpush2.bf16.msra.mxu0 0
      %3866 = vmatprep.subr.bf16.mxu0 0
      %3867 = vmatpush2.bf16.msra.mxu0 0
      %3868 = vmatprep.subr.bf16.mxu0 0
      %3869 = vmatpush2.bf16.msra.mxu0 0
      %3870 = vmatprep.subr.bf16.mxu0 0
      %3871 = vmatpush2.bf16.msra.mxu0 0
      %3872 = vmatprep.subr.bf16.mxu0 0
      %3873 = vmatpush2.bf16.msra.mxu0 0
      %3874 = vmatprep.subr.bf16.mxu0 0
      %3875 = vmatpush2.bf16.msra.mxu0 0
      %3876 = vmatprep.subr.bf16.mxu0 0
      %3877 = vmatpush2.bf16.msra.mxu0 0
      %3878 = vmatprep.mubr.bf16.mxu0 0
      %3879 = vmatmul.mubr.bf16.gmra.mxu0 %v3790
      %v3880 = vpop.f32.mrf.mxu0
      %v3881 = vadd.f32 0.0, %v3880
      %v3882 = vpop.f32.mrf.mxu0
      %v3883 = vpop.f32.mrf.mxu0
      %v3884 = vadd.f32 0.0, %v3883
      %v3885 = vpop.f32.mrf.mxu0
      %3886 = vmatprep.mubr.bf16.mxu0 0
      %3887 = vmatmul.mubr.bf16.gmra.mxu0 %v3793
      %v3888 = vpop.f32.mrf.mxu0
      %v3889 = vadd.f32 0.0, %v3888
      %v3890 = vpop.f32.mrf.mxu0
      %v3891 = vpop.f32.mrf.mxu0
      %v3892 = vadd.f32 0.0, %v3891
      %v3893 = vpop.f32.mrf.mxu0
      %3894 = vmatprep.mubr.bf16.mxu0 0
      %3895 = vmatmul.mubr.bf16.gmra.mxu0 %v3796
      %v3896 = vpop.f32.mrf.mxu0
      %v3897 = vadd.f32 0.0, %v3896
      %v3898 = vpop.f32.mrf.mxu0
      %v3899 = vpop.f32.mrf.mxu0
      %v3900 = vadd.f32 0.0, %v3899
      %v3901 = vpop.f32.mrf.mxu0
      %3902 = vmatprep.mubr.bf16.mxu0 0
      %3903 = vmatmul.mubr.bf16.gmra.mxu0 %v3799
      %v3904 = vpop.f32.mrf.mxu0
      %v3905 = vadd.f32 0.0, %v3904
      %v3906 = vpop.f32.mrf.mxu0
      %v3907 = vpop.f32.mrf.mxu0
      %v3908 = vadd.f32 0.0, %v3907
      %v3909 = vpop.f32.mrf.mxu0
      %3910 = vmatprep.mubr.bf16.mxu0 0
      %3911 = vmatmul.mubr.bf16.gmra.mxu0 %v3802
      %v3912 = vpop.f32.mrf.mxu0
      %v3913 = vadd.f32 0.0, %v3912
      %v3914 = vpop.f32.mrf.mxu0
      %v3915 = vpop.f32.mrf.mxu0
      %v3916 = vadd.f32 0.0, %v3915
      %v3917 = vpop.f32.mrf.mxu0
      %3918 = vmatprep.mubr.bf16.mxu0 0
      %3919 = vmatmul.mubr.bf16.gmra.mxu0 %v3805
      %v3920 = vpop.f32.mrf.mxu0
      %v3921 = vadd.f32 0.0, %v3920
      %v3922 = vpop.f32.mrf.mxu0
      %v3923 = vpop.f32.mrf.mxu0
      %v3924 = vadd.f32 0.0, %v3923
      %v3925 = vpop.f32.mrf.mxu0
      %3926 = vmatprep.mubr.bf16.mxu0 0
      %3927 = vmatmul.mubr.bf16.gmra.mxu0 %v3808
      %v3928 = vpop.f32.mrf.mxu0
      %v3929 = vadd.f32 0.0, %v3928
      %v3930 = vpop.f32.mrf.mxu0
      %v3931 = vpop.f32.mrf.mxu0
      %v3932 = vadd.f32 0.0, %v3931
      %v3933 = vpop.f32.mrf.mxu0
      %3934 = vmatprep.mubr.bf16.mxu0 0
      %3935 = vmatmul.mubr.bf16.gmra.mxu0 %v3811
      %v3936 = vpop.f32.mrf.mxu0
      %v3937 = vadd.f32 0.0, %v3936
      %v3938 = vpop.f32.mrf.mxu0
      %v3939 = vpop.f32.mrf.mxu0
      %v3940 = vadd.f32 0.0, %v3939
      %v3941 = vpop.f32.mrf.mxu0
      %3942 = vmatprep.mubr.bf16.mxu0 0
      %3943 = vmatmul.mubr.bf16.gmra.mxu0 %v3814
      %v3944 = vpop.f32.mrf.mxu0
      %v3945 = vadd.f32 0.0, %v3944
      %v3946 = vpop.f32.mrf.mxu0
      %v3947 = vpop.f32.mrf.mxu0
      %v3948 = vadd.f32 0.0, %v3947
      %v3949 = vpop.f32.mrf.mxu0
      %3950 = vmatprep.mubr.bf16.mxu0 0
      %3951 = vmatmul.mubr.bf16.gmra.mxu0 %v3817
      %v3952 = vpop.f32.mrf.mxu0
      %v3953 = vadd.f32 0.0, %v3952
      %v3954 = vpop.f32.mrf.mxu0
      %v3955 = vpop.f32.mrf.mxu0
      %v3956 = vadd.f32 0.0, %v3955
      %v3957 = vpop.f32.mrf.mxu0
      %3958 = vmatprep.mubr.bf16.mxu0 0
      %3959 = vmatmul.mubr.bf16.gmra.mxu0 %v3820
      %v3960 = vpop.f32.mrf.mxu0
      %v3961 = vadd.f32 0.0, %v3960
      %v3962 = vpop.f32.mrf.mxu0
      %v3963 = vpop.f32.mrf.mxu0
      %v3964 = vadd.f32 0.0, %v3963
      %v3965 = vpop.f32.mrf.mxu0
      %3966 = vmatprep.mubr.bf16.mxu0 0
      %3967 = vmatmul.mubr.bf16.gmra.mxu0 %v3823
      %v3968 = vpop.f32.mrf.mxu0
      %v3969 = vadd.f32 0.0, %v3968
      %v3970 = vpop.f32.mrf.mxu0
      %v3971 = vpop.f32.mrf.mxu0
      %v3972 = vadd.f32 0.0, %v3971
      %v3973 = vpop.f32.mrf.mxu0
      %3974 = vmatprep.mubr.bf16.mxu0 0
      %3975 = vmatmul.mubr.bf16.gmra.mxu0 %v3826
      %v3976 = vpop.f32.mrf.mxu0
      %v3977 = vadd.f32 0.0, %v3976
      %v3978 = vpop.f32.mrf.mxu0
      %v3979 = vpop.f32.mrf.mxu0
      %v3980 = vadd.f32 0.0, %v3979
      %v3981 = vpop.f32.mrf.mxu0
      %3982 = vmatprep.mubr.bf16.mxu0 0
      %3983 = vmatmul.mubr.bf16.gmra.mxu0 %v3829
      %v3984 = vpop.f32.mrf.mxu0
      %v3985 = vadd.f32 0.0, %v3984
      %v3986 = vpop.f32.mrf.mxu0
      %v3987 = vpop.f32.mrf.mxu0
      %v3988 = vadd.f32 0.0, %v3987
      %v3989 = vpop.f32.mrf.mxu0
      %3990 = vmatprep.mubr.bf16.mxu0 0
      %3991 = vmatmul.mubr.bf16.gmra.mxu0 %v3832
      %v3992 = vpop.f32.mrf.mxu0
      %v3993 = vadd.f32 0.0, %v3992
      %v3994 = vpop.f32.mrf.mxu0
      %v3995 = vpop.f32.mrf.mxu0
      %v3996 = vadd.f32 0.0, %v3995
      %v3997 = vpop.f32.mrf.mxu0
      %3998 = vmatprep.mubr.bf16.mxu0 0
      %3999 = vmatmul.mubr.bf16.gmra.mxu0 %v3835
      %v4000 = vpop.f32.mrf.mxu0
      %v4001 = vadd.f32 0.0, %v4000
      %v4002 = vpop.f32.mrf.mxu0
      %v4003 = vpop.f32.mrf.mxu0
      %v4004 = vadd.f32 0.0, %v4003
      %v4005 = vpop.f32.mrf.mxu0
      %4006 = vmatprep.mubr.bf16.mxu0 0
      %4007 = vmatmul.mubr.bf16.gmra.mxu0 %v3838
      %v4008 = vpop.f32.mrf.mxu0
      %v4009 = vadd.f32 0.0, %v4008
      %v4010 = vpop.f32.mrf.mxu0
      %v4011 = vpop.f32.mrf.mxu0
      %v4012 = vadd.f32 0.0, %v4011
      %v4013 = vpop.f32.mrf.mxu0
      %4014 = vmatprep.mubr.bf16.mxu0 0
      %4015 = vmatmul.mubr.bf16.gmra.mxu0 %v3841
      %v4016 = vpop.f32.mrf.mxu0
      %v4017 = vadd.f32 0.0, %v4016
      %v4018 = vpop.f32.mrf.mxu0
      %v4019 = vpop.f32.mrf.mxu0
      %v4020 = vadd.f32 0.0, %v4019
      %v4021 = vpop.f32.mrf.mxu0
      %4022 = vdwg.mxu0
      %v4023 = vadd.f32 %v3576, %v3881
      %v4024 = vadd.f32 %v3577, %v3884
      %v4025 = vadd.f32 %v3578, %v3889
      %v4026 = vadd.f32 %v3579, %v3892
      %v4027 = vadd.f32 %v3580, %v3897
      %v4028 = vadd.f32 %v3581, %v3900
      %v4029 = vadd.f32 %v3582, %v3905
      %v4030 = vadd.f32 %v3583, %v3908
      %v4031 = vadd.f32 %v3584, %v3913
      %v4032 = vadd.f32 %v3585, %v3916
      %v4033 = vadd.f32 %v3586, %v3921
      %v4034 = vadd.f32 %v3587, %v3924
      %v4035 = vadd.f32 %v3588, %v3929
      %v4036 = vadd.f32 %v3589, %v3932
      %v4037 = vadd.f32 %v3590, %v3937
      %v4038 = vadd.f32 %v3591, %v3940
      %v4039 = vadd.f32 %v3592, %v3945
      %v4040 = vadd.f32 %v3593, %v3948
      %v4041 = vadd.f32 %v3594, %v3953
      %v4042 = vadd.f32 %v3595, %v3956
      %v4043 = vadd.f32 %v3596, %v3961
      %v4044 = vadd.f32 %v3597, %v3964
      %v4045 = vadd.f32 %v3598, %v3969
      %v4046 = vadd.f32 %v3599, %v3972
      %v4047 = vadd.f32 %v3600, %v3977
      %v4048 = vadd.f32 %v3601, %v3980
      %v4049 = vadd.f32 %v3602, %v3985
      %v4050 = vadd.f32 %v3603, %v3988
      %v4051 = vadd.f32 %v3604, %v3993
      %v4052 = vadd.f32 %v3605, %v3996
      %v4053 = vadd.f32 %v3606, %v4001
      %v4054 = vadd.f32 %v3607, %v4004
      %v4055 = vadd.f32 %v3608, %v4009
      %v4056 = vadd.f32 %v3609, %v4012
      %v4057 = vadd.f32 %v3610, %v4017
      %v4058 = vadd.f32 %v3611, %v4020
      %v4059 = vld [vmem:[%s219 + $0x10] sm:$0x8]
      %s4060 = scalar_lea.vmem %s1, 8
      %v4061 = vld [vmem:[%s4060] sm:$0x1]
      %v4063 = vunpack.c.l.b16 %v4059
      %v4064 = vpack.c.b16 %v3250, %v4063
      %vm4065 = vcmask 1044480
      %v4066 = vrot.slane %v4064, 3
      %v4067 = vrot.slane %v3287, 3
      %v4068 = vsel %vm4065, %v4066, %v4067
      %v4069 = vrot.slane %v3288, 3
      %v4070 = vsel %vm4065, %v4067, %v4069
      %v4071 = vrot.slane %v3289, 3
      %v4072 = vsel %vm4065, %v4069, %v4071
      %v4073 = vrot.slane %v3290, 3
      %v4074 = vsel %vm4065, %v4071, %v4073
      %v4075 = vrot.slane %v3291, 3
      %v4076 = vsel %vm4065, %v4073, %v4075
      %v4077 = vrot.slane %v3292, 3
      %v4078 = vsel %vm4065, %v4075, %v4077
      %v4079 = vrot.slane %v3293, 3
      %v4080 = vsel %vm4065, %v4077, %v4079
      %v4081 = vrot.slane %v3294, 3
      %v4082 = vsel %vm4065, %v4079, %v4081
      %v4083 = vrot.slane %v3295, 3
      %v4084 = vsel %vm4065, %v4081, %v4083
      %v4085 = vrot.slane %v3296, 3
      %v4086 = vsel %vm4065, %v4083, %v4085
      %v4087 = vrot.slane %v3297, 3
      %v4088 = vsel %vm4065, %v4085, %v4087
      %v4089 = vrot.slane %v3298, 3
      %v4090 = vsel %vm4065, %v4087, %v4089
      %v4091 = vrot.slane %v3299, 3
      %v4092 = vsel %vm4065, %v4089, %v4091
      %v4093 = vrot.slane %v3300, 3
      %v4094 = vsel %vm4065, %v4091, %v4093
      %v4095 = vrot.slane %v3301, 3
      %v4096 = vsel %vm4065, %v4093, %v4095
      %v4097 = vrot.slane %v3302, 3
      %v4098 = vsel %vm4065, %v4095, %v4097
      %v4099 = vrot.slane %v3303, 3
      %v4100 = vsel %vm4065, %v4097, %v4099
      %v4101 = vrot.slane %v3617, 3
      %v4102 = vsel %vm4065, %v4099, %v4101
      %v4104 = vsel %vm1207, %v4068, 0
      %v4107 = vsel %vm1207, %v4070, 0
      %v4110 = vsel %vm1207, %v4072, 0
      %v4113 = vsel %vm1207, %v4074, 0
      %v4116 = vsel %vm1207, %v4076, 0
      %v4119 = vsel %vm1207, %v4078, 0
      %v4122 = vsel %vm1207, %v4080, 0
      %v4125 = vsel %vm1207, %v4082, 0
      %v4128 = vsel %vm1207, %v4084, 0
      %v4131 = vsel %vm1207, %v4086, 0
      %v4134 = vsel %vm1207, %v4088, 0
      %v4137 = vsel %vm1207, %v4090, 0
      %v4140 = vsel %vm1207, %v4092, 0
      %v4143 = vsel %vm1207, %v4094, 0
      %v4146 = vsel %vm1207, %v4096, 0
      %v4149 = vsel %vm1207, %v4098, 0
      %v4152 = vsel %vm1207, %v4100, 0
      %v4155 = vsel %vm1207, %v4102, 0
      %v4158 = vsel %vm1262, %v4061, 0
      %4160 = vmatprep.subr.bf16.mxu0 0
      %4161 = vmatpush1.bf16.msra.mxu0 0
      %4162 = vmatprep.subr.bf16.mxu0 0
      %4163 = vmatpush1.bf16.msra.mxu0 0
      %4164 = vmatprep.subr.bf16.mxu0 0
      %4165 = vmatpush1.bf16.msra.mxu0 0
      %4166 = vmatprep.subr.bf16.mxu0 0
      %4167 = vmatpush1.bf16.msra.mxu0 0
      %4168 = vmatprep.subr.bf16.mxu0 0
      %4169 = vmatpush1.bf16.msra.mxu0 0
      %4170 = vmatprep.subr.bf16.mxu0 0
      %4171 = vmatpush1.bf16.msra.mxu0 0
      %4172 = vmatprep.subr.bf16.mxu0 0
      %4173 = vmatpush1.bf16.msra.mxu0 0
      %4174 = vmatprep.subr.bf16.mxu0 0
      %4175 = vmatpush1.bf16.msra.mxu0 %v4158
      %4176 = vmatprep.subr.bf16.mxu0 0
      %4177 = vmatpush2.bf16.msra.mxu0 0
      %4178 = vmatprep.subr.bf16.mxu0 0
      %4179 = vmatpush2.bf16.msra.mxu0 0
      %4180 = vmatprep.subr.bf16.mxu0 0
      %4181 = vmatpush2.bf16.msra.mxu0 0
      %4182 = vmatprep.subr.bf16.mxu0 0
      %4183 = vmatpush2.bf16.msra.mxu0 0
      %4184 = vmatprep.subr.bf16.mxu0 0
      %4185 = vmatpush2.bf16.msra.mxu0 0
      %4186 = vmatprep.subr.bf16.mxu0 0
      %4187 = vmatpush2.bf16.msra.mxu0 0
      %4188 = vmatprep.subr.bf16.mxu0 0
      %4189 = vmatpush2.bf16.msra.mxu0 0
      %4190 = vmatprep.subr.bf16.mxu0 0
      %4191 = vmatpush2.bf16.msra.mxu0 0
      %4192 = vmatprep.mubr.bf16.mxu0 0
      %4193 = vmatmul.mubr.bf16.gmra.mxu0 %v4104
      %v4194 = vpop.f32.mrf.mxu0
      %v4195 = vadd.f32 0.0, %v4194
      %v4196 = vpop.f32.mrf.mxu0
      %v4197 = vpop.f32.mrf.mxu0
      %v4198 = vadd.f32 0.0, %v4197
      %v4199 = vpop.f32.mrf.mxu0
      %4200 = vmatprep.mubr.bf16.mxu0 0
      %4201 = vmatmul.mubr.bf16.gmra.mxu0 %v4107
      %v4202 = vpop.f32.mrf.mxu0
      %v4203 = vadd.f32 0.0, %v4202
      %v4204 = vpop.f32.mrf.mxu0
      %v4205 = vpop.f32.mrf.mxu0
      %v4206 = vadd.f32 0.0, %v4205
      %v4207 = vpop.f32.mrf.mxu0
      %4208 = vmatprep.mubr.bf16.mxu0 0
      %4209 = vmatmul.mubr.bf16.gmra.mxu0 %v4110
      %v4210 = vpop.f32.mrf.mxu0
      %v4211 = vadd.f32 0.0, %v4210
      %v4212 = vpop.f32.mrf.mxu0
      %v4213 = vpop.f32.mrf.mxu0
      %v4214 = vadd.f32 0.0, %v4213
      %v4215 = vpop.f32.mrf.mxu0
      %4216 = vmatprep.mubr.bf16.mxu0 0
      %4217 = vmatmul.mubr.bf16.gmra.mxu0 %v4113
      %v4218 = vpop.f32.mrf.mxu0
      %v4219 = vadd.f32 0.0, %v4218
      %v4220 = vpop.f32.mrf.mxu0
      %v4221 = vpop.f32.mrf.mxu0
      %v4222 = vadd.f32 0.0, %v4221
      %v4223 = vpop.f32.mrf.mxu0
      %4224 = vmatprep.mubr.bf16.mxu0 0
      %4225 = vmatmul.mubr.bf16.gmra.mxu0 %v4116
      %v4226 = vpop.f32.mrf.mxu0
      %v4227 = vadd.f32 0.0, %v4226
      %v4228 = vpop.f32.mrf.mxu0
      %v4229 = vpop.f32.mrf.mxu0
      %v4230 = vadd.f32 0.0, %v4229
      %v4231 = vpop.f32.mrf.mxu0
      %4232 = vmatprep.mubr.bf16.mxu0 0
      %4233 = vmatmul.mubr.bf16.gmra.mxu0 %v4119
      %v4234 = vpop.f32.mrf.mxu0
      %v4235 = vadd.f32 0.0, %v4234
      %v4236 = vpop.f32.mrf.mxu0
      %v4237 = vpop.f32.mrf.mxu0
      %v4238 = vadd.f32 0.0, %v4237
      %v4239 = vpop.f32.mrf.mxu0
      %4240 = vmatprep.mubr.bf16.mxu0 0
      %4241 = vmatmul.mubr.bf16.gmra.mxu0 %v4122
      %v4242 = vpop.f32.mrf.mxu0
      %v4243 = vadd.f32 0.0, %v4242
      %v4244 = vpop.f32.mrf.mxu0
      %v4245 = vpop.f32.mrf.mxu0
      %v4246 = vadd.f32 0.0, %v4245
      %v4247 = vpop.f32.mrf.mxu0
      %4248 = vmatprep.mubr.bf16.mxu0 0
      %4249 = vmatmul.mubr.bf16.gmra.mxu0 %v4125
      %v4250 = vpop.f32.mrf.mxu0
      %v4251 = vadd.f32 0.0, %v4250
      %v4252 = vpop.f32.mrf.mxu0
      %v4253 = vpop.f32.mrf.mxu0
      %v4254 = vadd.f32 0.0, %v4253
      %v4255 = vpop.f32.mrf.mxu0
      %4256 = vmatprep.mubr.bf16.mxu0 0
      %4257 = vmatmul.mubr.bf16.gmra.mxu0 %v4128
      %v4258 = vpop.f32.mrf.mxu0
      %v4259 = vadd.f32 0.0, %v4258
      %v4260 = vpop.f32.mrf.mxu0
      %v4261 = vpop.f32.mrf.mxu0
      %v4262 = vadd.f32 0.0, %v4261
      %v4263 = vpop.f32.mrf.mxu0
      %4264 = vmatprep.mubr.bf16.mxu0 0
      %4265 = vmatmul.mubr.bf16.gmra.mxu0 %v4131
      %v4266 = vpop.f32.mrf.mxu0
      %v4267 = vadd.f32 0.0, %v4266
      %v4268 = vpop.f32.mrf.mxu0
      %v4269 = vpop.f32.mrf.mxu0
      %v4270 = vadd.f32 0.0, %v4269
      %v4271 = vpop.f32.mrf.mxu0
      %4272 = vmatprep.mubr.bf16.mxu0 0
      %4273 = vmatmul.mubr.bf16.gmra.mxu0 %v4134
      %v4274 = vpop.f32.mrf.mxu0
      %v4275 = vadd.f32 0.0, %v4274
      %v4276 = vpop.f32.mrf.mxu0
      %v4277 = vpop.f32.mrf.mxu0
      %v4278 = vadd.f32 0.0, %v4277
      %v4279 = vpop.f32.mrf.mxu0
      %4280 = vmatprep.mubr.bf16.mxu0 0
      %4281 = vmatmul.mubr.bf16.gmra.mxu0 %v4137
      %v4282 = vpop.f32.mrf.mxu0
      %v4283 = vadd.f32 0.0, %v4282
      %v4284 = vpop.f32.mrf.mxu0
      %v4285 = vpop.f32.mrf.mxu0
      %v4286 = vadd.f32 0.0, %v4285
      %v4287 = vpop.f32.mrf.mxu0
      %4288 = vmatprep.mubr.bf16.mxu0 0
      %4289 = vmatmul.mubr.bf16.gmra.mxu0 %v4140
      %v4290 = vpop.f32.mrf.mxu0
      %v4291 = vadd.f32 0.0, %v4290
      %v4292 = vpop.f32.mrf.mxu0
      %v4293 = vpop.f32.mrf.mxu0
      %v4294 = vadd.f32 0.0, %v4293
      %v4295 = vpop.f32.mrf.mxu0
      %4296 = vmatprep.mubr.bf16.mxu0 0
      %4297 = vmatmul.mubr.bf16.gmra.mxu0 %v4143
      %v4298 = vpop.f32.mrf.mxu0
      %v4299 = vadd.f32 0.0, %v4298
      %v4300 = vpop.f32.mrf.mxu0
      %v4301 = vpop.f32.mrf.mxu0
      %v4302 = vadd.f32 0.0, %v4301
      %v4303 = vpop.f32.mrf.mxu0
      %4304 = vmatprep.mubr.bf16.mxu0 0
      %4305 = vmatmul.mubr.bf16.gmra.mxu0 %v4146
      %v4306 = vpop.f32.mrf.mxu0
      %v4307 = vadd.f32 0.0, %v4306
      %v4308 = vpop.f32.mrf.mxu0
      %v4309 = vpop.f32.mrf.mxu0
      %v4310 = vadd.f32 0.0, %v4309
      %v4311 = vpop.f32.mrf.mxu0
      %4312 = vmatprep.mubr.bf16.mxu0 0
      %4313 = vmatmul.mubr.bf16.gmra.mxu0 %v4149
      %v4314 = vpop.f32.mrf.mxu0
      %v4315 = vadd.f32 0.0, %v4314
      %v4316 = vpop.f32.mrf.mxu0
      %v4317 = vpop.f32.mrf.mxu0
      %v4318 = vadd.f32 0.0, %v4317
      %v4319 = vpop.f32.mrf.mxu0
      %4320 = vmatprep.mubr.bf16.mxu0 0
      %4321 = vmatmul.mubr.bf16.gmra.mxu0 %v4152
      %v4322 = vpop.f32.mrf.mxu0
      %v4323 = vadd.f32 0.0, %v4322
      %v4324 = vpop.f32.mrf.mxu0
      %v4325 = vpop.f32.mrf.mxu0
      %v4326 = vadd.f32 0.0, %v4325
      %v4327 = vpop.f32.mrf.mxu0
      %4328 = vmatprep.mubr.bf16.mxu0 0
      %4329 = vmatmul.mubr.bf16.gmra.mxu0 %v4155
      %v4330 = vpop.f32.mrf.mxu0
      %v4331 = vadd.f32 0.0, %v4330
      %v4332 = vpop.f32.mrf.mxu0
      %v4333 = vpop.f32.mrf.mxu0
      %v4334 = vadd.f32 0.0, %v4333
      %v4335 = vpop.f32.mrf.mxu0
      %4336 = vdwg.mxu0
      %v4337 = vadd.f32 %v4023, %v4195
      %v4338 = vadd.f32 %v4024, %v4198
      %v4339 = vadd.f32 %v4025, %v4203
      %v4340 = vadd.f32 %v4026, %v4206
      %v4341 = vadd.f32 %v4027, %v4211
      %v4342 = vadd.f32 %v4028, %v4214
      %v4343 = vadd.f32 %v4029, %v4219
      %v4344 = vadd.f32 %v4030, %v4222
      %v4345 = vadd.f32 %v4031, %v4227
      %v4346 = vadd.f32 %v4032, %v4230
      %v4347 = vadd.f32 %v4033, %v4235
      %v4348 = vadd.f32 %v4034, %v4238
      %v4349 = vadd.f32 %v4035, %v4243
      %v4350 = vadd.f32 %v4036, %v4246
      %v4351 = vadd.f32 %v4037, %v4251
      %v4352 = vadd.f32 %v4038, %v4254
      %v4353 = vadd.f32 %v4039, %v4259
      %v4354 = vadd.f32 %v4040, %v4262
      %v4355 = vadd.f32 %v4041, %v4267
      %v4356 = vadd.f32 %v4042, %v4270
      %v4357 = vadd.f32 %v4043, %v4275
      %v4358 = vadd.f32 %v4044, %v4278
      %v4359 = vadd.f32 %v4045, %v4283
      %v4360 = vadd.f32 %v4046, %v4286
      %v4361 = vadd.f32 %v4047, %v4291
      %v4362 = vadd.f32 %v4048, %v4294
      %v4363 = vadd.f32 %v4049, %v4299
      %v4364 = vadd.f32 %v4050, %v4302
      %v4365 = vadd.f32 %v4051, %v4307
      %v4366 = vadd.f32 %v4052, %v4310
      %v4367 = vadd.f32 %v4053, %v4315
      %v4368 = vadd.f32 %v4054, %v4318
      %v4369 = vadd.f32 %v4055, %v4323
      %v4370 = vadd.f32 %v4056, %v4326
      %v4371 = vadd.f32 %v4057, %v4331
      %v4372 = vadd.f32 %v4058, %v4334
      %v4373 = vld [vmem:[%s2] sm:$0x1]
      %v4375 = vlaneseq
      %v4376 = vshrl.u32 %v4375, 7
      %v4377 = vsub.s32 0, %v4376
      %v4378 = vrot.slane %v4373, %v4377
      %v4380 = vadd.f32 %v4337, %v4378
      %v4381 = vadd.f32 %v4338, %v4378
      %v4382 = vadd.f32 %v4339, %v4378
      %v4383 = vadd.f32 %v4340, %v4378
      %v4384 = vadd.f32 %v4341, %v4378
      %v4385 = vadd.f32 %v4342, %v4378
      %v4386 = vadd.f32 %v4343, %v4378
      %v4387 = vadd.f32 %v4344, %v4378
      %v4388 = vadd.f32 %v4345, %v4378
      %v4389 = vadd.f32 %v4346, %v4378
      %v4390 = vadd.f32 %v4347, %v4378
      %v4391 = vadd.f32 %v4348, %v4378
      %v4392 = vadd.f32 %v4349, %v4378
      %v4393 = vadd.f32 %v4350, %v4378
      %v4394 = vadd.f32 %v4351, %v4378
      %v4395 = vadd.f32 %v4352, %v4378
      %v4396 = vadd.f32 %v4353, %v4378
      %v4397 = vadd.f32 %v4354, %v4378
      %v4398 = vadd.f32 %v4355, %v4378
      %v4399 = vadd.f32 %v4356, %v4378
      %v4400 = vadd.f32 %v4357, %v4378
      %v4401 = vadd.f32 %v4358, %v4378
      %v4402 = vadd.f32 %v4359, %v4378
      %v4403 = vadd.f32 %v4360, %v4378
      %v4404 = vadd.f32 %v4361, %v4378
      %v4405 = vadd.f32 %v4362, %v4378
      %v4406 = vadd.f32 %v4363, %v4378
      %v4407 = vadd.f32 %v4364, %v4378
      %v4408 = vadd.f32 %v4365, %v4378
      %v4409 = vadd.f32 %v4366, %v4378
      %v4410 = vadd.f32 %v4367, %v4378
      %v4411 = vadd.f32 %v4368, %v4378
      %v4412 = vadd.f32 %v4369, %v4378
      %v4413 = vadd.f32 %v4370, %v4378
      %v4414 = vadd.f32 %v4371, %v4378
      %v4415 = vadd.f32 %v4372, %v4378
      %v4416 = vxor.u32 %v4380, 2147483648
      %v4417 = vxor.u32 %v4381, 2147483648
      %v4418 = vxor.u32 %v4382, 2147483648
      %v4419 = vxor.u32 %v4383, 2147483648
      %v4420 = vxor.u32 %v4384, 2147483648
      %v4421 = vxor.u32 %v4385, 2147483648
      %v4422 = vxor.u32 %v4386, 2147483648
      %v4423 = vxor.u32 %v4387, 2147483648
      %v4424 = vxor.u32 %v4388, 2147483648
      %v4425 = vxor.u32 %v4389, 2147483648
      %v4426 = vxor.u32 %v4390, 2147483648
      %v4427 = vxor.u32 %v4391, 2147483648
      %v4428 = vxor.u32 %v4392, 2147483648
      %v4429 = vxor.u32 %v4393, 2147483648
      %v4430 = vxor.u32 %v4394, 2147483648
      %v4431 = vxor.u32 %v4395, 2147483648
      %v4432 = vxor.u32 %v4396, 2147483648
      %v4433 = vxor.u32 %v4397, 2147483648
      %v4434 = vxor.u32 %v4398, 2147483648
      %v4435 = vxor.u32 %v4399, 2147483648
      %v4436 = vxor.u32 %v4400, 2147483648
      %v4437 = vxor.u32 %v4401, 2147483648
      %v4438 = vxor.u32 %v4402, 2147483648
      %v4439 = vxor.u32 %v4403, 2147483648
      %v4440 = vxor.u32 %v4404, 2147483648
      %v4441 = vxor.u32 %v4405, 2147483648
      %v4442 = vxor.u32 %v4406, 2147483648
      %v4443 = vxor.u32 %v4407, 2147483648
      %v4444 = vxor.u32 %v4408, 2147483648
      %v4445 = vxor.u32 %v4409, 2147483648
      %v4446 = vxor.u32 %v4410, 2147483648
      %v4447 = vxor.u32 %v4411, 2147483648
      %v4448 = vxor.u32 %v4412, 2147483648
      %v4449 = vxor.u32 %v4413, 2147483648
      %v4450 = vxor.u32 %v4414, 2147483648
      %v4451 = vxor.u32 %v4415, 2147483648
      %v4452 = vmul.f32 %v4416, 1.442695
      %v4453 = vpow.pop %v4452
      %v4454 = vmul.f32 %v4417, 1.442695
      %v4455 = vpow.pop %v4454
      %v4456 = vmul.f32 %v4418, 1.442695
      %v4457 = vpow.pop %v4456
      %v4458 = vmul.f32 %v4419, 1.442695
      %v4459 = vpow.pop %v4458
      %v4460 = vmul.f32 %v4420, 1.442695
      %v4461 = vpow.pop %v4460
      %v4462 = vmul.f32 %v4421, 1.442695
      %v4463 = vpow.pop %v4462
      %v4464 = vmul.f32 %v4422, 1.442695
      %v4465 = vpow.pop %v4464
      %v4466 = vmul.f32 %v4423, 1.442695
      %v4467 = vpow.pop %v4466
      %v4468 = vmul.f32 %v4424, 1.442695
      %v4469 = vpow.pop %v4468
      %v4470 = vmul.f32 %v4425, 1.442695
      %v4471 = vpow.pop %v4470
      %v4472 = vmul.f32 %v4426, 1.442695
      %v4473 = vpow.pop %v4472
      %v4474 = vmul.f32 %v4427, 1.442695
      %v4475 = vpow.pop %v4474
      %v4476 = vmul.f32 %v4428, 1.442695
      %v4477 = vpow.pop %v4476
      %v4478 = vmul.f32 %v4429, 1.442695
      %v4479 = vpow.pop %v4478
      %v4480 = vmul.f32 %v4430, 1.442695
      %v4481 = vpow.pop %v4480
      %v4482 = vmul.f32 %v4431, 1.442695
      %v4483 = vpow.pop %v4482
      %v4484 = vmul.f32 %v4432, 1.442695
      %v4485 = vpow.pop %v4484
      %v4486 = vmul.f32 %v4433, 1.442695
      %v4487 = vpow.pop %v4486
      %v4488 = vmul.f32 %v4434, 1.442695
      %v4489 = vpow.pop %v4488
      %v4490 = vmul.f32 %v4435, 1.442695
      %v4491 = vpow.pop %v4490
      %v4492 = vmul.f32 %v4436, 1.442695
      %v4493 = vpow.pop %v4492
      %v4494 = vmul.f32 %v4437, 1.442695
      %v4495 = vpow.pop %v4494
      %v4496 = vmul.f32 %v4438, 1.442695
      %v4497 = vpow.pop %v4496
      %v4498 = vmul.f32 %v4439, 1.442695
      %v4499 = vpow.pop %v4498
      %v4500 = vmul.f32 %v4440, 1.442695
      %v4501 = vpow.pop %v4500
      %v4502 = vmul.f32 %v4441, 1.442695
      %v4503 = vpow.pop %v4502
      %v4504 = vmul.f32 %v4442, 1.442695
      %v4505 = vpow.pop %v4504
      %v4506 = vmul.f32 %v4443, 1.442695
      %v4507 = vpow.pop %v4506
      %v4508 = vmul.f32 %v4444, 1.442695
      %v4509 = vpow.pop %v4508
      %v4510 = vmul.f32 %v4445, 1.442695
      %v4511 = vpow.pop %v4510
      %v4512 = vmul.f32 %v4446, 1.442695
      %v4513 = vpow.pop %v4512
      %v4514 = vmul.f32 %v4447, 1.442695
      %v4515 = vpow.pop %v4514
      %v4516 = vmul.f32 %v4448, 1.442695
      %v4517 = vpow.pop %v4516
      %v4518 = vmul.f32 %v4449, 1.442695
      %v4519 = vpow.pop %v4518
      %v4520 = vmul.f32 %v4450, 1.442695
      %v4521 = vpow.pop %v4520
      %v4522 = vmul.f32 %v4451, 1.442695
      %v4523 = vpow.pop %v4522
      %v4524 = vadd.f32 %v4453, 1.0
      %v4525 = vadd.f32 %v4455, 1.0
      %v4526 = vadd.f32 %v4457, 1.0
      %v4527 = vadd.f32 %v4459, 1.0
      %v4528 = vadd.f32 %v4461, 1.0
      %v4529 = vadd.f32 %v4463, 1.0
      %v4530 = vadd.f32 %v4465, 1.0
      %v4531 = vadd.f32 %v4467, 1.0
      %v4532 = vadd.f32 %v4469, 1.0
      %v4533 = vadd.f32 %v4471, 1.0
      %v4534 = vadd.f32 %v4473, 1.0
      %v4535 = vadd.f32 %v4475, 1.0
      %v4536 = vadd.f32 %v4477, 1.0
      %v4537 = vadd.f32 %v4479, 1.0
      %v4538 = vadd.f32 %v4481, 1.0
      %v4539 = vadd.f32 %v4483, 1.0
      %v4540 = vadd.f32 %v4485, 1.0
      %v4541 = vadd.f32 %v4487, 1.0
      %v4542 = vadd.f32 %v4489, 1.0
      %v4543 = vadd.f32 %v4491, 1.0
      %v4544 = vadd.f32 %v4493, 1.0
      %v4545 = vadd.f32 %v4495, 1.0
      %v4546 = vadd.f32 %v4497, 1.0
      %v4547 = vadd.f32 %v4499, 1.0
      %v4548 = vadd.f32 %v4501, 1.0
      %v4549 = vadd.f32 %v4503, 1.0
      %v4550 = vadd.f32 %v4505, 1.0
      %v4551 = vadd.f32 %v4507, 1.0
      %v4552 = vadd.f32 %v4509, 1.0
      %v4553 = vadd.f32 %v4511, 1.0
      %v4554 = vadd.f32 %v4513, 1.0
      %v4555 = vadd.f32 %v4515, 1.0
      %v4556 = vadd.f32 %v4517, 1.0
      %v4557 = vadd.f32 %v4519, 1.0
      %v4558 = vadd.f32 %v4521, 1.0
      %v4559 = vadd.f32 %v4523, 1.0
      %v4560 = vrcp.pop %v4524
      %v4561 = vmul.f32 1.0, %v4560
      %v4562 = vrcp.pop %v4525
      %v4563 = vmul.f32 1.0, %v4562
      %v4564 = vrcp.pop %v4526
      %v4565 = vmul.f32 1.0, %v4564
      %v4566 = vrcp.pop %v4527
      %v4567 = vmul.f32 1.0, %v4566
      %v4568 = vrcp.pop %v4528
      %v4569 = vmul.f32 1.0, %v4568
      %v4570 = vrcp.pop %v4529
      %v4571 = vmul.f32 1.0, %v4570
      %v4572 = vrcp.pop %v4530
      %v4573 = vmul.f32 1.0, %v4572
      %v4574 = vrcp.pop %v4531
      %v4575 = vmul.f32 1.0, %v4574
      %v4576 = vrcp.pop %v4532
      %v4577 = vmul.f32 1.0, %v4576
      %v4578 = vrcp.pop %v4533
      %v4579 = vmul.f32 1.0, %v4578
      %v4580 = vrcp.pop %v4534
      %v4581 = vmul.f32 1.0, %v4580
      %v4582 = vrcp.pop %v4535
      %v4583 = vmul.f32 1.0, %v4582
      %v4584 = vrcp.pop %v4536
      %v4585 = vmul.f32 1.0, %v4584
      %v4586 = vrcp.pop %v4537
      %v4587 = vmul.f32 1.0, %v4586
      %v4588 = vrcp.pop %v4538
      %v4589 = vmul.f32 1.0, %v4588
      %v4590 = vrcp.pop %v4539
      %v4591 = vmul.f32 1.0, %v4590
      %v4592 = vrcp.pop %v4540
      %v4593 = vmul.f32 1.0, %v4592
      %v4594 = vrcp.pop %v4541
      %v4595 = vmul.f32 1.0, %v4594
      %v4596 = vrcp.pop %v4542
      %v4597 = vmul.f32 1.0, %v4596
      %v4598 = vrcp.pop %v4543
      %v4599 = vmul.f32 1.0, %v4598
      %v4600 = vrcp.pop %v4544
      %v4601 = vmul.f32 1.0, %v4600
      %v4602 = vrcp.pop %v4545
      %v4603 = vmul.f32 1.0, %v4602
      %v4604 = vrcp.pop %v4546
      %v4605 = vmul.f32 1.0, %v4604
      %v4606 = vrcp.pop %v4547
      %v4607 = vmul.f32 1.0, %v4606
      %v4608 = vrcp.pop %v4548
      %v4609 = vmul.f32 1.0, %v4608
      %v4610 = vrcp.pop %v4549
      %v4611 = vmul.f32 1.0, %v4610
      %v4612 = vrcp.pop %v4550
      %v4613 = vmul.f32 1.0, %v4612
      %v4614 = vrcp.pop %v4551
      %v4615 = vmul.f32 1.0, %v4614
      %v4616 = vrcp.pop %v4552
      %v4617 = vmul.f32 1.0, %v4616
      %v4618 = vrcp.pop %v4553
      %v4619 = vmul.f32 1.0, %v4618
      %v4620 = vrcp.pop %v4554
      %v4621 = vmul.f32 1.0, %v4620
      %v4622 = vrcp.pop %v4555
      %v4623 = vmul.f32 1.0, %v4622
      %v4624 = vrcp.pop %v4556
      %v4625 = vmul.f32 1.0, %v4624
      %v4626 = vrcp.pop %v4557
      %v4627 = vmul.f32 1.0, %v4626
      %v4628 = vrcp.pop %v4558
      %v4629 = vmul.f32 1.0, %v4628
      %v4630 = vrcp.pop %v4559
      %v4631 = vmul.f32 1.0, %v4630
      %v4632 = vmul.f32 %v4380, %v4561
      %v4633 = vmul.f32 %v4381, %v4563
      %v4634 = vmul.f32 %v4382, %v4565
      %v4635 = vmul.f32 %v4383, %v4567
      %v4636 = vmul.f32 %v4384, %v4569
      %v4637 = vmul.f32 %v4385, %v4571
      %v4638 = vmul.f32 %v4386, %v4573
      %v4639 = vmul.f32 %v4387, %v4575
      %v4640 = vmul.f32 %v4388, %v4577
      %v4641 = vmul.f32 %v4389, %v4579
      %v4642 = vmul.f32 %v4390, %v4581
      %v4643 = vmul.f32 %v4391, %v4583
      %v4644 = vmul.f32 %v4392, %v4585
      %v4645 = vmul.f32 %v4393, %v4587
      %v4646 = vmul.f32 %v4394, %v4589
      %v4647 = vmul.f32 %v4395, %v4591
      %v4648 = vmul.f32 %v4396, %v4593
      %v4649 = vmul.f32 %v4397, %v4595
      %v4650 = vmul.f32 %v4398, %v4597
      %v4651 = vmul.f32 %v4399, %v4599
      %v4652 = vmul.f32 %v4400, %v4601
      %v4653 = vmul.f32 %v4401, %v4603
      %v4654 = vmul.f32 %v4402, %v4605
      %v4655 = vmul.f32 %v4403, %v4607
      %v4656 = vmul.f32 %v4404, %v4609
      %v4657 = vmul.f32 %v4405, %v4611
      %v4658 = vmul.f32 %v4406, %v4613
      %v4659 = vmul.f32 %v4407, %v4615
      %v4660 = vmul.f32 %v4408, %v4617
      %v4661 = vmul.f32 %v4409, %v4619
      %v4662 = vmul.f32 %v4410, %v4621
      %v4663 = vmul.f32 %v4411, %v4623
      %v4664 = vmul.f32 %v4412, %v4625
      %v4665 = vmul.f32 %v4413, %v4627
      %v4666 = vmul.f32 %v4414, %v4629
      %v4667 = vmul.f32 %v4415, %v4631
      %v4668 = vsel %vm889, 1, 0
      %v4669 = vsel %vm890, 1, 0
      %v4670 = vsel %vm891, 1, 0
      %v4671 = vsel %vm892, 1, 0
      %v4672 = vsel %vm893, 1, 0
      %v4673 = vsel %vm894, 1, 0
      %v4674 = vsel %vm895, 1, 0
      %v4675 = vsel %vm896, 1, 0
      %v4676 = vsel %vm897, 1, 0
      %v4677 = vsel %vm898, 1, 0
      %v4678 = vsel %vm899, 1, 0
      %v4679 = vsel %vm900, 1, 0
      %v4680 = vsel %vm901, 1, 0
      %v4681 = vsel %vm902, 1, 0
      %v4682 = vsel %vm903, 1, 0
      %v4683 = vsel %vm904, 1, 0
      %v4684 = vsel %vm905, 1, 0
      %v4685 = vsel %vm906, 1, 0
      %v4686 = vsel %vm907, 1, 0
      %v4687 = vsel %vm908, 1, 0
      %v4688 = vsel %vm909, 1, 0
      %v4689 = vsel %vm910, 1, 0
      %v4690 = vsel %vm911, 1, 0
      %v4691 = vsel %vm912, 1, 0
      %v4692 = vsel %vm913, 1, 0
      %v4693 = vsel %vm914, 1, 0
      %v4694 = vsel %vm915, 1, 0
      %v4695 = vsel %vm916, 1, 0
      %v4696 = vsel %vm917, 1, 0
      %v4697 = vsel %vm918, 1, 0
      %v4698 = vsel %vm919, 1, 0
      %v4699 = vsel %vm920, 1, 0
      %v4700 = vsel %vm921, 1, 0
      %v4701 = vsel %vm922, 1, 0
      %v4702 = vsel %vm923, 1, 0
      %v4703 = vsel %vm924, 1, 0
      %vm4704 = vcmp.eq.s32.totalorder %v4668, 1
      %vm4705 = vcmp.eq.s32.totalorder %v4669, 1
      %vm4706 = vcmp.eq.s32.totalorder %v4670, 1
      %vm4707 = vcmp.eq.s32.totalorder %v4671, 1
      %vm4708 = vcmp.eq.s32.totalorder %v4672, 1
      %vm4709 = vcmp.eq.s32.totalorder %v4673, 1
      %vm4710 = vcmp.eq.s32.totalorder %v4674, 1
      %vm4711 = vcmp.eq.s32.totalorder %v4675, 1
      %vm4712 = vcmp.eq.s32.totalorder %v4676, 1
      %vm4713 = vcmp.eq.s32.totalorder %v4677, 1
      %vm4714 = vcmp.eq.s32.totalorder %v4678, 1
      %vm4715 = vcmp.eq.s32.totalorder %v4679, 1
      %vm4716 = vcmp.eq.s32.totalorder %v4680, 1
      %vm4717 = vcmp.eq.s32.totalorder %v4681, 1
      %vm4718 = vcmp.eq.s32.totalorder %v4682, 1
      %vm4719 = vcmp.eq.s32.totalorder %v4683, 1
      %vm4720 = vcmp.eq.s32.totalorder %v4684, 1
      %vm4721 = vcmp.eq.s32.totalorder %v4685, 1
      %vm4722 = vcmp.eq.s32.totalorder %v4686, 1
      %vm4723 = vcmp.eq.s32.totalorder %v4687, 1
      %vm4724 = vcmp.eq.s32.totalorder %v4688, 1
      %vm4725 = vcmp.eq.s32.totalorder %v4689, 1
      %vm4726 = vcmp.eq.s32.totalorder %v4690, 1
      %vm4727 = vcmp.eq.s32.totalorder %v4691, 1
      %vm4728 = vcmp.eq.s32.totalorder %v4692, 1
      %vm4729 = vcmp.eq.s32.totalorder %v4693, 1
      %vm4730 = vcmp.eq.s32.totalorder %v4694, 1
      %vm4731 = vcmp.eq.s32.totalorder %v4695, 1
      %vm4732 = vcmp.eq.s32.totalorder %v4696, 1
      %vm4733 = vcmp.eq.s32.totalorder %v4697, 1
      %vm4734 = vcmp.eq.s32.totalorder %v4698, 1
      %vm4735 = vcmp.eq.s32.totalorder %v4699, 1
      %vm4736 = vcmp.eq.s32.totalorder %v4700, 1
      %vm4737 = vcmp.eq.s32.totalorder %v4701, 1
      %vm4738 = vcmp.eq.s32.totalorder %v4702, 1
      %vm4739 = vcmp.eq.s32.totalorder %v4703, 1
      %v4740 = vsel %vm4704, %v4632, 0.0
      %v4741 = vsel %vm4705, %v4633, 0.0
      %v4742 = vsel %vm4706, %v4634, 0.0
      %v4743 = vsel %vm4707, %v4635, 0.0
      %v4744 = vsel %vm4708, %v4636, 0.0
      %v4745 = vsel %vm4709, %v4637, 0.0
      %v4746 = vsel %vm4710, %v4638, 0.0
      %v4747 = vsel %vm4711, %v4639, 0.0
      %v4748 = vsel %vm4712, %v4640, 0.0
      %v4749 = vsel %vm4713, %v4641, 0.0
      %v4750 = vsel %vm4714, %v4642, 0.0
      %v4751 = vsel %vm4715, %v4643, 0.0
      %v4752 = vsel %vm4716, %v4644, 0.0
      %v4753 = vsel %vm4717, %v4645, 0.0
      %v4754 = vsel %vm4718, %v4646, 0.0
      %v4755 = vsel %vm4719, %v4647, 0.0
      %v4756 = vsel %vm4720, %v4648, 0.0
      %v4757 = vsel %vm4721, %v4649, 0.0
      %v4758 = vsel %vm4722, %v4650, 0.0
      %v4759 = vsel %vm4723, %v4651, 0.0
      %v4760 = vsel %vm4724, %v4652, 0.0
      %v4761 = vsel %vm4725, %v4653, 0.0
      %v4762 = vsel %vm4726, %v4654, 0.0
      %v4763 = vsel %vm4727, %v4655, 0.0
      %v4764 = vsel %vm4728, %v4656, 0.0
      %v4765 = vsel %vm4729, %v4657, 0.0
      %v4766 = vsel %vm4730, %v4658, 0.0
      %v4767 = vsel %vm4731, %v4659, 0.0
      %v4768 = vsel %vm4732, %v4660, 0.0
      %v4769 = vsel %vm4733, %v4661, 0.0
      %v4770 = vsel %vm4734, %v4662, 0.0
      %v4771 = vsel %vm4735, %v4663, 0.0
      %v4772 = vsel %vm4736, %v4664, 0.0
      %v4773 = vsel %vm4737, %v4665, 0.0
      %v4774 = vsel %vm4738, %v4666, 0.0
      %v4775 = vsel %vm4739, %v4667, 0.0
      %v4776 = vpack.c.bf16 %v4741, %v4740
      %v4777 = vpack.c.bf16 %v4743, %v4742
      %v4778 = vpack.c.bf16 %v4745, %v4744
      %v4779 = vpack.c.bf16 %v4747, %v4746
      %v4780 = vpack.c.bf16 %v4749, %v4748
      %v4781 = vpack.c.bf16 %v4751, %v4750
      %v4782 = vpack.c.bf16 %v4753, %v4752
      %v4783 = vpack.c.bf16 %v4755, %v4754
      %v4784 = vpack.c.bf16 %v4757, %v4756
      %v4785 = vpack.c.bf16 %v4759, %v4758
      %v4786 = vpack.c.bf16 %v4761, %v4760
      %v4787 = vpack.c.bf16 %v4763, %v4762
      %v4788 = vpack.c.bf16 %v4765, %v4764
      %v4789 = vpack.c.bf16 %v4767, %v4766
      %v4790 = vpack.c.bf16 %v4769, %v4768
      %v4791 = vpack.c.bf16 %v4771, %v4770
      %v4792 = vpack.c.bf16 %v4773, %v4772
      %v4793 = vpack.c.bf16 %v4775, %v4774
      %v4812 = vunpack.c.l.b16 %v4776
      %v4813 = vunpack.c.h.b16 %v4776
      %v4814 = vunpack.c.l.b16 %v4777
      %v4815 = vunpack.c.h.b16 %v4777
      %v4816 = vunpack.c.l.b16 %v4778
      %v4817 = vunpack.c.h.b16 %v4778
      %v4818 = vunpack.c.l.b16 %v4779
      %v4819 = vunpack.c.h.b16 %v4779
      %v4820 = vunpack.c.l.b16 %v4780
      %v4821 = vunpack.c.h.b16 %v4780
      %v4822 = vunpack.c.l.b16 %v4781
      %v4823 = vunpack.c.h.b16 %v4781
      %v4824 = vunpack.c.l.b16 %v4782
      %v4825 = vunpack.c.h.b16 %v4782
      %v4826 = vunpack.c.l.b16 %v4783
      %v4827 = vunpack.c.h.b16 %v4783
      %v4828 = vunpack.c.l.b16 %v4784
      %v4829 = vunpack.c.h.b16 %v4784
      %v4830 = vunpack.c.l.b16 %v4785
      %v4831 = vunpack.c.h.b16 %v4785
      %v4832 = vunpack.c.l.b16 %v4786
      %v4833 = vunpack.c.h.b16 %v4786
      %v4834 = vunpack.c.l.b16 %v4787
      %v4835 = vunpack.c.h.b16 %v4787
      %v4836 = vunpack.c.l.b16 %v4788
      %v4837 = vunpack.c.h.b16 %v4788
      %v4838 = vunpack.c.l.b16 %v4789
      %v4839 = vunpack.c.h.b16 %v4789
      %v4840 = vunpack.c.l.b16 %v4790
      %v4841 = vunpack.c.h.b16 %v4790
      %v4842 = vunpack.c.l.b16 %v4791
      %v4843 = vunpack.c.h.b16 %v4791
      %v4844 = vunpack.c.l.b16 %v4792
      %v4845 = vunpack.c.h.b16 %v4792
      %v4846 = vunpack.c.l.b16 %v4793
      %v4847 = vunpack.c.h.b16 %v4793
      %v4848 = vpack.c.b16 %v4812, %v4812
      %v4849 = vpack.c.b16 %v4813, %v4813
      %v4850 = vpack.c.b16 %v4814, %v4814
      %v4851 = vpack.c.b16 %v4815, %v4815
      %v4852 = vpack.c.b16 %v4816, %v4816
      %v4853 = vpack.c.b16 %v4817, %v4817
      %v4854 = vpack.c.b16 %v4818, %v4818
      %v4855 = vpack.c.b16 %v4819, %v4819
      %v4856 = vpack.c.b16 %v4820, %v4820
      %v4857 = vpack.c.b16 %v4821, %v4821
      %v4858 = vpack.c.b16 %v4822, %v4822
      %v4859 = vpack.c.b16 %v4823, %v4823
      %v4860 = vpack.c.b16 %v4824, %v4824
      %v4861 = vpack.c.b16 %v4825, %v4825
      %v4862 = vpack.c.b16 %v4826, %v4826
      %v4863 = vpack.c.b16 %v4827, %v4827
      %v4864 = vpack.c.b16 %v4828, %v4828
      %v4865 = vpack.c.b16 %v4829, %v4829
      %v4866 = vpack.c.b16 %v4830, %v4830
      %v4867 = vpack.c.b16 %v4831, %v4831
      %v4868 = vpack.c.b16 %v4832, %v4832
      %v4869 = vpack.c.b16 %v4833, %v4833
      %v4870 = vpack.c.b16 %v4834, %v4834
      %v4871 = vpack.c.b16 %v4835, %v4835
      %v4872 = vpack.c.b16 %v4836, %v4836
      %v4873 = vpack.c.b16 %v4837, %v4837
      %v4874 = vpack.c.b16 %v4838, %v4838
      %v4875 = vpack.c.b16 %v4839, %v4839
      %v4876 = vpack.c.b16 %v4840, %v4840
      %v4877 = vpack.c.b16 %v4841, %v4841
      %v4878 = vpack.c.b16 %v4842, %v4842
      %v4879 = vpack.c.b16 %v4843, %v4843
      %v4880 = vpack.c.b16 %v4844, %v4844
      %v4881 = vpack.c.b16 %v4845, %v4845
      %v4882 = vpack.c.b16 %v4846, %v4846
      %v4883 = vpack.c.b16 %v4847, %v4847
      %vm4920 = vcmask 11264
      %4921 = vst.msk [vmem:[#allocation2 + $0x10] sm:$0xf] %vm4920, %v4848
      %4922 = vst.msk [vmem:[#allocation2 + $0x14] sm:$0xf] %vm4920, %v4849
      %4923 = vst.msk [vmem:[#allocation2 + $0x18] sm:$0xf] %vm4920, %v4850
      %4924 = vst.msk [vmem:[#allocation2 + $0x1c] sm:$0xf] %vm4920, %v4851
      %4925 = vst.msk [vmem:[#allocation2 + $0x20] sm:$0xf] %vm4920, %v4852
      %4926 = vst.msk [vmem:[#allocation2 + $0x24] sm:$0xf] %vm4920, %v4853
      %4927 = vst.msk [vmem:[#allocation2 + $0x28] sm:$0xf] %vm4920, %v4854
      %4928 = vst.msk [vmem:[#allocation2 + $0x2c] sm:$0xf] %vm4920, %v4855
      %4929 = vst.msk [vmem:[#allocation2 + $0x30] sm:$0xf] %vm4920, %v4856
      %4930 = vst.msk [vmem:[#allocation2 + $0x34] sm:$0xf] %vm4920, %v4857
      %4931 = vst.msk [vmem:[#allocation2 + $0x38] sm:$0xf] %vm4920, %v4858
      %4932 = vst.msk [vmem:[#allocation2 + $0x3c] sm:$0xf] %vm4920, %v4859
      %4933 = vst.msk [vmem:[#allocation2 + $0x40] sm:$0xf] %vm4920, %v4860
      %4934 = vst.msk [vmem:[#allocation2 + $0x44] sm:$0xf] %vm4920, %v4861
      %4935 = vst.msk [vmem:[#allocation2 + $0x48] sm:$0xf] %vm4920, %v4862
      %4936 = vst.msk [vmem:[#allocation2 + $0x4c] sm:$0xf] %vm4920, %v4863
      %4937 = vst.msk [vmem:[#allocation2 + $0x50] sm:$0xf] %vm4920, %v4864
      %4938 = vst.msk [vmem:[#allocation2 + $0x54] sm:$0xf] %vm4920, %v4865
      %4939 = vst.msk [vmem:[#allocation2 + $0x58] sm:$0xf] %vm4920, %v4866
      %4940 = vst.msk [vmem:[#allocation2 + $0x5c] sm:$0xf] %vm4920, %v4867
      %4941 = vst.msk [vmem:[#allocation2 + $0x60] sm:$0xf] %vm4920, %v4868
      %4942 = vst.msk [vmem:[#allocation2 + $0x64] sm:$0xf] %vm4920, %v4869
      %4943 = vst.msk [vmem:[#allocation2 + $0x68] sm:$0xf] %vm4920, %v4870
      %4944 = vst.msk [vmem:[#allocation2 + $0x6c] sm:$0xf] %vm4920, %v4871
      %4945 = vst.msk [vmem:[#allocation2 + $0x70] sm:$0xf] %vm4920, %v4872
      %4946 = vst.msk [vmem:[#allocation2 + $0x74] sm:$0xf] %vm4920, %v4873
      %4947 = vst.msk [vmem:[#allocation2 + $0x78] sm:$0xf] %vm4920, %v4874
      %4948 = vst.msk [vmem:[#allocation2 + $0x7c] sm:$0xf] %vm4920, %v4875
      %4949 = vst.msk [vmem:[#allocation2 + $0x80] sm:$0xf] %vm4920, %v4876
      %4950 = vst.msk [vmem:[#allocation2 + $0x84] sm:$0xf] %vm4920, %v4877
      %4951 = vst.msk [vmem:[#allocation2 + $0x88] sm:$0xf] %vm4920, %v4878
      %4952 = vst.msk [vmem:[#allocation2 + $0x8c] sm:$0xf] %vm4920, %v4879
      %4953 = vst.msk [vmem:[#allocation2 + $0x90] sm:$0xf] %vm4920, %v4880
      %4954 = vst.msk [vmem:[#allocation2 + $0x94] sm:$0xf] %vm4920, %v4881
      %4955 = vst.msk [vmem:[#allocation2 + $0x98] sm:$0xf] %vm4920, %v4882
      %4956 = vst.msk [vmem:[#allocation2 + $0x9c] sm:$0xf] %vm4920, %v4883
      %v4957 = vld [vmem:[#allocation2 + $0x4] sm:$0xc]
      %v4958 = vld [vmem:[#allocation2 + $0x8] sm:$0xf]
      %v4959 = vld [vmem:[#allocation2 + $0xc] sm:$0xf]
      %v4960 = vld [vmem:[#allocation2 + $0x10] sm:$0xf]
      %v4961 = vld [vmem:[#allocation2 + $0x14] sm:$0xf]
      %v4962 = vld [vmem:[#allocation2 + $0x18] sm:$0xf]
      %v4963 = vld [vmem:[#allocation2 + $0x1c] sm:$0xf]
      %v4964 = vld [vmem:[#allocation2 + $0x20] sm:$0xf]
      %v4965 = vld [vmem:[#allocation2 + $0x24] sm:$0xf]
      %v4966 = vld [vmem:[#allocation2 + $0x28] sm:$0xf]
      %v4967 = vld [vmem:[#allocation2 + $0x2c] sm:$0xf]
      %v4968 = vld [vmem:[#allocation2 + $0x30] sm:$0xf]
      %v4969 = vld [vmem:[#allocation2 + $0x34] sm:$0xf]
      %v4970 = vld [vmem:[#allocation2 + $0x38] sm:$0xf]
      %v4971 = vld [vmem:[#allocation2 + $0x3c] sm:$0xf]
      %v4972 = vld [vmem:[#allocation2 + $0x40] sm:$0xf]
      %v4973 = vld [vmem:[#allocation2 + $0x44] sm:$0xf]
      %v4974 = vld [vmem:[#allocation2 + $0x48] sm:$0xf]
      %v4975 = vld [vmem:[#allocation2 + $0x4c] sm:$0xf]
      %v4976 = vld [vmem:[#allocation2 + $0x50] sm:$0xf]
      %v4977 = vld [vmem:[#allocation2 + $0x54] sm:$0xf]
      %v4978 = vld [vmem:[#allocation2 + $0x58] sm:$0xf]
      %v4979 = vld [vmem:[#allocation2 + $0x5c] sm:$0xf]
      %v4980 = vld [vmem:[#allocation2 + $0x60] sm:$0xf]
      %v4981 = vld [vmem:[#allocation2 + $0x64] sm:$0xf]
      %v4982 = vld [vmem:[#allocation2 + $0x68] sm:$0xf]
      %v4983 = vld [vmem:[#allocation2 + $0x6c] sm:$0xf]
      %v4984 = vld [vmem:[#allocation2 + $0x70] sm:$0xf]
      %v4985 = vld [vmem:[#allocation2 + $0x74] sm:$0xf]
      %v4986 = vld [vmem:[#allocation2 + $0x78] sm:$0xf]
      %v4987 = vld [vmem:[#allocation2 + $0x7c] sm:$0xf]
      %v4988 = vld [vmem:[#allocation2 + $0x80] sm:$0xf]
      %v4989 = vld [vmem:[#allocation2 + $0x84] sm:$0xf]
      %v4990 = vld [vmem:[#allocation2 + $0x88] sm:$0xf]
      %v4991 = vld [vmem:[#allocation2 + $0x8c] sm:$0xf]
      %v4992 = vld [vmem:[#allocation2 + $0x90] sm:$0xf]
      %v4993 = vld [vmem:[#allocation2 + $0x94] sm:$0x7]
      %v4994 = vld [vmem:[%s3] sm:$0x1]
      %v4995 = vld [vmem:[#allocation2 + $0x4] sm:$0x8]
      %s4996 = scalar_lea.vmem %s3, 1
      %v4997 = vld [vmem:[%s4996] sm:$0x1]
      %v5035 = vunpack.c.l.b16 %v4995
      %v5036 = vunpack.c.l.b16 %v4958
      %v5037 = vunpack.c.l.b16 %v4959
      %v5038 = vunpack.c.l.b16 %v4960
      %v5039 = vunpack.c.l.b16 %v4961
      %v5040 = vunpack.c.l.b16 %v4962
      %v5041 = vunpack.c.l.b16 %v4963
      %v5042 = vunpack.c.l.b16 %v4964
      %v5043 = vunpack.c.l.b16 %v4965
      %v5044 = vunpack.c.l.b16 %v4966
      %v5045 = vunpack.c.l.b16 %v4967
      %v5046 = vunpack.c.l.b16 %v4968
      %v5047 = vunpack.c.l.b16 %v4969
      %v5048 = vunpack.c.l.b16 %v4970
      %v5049 = vunpack.c.l.b16 %v4971
      %v5050 = vunpack.c.l.b16 %v4972
      %v5051 = vunpack.c.l.b16 %v4973
      %v5052 = vunpack.c.l.b16 %v4974
      %v5053 = vunpack.c.l.b16 %v4975
      %v5054 = vunpack.c.l.b16 %v4976
      %v5055 = vunpack.c.l.b16 %v4977
      %v5056 = vunpack.c.l.b16 %v4978
      %v5057 = vunpack.c.l.b16 %v4979
      %v5058 = vunpack.c.l.b16 %v4980
      %v5059 = vunpack.c.l.b16 %v4981
      %v5060 = vunpack.c.l.b16 %v4982
      %v5061 = vunpack.c.l.b16 %v4983
      %v5062 = vunpack.c.l.b16 %v4984
      %v5063 = vunpack.c.l.b16 %v4985
      %v5064 = vunpack.c.l.b16 %v4986
      %v5065 = vunpack.c.l.b16 %v4987
      %v5066 = vunpack.c.l.b16 %v4988
      %v5067 = vunpack.c.l.b16 %v4989
      %v5068 = vunpack.c.l.b16 %v4990
      %v5069 = vunpack.c.l.b16 %v4991
      %v5070 = vunpack.c.l.b16 %v4992
      %v5071 = vunpack.c.l.b16 %v4993
      %v5072 = vpack.c.b16 %v5036, %v5035
      %v5073 = vpack.c.b16 %v5038, %v5037
      %v5074 = vpack.c.b16 %v5040, %v5039
      %v5075 = vpack.c.b16 %v5042, %v5041
      %v5076 = vpack.c.b16 %v5044, %v5043
      %v5077 = vpack.c.b16 %v5046, %v5045
      %v5078 = vpack.c.b16 %v5048, %v5047
      %v5079 = vpack.c.b16 %v5050, %v5049
      %v5080 = vpack.c.b16 %v5052, %v5051
      %v5081 = vpack.c.b16 %v5054, %v5053
      %v5082 = vpack.c.b16 %v5056, %v5055
      %v5083 = vpack.c.b16 %v5058, %v5057
      %v5084 = vpack.c.b16 %v5060, %v5059
      %v5085 = vpack.c.b16 %v5062, %v5061
      %v5086 = vpack.c.b16 %v5064, %v5063
      %v5087 = vpack.c.b16 %v5066, %v5065
      %v5088 = vpack.c.b16 %v5068, %v5067
      %v5089 = vpack.c.b16 %v5070, %v5069
      %v5090 = vpack.c.b16 %v5071, %v5071
      %v5091 = vrot.slane %v5072, 3
      %v5092 = vrot.slane %v5073, 3
      %v5093 = vsel %vm4065, %v5091, %v5092
      %v5094 = vrot.slane %v5074, 3
      %v5095 = vsel %vm4065, %v5092, %v5094
      %v5096 = vrot.slane %v5075, 3
      %v5097 = vsel %vm4065, %v5094, %v5096
      %v5098 = vrot.slane %v5076, 3
      %v5099 = vsel %vm4065, %v5096, %v5098
      %v5100 = vrot.slane %v5077, 3
      %v5101 = vsel %vm4065, %v5098, %v5100
      %v5102 = vrot.slane %v5078, 3
      %v5103 = vsel %vm4065, %v5100, %v5102
      %v5104 = vrot.slane %v5079, 3
      %v5105 = vsel %vm4065, %v5102, %v5104
      %v5106 = vrot.slane %v5080, 3
      %v5107 = vsel %vm4065, %v5104, %v5106
      %v5108 = vrot.slane %v5081, 3
      %v5109 = vsel %vm4065, %v5106, %v5108
      %v5110 = vrot.slane %v5082, 3
      %v5111 = vsel %vm4065, %v5108, %v5110
      %v5112 = vrot.slane %v5083, 3
      %v5113 = vsel %vm4065, %v5110, %v5112
      %v5114 = vrot.slane %v5084, 3
      %v5115 = vsel %vm4065, %v5112, %v5114
      %v5116 = vrot.slane %v5085, 3
      %v5117 = vsel %vm4065, %v5114, %v5116
      %v5118 = vrot.slane %v5086, 3
      %v5119 = vsel %vm4065, %v5116, %v5118
      %v5120 = vrot.slane %v5087, 3
      %v5121 = vsel %vm4065, %v5118, %v5120
      %v5122 = vrot.slane %v5088, 3
      %v5123 = vsel %vm4065, %v5120, %v5122
      %v5124 = vrot.slane %v5089, 3
      %v5125 = vsel %vm4065, %v5122, %v5124
      %v5126 = vrot.slane %v5090, 3
      %v5127 = vsel %vm4065, %v5124, %v5126
      %v5129 = vsel %vm1207, %v5093, 0
      %v5132 = vsel %vm1207, %v5095, 0
      %v5135 = vsel %vm1207, %v5097, 0
      %v5138 = vsel %vm1207, %v5099, 0
      %v5141 = vsel %vm1207, %v5101, 0
      %v5144 = vsel %vm1207, %v5103, 0
      %v5147 = vsel %vm1207, %v5105, 0
      %v5150 = vsel %vm1207, %v5107, 0
      %v5153 = vsel %vm1207, %v5109, 0
      %v5156 = vsel %vm1207, %v5111, 0
      %v5159 = vsel %vm1207, %v5113, 0
      %v5162 = vsel %vm1207, %v5115, 0
      %v5165 = vsel %vm1207, %v5117, 0
      %v5168 = vsel %vm1207, %v5119, 0
      %v5171 = vsel %vm1207, %v5121, 0
      %v5174 = vsel %vm1207, %v5123, 0
      %v5177 = vsel %vm1207, %v5125, 0
      %v5180 = vsel %vm1207, %v5127, 0
      %v5183 = vsel %vm1262, %v4997, 0
      %5185 = vmatprep.subr.bf16.mxu0 0
      %5186 = vmatpush1.bf16.msra.mxu0 0
      %5187 = vmatprep.subr.bf16.mxu0 0
      %5188 = vmatpush1.bf16.msra.mxu0 0
      %5189 = vmatprep.subr.bf16.mxu0 0
      %5190 = vmatpush1.bf16.msra.mxu0 0
      %5191 = vmatprep.subr.bf16.mxu0 0
      %5192 = vmatpush1.bf16.msra.mxu0 0
      %5193 = vmatprep.subr.bf16.mxu0 0
      %5194 = vmatpush1.bf16.msra.mxu0 0
      %5195 = vmatprep.subr.bf16.mxu0 0
      %5196 = vmatpush1.bf16.msra.mxu0 0
      %5197 = vmatprep.subr.bf16.mxu0 0
      %5198 = vmatpush1.bf16.msra.mxu0 0
      %5199 = vmatprep.subr.bf16.mxu0 0
      %5200 = vmatpush1.bf16.msra.mxu0 %v5183
      %5201 = vmatprep.subr.bf16.mxu0 0
      %5202 = vmatpush2.bf16.msra.mxu0 0
      %5203 = vmatprep.subr.bf16.mxu0 0
      %5204 = vmatpush2.bf16.msra.mxu0 0
      %5205 = vmatprep.subr.bf16.mxu0 0
      %5206 = vmatpush2.bf16.msra.mxu0 0
      %5207 = vmatprep.subr.bf16.mxu0 0
      %5208 = vmatpush2.bf16.msra.mxu0 0
      %5209 = vmatprep.subr.bf16.mxu0 0
      %5210 = vmatpush2.bf16.msra.mxu0 0
      %5211 = vmatprep.subr.bf16.mxu0 0
      %5212 = vmatpush2.bf16.msra.mxu0 0
      %5213 = vmatprep.subr.bf16.mxu0 0
      %5214 = vmatpush2.bf16.msra.mxu0 0
      %5215 = vmatprep.subr.bf16.mxu0 0
      %5216 = vmatpush2.bf16.msra.mxu0 0
      %5217 = vmatprep.mubr.bf16.mxu0 0
      %5218 = vmatmul.mubr.bf16.gmra.mxu0 %v5129
      %v5219 = vpop.f32.mrf.mxu0
      %v5220 = vadd.f32 0.0, %v5219
      %v5221 = vpop.f32.mrf.mxu0
      %v5222 = vpop.f32.mrf.mxu0
      %v5223 = vadd.f32 0.0, %v5222
      %v5224 = vpop.f32.mrf.mxu0
      %5225 = vmatprep.mubr.bf16.mxu0 0
      %5226 = vmatmul.mubr.bf16.gmra.mxu0 %v5132
      %v5227 = vpop.f32.mrf.mxu0
      %v5228 = vadd.f32 0.0, %v5227
      %v5229 = vpop.f32.mrf.mxu0
      %v5230 = vpop.f32.mrf.mxu0
      %v5231 = vadd.f32 0.0, %v5230
      %v5232 = vpop.f32.mrf.mxu0
      %5233 = vmatprep.mubr.bf16.mxu0 0
      %5234 = vmatmul.mubr.bf16.gmra.mxu0 %v5135
      %v5235 = vpop.f32.mrf.mxu0
      %v5236 = vadd.f32 0.0, %v5235
      %v5237 = vpop.f32.mrf.mxu0
      %v5238 = vpop.f32.mrf.mxu0
      %v5239 = vadd.f32 0.0, %v5238
      %v5240 = vpop.f32.mrf.mxu0
      %5241 = vmatprep.mubr.bf16.mxu0 0
      %5242 = vmatmul.mubr.bf16.gmra.mxu0 %v5138
      %v5243 = vpop.f32.mrf.mxu0
      %v5244 = vadd.f32 0.0, %v5243
      %v5245 = vpop.f32.mrf.mxu0
      %v5246 = vpop.f32.mrf.mxu0
      %v5247 = vadd.f32 0.0, %v5246
      %v5248 = vpop.f32.mrf.mxu0
      %5249 = vmatprep.mubr.bf16.mxu0 0
      %5250 = vmatmul.mubr.bf16.gmra.mxu0 %v5141
      %v5251 = vpop.f32.mrf.mxu0
      %v5252 = vadd.f32 0.0, %v5251
      %v5253 = vpop.f32.mrf.mxu0
      %v5254 = vpop.f32.mrf.mxu0
      %v5255 = vadd.f32 0.0, %v5254
      %v5256 = vpop.f32.mrf.mxu0
      %5257 = vmatprep.mubr.bf16.mxu0 0
      %5258 = vmatmul.mubr.bf16.gmra.mxu0 %v5144
      %v5259 = vpop.f32.mrf.mxu0
      %v5260 = vadd.f32 0.0, %v5259
      %v5261 = vpop.f32.mrf.mxu0
      %v5262 = vpop.f32.mrf.mxu0
      %v5263 = vadd.f32 0.0, %v5262
      %v5264 = vpop.f32.mrf.mxu0
      %5265 = vmatprep.mubr.bf16.mxu0 0
      %5266 = vmatmul.mubr.bf16.gmra.mxu0 %v5147
      %v5267 = vpop.f32.mrf.mxu0
      %v5268 = vadd.f32 0.0, %v5267
      %v5269 = vpop.f32.mrf.mxu0
      %v5270 = vpop.f32.mrf.mxu0
      %v5271 = vadd.f32 0.0, %v5270
      %v5272 = vpop.f32.mrf.mxu0
      %5273 = vmatprep.mubr.bf16.mxu0 0
      %5274 = vmatmul.mubr.bf16.gmra.mxu0 %v5150
      %v5275 = vpop.f32.mrf.mxu0
      %v5276 = vadd.f32 0.0, %v5275
      %v5277 = vpop.f32.mrf.mxu0
      %v5278 = vpop.f32.mrf.mxu0
      %v5279 = vadd.f32 0.0, %v5278
      %v5280 = vpop.f32.mrf.mxu0
      %5281 = vmatprep.mubr.bf16.mxu0 0
      %5282 = vmatmul.mubr.bf16.gmra.mxu0 %v5153
      %v5283 = vpop.f32.mrf.mxu0
      %v5284 = vadd.f32 0.0, %v5283
      %v5285 = vpop.f32.mrf.mxu0
      %v5286 = vpop.f32.mrf.mxu0
      %v5287 = vadd.f32 0.0, %v5286
      %v5288 = vpop.f32.mrf.mxu0
      %5289 = vmatprep.mubr.bf16.mxu0 0
      %5290 = vmatmul.mubr.bf16.gmra.mxu0 %v5156
      %v5291 = vpop.f32.mrf.mxu0
      %v5292 = vadd.f32 0.0, %v5291
      %v5293 = vpop.f32.mrf.mxu0
      %v5294 = vpop.f32.mrf.mxu0
      %v5295 = vadd.f32 0.0, %v5294
      %v5296 = vpop.f32.mrf.mxu0
      %5297 = vmatprep.mubr.bf16.mxu0 0
      %5298 = vmatmul.mubr.bf16.gmra.mxu0 %v5159
      %v5299 = vpop.f32.mrf.mxu0
      %v5300 = vadd.f32 0.0, %v5299
      %v5301 = vpop.f32.mrf.mxu0
      %v5302 = vpop.f32.mrf.mxu0
      %v5303 = vadd.f32 0.0, %v5302
      %v5304 = vpop.f32.mrf.mxu0
      %5305 = vmatprep.mubr.bf16.mxu0 0
      %5306 = vmatmul.mubr.bf16.gmra.mxu0 %v5162
      %v5307 = vpop.f32.mrf.mxu0
      %v5308 = vadd.f32 0.0, %v5307
      %v5309 = vpop.f32.mrf.mxu0
      %v5310 = vpop.f32.mrf.mxu0
      %v5311 = vadd.f32 0.0, %v5310
      %v5312 = vpop.f32.mrf.mxu0
      %5313 = vmatprep.mubr.bf16.mxu0 0
      %5314 = vmatmul.mubr.bf16.gmra.mxu0 %v5165
      %v5315 = vpop.f32.mrf.mxu0
      %v5316 = vadd.f32 0.0, %v5315
      %v5317 = vpop.f32.mrf.mxu0
      %v5318 = vpop.f32.mrf.mxu0
      %v5319 = vadd.f32 0.0, %v5318
      %v5320 = vpop.f32.mrf.mxu0
      %5321 = vmatprep.mubr.bf16.mxu0 0
      %5322 = vmatmul.mubr.bf16.gmra.mxu0 %v5168
      %v5323 = vpop.f32.mrf.mxu0
      %v5324 = vadd.f32 0.0, %v5323
      %v5325 = vpop.f32.mrf.mxu0
      %v5326 = vpop.f32.mrf.mxu0
      %v5327 = vadd.f32 0.0, %v5326
      %v5328 = vpop.f32.mrf.mxu0
      %5329 = vmatprep.mubr.bf16.mxu0 0
      %5330 = vmatmul.mubr.bf16.gmra.mxu0 %v5171
      %v5331 = vpop.f32.mrf.mxu0
      %v5332 = vadd.f32 0.0, %v5331
      %v5333 = vpop.f32.mrf.mxu0
      %v5334 = vpop.f32.mrf.mxu0
      %v5335 = vadd.f32 0.0, %v5334
      %v5336 = vpop.f32.mrf.mxu0
      %5337 = vmatprep.mubr.bf16.mxu0 0
      %5338 = vmatmul.mubr.bf16.gmra.mxu0 %v5174
      %v5339 = vpop.f32.mrf.mxu0
      %v5340 = vadd.f32 0.0, %v5339
      %v5341 = vpop.f32.mrf.mxu0
      %v5342 = vpop.f32.mrf.mxu0
      %v5343 = vadd.f32 0.0, %v5342
      %v5344 = vpop.f32.mrf.mxu0
      %5345 = vmatprep.mubr.bf16.mxu0 0
      %5346 = vmatmul.mubr.bf16.gmra.mxu0 %v5177
      %v5347 = vpop.f32.mrf.mxu0
      %v5348 = vadd.f32 0.0, %v5347
      %v5349 = vpop.f32.mrf.mxu0
      %v5350 = vpop.f32.mrf.mxu0
      %v5351 = vadd.f32 0.0, %v5350
      %v5352 = vpop.f32.mrf.mxu0
      %5353 = vmatprep.mubr.bf16.mxu0 0
      %5354 = vmatmul.mubr.bf16.gmra.mxu0 %v5180
      %v5355 = vpop.f32.mrf.mxu0
      %v5356 = vadd.f32 0.0, %v5355
      %v5357 = vpop.f32.mrf.mxu0
      %v5358 = vpop.f32.mrf.mxu0
      %v5359 = vadd.f32 0.0, %v5358
      %v5360 = vpop.f32.mrf.mxu0
      %5361 = vdwg.mxu0
      %v5363 = vunpack.c.l.b16 %v4957
      %v5364 = vpack.c.b16 %v5036, %v5363
      %v5366 = vshrl.u32 %v5364, 16
      %v5368 = vrot.slane %v5366, 2
      %v5369 = vshll.u32 %v5364, 16
      %v5371 = vrot.slane %v5369, 3
      %v5372 = vor.u32 %v5368, %v5371
      %v5374 = vshrl.u32 %v5073, 16
      %v5376 = vrot.slane %v5374, 2
      %v5377 = vshll.u32 %v5073, 16
      %v5379 = vrot.slane %v5377, 3
      %v5380 = vor.u32 %v5376, %v5379
      %v5381 = vsel %vm3618, %v5372, %v5380
      %v5383 = vshrl.u32 %v5074, 16
      %v5385 = vrot.slane %v5383, 2
      %v5386 = vshll.u32 %v5074, 16
      %v5388 = vrot.slane %v5386, 3
      %v5389 = vor.u32 %v5385, %v5388
      %v5390 = vsel %vm3618, %v5380, %v5389
      %v5392 = vshrl.u32 %v5075, 16
      %v5394 = vrot.slane %v5392, 2
      %v5395 = vshll.u32 %v5075, 16
      %v5397 = vrot.slane %v5395, 3
      %v5398 = vor.u32 %v5394, %v5397
      %v5399 = vsel %vm3618, %v5389, %v5398
      %v5401 = vshrl.u32 %v5076, 16
      %v5403 = vrot.slane %v5401, 2
      %v5404 = vshll.u32 %v5076, 16
      %v5406 = vrot.slane %v5404, 3
      %v5407 = vor.u32 %v5403, %v5406
      %v5408 = vsel %vm3618, %v5398, %v5407
      %v5410 = vshrl.u32 %v5077, 16
      %v5412 = vrot.slane %v5410, 2
      %v5413 = vshll.u32 %v5077, 16
      %v5415 = vrot.slane %v5413, 3
      %v5416 = vor.u32 %v5412, %v5415
      %v5417 = vsel %vm3618, %v5407, %v5416
      %v5419 = vshrl.u32 %v5078, 16
      %v5421 = vrot.slane %v5419, 2
      %v5422 = vshll.u32 %v5078, 16
      %v5424 = vrot.slane %v5422, 3
      %v5425 = vor.u32 %v5421, %v5424
      %v5426 = vsel %vm3618, %v5416, %v5425
      %v5428 = vshrl.u32 %v5079, 16
      %v5430 = vrot.slane %v5428, 2
      %v5431 = vshll.u32 %v5079, 16
      %v5433 = vrot.slane %v5431, 3
      %v5434 = vor.u32 %v5430, %v5433
      %v5435 = vsel %vm3618, %v5425, %v5434
      %v5437 = vshrl.u32 %v5080, 16
      %v5439 = vrot.slane %v5437, 2
      %v5440 = vshll.u32 %v5080, 16
      %v5442 = vrot.slane %v5440, 3
      %v5443 = vor.u32 %v5439, %v5442
      %v5444 = vsel %vm3618, %v5434, %v5443
      %v5446 = vshrl.u32 %v5081, 16
      %v5448 = vrot.slane %v5446, 2
      %v5449 = vshll.u32 %v5081, 16
      %v5451 = vrot.slane %v5449, 3
      %v5452 = vor.u32 %v5448, %v5451
      %v5453 = vsel %vm3618, %v5443, %v5452
      %v5455 = vshrl.u32 %v5082, 16
      %v5457 = vrot.slane %v5455, 2
      %v5458 = vshll.u32 %v5082, 16
      %v5460 = vrot.slane %v5458, 3
      %v5461 = vor.u32 %v5457, %v5460
      %v5462 = vsel %vm3618, %v5452, %v5461
      %v5464 = vshrl.u32 %v5083, 16
      %v5466 = vrot.slane %v5464, 2
      %v5467 = vshll.u32 %v5083, 16
      %v5469 = vrot.slane %v5467, 3
      %v5470 = vor.u32 %v5466, %v5469
      %v5471 = vsel %vm3618, %v5461, %v5470
      %v5473 = vshrl.u32 %v5084, 16
      %v5475 = vrot.slane %v5473, 2
      %v5476 = vshll.u32 %v5084, 16
      %v5478 = vrot.slane %v5476, 3
      %v5479 = vor.u32 %v5475, %v5478
      %v5480 = vsel %vm3618, %v5470, %v5479
      %v5482 = vshrl.u32 %v5085, 16
      %v5484 = vrot.slane %v5482, 2
      %v5485 = vshll.u32 %v5085, 16
      %v5487 = vrot.slane %v5485, 3
      %v5488 = vor.u32 %v5484, %v5487
      %v5489 = vsel %vm3618, %v5479, %v5488
      %v5491 = vshrl.u32 %v5086, 16
      %v5493 = vrot.slane %v5491, 2
      %v5494 = vshll.u32 %v5086, 16
      %v5496 = vrot.slane %v5494, 3
      %v5497 = vor.u32 %v5493, %v5496
      %v5498 = vsel %vm3618, %v5488, %v5497
      %v5500 = vshrl.u32 %v5087, 16
      %v5502 = vrot.slane %v5500, 2
      %v5503 = vshll.u32 %v5087, 16
      %v5505 = vrot.slane %v5503, 3
      %v5506 = vor.u32 %v5502, %v5505
      %v5507 = vsel %vm3618, %v5497, %v5506
      %v5509 = vshrl.u32 %v5088, 16
      %v5511 = vrot.slane %v5509, 2
      %v5512 = vshll.u32 %v5088, 16
      %v5514 = vrot.slane %v5512, 3
      %v5515 = vor.u32 %v5511, %v5514
      %v5516 = vsel %vm3618, %v5506, %v5515
      %v5518 = vshrl.u32 %v5089, 16
      %v5520 = vrot.slane %v5518, 2
      %v5521 = vshll.u32 %v5089, 16
      %v5523 = vrot.slane %v5521, 3
      %v5524 = vor.u32 %v5520, %v5523
      %v5525 = vsel %vm3618, %v5515, %v5524
      %v5527 = vshrl.u32 %v5090, 16
      %v5529 = vrot.slane %v5527, 2
      %v5530 = vshll.u32 %v5090, 16
      %v5532 = vrot.slane %v5530, 3
      %v5533 = vor.u32 %v5529, %v5532
      %v5534 = vsel %vm3618, %v5524, %v5533
      %v5536 = vsel %vm1207, %v5381, 0
      %v5539 = vsel %vm1207, %v5390, 0
      %v5542 = vsel %vm1207, %v5399, 0
      %v5545 = vsel %vm1207, %v5408, 0
      %v5548 = vsel %vm1207, %v5417, 0
      %v5551 = vsel %vm1207, %v5426, 0
      %v5554 = vsel %vm1207, %v5435, 0
      %v5557 = vsel %vm1207, %v5444, 0
      %v5560 = vsel %vm1207, %v5453, 0
      %v5563 = vsel %vm1207, %v5462, 0
      %v5566 = vsel %vm1207, %v5471, 0
      %v5569 = vsel %vm1207, %v5480, 0
      %v5572 = vsel %vm1207, %v5489, 0
      %v5575 = vsel %vm1207, %v5498, 0
      %v5578 = vsel %vm1207, %v5507, 0
      %v5581 = vsel %vm1207, %v5516, 0
      %v5584 = vsel %vm1207, %v5525, 0
      %v5587 = vsel %vm1207, %v5534, 0
      %v5590 = vsel %vm1262, %v4994, 0
      %5592 = vmatprep.subr.bf16.mxu0 0
      %5593 = vmatpush1.bf16.msra.mxu0 0
      %5594 = vmatprep.subr.bf16.mxu0 0
      %5595 = vmatpush1.bf16.msra.mxu0 0
      %5596 = vmatprep.subr.bf16.mxu0 0
      %5597 = vmatpush1.bf16.msra.mxu0 0
      %5598 = vmatprep.subr.bf16.mxu0 0
      %5599 = vmatpush1.bf16.msra.mxu0 0
      %5600 = vmatprep.subr.bf16.mxu0 0
      %5601 = vmatpush1.bf16.msra.mxu0 0
      %5602 = vmatprep.subr.bf16.mxu0 0
      %5603 = vmatpush1.bf16.msra.mxu0 0
      %5604 = vmatprep.subr.bf16.mxu0 0
      %5605 = vmatpush1.bf16.msra.mxu0 0
      %5606 = vmatprep.subr.bf16.mxu0 0
      %5607 = vmatpush1.bf16.msra.mxu0 %v5590
      %5608 = vmatprep.subr.bf16.mxu0 0
      %5609 = vmatpush2.bf16.msra.mxu0 0
      %5610 = vmatprep.subr.bf16.mxu0 0
      %5611 = vmatpush2.bf16.msra.mxu0 0
      %5612 = vmatprep.subr.bf16.mxu0 0
      %5613 = vmatpush2.bf16.msra.mxu0 0
      %5614 = vmatprep.subr.bf16.mxu0 0
      %5615 = vmatpush2.bf16.msra.mxu0 0
      %5616 = vmatprep.subr.bf16.mxu0 0
      %5617 = vmatpush2.bf16.msra.mxu0 0
      %5618 = vmatprep.subr.bf16.mxu0 0
      %5619 = vmatpush2.bf16.msra.mxu0 0
      %5620 = vmatprep.subr.bf16.mxu0 0
      %5621 = vmatpush2.bf16.msra.mxu0 0
      %5622 = vmatprep.subr.bf16.mxu0 0
      %5623 = vmatpush2.bf16.msra.mxu0 0
      %5624 = vmatprep.mubr.bf16.mxu0 0
      %5625 = vmatmul.mubr.bf16.gmra.mxu0 %v5536
      %v5626 = vpop.f32.mrf.mxu0
      %v5627 = vadd.f32 %v5220, %v5626
      %v5628 = vpop.f32.mrf.mxu0
      %v5629 = vpop.f32.mrf.mxu0
      %v5630 = vadd.f32 %v5223, %v5629
      %v5631 = vpop.f32.mrf.mxu0
      %5632 = vmatprep.mubr.bf16.mxu0 0
      %5633 = vmatmul.mubr.bf16.gmra.mxu0 %v5539
      %v5634 = vpop.f32.mrf.mxu0
      %v5635 = vadd.f32 %v5228, %v5634
      %v5636 = vpop.f32.mrf.mxu0
      %v5637 = vpop.f32.mrf.mxu0
      %v5638 = vadd.f32 %v5231, %v5637
      %v5639 = vpop.f32.mrf.mxu0
      %5640 = vmatprep.mubr.bf16.mxu0 0
      %5641 = vmatmul.mubr.bf16.gmra.mxu0 %v5542
      %v5642 = vpop.f32.mrf.mxu0
      %v5643 = vadd.f32 %v5236, %v5642
      %v5644 = vpop.f32.mrf.mxu0
      %v5645 = vpop.f32.mrf.mxu0
      %v5646 = vadd.f32 %v5239, %v5645
      %v5647 = vpop.f32.mrf.mxu0
      %5648 = vmatprep.mubr.bf16.mxu0 0
      %5649 = vmatmul.mubr.bf16.gmra.mxu0 %v5545
      %v5650 = vpop.f32.mrf.mxu0
      %v5651 = vadd.f32 %v5244, %v5650
      %v5652 = vpop.f32.mrf.mxu0
      %v5653 = vpop.f32.mrf.mxu0
      %v5654 = vadd.f32 %v5247, %v5653
      %v5655 = vpop.f32.mrf.mxu0
      %5656 = vmatprep.mubr.bf16.mxu0 0
      %5657 = vmatmul.mubr.bf16.gmra.mxu0 %v5548
      %v5658 = vpop.f32.mrf.mxu0
      %v5659 = vadd.f32 %v5252, %v5658
      %v5660 = vpop.f32.mrf.mxu0
      %v5661 = vpop.f32.mrf.mxu0
      %v5662 = vadd.f32 %v5255, %v5661
      %v5663 = vpop.f32.mrf.mxu0
      %5664 = vmatprep.mubr.bf16.mxu0 0
      %5665 = vmatmul.mubr.bf16.gmra.mxu0 %v5551
      %v5666 = vpop.f32.mrf.mxu0
      %v5667 = vadd.f32 %v5260, %v5666
      %v5668 = vpop.f32.mrf.mxu0
      %v5669 = vpop.f32.mrf.mxu0
      %v5670 = vadd.f32 %v5263, %v5669
      %v5671 = vpop.f32.mrf.mxu0
      %5672 = vmatprep.mubr.bf16.mxu0 0
      %5673 = vmatmul.mubr.bf16.gmra.mxu0 %v5554
      %v5674 = vpop.f32.mrf.mxu0
      %v5675 = vadd.f32 %v5268, %v5674
      %v5676 = vpop.f32.mrf.mxu0
      %v5677 = vpop.f32.mrf.mxu0
      %v5678 = vadd.f32 %v5271, %v5677
      %v5679 = vpop.f32.mrf.mxu0
      %5680 = vmatprep.mubr.bf16.mxu0 0
      %5681 = vmatmul.mubr.bf16.gmra.mxu0 %v5557
      %v5682 = vpop.f32.mrf.mxu0
      %v5683 = vadd.f32 %v5276, %v5682
      %v5684 = vpop.f32.mrf.mxu0
      %v5685 = vpop.f32.mrf.mxu0
      %v5686 = vadd.f32 %v5279, %v5685
      %v5687 = vpop.f32.mrf.mxu0
      %5688 = vmatprep.mubr.bf16.mxu0 0
      %5689 = vmatmul.mubr.bf16.gmra.mxu0 %v5560
      %v5690 = vpop.f32.mrf.mxu0
      %v5691 = vadd.f32 %v5284, %v5690
      %v5692 = vpop.f32.mrf.mxu0
      %v5693 = vpop.f32.mrf.mxu0
      %v5694 = vadd.f32 %v5287, %v5693
      %v5695 = vpop.f32.mrf.mxu0
      %5696 = vmatprep.mubr.bf16.mxu0 0
      %5697 = vmatmul.mubr.bf16.gmra.mxu0 %v5563
      %v5698 = vpop.f32.mrf.mxu0
      %v5699 = vadd.f32 %v5292, %v5698
      %v5700 = vpop.f32.mrf.mxu0
      %v5701 = vpop.f32.mrf.mxu0
      %v5702 = vadd.f32 %v5295, %v5701
      %v5703 = vpop.f32.mrf.mxu0
      %5704 = vmatprep.mubr.bf16.mxu0 0
      %5705 = vmatmul.mubr.bf16.gmra.mxu0 %v5566
      %v5706 = vpop.f32.mrf.mxu0
      %v5707 = vadd.f32 %v5300, %v5706
      %v5708 = vpop.f32.mrf.mxu0
      %v5709 = vpop.f32.mrf.mxu0
      %v5710 = vadd.f32 %v5303, %v5709
      %v5711 = vpop.f32.mrf.mxu0
      %5712 = vmatprep.mubr.bf16.mxu0 0
      %5713 = vmatmul.mubr.bf16.gmra.mxu0 %v5569
      %v5714 = vpop.f32.mrf.mxu0
      %v5715 = vadd.f32 %v5308, %v5714
      %v5716 = vpop.f32.mrf.mxu0
      %v5717 = vpop.f32.mrf.mxu0
      %v5718 = vadd.f32 %v5311, %v5717
      %v5719 = vpop.f32.mrf.mxu0
      %5720 = vmatprep.mubr.bf16.mxu0 0
      %5721 = vmatmul.mubr.bf16.gmra.mxu0 %v5572
      %v5722 = vpop.f32.mrf.mxu0
      %v5723 = vadd.f32 %v5316, %v5722
      %v5724 = vpop.f32.mrf.mxu0
      %v5725 = vpop.f32.mrf.mxu0
      %v5726 = vadd.f32 %v5319, %v5725
      %v5727 = vpop.f32.mrf.mxu0
      %5728 = vmatprep.mubr.bf16.mxu0 0
      %5729 = vmatmul.mubr.bf16.gmra.mxu0 %v5575
      %v5730 = vpop.f32.mrf.mxu0
      %v5731 = vadd.f32 %v5324, %v5730
      %v5732 = vpop.f32.mrf.mxu0
      %v5733 = vpop.f32.mrf.mxu0
      %v5734 = vadd.f32 %v5327, %v5733
      %v5735 = vpop.f32.mrf.mxu0
      %5736 = vmatprep.mubr.bf16.mxu0 0
      %5737 = vmatmul.mubr.bf16.gmra.mxu0 %v5578
      %v5738 = vpop.f32.mrf.mxu0
      %v5739 = vadd.f32 %v5332, %v5738
      %v5740 = vpop.f32.mrf.mxu0
      %v5741 = vpop.f32.mrf.mxu0
      %v5742 = vadd.f32 %v5335, %v5741
      %v5743 = vpop.f32.mrf.mxu0
      %5744 = vmatprep.mubr.bf16.mxu0 0
      %5745 = vmatmul.mubr.bf16.gmra.mxu0 %v5581
      %v5746 = vpop.f32.mrf.mxu0
      %v5747 = vadd.f32 %v5340, %v5746
      %v5748 = vpop.f32.mrf.mxu0
      %v5749 = vpop.f32.mrf.mxu0
      %v5750 = vadd.f32 %v5343, %v5749
      %v5751 = vpop.f32.mrf.mxu0
      %5752 = vmatprep.mubr.bf16.mxu0 0
      %5753 = vmatmul.mubr.bf16.gmra.mxu0 %v5584
      %v5754 = vpop.f32.mrf.mxu0
      %v5755 = vadd.f32 %v5348, %v5754
      %v5756 = vpop.f32.mrf.mxu0
      %v5757 = vpop.f32.mrf.mxu0
      %v5758 = vadd.f32 %v5351, %v5757
      %v5759 = vpop.f32.mrf.mxu0
      %5760 = vmatprep.mubr.bf16.mxu0 0
      %5761 = vmatmul.mubr.bf16.gmra.mxu0 %v5587
      %v5762 = vpop.f32.mrf.mxu0
      %v5763 = vadd.f32 %v5356, %v5762
      %v5764 = vpop.f32.mrf.mxu0
      %v5765 = vpop.f32.mrf.mxu0
      %v5766 = vadd.f32 %v5359, %v5765
      %v5767 = vpop.f32.mrf.mxu0
      %5768 = vdwg.mxu0
      %v5769 = vld [vmem:[#allocation2 + $0x94] sm:$0xf]
      %s5770 = scalar_lea.vmem %s3, 2
      %v5771 = vld [vmem:[%s5770] sm:$0x1]
      %v5773 = vunpack.c.l.b16 %v5769
      %v5774 = vpack.c.b16 %v5773, %v5773
      %vm5775 = vsmask.f32 4352
      %v5777 = vshrl.u32 %v5072, 16
      %v5779 = vrot.slane %v5777, 3
      %v5780 = vshll.u32 %v5072, 16
      %v5782 = vrot.slane %v5780, 4
      %v5783 = vor.u32 %v5779, %v5782
      %v5784 = vrot.slane %v5374, 3
      %v5785 = vrot.slane %v5377, 4
      %v5786 = vor.u32 %v5784, %v5785
      %v5787 = vsel %vm5775, %v5783, %v5786
      %v5788 = vrot.slane %v5383, 3
      %v5789 = vrot.slane %v5386, 4
      %v5790 = vor.u32 %v5788, %v5789
      %v5791 = vsel %vm5775, %v5786, %v5790
      %v5792 = vrot.slane %v5392, 3
      %v5793 = vrot.slane %v5395, 4
      %v5794 = vor.u32 %v5792, %v5793
      %v5795 = vsel %vm5775, %v5790, %v5794
      %v5796 = vrot.slane %v5401, 3
      %v5797 = vrot.slane %v5404, 4
      %v5798 = vor.u32 %v5796, %v5797
      %v5799 = vsel %vm5775, %v5794, %v5798
      %v5800 = vrot.slane %v5410, 3
      %v5801 = vrot.slane %v5413, 4
      %v5802 = vor.u32 %v5800, %v5801
      %v5803 = vsel %vm5775, %v5798, %v5802
      %v5804 = vrot.slane %v5419, 3
      %v5805 = vrot.slane %v5422, 4
      %v5806 = vor.u32 %v5804, %v5805
      %v5807 = vsel %vm5775, %v5802, %v5806
      %v5808 = vrot.slane %v5428, 3
      %v5809 = vrot.slane %v5431, 4
      %v5810 = vor.u32 %v5808, %v5809
      %v5811 = vsel %vm5775, %v5806, %v5810
      %v5812 = vrot.slane %v5437, 3
      %v5813 = vrot.slane %v5440, 4
      %v5814 = vor.u32 %v5812, %v5813
      %v5815 = vsel %vm5775, %v5810, %v5814
      %v5816 = vrot.slane %v5446, 3
      %v5817 = vrot.slane %v5449, 4
      %v5818 = vor.u32 %v5816, %v5817
      %v5819 = vsel %vm5775, %v5814, %v5818
      %v5820 = vrot.slane %v5455, 3
      %v5821 = vrot.slane %v5458, 4
      %v5822 = vor.u32 %v5820, %v5821
      %v5823 = vsel %vm5775, %v5818, %v5822
      %v5824 = vrot.slane %v5464, 3
      %v5825 = vrot.slane %v5467, 4
      %v5826 = vor.u32 %v5824, %v5825
      %v5827 = vsel %vm5775, %v5822, %v5826
      %v5828 = vrot.slane %v5473, 3
      %v5829 = vrot.slane %v5476, 4
      %v5830 = vor.u32 %v5828, %v5829
      %v5831 = vsel %vm5775, %v5826, %v5830
      %v5832 = vrot.slane %v5482, 3
      %v5833 = vrot.slane %v5485, 4
      %v5834 = vor.u32 %v5832, %v5833
      %v5835 = vsel %vm5775, %v5830, %v5834
      %v5836 = vrot.slane %v5491, 3
      %v5837 = vrot.slane %v5494, 4
      %v5838 = vor.u32 %v5836, %v5837
      %v5839 = vsel %vm5775, %v5834, %v5838
      %v5840 = vrot.slane %v5500, 3
      %v5841 = vrot.slane %v5503, 4
      %v5842 = vor.u32 %v5840, %v5841
      %v5843 = vsel %vm5775, %v5838, %v5842
      %v5844 = vrot.slane %v5509, 3
      %v5845 = vrot.slane %v5512, 4
      %v5846 = vor.u32 %v5844, %v5845
      %v5847 = vsel %vm5775, %v5842, %v5846
      %v5848 = vrot.slane %v5518, 3
      %v5849 = vrot.slane %v5521, 4
      %v5850 = vor.u32 %v5848, %v5849
      %v5851 = vsel %vm5775, %v5846, %v5850
      %v5853 = vshrl.u32 %v5774, 16
      %v5855 = vrot.slane %v5853, 3
      %v5856 = vshll.u32 %v5774, 16
      %v5858 = vrot.slane %v5856, 4
      %v5859 = vor.u32 %v5855, %v5858
      %v5860 = vsel %vm5775, %v5850, %v5859
      %v5862 = vsel %vm1207, %v5787, 0
      %v5865 = vsel %vm1207, %v5791, 0
      %v5868 = vsel %vm1207, %v5795, 0
      %v5871 = vsel %vm1207, %v5799, 0
      %v5874 = vsel %vm1207, %v5803, 0
      %v5877 = vsel %vm1207, %v5807, 0
      %v5880 = vsel %vm1207, %v5811, 0
      %v5883 = vsel %vm1207, %v5815, 0
      %v5886 = vsel %vm1207, %v5819, 0
      %v5889 = vsel %vm1207, %v5823, 0
      %v5892 = vsel %vm1207, %v5827, 0
      %v5895 = vsel %vm1207, %v5831, 0
      %v5898 = vsel %vm1207, %v5835, 0
      %v5901 = vsel %vm1207, %v5839, 0
      %v5904 = vsel %vm1207, %v5843, 0
      %v5907 = vsel %vm1207, %v5847, 0
      %v5910 = vsel %vm1207, %v5851, 0
      %v5913 = vsel %vm1207, %v5860, 0
      %v5916 = vsel %vm1262, %v5771, 0
      %5918 = vmatprep.subr.bf16.mxu0 0
      %5919 = vmatpush1.bf16.msra.mxu0 0
      %5920 = vmatprep.subr.bf16.mxu0 0
      %5921 = vmatpush1.bf16.msra.mxu0 0
      %5922 = vmatprep.subr.bf16.mxu0 0
      %5923 = vmatpush1.bf16.msra.mxu0 0
      %5924 = vmatprep.subr.bf16.mxu0 0
      %5925 = vmatpush1.bf16.msra.mxu0 0
      %5926 = vmatprep.subr.bf16.mxu0 0
      %5927 = vmatpush1.bf16.msra.mxu0 0
      %5928 = vmatprep.subr.bf16.mxu0 0
      %5929 = vmatpush1.bf16.msra.mxu0 0
      %5930 = vmatprep.subr.bf16.mxu0 0
      %5931 = vmatpush1.bf16.msra.mxu0 0
      %5932 = vmatprep.subr.bf16.mxu0 0
      %5933 = vmatpush1.bf16.msra.mxu0 %v5916
      %5934 = vmatprep.subr.bf16.mxu0 0
      %5935 = vmatpush2.bf16.msra.mxu0 0
      %5936 = vmatprep.subr.bf16.mxu0 0
      %5937 = vmatpush2.bf16.msra.mxu0 0
      %5938 = vmatprep.subr.bf16.mxu0 0
      %5939 = vmatpush2.bf16.msra.mxu0 0
      %5940 = vmatprep.subr.bf16.mxu0 0
      %5941 = vmatpush2.bf16.msra.mxu0 0
      %5942 = vmatprep.subr.bf16.mxu0 0
      %5943 = vmatpush2.bf16.msra.mxu0 0
      %5944 = vmatprep.subr.bf16.mxu0 0
      %5945 = vmatpush2.bf16.msra.mxu0 0
      %5946 = vmatprep.subr.bf16.mxu0 0
      %5947 = vmatpush2.bf16.msra.mxu0 0
      %5948 = vmatprep.subr.bf16.mxu0 0
      %5949 = vmatpush2.bf16.msra.mxu0 0
      %5950 = vmatprep.mubr.bf16.mxu0 0
      %5951 = vmatmul.mubr.bf16.gmra.mxu0 %v5862
      %v5952 = vpop.f32.mrf.mxu0
      %v5953 = vadd.f32 0.0, %v5952
      %v5954 = vpop.f32.mrf.mxu0
      %v5955 = vpop.f32.mrf.mxu0
      %v5956 = vadd.f32 0.0, %v5955
      %v5957 = vpop.f32.mrf.mxu0
      %5958 = vmatprep.mubr.bf16.mxu0 0
      %5959 = vmatmul.mubr.bf16.gmra.mxu0 %v5865
      %v5960 = vpop.f32.mrf.mxu0
      %v5961 = vadd.f32 0.0, %v5960
      %v5962 = vpop.f32.mrf.mxu0
      %v5963 = vpop.f32.mrf.mxu0
      %v5964 = vadd.f32 0.0, %v5963
      %v5965 = vpop.f32.mrf.mxu0
      %5966 = vmatprep.mubr.bf16.mxu0 0
      %5967 = vmatmul.mubr.bf16.gmra.mxu0 %v5868
      %v5968 = vpop.f32.mrf.mxu0
      %v5969 = vadd.f32 0.0, %v5968
      %v5970 = vpop.f32.mrf.mxu0
      %v5971 = vpop.f32.mrf.mxu0
      %v5972 = vadd.f32 0.0, %v5971
      %v5973 = vpop.f32.mrf.mxu0
      %5974 = vmatprep.mubr.bf16.mxu0 0
      %5975 = vmatmul.mubr.bf16.gmra.mxu0 %v5871
      %v5976 = vpop.f32.mrf.mxu0
      %v5977 = vadd.f32 0.0, %v5976
      %v5978 = vpop.f32.mrf.mxu0
      %v5979 = vpop.f32.mrf.mxu0
      %v5980 = vadd.f32 0.0, %v5979
      %v5981 = vpop.f32.mrf.mxu0
      %5982 = vmatprep.mubr.bf16.mxu0 0
      %5983 = vmatmul.mubr.bf16.gmra.mxu0 %v5874
      %v5984 = vpop.f32.mrf.mxu0
      %v5985 = vadd.f32 0.0, %v5984
      %v5986 = vpop.f32.mrf.mxu0
      %v5987 = vpop.f32.mrf.mxu0
      %v5988 = vadd.f32 0.0, %v5987
      %v5989 = vpop.f32.mrf.mxu0
      %5990 = vmatprep.mubr.bf16.mxu0 0
      %5991 = vmatmul.mubr.bf16.gmra.mxu0 %v5877
      %v5992 = vpop.f32.mrf.mxu0
      %v5993 = vadd.f32 0.0, %v5992
      %v5994 = vpop.f32.mrf.mxu0
      %v5995 = vpop.f32.mrf.mxu0
      %v5996 = vadd.f32 0.0, %v5995
      %v5997 = vpop.f32.mrf.mxu0
      %5998 = vmatprep.mubr.bf16.mxu0 0
      %5999 = vmatmul.mubr.bf16.gmra.mxu0 %v5880
      %v6000 = vpop.f32.mrf.mxu0
      %v6001 = vadd.f32 0.0, %v6000
      %v6002 = vpop.f32.mrf.mxu0
      %v6003 = vpop.f32.mrf.mxu0
      %v6004 = vadd.f32 0.0, %v6003
      %v6005 = vpop.f32.mrf.mxu0
      %6006 = vmatprep.mubr.bf16.mxu0 0
      %6007 = vmatmul.mubr.bf16.gmra.mxu0 %v5883
      %v6008 = vpop.f32.mrf.mxu0
      %v6009 = vadd.f32 0.0, %v6008
      %v6010 = vpop.f32.mrf.mxu0
      %v6011 = vpop.f32.mrf.mxu0
      %v6012 = vadd.f32 0.0, %v6011
      %v6013 = vpop.f32.mrf.mxu0
      %6014 = vmatprep.mubr.bf16.mxu0 0
      %6015 = vmatmul.mubr.bf16.gmra.mxu0 %v5886
      %v6016 = vpop.f32.mrf.mxu0
      %v6017 = vadd.f32 0.0, %v6016
      %v6018 = vpop.f32.mrf.mxu0
      %v6019 = vpop.f32.mrf.mxu0
      %v6020 = vadd.f32 0.0, %v6019
      %v6021 = vpop.f32.mrf.mxu0
      %6022 = vmatprep.mubr.bf16.mxu0 0
      %6023 = vmatmul.mubr.bf16.gmra.mxu0 %v5889
      %v6024 = vpop.f32.mrf.mxu0
      %v6025 = vadd.f32 0.0, %v6024
      %v6026 = vpop.f32.mrf.mxu0
      %v6027 = vpop.f32.mrf.mxu0
      %v6028 = vadd.f32 0.0, %v6027
      %v6029 = vpop.f32.mrf.mxu0
      %6030 = vmatprep.mubr.bf16.mxu0 0
      %6031 = vmatmul.mubr.bf16.gmra.mxu0 %v5892
      %v6032 = vpop.f32.mrf.mxu0
      %v6033 = vadd.f32 0.0, %v6032
      %v6034 = vpop.f32.mrf.mxu0
      %v6035 = vpop.f32.mrf.mxu0
      %v6036 = vadd.f32 0.0, %v6035
      %v6037 = vpop.f32.mrf.mxu0
      %6038 = vmatprep.mubr.bf16.mxu0 0
      %6039 = vmatmul.mubr.bf16.gmra.mxu0 %v5895
      %v6040 = vpop.f32.mrf.mxu0
      %v6041 = vadd.f32 0.0, %v6040
      %v6042 = vpop.f32.mrf.mxu0
      %v6043 = vpop.f32.mrf.mxu0
      %v6044 = vadd.f32 0.0, %v6043
      %v6045 = vpop.f32.mrf.mxu0
      %6046 = vmatprep.mubr.bf16.mxu0 0
      %6047 = vmatmul.mubr.bf16.gmra.mxu0 %v5898
      %v6048 = vpop.f32.mrf.mxu0
      %v6049 = vadd.f32 0.0, %v6048
      %v6050 = vpop.f32.mrf.mxu0
      %v6051 = vpop.f32.mrf.mxu0
      %v6052 = vadd.f32 0.0, %v6051
      %v6053 = vpop.f32.mrf.mxu0
      %6054 = vmatprep.mubr.bf16.mxu0 0
      %6055 = vmatmul.mubr.bf16.gmra.mxu0 %v5901
      %v6056 = vpop.f32.mrf.mxu0
      %v6057 = vadd.f32 0.0, %v6056
      %v6058 = vpop.f32.mrf.mxu0
      %v6059 = vpop.f32.mrf.mxu0
      %v6060 = vadd.f32 0.0, %v6059
      %v6061 = vpop.f32.mrf.mxu0
      %6062 = vmatprep.mubr.bf16.mxu0 0
      %6063 = vmatmul.mubr.bf16.gmra.mxu0 %v5904
      %v6064 = vpop.f32.mrf.mxu0
      %v6065 = vadd.f32 0.0, %v6064
      %v6066 = vpop.f32.mrf.mxu0
      %v6067 = vpop.f32.mrf.mxu0
      %v6068 = vadd.f32 0.0, %v6067
      %v6069 = vpop.f32.mrf.mxu0
      %6070 = vmatprep.mubr.bf16.mxu0 0
      %6071 = vmatmul.mubr.bf16.gmra.mxu0 %v5907
      %v6072 = vpop.f32.mrf.mxu0
      %v6073 = vadd.f32 0.0, %v6072
      %v6074 = vpop.f32.mrf.mxu0
      %v6075 = vpop.f32.mrf.mxu0
      %v6076 = vadd.f32 0.0, %v6075
      %v6077 = vpop.f32.mrf.mxu0
      %6078 = vmatprep.mubr.bf16.mxu0 0
      %6079 = vmatmul.mubr.bf16.gmra.mxu0 %v5910
      %v6080 = vpop.f32.mrf.mxu0
      %v6081 = vadd.f32 0.0, %v6080
      %v6082 = vpop.f32.mrf.mxu0
      %v6083 = vpop.f32.mrf.mxu0
      %v6084 = vadd.f32 0.0, %v6083
      %v6085 = vpop.f32.mrf.mxu0
      %6086 = vmatprep.mubr.bf16.mxu0 0
      %6087 = vmatmul.mubr.bf16.gmra.mxu0 %v5913
      %v6088 = vpop.f32.mrf.mxu0
      %v6089 = vadd.f32 0.0, %v6088
      %v6090 = vpop.f32.mrf.mxu0
      %v6091 = vpop.f32.mrf.mxu0
      %v6092 = vadd.f32 0.0, %v6091
      %v6093 = vpop.f32.mrf.mxu0
      %6094 = vdwg.mxu0
      %v6095 = vadd.f32 %v5627, %v5953
      %v6096 = vadd.f32 %v5630, %v5956
      %v6097 = vadd.f32 %v5635, %v5961
      %v6098 = vadd.f32 %v5638, %v5964
      %v6099 = vadd.f32 %v5643, %v5969
      %v6100 = vadd.f32 %v5646, %v5972
      %v6101 = vadd.f32 %v5651, %v5977
      %v6102 = vadd.f32 %v5654, %v5980
      %v6103 = vadd.f32 %v5659, %v5985
      %v6104 = vadd.f32 %v5662, %v5988
      %v6105 = vadd.f32 %v5667, %v5993
      %v6106 = vadd.f32 %v5670, %v5996
      %v6107 = vadd.f32 %v5675, %v6001
      %v6108 = vadd.f32 %v5678, %v6004
      %v6109 = vadd.f32 %v5683, %v6009
      %v6110 = vadd.f32 %v5686, %v6012
      %v6111 = vadd.f32 %v5691, %v6017
      %v6112 = vadd.f32 %v5694, %v6020
      %v6113 = vadd.f32 %v5699, %v6025
      %v6114 = vadd.f32 %v5702, %v6028
      %v6115 = vadd.f32 %v5707, %v6033
      %v6116 = vadd.f32 %v5710, %v6036
      %v6117 = vadd.f32 %v5715, %v6041
      %v6118 = vadd.f32 %v5718, %v6044
      %v6119 = vadd.f32 %v5723, %v6049
      %v6120 = vadd.f32 %v5726, %v6052
      %v6121 = vadd.f32 %v5731, %v6057
      %v6122 = vadd.f32 %v5734, %v6060
      %v6123 = vadd.f32 %v5739, %v6065
      %v6124 = vadd.f32 %v5742, %v6068
      %v6125 = vadd.f32 %v5747, %v6073
      %v6126 = vadd.f32 %v5750, %v6076
      %v6127 = vadd.f32 %v5755, %v6081
      %v6128 = vadd.f32 %v5758, %v6084
      %v6129 = vadd.f32 %v5763, %v6089
      %v6130 = vadd.f32 %v5766, %v6092
      %v6131 = vld [vmem:[#allocation2 + $0xc] sm:$0x8]
      %v6132 = vld [vmem:[#allocation2 + $0x10] sm:$0xf]
      %v6133 = vld [vmem:[#allocation2 + $0x14] sm:$0xf]
      %v6134 = vld [vmem:[#allocation2 + $0x18] sm:$0xf]
      %v6135 = vld [vmem:[#allocation2 + $0x1c] sm:$0xf]
      %v6136 = vld [vmem:[#allocation2 + $0x20] sm:$0xf]
      %v6137 = vld [vmem:[#allocation2 + $0x24] sm:$0xf]
      %v6138 = vld [vmem:[#allocation2 + $0x28] sm:$0xf]
      %v6139 = vld [vmem:[#allocation2 + $0x2c] sm:$0xf]
      %v6140 = vld [vmem:[#allocation2 + $0x30] sm:$0xf]
      %v6141 = vld [vmem:[#allocation2 + $0x34] sm:$0xf]
      %v6142 = vld [vmem:[#allocation2 + $0x38] sm:$0xf]
      %v6143 = vld [vmem:[#allocation2 + $0x3c] sm:$0xf]
      %v6144 = vld [vmem:[#allocation2 + $0x40] sm:$0xf]
      %v6145 = vld [vmem:[#allocation2 + $0x44] sm:$0xf]
      %v6146 = vld [vmem:[#allocation2 + $0x48] sm:$0xf]
      %v6147 = vld [vmem:[#allocation2 + $0x4c] sm:$0xf]
      %v6148 = vld [vmem:[#allocation2 + $0x50] sm:$0xf]
      %v6149 = vld [vmem:[#allocation2 + $0x54] sm:$0xf]
      %v6150 = vld [vmem:[#allocation2 + $0x58] sm:$0xf]
      %v6151 = vld [vmem:[#allocation2 + $0x5c] sm:$0xf]
      %v6152 = vld [vmem:[#allocation2 + $0x60] sm:$0xf]
      %v6153 = vld [vmem:[#allocation2 + $0x64] sm:$0xf]
      %v6154 = vld [vmem:[#allocation2 + $0x68] sm:$0xf]
      %v6155 = vld [vmem:[#allocation2 + $0x6c] sm:$0xf]
      %v6156 = vld [vmem:[#allocation2 + $0x70] sm:$0xf]
      %v6157 = vld [vmem:[#allocation2 + $0x74] sm:$0xf]
      %v6158 = vld [vmem:[#allocation2 + $0x78] sm:$0xf]
      %v6159 = vld [vmem:[#allocation2 + $0x7c] sm:$0xf]
      %v6160 = vld [vmem:[#allocation2 + $0x80] sm:$0xf]
      %v6161 = vld [vmem:[#allocation2 + $0x84] sm:$0xf]
      %v6162 = vld [vmem:[#allocation2 + $0x88] sm:$0xf]
      %v6163 = vld [vmem:[#allocation2 + $0x8c] sm:$0xf]
      %v6164 = vld [vmem:[#allocation2 + $0x90] sm:$0xf]
      %v6165 = vld [vmem:[#allocation2 + $0x94] sm:$0xf]
      %v6166 = vld [vmem:[#allocation2 + $0x98] sm:$0xf]
      %v6167 = vld [vmem:[#allocation2 + $0x9c] sm:$0xf]
      %s6168 = scalar_lea.vmem %s3, 3
      %v6169 = vld [vmem:[%s6168] sm:$0x1]
      %v6207 = vunpack.c.l.b16 %v6131
      %v6208 = vunpack.c.l.b16 %v6132
      %v6209 = vunpack.c.l.b16 %v6133
      %v6210 = vunpack.c.l.b16 %v6134
      %v6211 = vunpack.c.l.b16 %v6135
      %v6212 = vunpack.c.l.b16 %v6136
      %v6213 = vunpack.c.l.b16 %v6137
      %v6214 = vunpack.c.l.b16 %v6138
      %v6215 = vunpack.c.l.b16 %v6139
      %v6216 = vunpack.c.l.b16 %v6140
      %v6217 = vunpack.c.l.b16 %v6141
      %v6218 = vunpack.c.l.b16 %v6142
      %v6219 = vunpack.c.l.b16 %v6143
      %v6220 = vunpack.c.l.b16 %v6144
      %v6221 = vunpack.c.l.b16 %v6145
      %v6222 = vunpack.c.l.b16 %v6146
      %v6223 = vunpack.c.l.b16 %v6147
      %v6224 = vunpack.c.l.b16 %v6148
      %v6225 = vunpack.c.l.b16 %v6149
      %v6226 = vunpack.c.l.b16 %v6150
      %v6227 = vunpack.c.l.b16 %v6151
      %v6228 = vunpack.c.l.b16 %v6152
      %v6229 = vunpack.c.l.b16 %v6153
      %v6230 = vunpack.c.l.b16 %v6154
      %v6231 = vunpack.c.l.b16 %v6155
      %v6232 = vunpack.c.l.b16 %v6156
      %v6233 = vunpack.c.l.b16 %v6157
      %v6234 = vunpack.c.l.b16 %v6158
      %v6235 = vunpack.c.l.b16 %v6159
      %v6236 = vunpack.c.l.b16 %v6160
      %v6237 = vunpack.c.l.b16 %v6161
      %v6238 = vunpack.c.l.b16 %v6162
      %v6239 = vunpack.c.l.b16 %v6163
      %v6240 = vunpack.c.l.b16 %v6164
      %v6241 = vunpack.c.l.b16 %v6165
      %v6242 = vunpack.c.l.b16 %v6166
      %v6243 = vunpack.c.l.b16 %v6167
      %v6244 = vpack.c.b16 %v6208, %v6207
      %v6245 = vpack.c.b16 %v6210, %v6209
      %v6246 = vpack.c.b16 %v6212, %v6211
      %v6247 = vpack.c.b16 %v6214, %v6213
      %v6248 = vpack.c.b16 %v6216, %v6215
      %v6249 = vpack.c.b16 %v6218, %v6217
      %v6250 = vpack.c.b16 %v6220, %v6219
      %v6251 = vpack.c.b16 %v6222, %v6221
      %v6252 = vpack.c.b16 %v6224, %v6223
      %v6253 = vpack.c.b16 %v6226, %v6225
      %v6254 = vpack.c.b16 %v6228, %v6227
      %v6255 = vpack.c.b16 %v6230, %v6229
      %v6256 = vpack.c.b16 %v6232, %v6231
      %v6257 = vpack.c.b16 %v6234, %v6233
      %v6258 = vpack.c.b16 %v6236, %v6235
      %v6259 = vpack.c.b16 %v6238, %v6237
      %v6260 = vpack.c.b16 %v6240, %v6239
      %v6261 = vpack.c.b16 %v6242, %v6241
      %v6262 = vpack.c.b16 %v6243, %v6243
      %v6264 = vshrl.u32 %v6244, 16
      %v6266 = vrot.slane %v6264, 3
      %v6267 = vshll.u32 %v6244, 16
      %v6269 = vrot.slane %v6267, 4
      %v6270 = vor.u32 %v6266, %v6269
      %v6272 = vshrl.u32 %v6245, 16
      %v6274 = vrot.slane %v6272, 3
      %v6275 = vshll.u32 %v6245, 16
      %v6277 = vrot.slane %v6275, 4
      %v6278 = vor.u32 %v6274, %v6277
      %v6279 = vsel %vm5775, %v6270, %v6278
      %v6281 = vshrl.u32 %v6246, 16
      %v6283 = vrot.slane %v6281, 3
      %v6284 = vshll.u32 %v6246, 16
      %v6286 = vrot.slane %v6284, 4
      %v6287 = vor.u32 %v6283, %v6286
      %v6288 = vsel %vm5775, %v6278, %v6287
      %v6290 = vshrl.u32 %v6247, 16
      %v6292 = vrot.slane %v6290, 3
      %v6293 = vshll.u32 %v6247, 16
      %v6295 = vrot.slane %v6293, 4
      %v6296 = vor.u32 %v6292, %v6295
      %v6297 = vsel %vm5775, %v6287, %v6296
      %v6299 = vshrl.u32 %v6248, 16
      %v6301 = vrot.slane %v6299, 3
      %v6302 = vshll.u32 %v6248, 16
      %v6304 = vrot.slane %v6302, 4
      %v6305 = vor.u32 %v6301, %v6304
      %v6306 = vsel %vm5775, %v6296, %v6305
      %v6308 = vshrl.u32 %v6249, 16
      %v6310 = vrot.slane %v6308, 3
      %v6311 = vshll.u32 %v6249, 16
      %v6313 = vrot.slane %v6311, 4
      %v6314 = vor.u32 %v6310, %v6313
      %v6315 = vsel %vm5775, %v6305, %v6314
      %v6317 = vshrl.u32 %v6250, 16
      %v6319 = vrot.slane %v6317, 3
      %v6320 = vshll.u32 %v6250, 16
      %v6322 = vrot.slane %v6320, 4
      %v6323 = vor.u32 %v6319, %v6322
      %v6324 = vsel %vm5775, %v6314, %v6323
      %v6326 = vshrl.u32 %v6251, 16
      %v6328 = vrot.slane %v6326, 3
      %v6329 = vshll.u32 %v6251, 16
      %v6331 = vrot.slane %v6329, 4
      %v6332 = vor.u32 %v6328, %v6331
      %v6333 = vsel %vm5775, %v6323, %v6332
      %v6335 = vshrl.u32 %v6252, 16
      %v6337 = vrot.slane %v6335, 3
      %v6338 = vshll.u32 %v6252, 16
      %v6340 = vrot.slane %v6338, 4
      %v6341 = vor.u32 %v6337, %v6340
      %v6342 = vsel %vm5775, %v6332, %v6341
      %v6344 = vshrl.u32 %v6253, 16
      %v6346 = vrot.slane %v6344, 3
      %v6347 = vshll.u32 %v6253, 16
      %v6349 = vrot.slane %v6347, 4
      %v6350 = vor.u32 %v6346, %v6349
      %v6351 = vsel %vm5775, %v6341, %v6350
      %v6353 = vshrl.u32 %v6254, 16
      %v6355 = vrot.slane %v6353, 3
      %v6356 = vshll.u32 %v6254, 16
      %v6358 = vrot.slane %v6356, 4
      %v6359 = vor.u32 %v6355, %v6358
      %v6360 = vsel %vm5775, %v6350, %v6359
      %v6362 = vshrl.u32 %v6255, 16
      %v6364 = vrot.slane %v6362, 3
      %v6365 = vshll.u32 %v6255, 16
      %v6367 = vrot.slane %v6365, 4
      %v6368 = vor.u32 %v6364, %v6367
      %v6369 = vsel %vm5775, %v6359, %v6368
      %v6371 = vshrl.u32 %v6256, 16
      %v6373 = vrot.slane %v6371, 3
      %v6374 = vshll.u32 %v6256, 16
      %v6376 = vrot.slane %v6374, 4
      %v6377 = vor.u32 %v6373, %v6376
      %v6378 = vsel %vm5775, %v6368, %v6377
      %v6380 = vshrl.u32 %v6257, 16
      %v6382 = vrot.slane %v6380, 3
      %v6383 = vshll.u32 %v6257, 16
      %v6385 = vrot.slane %v6383, 4
      %v6386 = vor.u32 %v6382, %v6385
      %v6387 = vsel %vm5775, %v6377, %v6386
      %v6389 = vshrl.u32 %v6258, 16
      %v6391 = vrot.slane %v6389, 3
      %v6392 = vshll.u32 %v6258, 16
      %v6394 = vrot.slane %v6392, 4
      %v6395 = vor.u32 %v6391, %v6394
      %v6396 = vsel %vm5775, %v6386, %v6395
      %v6398 = vshrl.u32 %v6259, 16
      %v6400 = vrot.slane %v6398, 3
      %v6401 = vshll.u32 %v6259, 16
      %v6403 = vrot.slane %v6401, 4
      %v6404 = vor.u32 %v6400, %v6403
      %v6405 = vsel %vm5775, %v6395, %v6404
      %v6407 = vshrl.u32 %v6260, 16
      %v6409 = vrot.slane %v6407, 3
      %v6410 = vshll.u32 %v6260, 16
      %v6412 = vrot.slane %v6410, 4
      %v6413 = vor.u32 %v6409, %v6412
      %v6414 = vsel %vm5775, %v6404, %v6413
      %v6416 = vshrl.u32 %v6261, 16
      %v6418 = vrot.slane %v6416, 3
      %v6419 = vshll.u32 %v6261, 16
      %v6421 = vrot.slane %v6419, 4
      %v6422 = vor.u32 %v6418, %v6421
      %v6423 = vsel %vm5775, %v6413, %v6422
      %v6425 = vshrl.u32 %v6262, 16
      %v6427 = vrot.slane %v6425, 3
      %v6428 = vshll.u32 %v6262, 16
      %v6430 = vrot.slane %v6428, 4
      %v6431 = vor.u32 %v6427, %v6430
      %v6432 = vsel %vm5775, %v6422, %v6431
      %v6434 = vsel %vm1207, %v6279, 0
      %v6437 = vsel %vm1207, %v6288, 0
      %v6440 = vsel %vm1207, %v6297, 0
      %v6443 = vsel %vm1207, %v6306, 0
      %v6446 = vsel %vm1207, %v6315, 0
      %v6449 = vsel %vm1207, %v6324, 0
      %v6452 = vsel %vm1207, %v6333, 0
      %v6455 = vsel %vm1207, %v6342, 0
      %v6458 = vsel %vm1207, %v6351, 0
      %v6461 = vsel %vm1207, %v6360, 0
      %v6464 = vsel %vm1207, %v6369, 0
      %v6467 = vsel %vm1207, %v6378, 0
      %v6470 = vsel %vm1207, %v6387, 0
      %v6473 = vsel %vm1207, %v6396, 0
      %v6476 = vsel %vm1207, %v6405, 0
      %v6479 = vsel %vm1207, %v6414, 0
      %v6482 = vsel %vm1207, %v6423, 0
      %v6485 = vsel %vm1207, %v6432, 0
      %v6488 = vsel %vm1262, %v6169, 0
      %6490 = vmatprep.subr.bf16.mxu0 0
      %6491 = vmatpush1.bf16.msra.mxu0 0
      %6492 = vmatprep.subr.bf16.mxu0 0
      %6493 = vmatpush1.bf16.msra.mxu0 0
      %6494 = vmatprep.subr.bf16.mxu0 0
      %6495 = vmatpush1.bf16.msra.mxu0 0
      %6496 = vmatprep.subr.bf16.mxu0 0
      %6497 = vmatpush1.bf16.msra.mxu0 0
      %6498 = vmatprep.subr.bf16.mxu0 0
      %6499 = vmatpush1.bf16.msra.mxu0 0
      %6500 = vmatprep.subr.bf16.mxu0 0
      %6501 = vmatpush1.bf16.msra.mxu0 0
      %6502 = vmatprep.subr.bf16.mxu0 0
      %6503 = vmatpush1.bf16.msra.mxu0 0
      %6504 = vmatprep.subr.bf16.mxu0 0
      %6505 = vmatpush1.bf16.msra.mxu0 %v6488
      %6506 = vmatprep.subr.bf16.mxu0 0
      %6507 = vmatpush2.bf16.msra.mxu0 0
      %6508 = vmatprep.subr.bf16.mxu0 0
      %6509 = vmatpush2.bf16.msra.mxu0 0
      %6510 = vmatprep.subr.bf16.mxu0 0
      %6511 = vmatpush2.bf16.msra.mxu0 0
      %6512 = vmatprep.subr.bf16.mxu0 0
      %6513 = vmatpush2.bf16.msra.mxu0 0
      %6514 = vmatprep.subr.bf16.mxu0 0
      %6515 = vmatpush2.bf16.msra.mxu0 0
      %6516 = vmatprep.subr.bf16.mxu0 0
      %6517 = vmatpush2.bf16.msra.mxu0 0
      %6518 = vmatprep.subr.bf16.mxu0 0
      %6519 = vmatpush2.bf16.msra.mxu0 0
      %6520 = vmatprep.subr.bf16.mxu0 0
      %6521 = vmatpush2.bf16.msra.mxu0 0
      %6522 = vmatprep.mubr.bf16.mxu0 0
      %6523 = vmatmul.mubr.bf16.gmra.mxu0 %v6434
      %v6524 = vpop.f32.mrf.mxu0
      %v6525 = vadd.f32 0.0, %v6524
      %v6526 = vpop.f32.mrf.mxu0
      %v6527 = vpop.f32.mrf.mxu0
      %v6528 = vadd.f32 0.0, %v6527
      %v6529 = vpop.f32.mrf.mxu0
      %6530 = vmatprep.mubr.bf16.mxu0 0
      %6531 = vmatmul.mubr.bf16.gmra.mxu0 %v6437
      %v6532 = vpop.f32.mrf.mxu0
      %v6533 = vadd.f32 0.0, %v6532
      %v6534 = vpop.f32.mrf.mxu0
      %v6535 = vpop.f32.mrf.mxu0
      %v6536 = vadd.f32 0.0, %v6535
      %v6537 = vpop.f32.mrf.mxu0
      %6538 = vmatprep.mubr.bf16.mxu0 0
      %6539 = vmatmul.mubr.bf16.gmra.mxu0 %v6440
      %v6540 = vpop.f32.mrf.mxu0
      %v6541 = vadd.f32 0.0, %v6540
      %v6542 = vpop.f32.mrf.mxu0
      %v6543 = vpop.f32.mrf.mxu0
      %v6544 = vadd.f32 0.0, %v6543
      %v6545 = vpop.f32.mrf.mxu0
      %6546 = vmatprep.mubr.bf16.mxu0 0
      %6547 = vmatmul.mubr.bf16.gmra.mxu0 %v6443
      %v6548 = vpop.f32.mrf.mxu0
      %v6549 = vadd.f32 0.0, %v6548
      %v6550 = vpop.f32.mrf.mxu0
      %v6551 = vpop.f32.mrf.mxu0
      %v6552 = vadd.f32 0.0, %v6551
      %v6553 = vpop.f32.mrf.mxu0
      %6554 = vmatprep.mubr.bf16.mxu0 0
      %6555 = vmatmul.mubr.bf16.gmra.mxu0 %v6446
      %v6556 = vpop.f32.mrf.mxu0
      %v6557 = vadd.f32 0.0, %v6556
      %v6558 = vpop.f32.mrf.mxu0
      %v6559 = vpop.f32.mrf.mxu0
      %v6560 = vadd.f32 0.0, %v6559
      %v6561 = vpop.f32.mrf.mxu0
      %6562 = vmatprep.mubr.bf16.mxu0 0
      %6563 = vmatmul.mubr.bf16.gmra.mxu0 %v6449
      %v6564 = vpop.f32.mrf.mxu0
      %v6565 = vadd.f32 0.0, %v6564
      %v6566 = vpop.f32.mrf.mxu0
      %v6567 = vpop.f32.mrf.mxu0
      %v6568 = vadd.f32 0.0, %v6567
      %v6569 = vpop.f32.mrf.mxu0
      %6570 = vmatprep.mubr.bf16.mxu0 0
      %6571 = vmatmul.mubr.bf16.gmra.mxu0 %v6452
      %v6572 = vpop.f32.mrf.mxu0
      %v6573 = vadd.f32 0.0, %v6572
      %v6574 = vpop.f32.mrf.mxu0
      %v6575 = vpop.f32.mrf.mxu0
      %v6576 = vadd.f32 0.0, %v6575
      %v6577 = vpop.f32.mrf.mxu0
      %6578 = vmatprep.mubr.bf16.mxu0 0
      %6579 = vmatmul.mubr.bf16.gmra.mxu0 %v6455
      %v6580 = vpop.f32.mrf.mxu0
      %v6581 = vadd.f32 0.0, %v6580
      %v6582 = vpop.f32.mrf.mxu0
      %v6583 = vpop.f32.mrf.mxu0
      %v6584 = vadd.f32 0.0, %v6583
      %v6585 = vpop.f32.mrf.mxu0
      %6586 = vmatprep.mubr.bf16.mxu0 0
      %6587 = vmatmul.mubr.bf16.gmra.mxu0 %v6458
      %v6588 = vpop.f32.mrf.mxu0
      %v6589 = vadd.f32 0.0, %v6588
      %v6590 = vpop.f32.mrf.mxu0
      %v6591 = vpop.f32.mrf.mxu0
      %v6592 = vadd.f32 0.0, %v6591
      %v6593 = vpop.f32.mrf.mxu0
      %6594 = vmatprep.mubr.bf16.mxu0 0
      %6595 = vmatmul.mubr.bf16.gmra.mxu0 %v6461
      %v6596 = vpop.f32.mrf.mxu0
      %v6597 = vadd.f32 0.0, %v6596
      %v6598 = vpop.f32.mrf.mxu0
      %v6599 = vpop.f32.mrf.mxu0
      %v6600 = vadd.f32 0.0, %v6599
      %v6601 = vpop.f32.mrf.mxu0
      %6602 = vmatprep.mubr.bf16.mxu0 0
      %6603 = vmatmul.mubr.bf16.gmra.mxu0 %v6464
      %v6604 = vpop.f32.mrf.mxu0
      %v6605 = vadd.f32 0.0, %v6604
      %v6606 = vpop.f32.mrf.mxu0
      %v6607 = vpop.f32.mrf.mxu0
      %v6608 = vadd.f32 0.0, %v6607
      %v6609 = vpop.f32.mrf.mxu0
      %6610 = vmatprep.mubr.bf16.mxu0 0
      %6611 = vmatmul.mubr.bf16.gmra.mxu0 %v6467
      %v6612 = vpop.f32.mrf.mxu0
      %v6613 = vadd.f32 0.0, %v6612
      %v6614 = vpop.f32.mrf.mxu0
      %v6615 = vpop.f32.mrf.mxu0
      %v6616 = vadd.f32 0.0, %v6615
      %v6617 = vpop.f32.mrf.mxu0
      %6618 = vmatprep.mubr.bf16.mxu0 0
      %6619 = vmatmul.mubr.bf16.gmra.mxu0 %v6470
      %v6620 = vpop.f32.mrf.mxu0
      %v6621 = vadd.f32 0.0, %v6620
      %v6622 = vpop.f32.mrf.mxu0
      %v6623 = vpop.f32.mrf.mxu0
      %v6624 = vadd.f32 0.0, %v6623
      %v6625 = vpop.f32.mrf.mxu0
      %6626 = vmatprep.mubr.bf16.mxu0 0
      %6627 = vmatmul.mubr.bf16.gmra.mxu0 %v6473
      %v6628 = vpop.f32.mrf.mxu0
      %v6629 = vadd.f32 0.0, %v6628
      %v6630 = vpop.f32.mrf.mxu0
      %v6631 = vpop.f32.mrf.mxu0
      %v6632 = vadd.f32 0.0, %v6631
      %v6633 = vpop.f32.mrf.mxu0
      %6634 = vmatprep.mubr.bf16.mxu0 0
      %6635 = vmatmul.mubr.bf16.gmra.mxu0 %v6476
      %v6636 = vpop.f32.mrf.mxu0
      %v6637 = vadd.f32 0.0, %v6636
      %v6638 = vpop.f32.mrf.mxu0
      %v6639 = vpop.f32.mrf.mxu0
      %v6640 = vadd.f32 0.0, %v6639
      %v6641 = vpop.f32.mrf.mxu0
      %6642 = vmatprep.mubr.bf16.mxu0 0
      %6643 = vmatmul.mubr.bf16.gmra.mxu0 %v6479
      %v6644 = vpop.f32.mrf.mxu0
      %v6645 = vadd.f32 0.0, %v6644
      %v6646 = vpop.f32.mrf.mxu0
      %v6647 = vpop.f32.mrf.mxu0
      %v6648 = vadd.f32 0.0, %v6647
      %v6649 = vpop.f32.mrf.mxu0
      %6650 = vmatprep.mubr.bf16.mxu0 0
      %6651 = vmatmul.mubr.bf16.gmra.mxu0 %v6482
      %v6652 = vpop.f32.mrf.mxu0
      %v6653 = vadd.f32 0.0, %v6652
      %v6654 = vpop.f32.mrf.mxu0
      %v6655 = vpop.f32.mrf.mxu0
      %v6656 = vadd.f32 0.0, %v6655
      %v6657 = vpop.f32.mrf.mxu0
      %6658 = vmatprep.mubr.bf16.mxu0 0
      %6659 = vmatmul.mubr.bf16.gmra.mxu0 %v6485
      %v6660 = vpop.f32.mrf.mxu0
      %v6661 = vadd.f32 0.0, %v6660
      %v6662 = vpop.f32.mrf.mxu0
      %v6663 = vpop.f32.mrf.mxu0
      %v6664 = vadd.f32 0.0, %v6663
      %v6665 = vpop.f32.mrf.mxu0
      %6666 = vdwg.mxu0
      %v6667 = vadd.f32 %v6095, %v6525
      %v6668 = vadd.f32 %v6096, %v6528
      %v6669 = vadd.f32 %v6097, %v6533
      %v6670 = vadd.f32 %v6098, %v6536
      %v6671 = vadd.f32 %v6099, %v6541
      %v6672 = vadd.f32 %v6100, %v6544
      %v6673 = vadd.f32 %v6101, %v6549
      %v6674 = vadd.f32 %v6102, %v6552
      %v6675 = vadd.f32 %v6103, %v6557
      %v6676 = vadd.f32 %v6104, %v6560
      %v6677 = vadd.f32 %v6105, %v6565
      %v6678 = vadd.f32 %v6106, %v6568
      %v6679 = vadd.f32 %v6107, %v6573
      %v6680 = vadd.f32 %v6108, %v6576
      %v6681 = vadd.f32 %v6109, %v6581
      %v6682 = vadd.f32 %v6110, %v6584
      %v6683 = vadd.f32 %v6111, %v6589
      %v6684 = vadd.f32 %v6112, %v6592
      %v6685 = vadd.f32 %v6113, %v6597
      %v6686 = vadd.f32 %v6114, %v6600
      %v6687 = vadd.f32 %v6115, %v6605
      %v6688 = vadd.f32 %v6116, %v6608
      %v6689 = vadd.f32 %v6117, %v6613
      %v6690 = vadd.f32 %v6118, %v6616
      %v6691 = vadd.f32 %v6119, %v6621
      %v6692 = vadd.f32 %v6120, %v6624
      %v6693 = vadd.f32 %v6121, %v6629
      %v6694 = vadd.f32 %v6122, %v6632
      %v6695 = vadd.f32 %v6123, %v6637
      %v6696 = vadd.f32 %v6124, %v6640
      %v6697 = vadd.f32 %v6125, %v6645
      %v6698 = vadd.f32 %v6126, %v6648
      %v6699 = vadd.f32 %v6127, %v6653
      %v6700 = vadd.f32 %v6128, %v6656
      %v6701 = vadd.f32 %v6129, %v6661
      %v6702 = vadd.f32 %v6130, %v6664
      %s6703 = scalar_lea.vmem %s3, 4
      %v6704 = vld [vmem:[%s6703] sm:$0x1]
      %v6705 = vpack.c.b16 %v6209, %v6208
      %v6706 = vpack.c.b16 %v6211, %v6210
      %v6707 = vpack.c.b16 %v6213, %v6212
      %v6708 = vpack.c.b16 %v6215, %v6214
      %v6709 = vpack.c.b16 %v6217, %v6216
      %v6710 = vpack.c.b16 %v6219, %v6218
      %v6711 = vpack.c.b16 %v6221, %v6220
      %v6712 = vpack.c.b16 %v6223, %v6222
      %v6713 = vpack.c.b16 %v6225, %v6224
      %v6714 = vpack.c.b16 %v6227, %v6226
      %v6715 = vpack.c.b16 %v6229, %v6228
      %v6716 = vpack.c.b16 %v6231, %v6230
      %v6717 = vpack.c.b16 %v6233, %v6232
      %v6718 = vpack.c.b16 %v6235, %v6234
      %v6719 = vpack.c.b16 %v6237, %v6236
      %v6720 = vpack.c.b16 %v6239, %v6238
      %v6721 = vpack.c.b16 %v6241, %v6240
      %v6722 = vpack.c.b16 %v6243, %v6242
      %v6724 = vsel %vm1207, %v6705, 0
      %v6727 = vsel %vm1207, %v6706, 0
      %v6730 = vsel %vm1207, %v6707, 0
      %v6733 = vsel %vm1207, %v6708, 0
      %v6736 = vsel %vm1207, %v6709, 0
      %v6739 = vsel %vm1207, %v6710, 0
      %v6742 = vsel %vm1207, %v6711, 0
      %v6745 = vsel %vm1207, %v6712, 0
      %v6748 = vsel %vm1207, %v6713, 0
      %v6751 = vsel %vm1207, %v6714, 0
      %v6754 = vsel %vm1207, %v6715, 0
      %v6757 = vsel %vm1207, %v6716, 0
      %v6760 = vsel %vm1207, %v6717, 0
      %v6763 = vsel %vm1207, %v6718, 0
      %v6766 = vsel %vm1207, %v6719, 0
      %v6769 = vsel %vm1207, %v6720, 0
      %v6772 = vsel %vm1207, %v6721, 0
      %v6775 = vsel %vm1207, %v6722, 0
      %v6778 = vsel %vm1262, %v6704, 0
      %6780 = vmatprep.subr.bf16.mxu0 0
      %6781 = vmatpush1.bf16.msra.mxu0 0
      %6782 = vmatprep.subr.bf16.mxu0 0
      %6783 = vmatpush1.bf16.msra.mxu0 0
      %6784 = vmatprep.subr.bf16.mxu0 0
      %6785 = vmatpush1.bf16.msra.mxu0 0
      %6786 = vmatprep.subr.bf16.mxu0 0
      %6787 = vmatpush1.bf16.msra.mxu0 0
      %6788 = vmatprep.subr.bf16.mxu0 0
      %6789 = vmatpush1.bf16.msra.mxu0 0
      %6790 = vmatprep.subr.bf16.mxu0 0
      %6791 = vmatpush1.bf16.msra.mxu0 0
      %6792 = vmatprep.subr.bf16.mxu0 0
      %6793 = vmatpush1.bf16.msra.mxu0 0
      %6794 = vmatprep.subr.bf16.mxu0 0
      %6795 = vmatpush1.bf16.msra.mxu0 %v6778
      %6796 = vmatprep.subr.bf16.mxu0 0
      %6797 = vmatpush2.bf16.msra.mxu0 0
      %6798 = vmatprep.subr.bf16.mxu0 0
      %6799 = vmatpush2.bf16.msra.mxu0 0
      %6800 = vmatprep.subr.bf16.mxu0 0
      %6801 = vmatpush2.bf16.msra.mxu0 0
      %6802 = vmatprep.subr.bf16.mxu0 0
      %6803 = vmatpush2.bf16.msra.mxu0 0
      %6804 = vmatprep.subr.bf16.mxu0 0
      %6805 = vmatpush2.bf16.msra.mxu0 0
      %6806 = vmatprep.subr.bf16.mxu0 0
      %6807 = vmatpush2.bf16.msra.mxu0 0
      %6808 = vmatprep.subr.bf16.mxu0 0
      %6809 = vmatpush2.bf16.msra.mxu0 0
      %6810 = vmatprep.subr.bf16.mxu0 0
      %6811 = vmatpush2.bf16.msra.mxu0 0
      %6812 = vmatprep.mubr.bf16.mxu0 0
      %6813 = vmatmul.mubr.bf16.gmra.mxu0 %v6724
      %v6814 = vpop.f32.mrf.mxu0
      %v6815 = vadd.f32 0.0, %v6814
      %v6816 = vpop.f32.mrf.mxu0
      %v6817 = vpop.f32.mrf.mxu0
      %v6818 = vadd.f32 0.0, %v6817
      %v6819 = vpop.f32.mrf.mxu0
      %6820 = vmatprep.mubr.bf16.mxu0 0
      %6821 = vmatmul.mubr.bf16.gmra.mxu0 %v6727
      %v6822 = vpop.f32.mrf.mxu0
      %v6823 = vadd.f32 0.0, %v6822
      %v6824 = vpop.f32.mrf.mxu0
      %v6825 = vpop.f32.mrf.mxu0
      %v6826 = vadd.f32 0.0, %v6825
      %v6827 = vpop.f32.mrf.mxu0
      %6828 = vmatprep.mubr.bf16.mxu0 0
      %6829 = vmatmul.mubr.bf16.gmra.mxu0 %v6730
      %v6830 = vpop.f32.mrf.mxu0
      %v6831 = vadd.f32 0.0, %v6830
      %v6832 = vpop.f32.mrf.mxu0
      %v6833 = vpop.f32.mrf.mxu0
      %v6834 = vadd.f32 0.0, %v6833
      %v6835 = vpop.f32.mrf.mxu0
      %6836 = vmatprep.mubr.bf16.mxu0 0
      %6837 = vmatmul.mubr.bf16.gmra.mxu0 %v6733
      %v6838 = vpop.f32.mrf.mxu0
      %v6839 = vadd.f32 0.0, %v6838
      %v6840 = vpop.f32.mrf.mxu0
      %v6841 = vpop.f32.mrf.mxu0
      %v6842 = vadd.f32 0.0, %v6841
      %v6843 = vpop.f32.mrf.mxu0
      %6844 = vmatprep.mubr.bf16.mxu0 0
      %6845 = vmatmul.mubr.bf16.gmra.mxu0 %v6736
      %v6846 = vpop.f32.mrf.mxu0
      %v6847 = vadd.f32 0.0, %v6846
      %v6848 = vpop.f32.mrf.mxu0
      %v6849 = vpop.f32.mrf.mxu0
      %v6850 = vadd.f32 0.0, %v6849
      %v6851 = vpop.f32.mrf.mxu0
      %6852 = vmatprep.mubr.bf16.mxu0 0
      %6853 = vmatmul.mubr.bf16.gmra.mxu0 %v6739
      %v6854 = vpop.f32.mrf.mxu0
      %v6855 = vadd.f32 0.0, %v6854
      %v6856 = vpop.f32.mrf.mxu0
      %v6857 = vpop.f32.mrf.mxu0
      %v6858 = vadd.f32 0.0, %v6857
      %v6859 = vpop.f32.mrf.mxu0
      %6860 = vmatprep.mubr.bf16.mxu0 0
      %6861 = vmatmul.mubr.bf16.gmra.mxu0 %v6742
      %v6862 = vpop.f32.mrf.mxu0
      %v6863 = vadd.f32 0.0, %v6862
      %v6864 = vpop.f32.mrf.mxu0
      %v6865 = vpop.f32.mrf.mxu0
      %v6866 = vadd.f32 0.0, %v6865
      %v6867 = vpop.f32.mrf.mxu0
      %6868 = vmatprep.mubr.bf16.mxu0 0
      %6869 = vmatmul.mubr.bf16.gmra.mxu0 %v6745
      %v6870 = vpop.f32.mrf.mxu0
      %v6871 = vadd.f32 0.0, %v6870
      %v6872 = vpop.f32.mrf.mxu0
      %v6873 = vpop.f32.mrf.mxu0
      %v6874 = vadd.f32 0.0, %v6873
      %v6875 = vpop.f32.mrf.mxu0
      %6876 = vmatprep.mubr.bf16.mxu0 0
      %6877 = vmatmul.mubr.bf16.gmra.mxu0 %v6748
      %v6878 = vpop.f32.mrf.mxu0
      %v6879 = vadd.f32 0.0, %v6878
      %v6880 = vpop.f32.mrf.mxu0
      %v6881 = vpop.f32.mrf.mxu0
      %v6882 = vadd.f32 0.0, %v6881
      %v6883 = vpop.f32.mrf.mxu0
      %6884 = vmatprep.mubr.bf16.mxu0 0
      %6885 = vmatmul.mubr.bf16.gmra.mxu0 %v6751
      %v6886 = vpop.f32.mrf.mxu0
      %v6887 = vadd.f32 0.0, %v6886
      %v6888 = vpop.f32.mrf.mxu0
      %v6889 = vpop.f32.mrf.mxu0
      %v6890 = vadd.f32 0.0, %v6889
      %v6891 = vpop.f32.mrf.mxu0
      %6892 = vmatprep.mubr.bf16.mxu0 0
      %6893 = vmatmul.mubr.bf16.gmra.mxu0 %v6754
      %v6894 = vpop.f32.mrf.mxu0
      %v6895 = vadd.f32 0.0, %v6894
      %v6896 = vpop.f32.mrf.mxu0
      %v6897 = vpop.f32.mrf.mxu0
      %v6898 = vadd.f32 0.0, %v6897
      %v6899 = vpop.f32.mrf.mxu0
      %6900 = vmatprep.mubr.bf16.mxu0 0
      %6901 = vmatmul.mubr.bf16.gmra.mxu0 %v6757
      %v6902 = vpop.f32.mrf.mxu0
      %v6903 = vadd.f32 0.0, %v6902
      %v6904 = vpop.f32.mrf.mxu0
      %v6905 = vpop.f32.mrf.mxu0
      %v6906 = vadd.f32 0.0, %v6905
      %v6907 = vpop.f32.mrf.mxu0
      %6908 = vmatprep.mubr.bf16.mxu0 0
      %6909 = vmatmul.mubr.bf16.gmra.mxu0 %v6760
      %v6910 = vpop.f32.mrf.mxu0
      %v6911 = vadd.f32 0.0, %v6910
      %v6912 = vpop.f32.mrf.mxu0
      %v6913 = vpop.f32.mrf.mxu0
      %v6914 = vadd.f32 0.0, %v6913
      %v6915 = vpop.f32.mrf.mxu0
      %6916 = vmatprep.mubr.bf16.mxu0 0
      %6917 = vmatmul.mubr.bf16.gmra.mxu0 %v6763
      %v6918 = vpop.f32.mrf.mxu0
      %v6919 = vadd.f32 0.0, %v6918
      %v6920 = vpop.f32.mrf.mxu0
      %v6921 = vpop.f32.mrf.mxu0
      %v6922 = vadd.f32 0.0, %v6921
      %v6923 = vpop.f32.mrf.mxu0
      %6924 = vmatprep.mubr.bf16.mxu0 0
      %6925 = vmatmul.mubr.bf16.gmra.mxu0 %v6766
      %v6926 = vpop.f32.mrf.mxu0
      %v6927 = vadd.f32 0.0, %v6926
      %v6928 = vpop.f32.mrf.mxu0
      %v6929 = vpop.f32.mrf.mxu0
      %v6930 = vadd.f32 0.0, %v6929
      %v6931 = vpop.f32.mrf.mxu0
      %6932 = vmatprep.mubr.bf16.mxu0 0
      %6933 = vmatmul.mubr.bf16.gmra.mxu0 %v6769
      %v6934 = vpop.f32.mrf.mxu0
      %v6935 = vadd.f32 0.0, %v6934
      %v6936 = vpop.f32.mrf.mxu0
      %v6937 = vpop.f32.mrf.mxu0
      %v6938 = vadd.f32 0.0, %v6937
      %v6939 = vpop.f32.mrf.mxu0
      %6940 = vmatprep.mubr.bf16.mxu0 0
      %6941 = vmatmul.mubr.bf16.gmra.mxu0 %v6772
      %v6942 = vpop.f32.mrf.mxu0
      %v6943 = vadd.f32 0.0, %v6942
      %v6944 = vpop.f32.mrf.mxu0
      %v6945 = vpop.f32.mrf.mxu0
      %v6946 = vadd.f32 0.0, %v6945
      %v6947 = vpop.f32.mrf.mxu0
      %6948 = vmatprep.mubr.bf16.mxu0 0
      %6949 = vmatmul.mubr.bf16.gmra.mxu0 %v6775
      %v6950 = vpop.f32.mrf.mxu0
      %v6951 = vadd.f32 0.0, %v6950
      %v6952 = vpop.f32.mrf.mxu0
      %v6953 = vpop.f32.mrf.mxu0
      %v6954 = vadd.f32 0.0, %v6953
      %v6955 = vpop.f32.mrf.mxu0
      %6956 = vdwg.mxu0
      %v6957 = vadd.f32 %v6667, %v6815
      %v6958 = vadd.f32 %v6668, %v6818
      %v6959 = vadd.f32 %v6669, %v6823
      %v6960 = vadd.f32 %v6670, %v6826
      %v6961 = vadd.f32 %v6671, %v6831
      %v6962 = vadd.f32 %v6672, %v6834
      %v6963 = vadd.f32 %v6673, %v6839
      %v6964 = vadd.f32 %v6674, %v6842
      %v6965 = vadd.f32 %v6675, %v6847
      %v6966 = vadd.f32 %v6676, %v6850
      %v6967 = vadd.f32 %v6677, %v6855
      %v6968 = vadd.f32 %v6678, %v6858
      %v6969 = vadd.f32 %v6679, %v6863
      %v6970 = vadd.f32 %v6680, %v6866
      %v6971 = vadd.f32 %v6681, %v6871
      %v6972 = vadd.f32 %v6682, %v6874
      %v6973 = vadd.f32 %v6683, %v6879
      %v6974 = vadd.f32 %v6684, %v6882
      %v6975 = vadd.f32 %v6685, %v6887
      %v6976 = vadd.f32 %v6686, %v6890
      %v6977 = vadd.f32 %v6687, %v6895
      %v6978 = vadd.f32 %v6688, %v6898
      %v6979 = vadd.f32 %v6689, %v6903
      %v6980 = vadd.f32 %v6690, %v6906
      %v6981 = vadd.f32 %v6691, %v6911
      %v6982 = vadd.f32 %v6692, %v6914
      %v6983 = vadd.f32 %v6693, %v6919
      %v6984 = vadd.f32 %v6694, %v6922
      %v6985 = vadd.f32 %v6695, %v6927
      %v6986 = vadd.f32 %v6696, %v6930
      %v6987 = vadd.f32 %v6697, %v6935
      %v6988 = vadd.f32 %v6698, %v6938
      %v6989 = vadd.f32 %v6699, %v6943
      %v6990 = vadd.f32 %v6700, %v6946
      %v6991 = vadd.f32 %v6701, %v6951
      %v6992 = vadd.f32 %v6702, %v6954
      %v6993 = vld [vmem:[#allocation2 + $0x10] sm:$0xf]
      %v6994 = vld [vmem:[#allocation2 + $0x14] sm:$0xf]
      %v6995 = vld [vmem:[#allocation2 + $0x18] sm:$0xf]
      %v6996 = vld [vmem:[#allocation2 + $0x1c] sm:$0xf]
      %v6997 = vld [vmem:[#allocation2 + $0x20] sm:$0xf]
      %v6998 = vld [vmem:[#allocation2 + $0x24] sm:$0xf]
      %v6999 = vld [vmem:[#allocation2 + $0x28] sm:$0xf]
      %v7000 = vld [vmem:[#allocation2 + $0x2c] sm:$0xf]
      %v7001 = vld [vmem:[#allocation2 + $0x30] sm:$0xf]
      %v7002 = vld [vmem:[#allocation2 + $0x34] sm:$0xf]
      %v7003 = vld [vmem:[#allocation2 + $0x38] sm:$0xf]
      %v7004 = vld [vmem:[#allocation2 + $0x3c] sm:$0xf]
      %v7005 = vld [vmem:[#allocation2 + $0x40] sm:$0xf]
      %v7006 = vld [vmem:[#allocation2 + $0x44] sm:$0xf]
      %v7007 = vld [vmem:[#allocation2 + $0x48] sm:$0xf]
      %v7008 = vld [vmem:[#allocation2 + $0x4c] sm:$0xf]
      %v7009 = vld [vmem:[#allocation2 + $0x50] sm:$0xf]
      %v7010 = vld [vmem:[#allocation2 + $0x54] sm:$0xf]
      %v7011 = vld [vmem:[#allocation2 + $0x58] sm:$0xf]
      %v7012 = vld [vmem:[#allocation2 + $0x5c] sm:$0xf]
      %v7013 = vld [vmem:[#allocation2 + $0x60] sm:$0xf]
      %v7014 = vld [vmem:[#allocation2 + $0x64] sm:$0xf]
      %v7015 = vld [vmem:[#allocation2 + $0x68] sm:$0xf]
      %v7016 = vld [vmem:[#allocation2 + $0x6c] sm:$0xf]
      %v7017 = vld [vmem:[#allocation2 + $0x70] sm:$0xf]
      %v7018 = vld [vmem:[#allocation2 + $0x74] sm:$0xf]
      %v7019 = vld [vmem:[#allocation2 + $0x78] sm:$0xf]
      %v7020 = vld [vmem:[#allocation2 + $0x7c] sm:$0xf]
      %v7021 = vld [vmem:[#allocation2 + $0x80] sm:$0xf]
      %v7022 = vld [vmem:[#allocation2 + $0x84] sm:$0xf]
      %v7023 = vld [vmem:[#allocation2 + $0x88] sm:$0xf]
      %v7024 = vld [vmem:[#allocation2 + $0x8c] sm:$0xf]
      %v7025 = vld [vmem:[#allocation2 + $0x90] sm:$0xf]
      %v7026 = vld [vmem:[#allocation2 + $0x94] sm:$0xf]
      %v7027 = vld [vmem:[#allocation2 + $0x98] sm:$0xf]
      %v7028 = vld [vmem:[#allocation2 + $0x9c] sm:$0xf]
      %v7029 = vld [vmem:[#allocation2 + $0xa0] sm:$0x1]
      %s7030 = scalar_lea.vmem %s3, 5
      %v7031 = vld [vmem:[%s7030] sm:$0x1]
      %v7069 = vunpack.c.l.b16 %v6993
      %v7070 = vunpack.c.l.b16 %v6994
      %v7071 = vunpack.c.l.b16 %v6995
      %v7072 = vunpack.c.l.b16 %v6996
      %v7073 = vunpack.c.l.b16 %v6997
      %v7074 = vunpack.c.l.b16 %v6998
      %v7075 = vunpack.c.l.b16 %v6999
      %v7076 = vunpack.c.l.b16 %v7000
      %v7077 = vunpack.c.l.b16 %v7001
      %v7078 = vunpack.c.l.b16 %v7002
      %v7079 = vunpack.c.l.b16 %v7003
      %v7080 = vunpack.c.l.b16 %v7004
      %v7081 = vunpack.c.l.b16 %v7005
      %v7082 = vunpack.c.l.b16 %v7006
      %v7083 = vunpack.c.l.b16 %v7007
      %v7084 = vunpack.c.l.b16 %v7008
      %v7085 = vunpack.c.l.b16 %v7009
      %v7086 = vunpack.c.l.b16 %v7010
      %v7087 = vunpack.c.l.b16 %v7011
      %v7088 = vunpack.c.l.b16 %v7012
      %v7089 = vunpack.c.l.b16 %v7013
      %v7090 = vunpack.c.l.b16 %v7014
      %v7091 = vunpack.c.l.b16 %v7015
      %v7092 = vunpack.c.l.b16 %v7016
      %v7093 = vunpack.c.l.b16 %v7017
      %v7094 = vunpack.c.l.b16 %v7018
      %v7095 = vunpack.c.l.b16 %v7019
      %v7096 = vunpack.c.l.b16 %v7020
      %v7097 = vunpack.c.l.b16 %v7021
      %v7098 = vunpack.c.l.b16 %v7022
      %v7099 = vunpack.c.l.b16 %v7023
      %v7100 = vunpack.c.l.b16 %v7024
      %v7101 = vunpack.c.l.b16 %v7025
      %v7102 = vunpack.c.l.b16 %v7026
      %v7103 = vunpack.c.l.b16 %v7027
      %v7104 = vunpack.c.l.b16 %v7028
      %v7105 = vunpack.c.l.b16 %v7029
      %v7106 = vpack.c.b16 %v7070, %v7069
      %v7107 = vpack.c.b16 %v7072, %v7071
      %v7108 = vpack.c.b16 %v7074, %v7073
      %v7109 = vpack.c.b16 %v7076, %v7075
      %v7110 = vpack.c.b16 %v7078, %v7077
      %v7111 = vpack.c.b16 %v7080, %v7079
      %v7112 = vpack.c.b16 %v7082, %v7081
      %v7113 = vpack.c.b16 %v7084, %v7083
      %v7114 = vpack.c.b16 %v7086, %v7085
      %v7115 = vpack.c.b16 %v7088, %v7087
      %v7116 = vpack.c.b16 %v7090, %v7089
      %v7117 = vpack.c.b16 %v7092, %v7091
      %v7118 = vpack.c.b16 %v7094, %v7093
      %v7119 = vpack.c.b16 %v7096, %v7095
      %v7120 = vpack.c.b16 %v7098, %v7097
      %v7121 = vpack.c.b16 %v7100, %v7099
      %v7122 = vpack.c.b16 %v7102, %v7101
      %v7123 = vpack.c.b16 %v7104, %v7103
      %v7124 = vpack.c.b16 %v7105, %v7105
      %v7126 = vshrl.u32 %v7106, 16
      %v7128 = vshll.u32 %v7106, 16
      %v7130 = vrot.slane %v7128, 1
      %v7131 = vor.u32 %v7126, %v7130
      %v7133 = vshll.u32 %v7107, 16
      %v7135 = vrot.slane %v7133, 1
      %v7136 = vsel %vm1058, %v7131, %v7135
      %v7137 = vshrl.u32 %v7107, 16
      %v7139 = vor.u32 %v7137, %v7135
      %v7141 = vshll.u32 %v7108, 16
      %v7143 = vrot.slane %v7141, 1
      %v7144 = vsel %vm1058, %v7139, %v7143
      %v7145 = vshrl.u32 %v7108, 16
      %v7147 = vor.u32 %v7145, %v7143
      %v7149 = vshll.u32 %v7109, 16
      %v7151 = vrot.slane %v7149, 1
      %v7152 = vsel %vm1058, %v7147, %v7151
      %v7153 = vshrl.u32 %v7109, 16
      %v7155 = vor.u32 %v7153, %v7151
      %v7157 = vshll.u32 %v7110, 16
      %v7159 = vrot.slane %v7157, 1
      %v7160 = vsel %vm1058, %v7155, %v7159
      %v7161 = vshrl.u32 %v7110, 16
      %v7163 = vor.u32 %v7161, %v7159
      %v7165 = vshll.u32 %v7111, 16
      %v7167 = vrot.slane %v7165, 1
      %v7168 = vsel %vm1058, %v7163, %v7167
      %v7169 = vshrl.u32 %v7111, 16
      %v7171 = vor.u32 %v7169, %v7167
      %v7173 = vshll.u32 %v7112, 16
      %v7175 = vrot.slane %v7173, 1
      %v7176 = vsel %vm1058, %v7171, %v7175
      %v7177 = vshrl.u32 %v7112, 16
      %v7179 = vor.u32 %v7177, %v7175
      %v7181 = vshll.u32 %v7113, 16
      %v7183 = vrot.slane %v7181, 1
      %v7184 = vsel %vm1058, %v7179, %v7183
      %v7185 = vshrl.u32 %v7113, 16
      %v7187 = vor.u32 %v7185, %v7183
      %v7189 = vshll.u32 %v7114, 16
      %v7191 = vrot.slane %v7189, 1
      %v7192 = vsel %vm1058, %v7187, %v7191
      %v7193 = vshrl.u32 %v7114, 16
      %v7195 = vor.u32 %v7193, %v7191
      %v7197 = vshll.u32 %v7115, 16
      %v7199 = vrot.slane %v7197, 1
      %v7200 = vsel %vm1058, %v7195, %v7199
      %v7201 = vshrl.u32 %v7115, 16
      %v7203 = vor.u32 %v7201, %v7199
      %v7205 = vshll.u32 %v7116, 16
      %v7207 = vrot.slane %v7205, 1
      %v7208 = vsel %vm1058, %v7203, %v7207
      %v7209 = vshrl.u32 %v7116, 16
      %v7211 = vor.u32 %v7209, %v7207
      %v7213 = vshll.u32 %v7117, 16
      %v7215 = vrot.slane %v7213, 1
      %v7216 = vsel %vm1058, %v7211, %v7215
      %v7217 = vshrl.u32 %v7117, 16
      %v7219 = vor.u32 %v7217, %v7215
      %v7221 = vshll.u32 %v7118, 16
      %v7223 = vrot.slane %v7221, 1
      %v7224 = vsel %vm1058, %v7219, %v7223
      %v7225 = vshrl.u32 %v7118, 16
      %v7227 = vor.u32 %v7225, %v7223
      %v7229 = vshll.u32 %v7119, 16
      %v7231 = vrot.slane %v7229, 1
      %v7232 = vsel %vm1058, %v7227, %v7231
      %v7233 = vshrl.u32 %v7119, 16
      %v7235 = vor.u32 %v7233, %v7231
      %v7237 = vshll.u32 %v7120, 16
      %v7239 = vrot.slane %v7237, 1
      %v7240 = vsel %vm1058, %v7235, %v7239
      %v7241 = vshrl.u32 %v7120, 16
      %v7243 = vor.u32 %v7241, %v7239
      %v7245 = vshll.u32 %v7121, 16
      %v7247 = vrot.slane %v7245, 1
      %v7248 = vsel %vm1058, %v7243, %v7247
      %v7249 = vshrl.u32 %v7121, 16
      %v7251 = vor.u32 %v7249, %v7247
      %v7253 = vshll.u32 %v7122, 16
      %v7255 = vrot.slane %v7253, 1
      %v7256 = vsel %vm1058, %v7251, %v7255
      %v7257 = vshrl.u32 %v7122, 16
      %v7259 = vor.u32 %v7257, %v7255
      %v7261 = vshll.u32 %v7123, 16
      %v7263 = vrot.slane %v7261, 1
      %v7264 = vsel %vm1058, %v7259, %v7263
      %v7265 = vshrl.u32 %v7123, 16
      %v7267 = vor.u32 %v7265, %v7263
      %v7269 = vshll.u32 %v7124, 16
      %v7271 = vrot.slane %v7269, 1
      %v7272 = vsel %vm1058, %v7267, %v7271
      %v7274 = vsel %vm1207, %v7136, 0
      %v7277 = vsel %vm1207, %v7144, 0
      %v7280 = vsel %vm1207, %v7152, 0
      %v7283 = vsel %vm1207, %v7160, 0
      %v7286 = vsel %vm1207, %v7168, 0
      %v7289 = vsel %vm1207, %v7176, 0
      %v7292 = vsel %vm1207, %v7184, 0
      %v7295 = vsel %vm1207, %v7192, 0
      %v7298 = vsel %vm1207, %v7200, 0
      %v7301 = vsel %vm1207, %v7208, 0
      %v7304 = vsel %vm1207, %v7216, 0
      %v7307 = vsel %vm1207, %v7224, 0
      %v7310 = vsel %vm1207, %v7232, 0
      %v7313 = vsel %vm1207, %v7240, 0
      %v7316 = vsel %vm1207, %v7248, 0
      %v7319 = vsel %vm1207, %v7256, 0
      %v7322 = vsel %vm1207, %v7264, 0
      %v7325 = vsel %vm1207, %v7272, 0
      %v7328 = vsel %vm1262, %v7031, 0
      %7330 = vmatprep.subr.bf16.mxu0 0
      %7331 = vmatpush1.bf16.msra.mxu0 0
      %7332 = vmatprep.subr.bf16.mxu0 0
      %7333 = vmatpush1.bf16.msra.mxu0 0
      %7334 = vmatprep.subr.bf16.mxu0 0
      %7335 = vmatpush1.bf16.msra.mxu0 0
      %7336 = vmatprep.subr.bf16.mxu0 0
      %7337 = vmatpush1.bf16.msra.mxu0 0
      %7338 = vmatprep.subr.bf16.mxu0 0
      %7339 = vmatpush1.bf16.msra.mxu0 0
      %7340 = vmatprep.subr.bf16.mxu0 0
      %7341 = vmatpush1.bf16.msra.mxu0 0
      %7342 = vmatprep.subr.bf16.mxu0 0
      %7343 = vmatpush1.bf16.msra.mxu0 0
      %7344 = vmatprep.subr.bf16.mxu0 0
      %7345 = vmatpush1.bf16.msra.mxu0 %v7328
      %7346 = vmatprep.subr.bf16.mxu0 0
      %7347 = vmatpush2.bf16.msra.mxu0 0
      %7348 = vmatprep.subr.bf16.mxu0 0
      %7349 = vmatpush2.bf16.msra.mxu0 0
      %7350 = vmatprep.subr.bf16.mxu0 0
      %7351 = vmatpush2.bf16.msra.mxu0 0
      %7352 = vmatprep.subr.bf16.mxu0 0
      %7353 = vmatpush2.bf16.msra.mxu0 0
      %7354 = vmatprep.subr.bf16.mxu0 0
      %7355 = vmatpush2.bf16.msra.mxu0 0
      %7356 = vmatprep.subr.bf16.mxu0 0
      %7357 = vmatpush2.bf16.msra.mxu0 0
      %7358 = vmatprep.subr.bf16.mxu0 0
      %7359 = vmatpush2.bf16.msra.mxu0 0
      %7360 = vmatprep.subr.bf16.mxu0 0
      %7361 = vmatpush2.bf16.msra.mxu0 0
      %7362 = vmatprep.mubr.bf16.mxu0 0
      %7363 = vmatmul.mubr.bf16.gmra.mxu0 %v7274
      %v7364 = vpop.f32.mrf.mxu0
      %v7365 = vadd.f32 0.0, %v7364
      %v7366 = vpop.f32.mrf.mxu0
      %v7367 = vpop.f32.mrf.mxu0
      %v7368 = vadd.f32 0.0, %v7367
      %v7369 = vpop.f32.mrf.mxu0
      %7370 = vmatprep.mubr.bf16.mxu0 0
      %7371 = vmatmul.mubr.bf16.gmra.mxu0 %v7277
      %v7372 = vpop.f32.mrf.mxu0
      %v7373 = vadd.f32 0.0, %v7372
      %v7374 = vpop.f32.mrf.mxu0
      %v7375 = vpop.f32.mrf.mxu0
      %v7376 = vadd.f32 0.0, %v7375
      %v7377 = vpop.f32.mrf.mxu0
      %7378 = vmatprep.mubr.bf16.mxu0 0
      %7379 = vmatmul.mubr.bf16.gmra.mxu0 %v7280
      %v7380 = vpop.f32.mrf.mxu0
      %v7381 = vadd.f32 0.0, %v7380
      %v7382 = vpop.f32.mrf.mxu0
      %v7383 = vpop.f32.mrf.mxu0
      %v7384 = vadd.f32 0.0, %v7383
      %v7385 = vpop.f32.mrf.mxu0
      %7386 = vmatprep.mubr.bf16.mxu0 0
      %7387 = vmatmul.mubr.bf16.gmra.mxu0 %v7283
      %v7388 = vpop.f32.mrf.mxu0
      %v7389 = vadd.f32 0.0, %v7388
      %v7390 = vpop.f32.mrf.mxu0
      %v7391 = vpop.f32.mrf.mxu0
      %v7392 = vadd.f32 0.0, %v7391
      %v7393 = vpop.f32.mrf.mxu0
      %7394 = vmatprep.mubr.bf16.mxu0 0
      %7395 = vmatmul.mubr.bf16.gmra.mxu0 %v7286
      %v7396 = vpop.f32.mrf.mxu0
      %v7397 = vadd.f32 0.0, %v7396
      %v7398 = vpop.f32.mrf.mxu0
      %v7399 = vpop.f32.mrf.mxu0
      %v7400 = vadd.f32 0.0, %v7399
      %v7401 = vpop.f32.mrf.mxu0
      %7402 = vmatprep.mubr.bf16.mxu0 0
      %7403 = vmatmul.mubr.bf16.gmra.mxu0 %v7289
      %v7404 = vpop.f32.mrf.mxu0
      %v7405 = vadd.f32 0.0, %v7404
      %v7406 = vpop.f32.mrf.mxu0
      %v7407 = vpop.f32.mrf.mxu0
      %v7408 = vadd.f32 0.0, %v7407
      %v7409 = vpop.f32.mrf.mxu0
      %7410 = vmatprep.mubr.bf16.mxu0 0
      %7411 = vmatmul.mubr.bf16.gmra.mxu0 %v7292
      %v7412 = vpop.f32.mrf.mxu0
      %v7413 = vadd.f32 0.0, %v7412
      %v7414 = vpop.f32.mrf.mxu0
      %v7415 = vpop.f32.mrf.mxu0
      %v7416 = vadd.f32 0.0, %v7415
      %v7417 = vpop.f32.mrf.mxu0
      %7418 = vmatprep.mubr.bf16.mxu0 0
      %7419 = vmatmul.mubr.bf16.gmra.mxu0 %v7295
      %v7420 = vpop.f32.mrf.mxu0
      %v7421 = vadd.f32 0.0, %v7420
      %v7422 = vpop.f32.mrf.mxu0
      %v7423 = vpop.f32.mrf.mxu0
      %v7424 = vadd.f32 0.0, %v7423
      %v7425 = vpop.f32.mrf.mxu0
      %7426 = vmatprep.mubr.bf16.mxu0 0
      %7427 = vmatmul.mubr.bf16.gmra.mxu0 %v7298
      %v7428 = vpop.f32.mrf.mxu0
      %v7429 = vadd.f32 0.0, %v7428
      %v7430 = vpop.f32.mrf.mxu0
      %v7431 = vpop.f32.mrf.mxu0
      %v7432 = vadd.f32 0.0, %v7431
      %v7433 = vpop.f32.mrf.mxu0
      %7434 = vmatprep.mubr.bf16.mxu0 0
      %7435 = vmatmul.mubr.bf16.gmra.mxu0 %v7301
      %v7436 = vpop.f32.mrf.mxu0
      %v7437 = vadd.f32 0.0, %v7436
      %v7438 = vpop.f32.mrf.mxu0
      %v7439 = vpop.f32.mrf.mxu0
      %v7440 = vadd.f32 0.0, %v7439
      %v7441 = vpop.f32.mrf.mxu0
      %7442 = vmatprep.mubr.bf16.mxu0 0
      %7443 = vmatmul.mubr.bf16.gmra.mxu0 %v7304
      %v7444 = vpop.f32.mrf.mxu0
      %v7445 = vadd.f32 0.0, %v7444
      %v7446 = vpop.f32.mrf.mxu0
      %v7447 = vpop.f32.mrf.mxu0
      %v7448 = vadd.f32 0.0, %v7447
      %v7449 = vpop.f32.mrf.mxu0
      %7450 = vmatprep.mubr.bf16.mxu0 0
      %7451 = vmatmul.mubr.bf16.gmra.mxu0 %v7307
      %v7452 = vpop.f32.mrf.mxu0
      %v7453 = vadd.f32 0.0, %v7452
      %v7454 = vpop.f32.mrf.mxu0
      %v7455 = vpop.f32.mrf.mxu0
      %v7456 = vadd.f32 0.0, %v7455
      %v7457 = vpop.f32.mrf.mxu0
      %7458 = vmatprep.mubr.bf16.mxu0 0
      %7459 = vmatmul.mubr.bf16.gmra.mxu0 %v7310
      %v7460 = vpop.f32.mrf.mxu0
      %v7461 = vadd.f32 0.0, %v7460
      %v7462 = vpop.f32.mrf.mxu0
      %v7463 = vpop.f32.mrf.mxu0
      %v7464 = vadd.f32 0.0, %v7463
      %v7465 = vpop.f32.mrf.mxu0
      %7466 = vmatprep.mubr.bf16.mxu0 0
      %7467 = vmatmul.mubr.bf16.gmra.mxu0 %v7313
      %v7468 = vpop.f32.mrf.mxu0
      %v7469 = vadd.f32 0.0, %v7468
      %v7470 = vpop.f32.mrf.mxu0
      %v7471 = vpop.f32.mrf.mxu0
      %v7472 = vadd.f32 0.0, %v7471
      %v7473 = vpop.f32.mrf.mxu0
      %7474 = vmatprep.mubr.bf16.mxu0 0
      %7475 = vmatmul.mubr.bf16.gmra.mxu0 %v7316
      %v7476 = vpop.f32.mrf.mxu0
      %v7477 = vadd.f32 0.0, %v7476
      %v7478 = vpop.f32.mrf.mxu0
      %v7479 = vpop.f32.mrf.mxu0
      %v7480 = vadd.f32 0.0, %v7479
      %v7481 = vpop.f32.mrf.mxu0
      %7482 = vmatprep.mubr.bf16.mxu0 0
      %7483 = vmatmul.mubr.bf16.gmra.mxu0 %v7319
      %v7484 = vpop.f32.mrf.mxu0
      %v7485 = vadd.f32 0.0, %v7484
      %v7486 = vpop.f32.mrf.mxu0
      %v7487 = vpop.f32.mrf.mxu0
      %v7488 = vadd.f32 0.0, %v7487
      %v7489 = vpop.f32.mrf.mxu0
      %7490 = vmatprep.mubr.bf16.mxu0 0
      %7491 = vmatmul.mubr.bf16.gmra.mxu0 %v7322
      %v7492 = vpop.f32.mrf.mxu0
      %v7493 = vadd.f32 0.0, %v7492
      %v7494 = vpop.f32.mrf.mxu0
      %v7495 = vpop.f32.mrf.mxu0
      %v7496 = vadd.f32 0.0, %v7495
      %v7497 = vpop.f32.mrf.mxu0
      %7498 = vmatprep.mubr.bf16.mxu0 0
      %7499 = vmatmul.mubr.bf16.gmra.mxu0 %v7325
      %v7500 = vpop.f32.mrf.mxu0
      %v7501 = vadd.f32 0.0, %v7500
      %v7502 = vpop.f32.mrf.mxu0
      %v7503 = vpop.f32.mrf.mxu0
      %v7504 = vadd.f32 0.0, %v7503
      %v7505 = vpop.f32.mrf.mxu0
      %7506 = vdwg.mxu0
      %v7507 = vadd.f32 %v6957, %v7365
      %v7508 = vadd.f32 %v6958, %v7368
      %v7509 = vadd.f32 %v6959, %v7373
      %v7510 = vadd.f32 %v6960, %v7376
      %v7511 = vadd.f32 %v6961, %v7381
      %v7512 = vadd.f32 %v6962, %v7384
      %v7513 = vadd.f32 %v6963, %v7389
      %v7514 = vadd.f32 %v6964, %v7392
      %v7515 = vadd.f32 %v6965, %v7397
      %v7516 = vadd.f32 %v6966, %v7400
      %v7517 = vadd.f32 %v6967, %v7405
      %v7518 = vadd.f32 %v6968, %v7408
      %v7519 = vadd.f32 %v6969, %v7413
      %v7520 = vadd.f32 %v6970, %v7416
      %v7521 = vadd.f32 %v6971, %v7421
      %v7522 = vadd.f32 %v6972, %v7424
      %v7523 = vadd.f32 %v6973, %v7429
      %v7524 = vadd.f32 %v6974, %v7432
      %v7525 = vadd.f32 %v6975, %v7437
      %v7526 = vadd.f32 %v6976, %v7440
      %v7527 = vadd.f32 %v6977, %v7445
      %v7528 = vadd.f32 %v6978, %v7448
      %v7529 = vadd.f32 %v6979, %v7453
      %v7530 = vadd.f32 %v6980, %v7456
      %v7531 = vadd.f32 %v6981, %v7461
      %v7532 = vadd.f32 %v6982, %v7464
      %v7533 = vadd.f32 %v6983, %v7469
      %v7534 = vadd.f32 %v6984, %v7472
      %v7535 = vadd.f32 %v6985, %v7477
      %v7536 = vadd.f32 %v6986, %v7480
      %v7537 = vadd.f32 %v6987, %v7485
      %v7538 = vadd.f32 %v6988, %v7488
      %v7539 = vadd.f32 %v6989, %v7493
      %v7540 = vadd.f32 %v6990, %v7496
      %v7541 = vadd.f32 %v6991, %v7501
      %v7542 = vadd.f32 %v6992, %v7504
      %v7543 = vld [vmem:[#allocation2 + $0x18] sm:$0xf]
      %v7544 = vld [vmem:[#allocation2 + $0x1c] sm:$0xf]
      %v7545 = vld [vmem:[#allocation2 + $0x20] sm:$0xf]
      %v7546 = vld [vmem:[#allocation2 + $0x24] sm:$0xf]
      %v7547 = vld [vmem:[#allocation2 + $0x28] sm:$0xf]
      %v7548 = vld [vmem:[#allocation2 + $0x2c] sm:$0xf]
      %v7549 = vld [vmem:[#allocation2 + $0x30] sm:$0xf]
      %v7550 = vld [vmem:[#allocation2 + $0x34] sm:$0xf]
      %v7551 = vld [vmem:[#allocation2 + $0x38] sm:$0xf]
      %v7552 = vld [vmem:[#allocation2 + $0x3c] sm:$0xf]
      %v7553 = vld [vmem:[#allocation2 + $0x40] sm:$0xf]
      %v7554 = vld [vmem:[#allocation2 + $0x44] sm:$0xf]
      %v7555 = vld [vmem:[#allocation2 + $0x48] sm:$0xf]
      %v7556 = vld [vmem:[#allocation2 + $0x4c] sm:$0xf]
      %v7557 = vld [vmem:[#allocation2 + $0x50] sm:$0xf]
      %v7558 = vld [vmem:[#allocation2 + $0x54] sm:$0xf]
      %v7559 = vld [vmem:[#allocation2 + $0x58] sm:$0xf]
      %v7560 = vld [vmem:[#allocation2 + $0x5c] sm:$0xf]
      %v7561 = vld [vmem:[#allocation2 + $0x60] sm:$0xf]
      %v7562 = vld [vmem:[#allocation2 + $0x64] sm:$0xf]
      %v7563 = vld [vmem:[#allocation2 + $0x68] sm:$0xf]
      %v7564 = vld [vmem:[#allocation2 + $0x6c] sm:$0xf]
      %v7565 = vld [vmem:[#allocation2 + $0x70] sm:$0xf]
      %v7566 = vld [vmem:[#allocation2 + $0x74] sm:$0xf]
      %v7567 = vld [vmem:[#allocation2 + $0x78] sm:$0xf]
      %v7568 = vld [vmem:[#allocation2 + $0x7c] sm:$0xf]
      %v7569 = vld [vmem:[#allocation2 + $0x80] sm:$0xf]
      %v7570 = vld [vmem:[#allocation2 + $0x84] sm:$0xf]
      %v7571 = vld [vmem:[#allocation2 + $0x88] sm:$0xf]
      %v7572 = vld [vmem:[#allocation2 + $0x8c] sm:$0xf]
      %v7573 = vld [vmem:[#allocation2 + $0x90] sm:$0xf]
      %v7574 = vld [vmem:[#allocation2 + $0x94] sm:$0xf]
      %v7575 = vld [vmem:[#allocation2 + $0x98] sm:$0xf]
      %v7576 = vld [vmem:[#allocation2 + $0x9c] sm:$0xf]
      %v7577 = vld [vmem:[#allocation2 + $0xa0] sm:$0xf]
      %v7578 = vld [vmem:[#allocation2 + $0xa4] sm:$0xf]
      %v7579 = vld [vmem:[#allocation2 + $0xa8] sm:$0x1]
      %s7580 = scalar_lea.vmem %s3, 6
      %v7581 = vld [vmem:[%s7580] sm:$0x1]
      %v7619 = vunpack.c.l.b16 %v7543
      %v7620 = vunpack.c.l.b16 %v7544
      %v7621 = vunpack.c.l.b16 %v7545
      %v7622 = vunpack.c.l.b16 %v7546
      %v7623 = vunpack.c.l.b16 %v7547
      %v7624 = vunpack.c.l.b16 %v7548
      %v7625 = vunpack.c.l.b16 %v7549
      %v7626 = vunpack.c.l.b16 %v7550
      %v7627 = vunpack.c.l.b16 %v7551
      %v7628 = vunpack.c.l.b16 %v7552
      %v7629 = vunpack.c.l.b16 %v7553
      %v7630 = vunpack.c.l.b16 %v7554
      %v7631 = vunpack.c.l.b16 %v7555
      %v7632 = vunpack.c.l.b16 %v7556
      %v7633 = vunpack.c.l.b16 %v7557
      %v7634 = vunpack.c.l.b16 %v7558
      %v7635 = vunpack.c.l.b16 %v7559
      %v7636 = vunpack.c.l.b16 %v7560
      %v7637 = vunpack.c.l.b16 %v7561
      %v7638 = vunpack.c.l.b16 %v7562
      %v7639 = vunpack.c.l.b16 %v7563
      %v7640 = vunpack.c.l.b16 %v7564
      %v7641 = vunpack.c.l.b16 %v7565
      %v7642 = vunpack.c.l.b16 %v7566
      %v7643 = vunpack.c.l.b16 %v7567
      %v7644 = vunpack.c.l.b16 %v7568
      %v7645 = vunpack.c.l.b16 %v7569
      %v7646 = vunpack.c.l.b16 %v7570
      %v7647 = vunpack.c.l.b16 %v7571
      %v7648 = vunpack.c.l.b16 %v7572
      %v7649 = vunpack.c.l.b16 %v7573
      %v7650 = vunpack.c.l.b16 %v7574
      %v7651 = vunpack.c.l.b16 %v7575
      %v7652 = vunpack.c.l.b16 %v7576
      %v7653 = vunpack.c.l.b16 %v7577
      %v7654 = vunpack.c.l.b16 %v7578
      %v7655 = vunpack.c.l.b16 %v7579
      %v7656 = vpack.c.b16 %v7620, %v7619
      %v7657 = vpack.c.b16 %v7622, %v7621
      %v7658 = vpack.c.b16 %v7624, %v7623
      %v7659 = vpack.c.b16 %v7626, %v7625
      %v7660 = vpack.c.b16 %v7628, %v7627
      %v7661 = vpack.c.b16 %v7630, %v7629
      %v7662 = vpack.c.b16 %v7632, %v7631
      %v7663 = vpack.c.b16 %v7634, %v7633
      %v7664 = vpack.c.b16 %v7636, %v7635
      %v7665 = vpack.c.b16 %v7638, %v7637
      %v7666 = vpack.c.b16 %v7640, %v7639
      %v7667 = vpack.c.b16 %v7642, %v7641
      %v7668 = vpack.c.b16 %v7644, %v7643
      %v7669 = vpack.c.b16 %v7646, %v7645
      %v7670 = vpack.c.b16 %v7648, %v7647
      %v7671 = vpack.c.b16 %v7650, %v7649
      %v7672 = vpack.c.b16 %v7652, %v7651
      %v7673 = vpack.c.b16 %v7654, %v7653
      %v7674 = vpack.c.b16 %v7655, %v7655
      %v7676 = vshrl.u32 %v7656, 16
      %v7678 = vshll.u32 %v7656, 16
      %v7680 = vrot.slane %v7678, 1
      %v7681 = vor.u32 %v7676, %v7680
      %v7683 = vshll.u32 %v7657, 16
      %v7685 = vrot.slane %v7683, 1
      %v7686 = vsel %vm1058, %v7681, %v7685
      %v7687 = vshrl.u32 %v7657, 16
      %v7689 = vor.u32 %v7687, %v7685
      %v7691 = vshll.u32 %v7658, 16
      %v7693 = vrot.slane %v7691, 1
      %v7694 = vsel %vm1058, %v7689, %v7693
      %v7695 = vshrl.u32 %v7658, 16
      %v7697 = vor.u32 %v7695, %v7693
      %v7699 = vshll.u32 %v7659, 16
      %v7701 = vrot.slane %v7699, 1
      %v7702 = vsel %vm1058, %v7697, %v7701
      %v7703 = vshrl.u32 %v7659, 16
      %v7705 = vor.u32 %v7703, %v7701
      %v7707 = vshll.u32 %v7660, 16
      %v7709 = vrot.slane %v7707, 1
      %v7710 = vsel %vm1058, %v7705, %v7709
      %v7711 = vshrl.u32 %v7660, 16
      %v7713 = vor.u32 %v7711, %v7709
      %v7715 = vshll.u32 %v7661, 16
      %v7717 = vrot.slane %v7715, 1
      %v7718 = vsel %vm1058, %v7713, %v7717
      %v7719 = vshrl.u32 %v7661, 16
      %v7721 = vor.u32 %v7719, %v7717
      %v7723 = vshll.u32 %v7662, 16
      %v7725 = vrot.slane %v7723, 1
      %v7726 = vsel %vm1058, %v7721, %v7725
      %v7727 = vshrl.u32 %v7662, 16
      %v7729 = vor.u32 %v7727, %v7725
      %v7731 = vshll.u32 %v7663, 16
      %v7733 = vrot.slane %v7731, 1
      %v7734 = vsel %vm1058, %v7729, %v7733
      %v7735 = vshrl.u32 %v7663, 16
      %v7737 = vor.u32 %v7735, %v7733
      %v7739 = vshll.u32 %v7664, 16
      %v7741 = vrot.slane %v7739, 1
      %v7742 = vsel %vm1058, %v7737, %v7741
      %v7743 = vshrl.u32 %v7664, 16
      %v7745 = vor.u32 %v7743, %v7741
      %v7747 = vshll.u32 %v7665, 16
      %v7749 = vrot.slane %v7747, 1
      %v7750 = vsel %vm1058, %v7745, %v7749
      %v7751 = vshrl.u32 %v7665, 16
      %v7753 = vor.u32 %v7751, %v7749
      %v7755 = vshll.u32 %v7666, 16
      %v7757 = vrot.slane %v7755, 1
      %v7758 = vsel %vm1058, %v7753, %v7757
      %v7759 = vshrl.u32 %v7666, 16
      %v7761 = vor.u32 %v7759, %v7757
      %v7763 = vshll.u32 %v7667, 16
      %v7765 = vrot.slane %v7763, 1
      %v7766 = vsel %vm1058, %v7761, %v7765
      %v7767 = vshrl.u32 %v7667, 16
      %v7769 = vor.u32 %v7767, %v7765
      %v7771 = vshll.u32 %v7668, 16
      %v7773 = vrot.slane %v7771, 1
      %v7774 = vsel %vm1058, %v7769, %v7773
      %v7775 = vshrl.u32 %v7668, 16
      %v7777 = vor.u32 %v7775, %v7773
      %v7779 = vshll.u32 %v7669, 16
      %v7781 = vrot.slane %v7779, 1
      %v7782 = vsel %vm1058, %v7777, %v7781
      %v7783 = vshrl.u32 %v7669, 16
      %v7785 = vor.u32 %v7783, %v7781
      %v7787 = vshll.u32 %v7670, 16
      %v7789 = vrot.slane %v7787, 1
      %v7790 = vsel %vm1058, %v7785, %v7789
      %v7791 = vshrl.u32 %v7670, 16
      %v7793 = vor.u32 %v7791, %v7789
      %v7795 = vshll.u32 %v7671, 16
      %v7797 = vrot.slane %v7795, 1
      %v7798 = vsel %vm1058, %v7793, %v7797
      %v7799 = vshrl.u32 %v7671, 16
      %v7801 = vor.u32 %v7799, %v7797
      %v7803 = vshll.u32 %v7672, 16
      %v7805 = vrot.slane %v7803, 1
      %v7806 = vsel %vm1058, %v7801, %v7805
      %v7807 = vshrl.u32 %v7672, 16
      %v7809 = vor.u32 %v7807, %v7805
      %v7811 = vshll.u32 %v7673, 16
      %v7813 = vrot.slane %v7811, 1
      %v7814 = vsel %vm1058, %v7809, %v7813
      %v7815 = vshrl.u32 %v7673, 16
      %v7817 = vor.u32 %v7815, %v7813
      %v7819 = vshll.u32 %v7674, 16
      %v7821 = vrot.slane %v7819, 1
      %v7822 = vsel %vm1058, %v7817, %v7821
      %v7824 = vsel %vm1207, %v7686, 0
      %v7827 = vsel %vm1207, %v7694, 0
      %v7830 = vsel %vm1207, %v7702, 0
      %v7833 = vsel %vm1207, %v7710, 0
      %v7836 = vsel %vm1207, %v7718, 0
      %v7839 = vsel %vm1207, %v7726, 0
      %v7842 = vsel %vm1207, %v7734, 0
      %v7845 = vsel %vm1207, %v7742, 0
      %v7848 = vsel %vm1207, %v7750, 0
      %v7851 = vsel %vm1207, %v7758, 0
      %v7854 = vsel %vm1207, %v7766, 0
      %v7857 = vsel %vm1207, %v7774, 0
      %v7860 = vsel %vm1207, %v7782, 0
      %v7863 = vsel %vm1207, %v7790, 0
      %v7866 = vsel %vm1207, %v7798, 0
      %v7869 = vsel %vm1207, %v7806, 0
      %v7872 = vsel %vm1207, %v7814, 0
      %v7875 = vsel %vm1207, %v7822, 0
      %v7878 = vsel %vm1262, %v7581, 0
      %7880 = vmatprep.subr.bf16.mxu0 0
      %7881 = vmatpush1.bf16.msra.mxu0 0
      %7882 = vmatprep.subr.bf16.mxu0 0
      %7883 = vmatpush1.bf16.msra.mxu0 0
      %7884 = vmatprep.subr.bf16.mxu0 0
      %7885 = vmatpush1.bf16.msra.mxu0 0
      %7886 = vmatprep.subr.bf16.mxu0 0
      %7887 = vmatpush1.bf16.msra.mxu0 0
      %7888 = vmatprep.subr.bf16.mxu0 0
      %7889 = vmatpush1.bf16.msra.mxu0 0
      %7890 = vmatprep.subr.bf16.mxu0 0
      %7891 = vmatpush1.bf16.msra.mxu0 0
      %7892 = vmatprep.subr.bf16.mxu0 0
      %7893 = vmatpush1.bf16.msra.mxu0 0
      %7894 = vmatprep.subr.bf16.mxu0 0
      %7895 = vmatpush1.bf16.msra.mxu0 %v7878
      %7896 = vmatprep.subr.bf16.mxu0 0
      %7897 = vmatpush2.bf16.msra.mxu0 0
      %7898 = vmatprep.subr.bf16.mxu0 0
      %7899 = vmatpush2.bf16.msra.mxu0 0
      %7900 = vmatprep.subr.bf16.mxu0 0
      %7901 = vmatpush2.bf16.msra.mxu0 0
      %7902 = vmatprep.subr.bf16.mxu0 0
      %7903 = vmatpush2.bf16.msra.mxu0 0
      %7904 = vmatprep.subr.bf16.mxu0 0
      %7905 = vmatpush2.bf16.msra.mxu0 0
      %7906 = vmatprep.subr.bf16.mxu0 0
      %7907 = vmatpush2.bf16.msra.mxu0 0
      %7908 = vmatprep.subr.bf16.mxu0 0
      %7909 = vmatpush2.bf16.msra.mxu0 0
      %7910 = vmatprep.subr.bf16.mxu0 0
      %7911 = vmatpush2.bf16.msra.mxu0 0
      %7912 = vmatprep.mubr.bf16.mxu0 0
      %7913 = vmatmul.mubr.bf16.gmra.mxu0 %v7824
      %v7914 = vpop.f32.mrf.mxu0
      %v7915 = vadd.f32 0.0, %v7914
      %v7916 = vpop.f32.mrf.mxu0
      %v7917 = vpop.f32.mrf.mxu0
      %v7918 = vadd.f32 0.0, %v7917
      %v7919 = vpop.f32.mrf.mxu0
      %7920 = vmatprep.mubr.bf16.mxu0 0
      %7921 = vmatmul.mubr.bf16.gmra.mxu0 %v7827
      %v7922 = vpop.f32.mrf.mxu0
      %v7923 = vadd.f32 0.0, %v7922
      %v7924 = vpop.f32.mrf.mxu0
      %v7925 = vpop.f32.mrf.mxu0
      %v7926 = vadd.f32 0.0, %v7925
      %v7927 = vpop.f32.mrf.mxu0
      %7928 = vmatprep.mubr.bf16.mxu0 0
      %7929 = vmatmul.mubr.bf16.gmra.mxu0 %v7830
      %v7930 = vpop.f32.mrf.mxu0
      %v7931 = vadd.f32 0.0, %v7930
      %v7932 = vpop.f32.mrf.mxu0
      %v7933 = vpop.f32.mrf.mxu0
      %v7934 = vadd.f32 0.0, %v7933
      %v7935 = vpop.f32.mrf.mxu0
      %7936 = vmatprep.mubr.bf16.mxu0 0
      %7937 = vmatmul.mubr.bf16.gmra.mxu0 %v7833
      %v7938 = vpop.f32.mrf.mxu0
      %v7939 = vadd.f32 0.0, %v7938
      %v7940 = vpop.f32.mrf.mxu0
      %v7941 = vpop.f32.mrf.mxu0
      %v7942 = vadd.f32 0.0, %v7941
      %v7943 = vpop.f32.mrf.mxu0
      %7944 = vmatprep.mubr.bf16.mxu0 0
      %7945 = vmatmul.mubr.bf16.gmra.mxu0 %v7836
      %v7946 = vpop.f32.mrf.mxu0
      %v7947 = vadd.f32 0.0, %v7946
      %v7948 = vpop.f32.mrf.mxu0
      %v7949 = vpop.f32.mrf.mxu0
      %v7950 = vadd.f32 0.0, %v7949
      %v7951 = vpop.f32.mrf.mxu0
      %7952 = vmatprep.mubr.bf16.mxu0 0
      %7953 = vmatmul.mubr.bf16.gmra.mxu0 %v7839
      %v7954 = vpop.f32.mrf.mxu0
      %v7955 = vadd.f32 0.0, %v7954
      %v7956 = vpop.f32.mrf.mxu0
      %v7957 = vpop.f32.mrf.mxu0
      %v7958 = vadd.f32 0.0, %v7957
      %v7959 = vpop.f32.mrf.mxu0
      %7960 = vmatprep.mubr.bf16.mxu0 0
      %7961 = vmatmul.mubr.bf16.gmra.mxu0 %v7842
      %v7962 = vpop.f32.mrf.mxu0
      %v7963 = vadd.f32 0.0, %v7962
      %v7964 = vpop.f32.mrf.mxu0
      %v7965 = vpop.f32.mrf.mxu0
      %v7966 = vadd.f32 0.0, %v7965
      %v7967 = vpop.f32.mrf.mxu0
      %7968 = vmatprep.mubr.bf16.mxu0 0
      %7969 = vmatmul.mubr.bf16.gmra.mxu0 %v7845
      %v7970 = vpop.f32.mrf.mxu0
      %v7971 = vadd.f32 0.0, %v7970
      %v7972 = vpop.f32.mrf.mxu0
      %v7973 = vpop.f32.mrf.mxu0
      %v7974 = vadd.f32 0.0, %v7973
      %v7975 = vpop.f32.mrf.mxu0
      %7976 = vmatprep.mubr.bf16.mxu0 0
      %7977 = vmatmul.mubr.bf16.gmra.mxu0 %v7848
      %v7978 = vpop.f32.mrf.mxu0
      %v7979 = vadd.f32 0.0, %v7978
      %v7980 = vpop.f32.mrf.mxu0
      %v7981 = vpop.f32.mrf.mxu0
      %v7982 = vadd.f32 0.0, %v7981
      %v7983 = vpop.f32.mrf.mxu0
      %7984 = vmatprep.mubr.bf16.mxu0 0
      %7985 = vmatmul.mubr.bf16.gmra.mxu0 %v7851
      %v7986 = vpop.f32.mrf.mxu0
      %v7987 = vadd.f32 0.0, %v7986
      %v7988 = vpop.f32.mrf.mxu0
      %v7989 = vpop.f32.mrf.mxu0
      %v7990 = vadd.f32 0.0, %v7989
      %v7991 = vpop.f32.mrf.mxu0
      %7992 = vmatprep.mubr.bf16.mxu0 0
      %7993 = vmatmul.mubr.bf16.gmra.mxu0 %v7854
      %v7994 = vpop.f32.mrf.mxu0
      %v7995 = vadd.f32 0.0, %v7994
      %v7996 = vpop.f32.mrf.mxu0
      %v7997 = vpop.f32.mrf.mxu0
      %v7998 = vadd.f32 0.0, %v7997
      %v7999 = vpop.f32.mrf.mxu0
      %8000 = vmatprep.mubr.bf16.mxu0 0
      %8001 = vmatmul.mubr.bf16.gmra.mxu0 %v7857
      %v8002 = vpop.f32.mrf.mxu0
      %v8003 = vadd.f32 0.0, %v8002
      %v8004 = vpop.f32.mrf.mxu0
      %v8005 = vpop.f32.mrf.mxu0
      %v8006 = vadd.f32 0.0, %v8005
      %v8007 = vpop.f32.mrf.mxu0
      %8008 = vmatprep.mubr.bf16.mxu0 0
      %8009 = vmatmul.mubr.bf16.gmra.mxu0 %v7860
      %v8010 = vpop.f32.mrf.mxu0
      %v8011 = vadd.f32 0.0, %v8010
      %v8012 = vpop.f32.mrf.mxu0
      %v8013 = vpop.f32.mrf.mxu0
      %v8014 = vadd.f32 0.0, %v8013
      %v8015 = vpop.f32.mrf.mxu0
      %8016 = vmatprep.mubr.bf16.mxu0 0
      %8017 = vmatmul.mubr.bf16.gmra.mxu0 %v7863
      %v8018 = vpop.f32.mrf.mxu0
      %v8019 = vadd.f32 0.0, %v8018
      %v8020 = vpop.f32.mrf.mxu0
      %v8021 = vpop.f32.mrf.mxu0
      %v8022 = vadd.f32 0.0, %v8021
      %v8023 = vpop.f32.mrf.mxu0
      %8024 = vmatprep.mubr.bf16.mxu0 0
      %8025 = vmatmul.mubr.bf16.gmra.mxu0 %v7866
      %v8026 = vpop.f32.mrf.mxu0
      %v8027 = vadd.f32 0.0, %v8026
      %v8028 = vpop.f32.mrf.mxu0
      %v8029 = vpop.f32.mrf.mxu0
      %v8030 = vadd.f32 0.0, %v8029
      %v8031 = vpop.f32.mrf.mxu0
      %8032 = vmatprep.mubr.bf16.mxu0 0
      %8033 = vmatmul.mubr.bf16.gmra.mxu0 %v7869
      %v8034 = vpop.f32.mrf.mxu0
      %v8035 = vadd.f32 0.0, %v8034
      %v8036 = vpop.f32.mrf.mxu0
      %v8037 = vpop.f32.mrf.mxu0
      %v8038 = vadd.f32 0.0, %v8037
      %v8039 = vpop.f32.mrf.mxu0
      %8040 = vmatprep.mubr.bf16.mxu0 0
      %8041 = vmatmul.mubr.bf16.gmra.mxu0 %v7872
      %v8042 = vpop.f32.mrf.mxu0
      %v8043 = vadd.f32 0.0, %v8042
      %v8044 = vpop.f32.mrf.mxu0
      %v8045 = vpop.f32.mrf.mxu0
      %v8046 = vadd.f32 0.0, %v8045
      %v8047 = vpop.f32.mrf.mxu0
      %8048 = vmatprep.mubr.bf16.mxu0 0
      %8049 = vmatmul.mubr.bf16.gmra.mxu0 %v7875
      %v8050 = vpop.f32.mrf.mxu0
      %v8051 = vadd.f32 0.0, %v8050
      %v8052 = vpop.f32.mrf.mxu0
      %v8053 = vpop.f32.mrf.mxu0
      %v8054 = vadd.f32 0.0, %v8053
      %v8055 = vpop.f32.mrf.mxu0
      %8056 = vdwg.mxu0
      %v8057 = vadd.f32 %v7507, %v7915
      %v8058 = vadd.f32 %v7508, %v7918
      %v8059 = vadd.f32 %v7509, %v7923
      %v8060 = vadd.f32 %v7510, %v7926
      %v8061 = vadd.f32 %v7511, %v7931
      %v8062 = vadd.f32 %v7512, %v7934
      %v8063 = vadd.f32 %v7513, %v7939
      %v8064 = vadd.f32 %v7514, %v7942
      %v8065 = vadd.f32 %v7515, %v7947
      %v8066 = vadd.f32 %v7516, %v7950
      %v8067 = vadd.f32 %v7517, %v7955
      %v8068 = vadd.f32 %v7518, %v7958
      %v8069 = vadd.f32 %v7519, %v7963
      %v8070 = vadd.f32 %v7520, %v7966
      %v8071 = vadd.f32 %v7521, %v7971
      %v8072 = vadd.f32 %v7522, %v7974
      %v8073 = vadd.f32 %v7523, %v7979
      %v8074 = vadd.f32 %v7524, %v7982
      %v8075 = vadd.f32 %v7525, %v7987
      %v8076 = vadd.f32 %v7526, %v7990
      %v8077 = vadd.f32 %v7527, %v7995
      %v8078 = vadd.f32 %v7528, %v7998
      %v8079 = vadd.f32 %v7529, %v8003
      %v8080 = vadd.f32 %v7530, %v8006
      %v8081 = vadd.f32 %v7531, %v8011
      %v8082 = vadd.f32 %v7532, %v8014
      %v8083 = vadd.f32 %v7533, %v8019
      %v8084 = vadd.f32 %v7534, %v8022
      %v8085 = vadd.f32 %v7535, %v8027
      %v8086 = vadd.f32 %v7536, %v8030
      %v8087 = vadd.f32 %v7537, %v8035
      %v8088 = vadd.f32 %v7538, %v8038
      %v8089 = vadd.f32 %v7539, %v8043
      %v8090 = vadd.f32 %v7540, %v8046
      %v8091 = vadd.f32 %v7541, %v8051
      %v8092 = vadd.f32 %v7542, %v8054
      %v8093 = vld [vmem:[#allocation2 + $0x18] sm:$0xe]
      %s8094 = scalar_lea.vmem %s3, 7
      %v8095 = vld [vmem:[%s8094] sm:$0x1]
      %v8097 = vunpack.c.l.b16 %v8093
      %v8098 = vpack.c.b16 %v7620, %v8097
      %v8099 = vrot.slane %v8098, 1
      %v8100 = vrot.slane %v7657, 1
      %v8101 = vsel %vm1665, %v8099, %v8100
      %v8102 = vrot.slane %v7658, 1
      %v8103 = vsel %vm1665, %v8100, %v8102
      %v8104 = vrot.slane %v7659, 1
      %v8105 = vsel %vm1665, %v8102, %v8104
      %v8106 = vrot.slane %v7660, 1
      %v8107 = vsel %vm1665, %v8104, %v8106
      %v8108 = vrot.slane %v7661, 1
      %v8109 = vsel %vm1665, %v8106, %v8108
      %v8110 = vrot.slane %v7662, 1
      %v8111 = vsel %vm1665, %v8108, %v8110
      %v8112 = vrot.slane %v7663, 1
      %v8113 = vsel %vm1665, %v8110, %v8112
      %v8114 = vrot.slane %v7664, 1
      %v8115 = vsel %vm1665, %v8112, %v8114
      %v8116 = vrot.slane %v7665, 1
      %v8117 = vsel %vm1665, %v8114, %v8116
      %v8118 = vrot.slane %v7666, 1
      %v8119 = vsel %vm1665, %v8116, %v8118
      %v8120 = vrot.slane %v7667, 1
      %v8121 = vsel %vm1665, %v8118, %v8120
      %v8122 = vrot.slane %v7668, 1
      %v8123 = vsel %vm1665, %v8120, %v8122
      %v8124 = vrot.slane %v7669, 1
      %v8125 = vsel %vm1665, %v8122, %v8124
      %v8126 = vrot.slane %v7670, 1
      %v8127 = vsel %vm1665, %v8124, %v8126
      %v8128 = vrot.slane %v7671, 1
      %v8129 = vsel %vm1665, %v8126, %v8128
      %v8130 = vrot.slane %v7672, 1
      %v8131 = vsel %vm1665, %v8128, %v8130
      %v8132 = vrot.slane %v7673, 1
      %v8133 = vsel %vm1665, %v8130, %v8132
      %v8134 = vrot.slane %v7674, 1
      %v8135 = vsel %vm1665, %v8132, %v8134
      %v8137 = vsel %vm1207, %v8101, 0
      %v8140 = vsel %vm1207, %v8103, 0
      %v8143 = vsel %vm1207, %v8105, 0
      %v8146 = vsel %vm1207, %v8107, 0
      %v8149 = vsel %vm1207, %v8109, 0
      %v8152 = vsel %vm1207, %v8111, 0
      %v8155 = vsel %vm1207, %v8113, 0
      %v8158 = vsel %vm1207, %v8115, 0
      %v8161 = vsel %vm1207, %v8117, 0
      %v8164 = vsel %vm1207, %v8119, 0
      %v8167 = vsel %vm1207, %v8121, 0
      %v8170 = vsel %vm1207, %v8123, 0
      %v8173 = vsel %vm1207, %v8125, 0
      %v8176 = vsel %vm1207, %v8127, 0
      %v8179 = vsel %vm1207, %v8129, 0
      %v8182 = vsel %vm1207, %v8131, 0
      %v8185 = vsel %vm1207, %v8133, 0
      %v8188 = vsel %vm1207, %v8135, 0
      %v8191 = vsel %vm1262, %v8095, 0
      %8193 = vmatprep.subr.bf16.mxu0 0
      %8194 = vmatpush1.bf16.msra.mxu0 0
      %8195 = vmatprep.subr.bf16.mxu0 0
      %8196 = vmatpush1.bf16.msra.mxu0 0
      %8197 = vmatprep.subr.bf16.mxu0 0
      %8198 = vmatpush1.bf16.msra.mxu0 0
      %8199 = vmatprep.subr.bf16.mxu0 0
      %8200 = vmatpush1.bf16.msra.mxu0 0
      %8201 = vmatprep.subr.bf16.mxu0 0
      %8202 = vmatpush1.bf16.msra.mxu0 0
      %8203 = vmatprep.subr.bf16.mxu0 0
      %8204 = vmatpush1.bf16.msra.mxu0 0
      %8205 = vmatprep.subr.bf16.mxu0 0
      %8206 = vmatpush1.bf16.msra.mxu0 0
      %8207 = vmatprep.subr.bf16.mxu0 0
      %8208 = vmatpush1.bf16.msra.mxu0 %v8191
      %8209 = vmatprep.subr.bf16.mxu0 0
      %8210 = vmatpush2.bf16.msra.mxu0 0
      %8211 = vmatprep.subr.bf16.mxu0 0
      %8212 = vmatpush2.bf16.msra.mxu0 0
      %8213 = vmatprep.subr.bf16.mxu0 0
      %8214 = vmatpush2.bf16.msra.mxu0 0
      %8215 = vmatprep.subr.bf16.mxu0 0
      %8216 = vmatpush2.bf16.msra.mxu0 0
      %8217 = vmatprep.subr.bf16.mxu0 0
      %8218 = vmatpush2.bf16.msra.mxu0 0
      %8219 = vmatprep.subr.bf16.mxu0 0
      %8220 = vmatpush2.bf16.msra.mxu0 0
      %8221 = vmatprep.subr.bf16.mxu0 0
      %8222 = vmatpush2.bf16.msra.mxu0 0
      %8223 = vmatprep.subr.bf16.mxu0 0
      %8224 = vmatpush2.bf16.msra.mxu0 0
      %8225 = vmatprep.mubr.bf16.mxu0 0
      %8226 = vmatmul.mubr.bf16.gmra.mxu0 %v8137
      %v8227 = vpop.f32.mrf.mxu0
      %v8228 = vadd.f32 0.0, %v8227
      %v8229 = vpop.f32.mrf.mxu0
      %v8230 = vpop.f32.mrf.mxu0
      %v8231 = vadd.f32 0.0, %v8230
      %v8232 = vpop.f32.mrf.mxu0
      %8233 = vmatprep.mubr.bf16.mxu0 0
      %8234 = vmatmul.mubr.bf16.gmra.mxu0 %v8140
      %v8235 = vpop.f32.mrf.mxu0
      %v8236 = vadd.f32 0.0, %v8235
      %v8237 = vpop.f32.mrf.mxu0
      %v8238 = vpop.f32.mrf.mxu0
      %v8239 = vadd.f32 0.0, %v8238
      %v8240 = vpop.f32.mrf.mxu0
      %8241 = vmatprep.mubr.bf16.mxu0 0
      %8242 = vmatmul.mubr.bf16.gmra.mxu0 %v8143
      %v8243 = vpop.f32.mrf.mxu0
      %v8244 = vadd.f32 0.0, %v8243
      %v8245 = vpop.f32.mrf.mxu0
      %v8246 = vpop.f32.mrf.mxu0
      %v8247 = vadd.f32 0.0, %v8246
      %v8248 = vpop.f32.mrf.mxu0
      %8249 = vmatprep.mubr.bf16.mxu0 0
      %8250 = vmatmul.mubr.bf16.gmra.mxu0 %v8146
      %v8251 = vpop.f32.mrf.mxu0
      %v8252 = vadd.f32 0.0, %v8251
      %v8253 = vpop.f32.mrf.mxu0
      %v8254 = vpop.f32.mrf.mxu0
      %v8255 = vadd.f32 0.0, %v8254
      %v8256 = vpop.f32.mrf.mxu0
      %8257 = vmatprep.mubr.bf16.mxu0 0
      %8258 = vmatmul.mubr.bf16.gmra.mxu0 %v8149
      %v8259 = vpop.f32.mrf.mxu0
      %v8260 = vadd.f32 0.0, %v8259
      %v8261 = vpop.f32.mrf.mxu0
      %v8262 = vpop.f32.mrf.mxu0
      %v8263 = vadd.f32 0.0, %v8262
      %v8264 = vpop.f32.mrf.mxu0
      %8265 = vmatprep.mubr.bf16.mxu0 0
      %8266 = vmatmul.mubr.bf16.gmra.mxu0 %v8152
      %v8267 = vpop.f32.mrf.mxu0
      %v8268 = vadd.f32 0.0, %v8267
      %v8269 = vpop.f32.mrf.mxu0
      %v8270 = vpop.f32.mrf.mxu0
      %v8271 = vadd.f32 0.0, %v8270
      %v8272 = vpop.f32.mrf.mxu0
      %8273 = vmatprep.mubr.bf16.mxu0 0
      %8274 = vmatmul.mubr.bf16.gmra.mxu0 %v8155
      %v8275 = vpop.f32.mrf.mxu0
      %v8276 = vadd.f32 0.0, %v8275
      %v8277 = vpop.f32.mrf.mxu0
      %v8278 = vpop.f32.mrf.mxu0
      %v8279 = vadd.f32 0.0, %v8278
      %v8280 = vpop.f32.mrf.mxu0
      %8281 = vmatprep.mubr.bf16.mxu0 0
      %8282 = vmatmul.mubr.bf16.gmra.mxu0 %v8158
      %v8283 = vpop.f32.mrf.mxu0
      %v8284 = vadd.f32 0.0, %v8283
      %v8285 = vpop.f32.mrf.mxu0
      %v8286 = vpop.f32.mrf.mxu0
      %v8287 = vadd.f32 0.0, %v8286
      %v8288 = vpop.f32.mrf.mxu0
      %8289 = vmatprep.mubr.bf16.mxu0 0
      %8290 = vmatmul.mubr.bf16.gmra.mxu0 %v8161
      %v8291 = vpop.f32.mrf.mxu0
      %v8292 = vadd.f32 0.0, %v8291
      %v8293 = vpop.f32.mrf.mxu0
      %v8294 = vpop.f32.mrf.mxu0
      %v8295 = vadd.f32 0.0, %v8294
      %v8296 = vpop.f32.mrf.mxu0
      %8297 = vmatprep.mubr.bf16.mxu0 0
      %8298 = vmatmul.mubr.bf16.gmra.mxu0 %v8164
      %v8299 = vpop.f32.mrf.mxu0
      %v8300 = vadd.f32 0.0, %v8299
      %v8301 = vpop.f32.mrf.mxu0
      %v8302 = vpop.f32.mrf.mxu0
      %v8303 = vadd.f32 0.0, %v8302
      %v8304 = vpop.f32.mrf.mxu0
      %8305 = vmatprep.mubr.bf16.mxu0 0
      %8306 = vmatmul.mubr.bf16.gmra.mxu0 %v8167
      %v8307 = vpop.f32.mrf.mxu0
      %v8308 = vadd.f32 0.0, %v8307
      %v8309 = vpop.f32.mrf.mxu0
      %v8310 = vpop.f32.mrf.mxu0
      %v8311 = vadd.f32 0.0, %v8310
      %v8312 = vpop.f32.mrf.mxu0
      %8313 = vmatprep.mubr.bf16.mxu0 0
      %8314 = vmatmul.mubr.bf16.gmra.mxu0 %v8170
      %v8315 = vpop.f32.mrf.mxu0
      %v8316 = vadd.f32 0.0, %v8315
      %v8317 = vpop.f32.mrf.mxu0
      %v8318 = vpop.f32.mrf.mxu0
      %v8319 = vadd.f32 0.0, %v8318
      %v8320 = vpop.f32.mrf.mxu0
      %8321 = vmatprep.mubr.bf16.mxu0 0
      %8322 = vmatmul.mubr.bf16.gmra.mxu0 %v8173
      %v8323 = vpop.f32.mrf.mxu0
      %v8324 = vadd.f32 0.0, %v8323
      %v8325 = vpop.f32.mrf.mxu0
      %v8326 = vpop.f32.mrf.mxu0
      %v8327 = vadd.f32 0.0, %v8326
      %v8328 = vpop.f32.mrf.mxu0
      %8329 = vmatprep.mubr.bf16.mxu0 0
      %8330 = vmatmul.mubr.bf16.gmra.mxu0 %v8176
      %v8331 = vpop.f32.mrf.mxu0
      %v8332 = vadd.f32 0.0, %v8331
      %v8333 = vpop.f32.mrf.mxu0
      %v8334 = vpop.f32.mrf.mxu0
      %v8335 = vadd.f32 0.0, %v8334
      %v8336 = vpop.f32.mrf.mxu0
      %8337 = vmatprep.mubr.bf16.mxu0 0
      %8338 = vmatmul.mubr.bf16.gmra.mxu0 %v8179
      %v8339 = vpop.f32.mrf.mxu0
      %v8340 = vadd.f32 0.0, %v8339
      %v8341 = vpop.f32.mrf.mxu0
      %v8342 = vpop.f32.mrf.mxu0
      %v8343 = vadd.f32 0.0, %v8342
      %v8344 = vpop.f32.mrf.mxu0
      %8345 = vmatprep.mubr.bf16.mxu0 0
      %8346 = vmatmul.mubr.bf16.gmra.mxu0 %v8182
      %v8347 = vpop.f32.mrf.mxu0
      %v8348 = vadd.f32 0.0, %v8347
      %v8349 = vpop.f32.mrf.mxu0
      %v8350 = vpop.f32.mrf.mxu0
      %v8351 = vadd.f32 0.0, %v8350
      %v8352 = vpop.f32.mrf.mxu0
      %8353 = vmatprep.mubr.bf16.mxu0 0
      %8354 = vmatmul.mubr.bf16.gmra.mxu0 %v8185
      %v8355 = vpop.f32.mrf.mxu0
      %v8356 = vadd.f32 0.0, %v8355
      %v8357 = vpop.f32.mrf.mxu0
      %v8358 = vpop.f32.mrf.mxu0
      %v8359 = vadd.f32 0.0, %v8358
      %v8360 = vpop.f32.mrf.mxu0
      %8361 = vmatprep.mubr.bf16.mxu0 0
      %8362 = vmatmul.mubr.bf16.gmra.mxu0 %v8188
      %v8363 = vpop.f32.mrf.mxu0
      %v8364 = vadd.f32 0.0, %v8363
      %v8365 = vpop.f32.mrf.mxu0
      %v8366 = vpop.f32.mrf.mxu0
      %v8367 = vadd.f32 0.0, %v8366
      %v8368 = vpop.f32.mrf.mxu0
      %8369 = vdwg.mxu0
      %v8370 = vadd.f32 %v8057, %v8228
      %v8371 = vadd.f32 %v8058, %v8231
      %v8372 = vadd.f32 %v8059, %v8236
      %v8373 = vadd.f32 %v8060, %v8239
      %v8374 = vadd.f32 %v8061, %v8244
      %v8375 = vadd.f32 %v8062, %v8247
      %v8376 = vadd.f32 %v8063, %v8252
      %v8377 = vadd.f32 %v8064, %v8255
      %v8378 = vadd.f32 %v8065, %v8260
      %v8379 = vadd.f32 %v8066, %v8263
      %v8380 = vadd.f32 %v8067, %v8268
      %v8381 = vadd.f32 %v8068, %v8271
      %v8382 = vadd.f32 %v8069, %v8276
      %v8383 = vadd.f32 %v8070, %v8279
      %v8384 = vadd.f32 %v8071, %v8284
      %v8385 = vadd.f32 %v8072, %v8287
      %v8386 = vadd.f32 %v8073, %v8292
      %v8387 = vadd.f32 %v8074, %v8295
      %v8388 = vadd.f32 %v8075, %v8300
      %v8389 = vadd.f32 %v8076, %v8303
      %v8390 = vadd.f32 %v8077, %v8308
      %v8391 = vadd.f32 %v8078, %v8311
      %v8392 = vadd.f32 %v8079, %v8316
      %v8393 = vadd.f32 %v8080, %v8319
      %v8394 = vadd.f32 %v8081, %v8324
      %v8395 = vadd.f32 %v8082, %v8327
      %v8396 = vadd.f32 %v8083, %v8332
      %v8397 = vadd.f32 %v8084, %v8335
      %v8398 = vadd.f32 %v8085, %v8340
      %v8399 = vadd.f32 %v8086, %v8343
      %v8400 = vadd.f32 %v8087, %v8348
      %v8401 = vadd.f32 %v8088, %v8351
      %v8402 = vadd.f32 %v8089, %v8356
      %v8403 = vadd.f32 %v8090, %v8359
      %v8404 = vadd.f32 %v8091, %v8364
      %v8405 = vadd.f32 %v8092, %v8367
      %v8406 = vld [vmem:[#allocation2 + $0xa8] sm:$0x3]
      %s8407 = scalar_lea.vmem %s3, 8
      %v8408 = vld [vmem:[%s8407] sm:$0x1]
      %v8410 = vunpack.c.l.b16 %v8406
      %v8411 = vpack.c.b16 %v8410, %v8410
      %v8413 = vshrl.u32 %v8098, 16
      %v8415 = vrot.slane %v8413, 1
      %v8416 = vshll.u32 %v8098, 16
      %v8418 = vrot.slane %v8416, 2
      %v8419 = vor.u32 %v8415, %v8418
      %v8420 = vrot.slane %v7687, 1
      %v8421 = vrot.slane %v7683, 2
      %v8422 = vor.u32 %v8420, %v8421
      %v8423 = vsel %vm2418, %v8419, %v8422
      %v8424 = vrot.slane %v7695, 1
      %v8425 = vrot.slane %v7691, 2
      %v8426 = vor.u32 %v8424, %v8425
      %v8427 = vsel %vm2418, %v8422, %v8426
      %v8428 = vrot.slane %v7703, 1
      %v8429 = vrot.slane %v7699, 2
      %v8430 = vor.u32 %v8428, %v8429
      %v8431 = vsel %vm2418, %v8426, %v8430
      %v8432 = vrot.slane %v7711, 1
      %v8433 = vrot.slane %v7707, 2
      %v8434 = vor.u32 %v8432, %v8433
      %v8435 = vsel %vm2418, %v8430, %v8434
      %v8436 = vrot.slane %v7719, 1
      %v8437 = vrot.slane %v7715, 2
      %v8438 = vor.u32 %v8436, %v8437
      %v8439 = vsel %vm2418, %v8434, %v8438
      %v8440 = vrot.slane %v7727, 1
      %v8441 = vrot.slane %v7723, 2
      %v8442 = vor.u32 %v8440, %v8441
      %v8443 = vsel %vm2418, %v8438, %v8442
      %v8444 = vrot.slane %v7735, 1
      %v8445 = vrot.slane %v7731, 2
      %v8446 = vor.u32 %v8444, %v8445
      %v8447 = vsel %vm2418, %v8442, %v8446
      %v8448 = vrot.slane %v7743, 1
      %v8449 = vrot.slane %v7739, 2
      %v8450 = vor.u32 %v8448, %v8449
      %v8451 = vsel %vm2418, %v8446, %v8450
      %v8452 = vrot.slane %v7751, 1
      %v8453 = vrot.slane %v7747, 2
      %v8454 = vor.u32 %v8452, %v8453
      %v8455 = vsel %vm2418, %v8450, %v8454
      %v8456 = vrot.slane %v7759, 1
      %v8457 = vrot.slane %v7755, 2
      %v8458 = vor.u32 %v8456, %v8457
      %v8459 = vsel %vm2418, %v8454, %v8458
      %v8460 = vrot.slane %v7767, 1
      %v8461 = vrot.slane %v7763, 2
      %v8462 = vor.u32 %v8460, %v8461
      %v8463 = vsel %vm2418, %v8458, %v8462
      %v8464 = vrot.slane %v7775, 1
      %v8465 = vrot.slane %v7771, 2
      %v8466 = vor.u32 %v8464, %v8465
      %v8467 = vsel %vm2418, %v8462, %v8466
      %v8468 = vrot.slane %v7783, 1
      %v8469 = vrot.slane %v7779, 2
      %v8470 = vor.u32 %v8468, %v8469
      %v8471 = vsel %vm2418, %v8466, %v8470
      %v8472 = vrot.slane %v7791, 1
      %v8473 = vrot.slane %v7787, 2
      %v8474 = vor.u32 %v8472, %v8473
      %v8475 = vsel %vm2418, %v8470, %v8474
      %v8476 = vrot.slane %v7799, 1
      %v8477 = vrot.slane %v7795, 2
      %v8478 = vor.u32 %v8476, %v8477
      %v8479 = vsel %vm2418, %v8474, %v8478
      %v8480 = vrot.slane %v7807, 1
      %v8481 = vrot.slane %v7803, 2
      %v8482 = vor.u32 %v8480, %v8481
      %v8483 = vsel %vm2418, %v8478, %v8482
      %v8484 = vrot.slane %v7815, 1
      %v8485 = vrot.slane %v7811, 2
      %v8486 = vor.u32 %v8484, %v8485
      %v8487 = vsel %vm2418, %v8482, %v8486
      %v8489 = vshrl.u32 %v8411, 16
      %v8491 = vrot.slane %v8489, 1
      %v8492 = vshll.u32 %v8411, 16
      %v8494 = vrot.slane %v8492, 2
      %v8495 = vor.u32 %v8491, %v8494
      %v8496 = vsel %vm2418, %v8486, %v8495
      %v8498 = vsel %vm1207, %v8423, 0
      %v8501 = vsel %vm1207, %v8427, 0
      %v8504 = vsel %vm1207, %v8431, 0
      %v8507 = vsel %vm1207, %v8435, 0
      %v8510 = vsel %vm1207, %v8439, 0
      %v8513 = vsel %vm1207, %v8443, 0
      %v8516 = vsel %vm1207, %v8447, 0
      %v8519 = vsel %vm1207, %v8451, 0
      %v8522 = vsel %vm1207, %v8455, 0
      %v8525 = vsel %vm1207, %v8459, 0
      %v8528 = vsel %vm1207, %v8463, 0
      %v8531 = vsel %vm1207, %v8467, 0
      %v8534 = vsel %vm1207, %v8471, 0
      %v8537 = vsel %vm1207, %v8475, 0
      %v8540 = vsel %vm1207, %v8479, 0
      %v8543 = vsel %vm1207, %v8483, 0
      %v8546 = vsel %vm1207, %v8487, 0
      %v8549 = vsel %vm1207, %v8496, 0
      %v8552 = vsel %vm1262, %v8408, 0
      %8554 = vmatprep.subr.bf16.mxu0 0
      %8555 = vmatpush1.bf16.msra.mxu0 0
      %8556 = vmatprep.subr.bf16.mxu0 0
      %8557 = vmatpush1.bf16.msra.mxu0 0
      %8558 = vmatprep.subr.bf16.mxu0 0
      %8559 = vmatpush1.bf16.msra.mxu0 0
      %8560 = vmatprep.subr.bf16.mxu0 0
      %8561 = vmatpush1.bf16.msra.mxu0 0
      %8562 = vmatprep.subr.bf16.mxu0 0
      %8563 = vmatpush1.bf16.msra.mxu0 0
      %8564 = vmatprep.subr.bf16.mxu0 0
      %8565 = vmatpush1.bf16.msra.mxu0 0
      %8566 = vmatprep.subr.bf16.mxu0 0
      %8567 = vmatpush1.bf16.msra.mxu0 0
      %8568 = vmatprep.subr.bf16.mxu0 0
      %8569 = vmatpush1.bf16.msra.mxu0 %v8552
      %8570 = vmatprep.subr.bf16.mxu0 0
      %8571 = vmatpush2.bf16.msra.mxu0 0
      %8572 = vmatprep.subr.bf16.mxu0 0
      %8573 = vmatpush2.bf16.msra.mxu0 0
      %8574 = vmatprep.subr.bf16.mxu0 0
      %8575 = vmatpush2.bf16.msra.mxu0 0
      %8576 = vmatprep.subr.bf16.mxu0 0
      %8577 = vmatpush2.bf16.msra.mxu0 0
      %8578 = vmatprep.subr.bf16.mxu0 0
      %8579 = vmatpush2.bf16.msra.mxu0 0
      %8580 = vmatprep.subr.bf16.mxu0 0
      %8581 = vmatpush2.bf16.msra.mxu0 0
      %8582 = vmatprep.subr.bf16.mxu0 0
      %8583 = vmatpush2.bf16.msra.mxu0 0
      %8584 = vmatprep.subr.bf16.mxu0 0
      %8585 = vmatpush2.bf16.msra.mxu0 0
      %8586 = vmatprep.mubr.bf16.mxu0 0
      %8587 = vmatmul.mubr.bf16.gmra.mxu0 %v8498
      %v8588 = vpop.f32.mrf.mxu0
      %v8589 = vadd.f32 0.0, %v8588
      %v8590 = vpop.f32.mrf.mxu0
      %v8591 = vpop.f32.mrf.mxu0
      %v8592 = vadd.f32 0.0, %v8591
      %v8593 = vpop.f32.mrf.mxu0
      %8594 = vmatprep.mubr.bf16.mxu0 0
      %8595 = vmatmul.mubr.bf16.gmra.mxu0 %v8501
      %v8596 = vpop.f32.mrf.mxu0
      %v8597 = vadd.f32 0.0, %v8596
      %v8598 = vpop.f32.mrf.mxu0
      %v8599 = vpop.f32.mrf.mxu0
      %v8600 = vadd.f32 0.0, %v8599
      %v8601 = vpop.f32.mrf.mxu0
      %8602 = vmatprep.mubr.bf16.mxu0 0
      %8603 = vmatmul.mubr.bf16.gmra.mxu0 %v8504
      %v8604 = vpop.f32.mrf.mxu0
      %v8605 = vadd.f32 0.0, %v8604
      %v8606 = vpop.f32.mrf.mxu0
      %v8607 = vpop.f32.mrf.mxu0
      %v8608 = vadd.f32 0.0, %v8607
      %v8609 = vpop.f32.mrf.mxu0
      %8610 = vmatprep.mubr.bf16.mxu0 0
      %8611 = vmatmul.mubr.bf16.gmra.mxu0 %v8507
      %v8612 = vpop.f32.mrf.mxu0
      %v8613 = vadd.f32 0.0, %v8612
      %v8614 = vpop.f32.mrf.mxu0
      %v8615 = vpop.f32.mrf.mxu0
      %v8616 = vadd.f32 0.0, %v8615
      %v8617 = vpop.f32.mrf.mxu0
      %8618 = vmatprep.mubr.bf16.mxu0 0
      %8619 = vmatmul.mubr.bf16.gmra.mxu0 %v8510
      %v8620 = vpop.f32.mrf.mxu0
      %v8621 = vadd.f32 0.0, %v8620
      %v8622 = vpop.f32.mrf.mxu0
      %v8623 = vpop.f32.mrf.mxu0
      %v8624 = vadd.f32 0.0, %v8623
      %v8625 = vpop.f32.mrf.mxu0
      %8626 = vmatprep.mubr.bf16.mxu0 0
      %8627 = vmatmul.mubr.bf16.gmra.mxu0 %v8513
      %v8628 = vpop.f32.mrf.mxu0
      %v8629 = vadd.f32 0.0, %v8628
      %v8630 = vpop.f32.mrf.mxu0
      %v8631 = vpop.f32.mrf.mxu0
      %v8632 = vadd.f32 0.0, %v8631
      %v8633 = vpop.f32.mrf.mxu0
      %8634 = vmatprep.mubr.bf16.mxu0 0
      %8635 = vmatmul.mubr.bf16.gmra.mxu0 %v8516
      %v8636 = vpop.f32.mrf.mxu0
      %v8637 = vadd.f32 0.0, %v8636
      %v8638 = vpop.f32.mrf.mxu0
      %v8639 = vpop.f32.mrf.mxu0
      %v8640 = vadd.f32 0.0, %v8639
      %v8641 = vpop.f32.mrf.mxu0
      %8642 = vmatprep.mubr.bf16.mxu0 0
      %8643 = vmatmul.mubr.bf16.gmra.mxu0 %v8519
      %v8644 = vpop.f32.mrf.mxu0
      %v8645 = vadd.f32 0.0, %v8644
      %v8646 = vpop.f32.mrf.mxu0
      %v8647 = vpop.f32.mrf.mxu0
      %v8648 = vadd.f32 0.0, %v8647
      %v8649 = vpop.f32.mrf.mxu0
      %8650 = vmatprep.mubr.bf16.mxu0 0
      %8651 = vmatmul.mubr.bf16.gmra.mxu0 %v8522
      %v8652 = vpop.f32.mrf.mxu0
      %v8653 = vadd.f32 0.0, %v8652
      %v8654 = vpop.f32.mrf.mxu0
      %v8655 = vpop.f32.mrf.mxu0
      %v8656 = vadd.f32 0.0, %v8655
      %v8657 = vpop.f32.mrf.mxu0
      %8658 = vmatprep.mubr.bf16.mxu0 0
      %8659 = vmatmul.mubr.bf16.gmra.mxu0 %v8525
      %v8660 = vpop.f32.mrf.mxu0
      %v8661 = vadd.f32 0.0, %v8660
      %v8662 = vpop.f32.mrf.mxu0
      %v8663 = vpop.f32.mrf.mxu0
      %v8664 = vadd.f32 0.0, %v8663
      %v8665 = vpop.f32.mrf.mxu0
      %8666 = vmatprep.mubr.bf16.mxu0 0
      %8667 = vmatmul.mubr.bf16.gmra.mxu0 %v8528
      %v8668 = vpop.f32.mrf.mxu0
      %v8669 = vadd.f32 0.0, %v8668
      %v8670 = vpop.f32.mrf.mxu0
      %v8671 = vpop.f32.mrf.mxu0
      %v8672 = vadd.f32 0.0, %v8671
      %v8673 = vpop.f32.mrf.mxu0
      %8674 = vmatprep.mubr.bf16.mxu0 0
      %8675 = vmatmul.mubr.bf16.gmra.mxu0 %v8531
      %v8676 = vpop.f32.mrf.mxu0
      %v8677 = vadd.f32 0.0, %v8676
      %v8678 = vpop.f32.mrf.mxu0
      %v8679 = vpop.f32.mrf.mxu0
      %v8680 = vadd.f32 0.0, %v8679
      %v8681 = vpop.f32.mrf.mxu0
      %8682 = vmatprep.mubr.bf16.mxu0 0
      %8683 = vmatmul.mubr.bf16.gmra.mxu0 %v8534
      %v8684 = vpop.f32.mrf.mxu0
      %v8685 = vadd.f32 0.0, %v8684
      %v8686 = vpop.f32.mrf.mxu0
      %v8687 = vpop.f32.mrf.mxu0
      %v8688 = vadd.f32 0.0, %v8687
      %v8689 = vpop.f32.mrf.mxu0
      %8690 = vmatprep.mubr.bf16.mxu0 0
      %8691 = vmatmul.mubr.bf16.gmra.mxu0 %v8537
      %v8692 = vpop.f32.mrf.mxu0
      %v8693 = vadd.f32 0.0, %v8692
      %v8694 = vpop.f32.mrf.mxu0
      %v8695 = vpop.f32.mrf.mxu0
      %v8696 = vadd.f32 0.0, %v8695
      %v8697 = vpop.f32.mrf.mxu0
      %8698 = vmatprep.mubr.bf16.mxu0 0
      %8699 = vmatmul.mubr.bf16.gmra.mxu0 %v8540
      %v8700 = vpop.f32.mrf.mxu0
      %v8701 = vadd.f32 0.0, %v8700
      %v8702 = vpop.f32.mrf.mxu0
      %v8703 = vpop.f32.mrf.mxu0
      %v8704 = vadd.f32 0.0, %v8703
      %v8705 = vpop.f32.mrf.mxu0
      %8706 = vmatprep.mubr.bf16.mxu0 0
      %8707 = vmatmul.mubr.bf16.gmra.mxu0 %v8543
      %v8708 = vpop.f32.mrf.mxu0
      %v8709 = vadd.f32 0.0, %v8708
      %v8710 = vpop.f32.mrf.mxu0
      %v8711 = vpop.f32.mrf.mxu0
      %v8712 = vadd.f32 0.0, %v8711
      %v8713 = vpop.f32.mrf.mxu0
      %8714 = vmatprep.mubr.bf16.mxu0 0
      %8715 = vmatmul.mubr.bf16.gmra.mxu0 %v8546
      %v8716 = vpop.f32.mrf.mxu0
      %v8717 = vadd.f32 0.0, %v8716
      %v8718 = vpop.f32.mrf.mxu0
      %v8719 = vpop.f32.mrf.mxu0
      %v8720 = vadd.f32 0.0, %v8719
      %v8721 = vpop.f32.mrf.mxu0
      %8722 = vmatprep.mubr.bf16.mxu0 0
      %8723 = vmatmul.mubr.bf16.gmra.mxu0 %v8549
      %v8724 = vpop.f32.mrf.mxu0
      %v8725 = vadd.f32 0.0, %v8724
      %v8726 = vpop.f32.mrf.mxu0
      %v8727 = vpop.f32.mrf.mxu0
      %v8728 = vadd.f32 0.0, %v8727
      %v8729 = vpop.f32.mrf.mxu0
      %8730 = vdwg.mxu0
      %v8731 = vadd.f32 %v8370, %v8589
      %v8732 = vadd.f32 %v8371, %v8592
      %v8733 = vadd.f32 %v8372, %v8597
      %v8734 = vadd.f32 %v8373, %v8600
      %v8735 = vadd.f32 %v8374, %v8605
      %v8736 = vadd.f32 %v8375, %v8608
      %v8737 = vadd.f32 %v8376, %v8613
      %v8738 = vadd.f32 %v8377, %v8616
      %v8739 = vadd.f32 %v8378, %v8621
      %v8740 = vadd.f32 %v8379, %v8624
      %v8741 = vadd.f32 %v8380, %v8629
      %v8742 = vadd.f32 %v8381, %v8632
      %v8743 = vadd.f32 %v8382, %v8637
      %v8744 = vadd.f32 %v8383, %v8640
      %v8745 = vadd.f32 %v8384, %v8645
      %v8746 = vadd.f32 %v8385, %v8648
      %v8747 = vadd.f32 %v8386, %v8653
      %v8748 = vadd.f32 %v8387, %v8656
      %v8749 = vadd.f32 %v8388, %v8661
      %v8750 = vadd.f32 %v8389, %v8664
      %v8751 = vadd.f32 %v8390, %v8669
      %v8752 = vadd.f32 %v8391, %v8672
      %v8753 = vadd.f32 %v8392, %v8677
      %v8754 = vadd.f32 %v8393, %v8680
      %v8755 = vadd.f32 %v8394, %v8685
      %v8756 = vadd.f32 %v8395, %v8688
      %v8757 = vadd.f32 %v8396, %v8693
      %v8758 = vadd.f32 %v8397, %v8696
      %v8759 = vadd.f32 %v8398, %v8701
      %v8760 = vadd.f32 %v8399, %v8704
      %v8761 = vadd.f32 %v8400, %v8709
      %v8762 = vadd.f32 %v8401, %v8712
      %v8763 = vadd.f32 %v8402, %v8717
      %v8764 = vadd.f32 %v8403, %v8720
      %v8765 = vadd.f32 %v8404, %v8725
      %v8766 = vadd.f32 %v8405, %v8728
      %v8767 = vld [vmem:[%s4] sm:$0x1]
      %v8769 = vlaneseq
      %v8770 = vshrl.u32 %v8769, 7
      %v8771 = vsub.s32 0, %v8770
      %v8772 = vrot.slane %v8767, %v8771
      %v8774 = vadd.f32 %v8731, %v8772
      %v8775 = vadd.f32 %v8732, %v8772
      %v8776 = vadd.f32 %v8733, %v8772
      %v8777 = vadd.f32 %v8734, %v8772
      %v8778 = vadd.f32 %v8735, %v8772
      %v8779 = vadd.f32 %v8736, %v8772
      %v8780 = vadd.f32 %v8737, %v8772
      %v8781 = vadd.f32 %v8738, %v8772
      %v8782 = vadd.f32 %v8739, %v8772
      %v8783 = vadd.f32 %v8740, %v8772
      %v8784 = vadd.f32 %v8741, %v8772
      %v8785 = vadd.f32 %v8742, %v8772
      %v8786 = vadd.f32 %v8743, %v8772
      %v8787 = vadd.f32 %v8744, %v8772
      %v8788 = vadd.f32 %v8745, %v8772
      %v8789 = vadd.f32 %v8746, %v8772
      %v8790 = vadd.f32 %v8747, %v8772
      %v8791 = vadd.f32 %v8748, %v8772
      %v8792 = vadd.f32 %v8749, %v8772
      %v8793 = vadd.f32 %v8750, %v8772
      %v8794 = vadd.f32 %v8751, %v8772
      %v8795 = vadd.f32 %v8752, %v8772
      %v8796 = vadd.f32 %v8753, %v8772
      %v8797 = vadd.f32 %v8754, %v8772
      %v8798 = vadd.f32 %v8755, %v8772
      %v8799 = vadd.f32 %v8756, %v8772
      %v8800 = vadd.f32 %v8757, %v8772
      %v8801 = vadd.f32 %v8758, %v8772
      %v8802 = vadd.f32 %v8759, %v8772
      %v8803 = vadd.f32 %v8760, %v8772
      %v8804 = vadd.f32 %v8761, %v8772
      %v8805 = vadd.f32 %v8762, %v8772
      %v8806 = vadd.f32 %v8763, %v8772
      %v8807 = vadd.f32 %v8764, %v8772
      %v8808 = vadd.f32 %v8765, %v8772
      %v8809 = vadd.f32 %v8766, %v8772
      %v8810 = vxor.u32 %v8774, 2147483648
      %v8811 = vxor.u32 %v8775, 2147483648
      %v8812 = vxor.u32 %v8776, 2147483648
      %v8813 = vxor.u32 %v8777, 2147483648
      %v8814 = vxor.u32 %v8778, 2147483648
      %v8815 = vxor.u32 %v8779, 2147483648
      %v8816 = vxor.u32 %v8780, 2147483648
      %v8817 = vxor.u32 %v8781, 2147483648
      %v8818 = vxor.u32 %v8782, 2147483648
      %v8819 = vxor.u32 %v8783, 2147483648
      %v8820 = vxor.u32 %v8784, 2147483648
      %v8821 = vxor.u32 %v8785, 2147483648
      %v8822 = vxor.u32 %v8786, 2147483648
      %v8823 = vxor.u32 %v8787, 2147483648
      %v8824 = vxor.u32 %v8788, 2147483648
      %v8825 = vxor.u32 %v8789, 2147483648
      %v8826 = vxor.u32 %v8790, 2147483648
      %v8827 = vxor.u32 %v8791, 2147483648
      %v8828 = vxor.u32 %v8792, 2147483648
      %v8829 = vxor.u32 %v8793, 2147483648
      %v8830 = vxor.u32 %v8794, 2147483648
      %v8831 = vxor.u32 %v8795, 2147483648
      %v8832 = vxor.u32 %v8796, 2147483648
      %v8833 = vxor.u32 %v8797, 2147483648
      %v8834 = vxor.u32 %v8798, 2147483648
      %v8835 = vxor.u32 %v8799, 2147483648
      %v8836 = vxor.u32 %v8800, 2147483648
      %v8837 = vxor.u32 %v8801, 2147483648
      %v8838 = vxor.u32 %v8802, 2147483648
      %v8839 = vxor.u32 %v8803, 2147483648
      %v8840 = vxor.u32 %v8804, 2147483648
      %v8841 = vxor.u32 %v8805, 2147483648
      %v8842 = vxor.u32 %v8806, 2147483648
      %v8843 = vxor.u32 %v8807, 2147483648
      %v8844 = vxor.u32 %v8808, 2147483648
      %v8845 = vxor.u32 %v8809, 2147483648
      %v8846 = vmul.f32 %v8810, 1.442695
      %v8847 = vpow.pop %v8846
      %v8848 = vmul.f32 %v8811, 1.442695
      %v8849 = vpow.pop %v8848
      %v8850 = vmul.f32 %v8812, 1.442695
      %v8851 = vpow.pop %v8850
      %v8852 = vmul.f32 %v8813, 1.442695
      %v8853 = vpow.pop %v8852
      %v8854 = vmul.f32 %v8814, 1.442695
      %v8855 = vpow.pop %v8854
      %v8856 = vmul.f32 %v8815, 1.442695
      %v8857 = vpow.pop %v8856
      %v8858 = vmul.f32 %v8816, 1.442695
      %v8859 = vpow.pop %v8858
      %v8860 = vmul.f32 %v8817, 1.442695
      %v8861 = vpow.pop %v8860
      %v8862 = vmul.f32 %v8818, 1.442695
      %v8863 = vpow.pop %v8862
      %v8864 = vmul.f32 %v8819, 1.442695
      %v8865 = vpow.pop %v8864
      %v8866 = vmul.f32 %v8820, 1.442695
      %v8867 = vpow.pop %v8866
      %v8868 = vmul.f32 %v8821, 1.442695
      %v8869 = vpow.pop %v8868
      %v8870 = vmul.f32 %v8822, 1.442695
      %v8871 = vpow.pop %v8870
      %v8872 = vmul.f32 %v8823, 1.442695
      %v8873 = vpow.pop %v8872
      %v8874 = vmul.f32 %v8824, 1.442695
      %v8875 = vpow.pop %v8874
      %v8876 = vmul.f32 %v8825, 1.442695
      %v8877 = vpow.pop %v8876
      %v8878 = vmul.f32 %v8826, 1.442695
      %v8879 = vpow.pop %v8878
      %v8880 = vmul.f32 %v8827, 1.442695
      %v8881 = vpow.pop %v8880
      %v8882 = vmul.f32 %v8828, 1.442695
      %v8883 = vpow.pop %v8882
      %v8884 = vmul.f32 %v8829, 1.442695
      %v8885 = vpow.pop %v8884
      %v8886 = vmul.f32 %v8830, 1.442695
      %v8887 = vpow.pop %v8886
      %v8888 = vmul.f32 %v8831, 1.442695
      %v8889 = vpow.pop %v8888
      %v8890 = vmul.f32 %v8832, 1.442695
      %v8891 = vpow.pop %v8890
      %v8892 = vmul.f32 %v8833, 1.442695
      %v8893 = vpow.pop %v8892
      %v8894 = vmul.f32 %v8834, 1.442695
      %v8895 = vpow.pop %v8894
      %v8896 = vmul.f32 %v8835, 1.442695
      %v8897 = vpow.pop %v8896
      %v8898 = vmul.f32 %v8836, 1.442695
      %v8899 = vpow.pop %v8898
      %v8900 = vmul.f32 %v8837, 1.442695
      %v8901 = vpow.pop %v8900
      %v8902 = vmul.f32 %v8838, 1.442695
      %v8903 = vpow.pop %v8902
      %v8904 = vmul.f32 %v8839, 1.442695
      %v8905 = vpow.pop %v8904
      %v8906 = vmul.f32 %v8840, 1.442695
      %v8907 = vpow.pop %v8906
      %v8908 = vmul.f32 %v8841, 1.442695
      %v8909 = vpow.pop %v8908
      %v8910 = vmul.f32 %v8842, 1.442695
      %v8911 = vpow.pop %v8910
      %v8912 = vmul.f32 %v8843, 1.442695
      %v8913 = vpow.pop %v8912
      %v8914 = vmul.f32 %v8844, 1.442695
      %v8915 = vpow.pop %v8914
      %v8916 = vmul.f32 %v8845, 1.442695
      %v8917 = vpow.pop %v8916
      %v8918 = vadd.f32 %v8847, 1.0
      %v8919 = vadd.f32 %v8849, 1.0
      %v8920 = vadd.f32 %v8851, 1.0
      %v8921 = vadd.f32 %v8853, 1.0
      %v8922 = vadd.f32 %v8855, 1.0
      %v8923 = vadd.f32 %v8857, 1.0
      %v8924 = vadd.f32 %v8859, 1.0
      %v8925 = vadd.f32 %v8861, 1.0
      %v8926 = vadd.f32 %v8863, 1.0
      %v8927 = vadd.f32 %v8865, 1.0
      %v8928 = vadd.f32 %v8867, 1.0
      %v8929 = vadd.f32 %v8869, 1.0
      %v8930 = vadd.f32 %v8871, 1.0
      %v8931 = vadd.f32 %v8873, 1.0
      %v8932 = vadd.f32 %v8875, 1.0
      %v8933 = vadd.f32 %v8877, 1.0
      %v8934 = vadd.f32 %v8879, 1.0
      %v8935 = vadd.f32 %v8881, 1.0
      %v8936 = vadd.f32 %v8883, 1.0
      %v8937 = vadd.f32 %v8885, 1.0
      %v8938 = vadd.f32 %v8887, 1.0
      %v8939 = vadd.f32 %v8889, 1.0
      %v8940 = vadd.f32 %v8891, 1.0
      %v8941 = vadd.f32 %v8893, 1.0
      %v8942 = vadd.f32 %v8895, 1.0
      %v8943 = vadd.f32 %v8897, 1.0
      %v8944 = vadd.f32 %v8899, 1.0
      %v8945 = vadd.f32 %v8901, 1.0
      %v8946 = vadd.f32 %v8903, 1.0
      %v8947 = vadd.f32 %v8905, 1.0
      %v8948 = vadd.f32 %v8907, 1.0
      %v8949 = vadd.f32 %v8909, 1.0
      %v8950 = vadd.f32 %v8911, 1.0
      %v8951 = vadd.f32 %v8913, 1.0
      %v8952 = vadd.f32 %v8915, 1.0
      %v8953 = vadd.f32 %v8917, 1.0
      %v8954 = vrcp.pop %v8918
      %v8955 = vmul.f32 1.0, %v8954
      %v8956 = vrcp.pop %v8919
      %v8957 = vmul.f32 1.0, %v8956
      %v8958 = vrcp.pop %v8920
      %v8959 = vmul.f32 1.0, %v8958
      %v8960 = vrcp.pop %v8921
      %v8961 = vmul.f32 1.0, %v8960
      %v8962 = vrcp.pop %v8922
      %v8963 = vmul.f32 1.0, %v8962
      %v8964 = vrcp.pop %v8923
      %v8965 = vmul.f32 1.0, %v8964
      %v8966 = vrcp.pop %v8924
      %v8967 = vmul.f32 1.0, %v8966
      %v8968 = vrcp.pop %v8925
      %v8969 = vmul.f32 1.0, %v8968
      %v8970 = vrcp.pop %v8926
      %v8971 = vmul.f32 1.0, %v8970
      %v8972 = vrcp.pop %v8927
      %v8973 = vmul.f32 1.0, %v8972
      %v8974 = vrcp.pop %v8928
      %v8975 = vmul.f32 1.0, %v8974
      %v8976 = vrcp.pop %v8929
      %v8977 = vmul.f32 1.0, %v8976
      %v8978 = vrcp.pop %v8930
      %v8979 = vmul.f32 1.0, %v8978
      %v8980 = vrcp.pop %v8931
      %v8981 = vmul.f32 1.0, %v8980
      %v8982 = vrcp.pop %v8932
      %v8983 = vmul.f32 1.0, %v8982
      %v8984 = vrcp.pop %v8933
      %v8985 = vmul.f32 1.0, %v8984
      %v8986 = vrcp.pop %v8934
      %v8987 = vmul.f32 1.0, %v8986
      %v8988 = vrcp.pop %v8935
      %v8989 = vmul.f32 1.0, %v8988
      %v8990 = vrcp.pop %v8936
      %v8991 = vmul.f32 1.0, %v8990
      %v8992 = vrcp.pop %v8937
      %v8993 = vmul.f32 1.0, %v8992
      %v8994 = vrcp.pop %v8938
      %v8995 = vmul.f32 1.0, %v8994
      %v8996 = vrcp.pop %v8939
      %v8997 = vmul.f32 1.0, %v8996
      %v8998 = vrcp.pop %v8940
      %v8999 = vmul.f32 1.0, %v8998
      %v9000 = vrcp.pop %v8941
      %v9001 = vmul.f32 1.0, %v9000
      %v9002 = vrcp.pop %v8942
      %v9003 = vmul.f32 1.0, %v9002
      %v9004 = vrcp.pop %v8943
      %v9005 = vmul.f32 1.0, %v9004
      %v9006 = vrcp.pop %v8944
      %v9007 = vmul.f32 1.0, %v9006
      %v9008 = vrcp.pop %v8945
      %v9009 = vmul.f32 1.0, %v9008
      %v9010 = vrcp.pop %v8946
      %v9011 = vmul.f32 1.0, %v9010
      %v9012 = vrcp.pop %v8947
      %v9013 = vmul.f32 1.0, %v9012
      %v9014 = vrcp.pop %v8948
      %v9015 = vmul.f32 1.0, %v9014
      %v9016 = vrcp.pop %v8949
      %v9017 = vmul.f32 1.0, %v9016
      %v9018 = vrcp.pop %v8950
      %v9019 = vmul.f32 1.0, %v9018
      %v9020 = vrcp.pop %v8951
      %v9021 = vmul.f32 1.0, %v9020
      %v9022 = vrcp.pop %v8952
      %v9023 = vmul.f32 1.0, %v9022
      %v9024 = vrcp.pop %v8953
      %v9025 = vmul.f32 1.0, %v9024
      %v9026 = vmul.f32 %v8774, %v8955
      %v9027 = vmul.f32 %v8775, %v8957
      %v9028 = vmul.f32 %v8776, %v8959
      %v9029 = vmul.f32 %v8777, %v8961
      %v9030 = vmul.f32 %v8778, %v8963
      %v9031 = vmul.f32 %v8779, %v8965
      %v9032 = vmul.f32 %v8780, %v8967
      %v9033 = vmul.f32 %v8781, %v8969
      %v9034 = vmul.f32 %v8782, %v8971
      %v9035 = vmul.f32 %v8783, %v8973
      %v9036 = vmul.f32 %v8784, %v8975
      %v9037 = vmul.f32 %v8785, %v8977
      %v9038 = vmul.f32 %v8786, %v8979
      %v9039 = vmul.f32 %v8787, %v8981
      %v9040 = vmul.f32 %v8788, %v8983
      %v9041 = vmul.f32 %v8789, %v8985
      %v9042 = vmul.f32 %v8790, %v8987
      %v9043 = vmul.f32 %v8791, %v8989
      %v9044 = vmul.f32 %v8792, %v8991
      %v9045 = vmul.f32 %v8793, %v8993
      %v9046 = vmul.f32 %v8794, %v8995
      %v9047 = vmul.f32 %v8795, %v8997
      %v9048 = vmul.f32 %v8796, %v8999
      %v9049 = vmul.f32 %v8797, %v9001
      %v9050 = vmul.f32 %v8798, %v9003
      %v9051 = vmul.f32 %v8799, %v9005
      %v9052 = vmul.f32 %v8800, %v9007
      %v9053 = vmul.f32 %v8801, %v9009
      %v9054 = vmul.f32 %v8802, %v9011
      %v9055 = vmul.f32 %v8803, %v9013
      %v9056 = vmul.f32 %v8804, %v9015
      %v9057 = vmul.f32 %v8805, %v9017
      %v9058 = vmul.f32 %v8806, %v9019
      %v9059 = vmul.f32 %v8807, %v9021
      %v9060 = vmul.f32 %v8808, %v9023
      %v9061 = vmul.f32 %v8809, %v9025
      %v9062 = vsel %vm4704, %v9026, 0.0
      %v9063 = vsel %vm4705, %v9027, 0.0
      %v9064 = vsel %vm4706, %v9028, 0.0
      %v9065 = vsel %vm4707, %v9029, 0.0
      %v9066 = vsel %vm4708, %v9030, 0.0
      %v9067 = vsel %vm4709, %v9031, 0.0
      %v9068 = vsel %vm4710, %v9032, 0.0
      %v9069 = vsel %vm4711, %v9033, 0.0
      %v9070 = vsel %vm4712, %v9034, 0.0
      %v9071 = vsel %vm4713, %v9035, 0.0
      %v9072 = vsel %vm4714, %v9036, 0.0
      %v9073 = vsel %vm4715, %v9037, 0.0
      %v9074 = vsel %vm4716, %v9038, 0.0
      %v9075 = vsel %vm4717, %v9039, 0.0
      %v9076 = vsel %vm4718, %v9040, 0.0
      %v9077 = vsel %vm4719, %v9041, 0.0
      %v9078 = vsel %vm4720, %v9042, 0.0
      %v9079 = vsel %vm4721, %v9043, 0.0
      %v9080 = vsel %vm4722, %v9044, 0.0
      %v9081 = vsel %vm4723, %v9045, 0.0
      %v9082 = vsel %vm4724, %v9046, 0.0
      %v9083 = vsel %vm4725, %v9047, 0.0
      %v9084 = vsel %vm4726, %v9048, 0.0
      %v9085 = vsel %vm4727, %v9049, 0.0
      %v9086 = vsel %vm4728, %v9050, 0.0
      %v9087 = vsel %vm4729, %v9051, 0.0
      %v9088 = vsel %vm4730, %v9052, 0.0
      %v9089 = vsel %vm4731, %v9053, 0.0
      %v9090 = vsel %vm4732, %v9054, 0.0
      %v9091 = vsel %vm4733, %v9055, 0.0
      %v9092 = vsel %vm4734, %v9056, 0.0
      %v9093 = vsel %vm4735, %v9057, 0.0
      %v9094 = vsel %vm4736, %v9058, 0.0
      %v9095 = vsel %vm4737, %v9059, 0.0
      %v9096 = vsel %vm4738, %v9060, 0.0
      %v9097 = vsel %vm4739, %v9061, 0.0
      %v9098 = vpack.c.bf16 %v9063, %v9062
      %v9099 = vpack.c.bf16 %v9065, %v9064
      %v9100 = vpack.c.bf16 %v9067, %v9066
      %v9101 = vpack.c.bf16 %v9069, %v9068
      %v9102 = vpack.c.bf16 %v9071, %v9070
      %v9103 = vpack.c.bf16 %v9073, %v9072
      %v9104 = vpack.c.bf16 %v9075, %v9074
      %v9105 = vpack.c.bf16 %v9077, %v9076
      %v9106 = vpack.c.bf16 %v9079, %v9078
      %v9107 = vpack.c.bf16 %v9081, %v9080
      %v9108 = vpack.c.bf16 %v9083, %v9082
      %v9109 = vpack.c.bf16 %v9085, %v9084
      %v9110 = vpack.c.bf16 %v9087, %v9086
      %v9111 = vpack.c.bf16 %v9089, %v9088
      %v9112 = vpack.c.bf16 %v9091, %v9090
      %v9113 = vpack.c.bf16 %v9093, %v9092
      %v9114 = vpack.c.bf16 %v9095, %v9094
      %v9115 = vpack.c.bf16 %v9097, %v9096
      %v9134 = vunpack.c.l.b16 %v9098
      %v9135 = vunpack.c.h.b16 %v9098
      %v9136 = vunpack.c.l.b16 %v9099
      %v9137 = vunpack.c.h.b16 %v9099
      %v9138 = vunpack.c.l.b16 %v9100
      %v9139 = vunpack.c.h.b16 %v9100
      %v9140 = vunpack.c.l.b16 %v9101
      %v9141 = vunpack.c.h.b16 %v9101
      %v9142 = vunpack.c.l.b16 %v9102
      %v9143 = vunpack.c.h.b16 %v9102
      %v9144 = vunpack.c.l.b16 %v9103
      %v9145 = vunpack.c.h.b16 %v9103
      %v9146 = vunpack.c.l.b16 %v9104
      %v9147 = vunpack.c.h.b16 %v9104
      %v9148 = vunpack.c.l.b16 %v9105
      %v9149 = vunpack.c.h.b16 %v9105
      %v9150 = vunpack.c.l.b16 %v9106
      %v9151 = vunpack.c.h.b16 %v9106
      %v9152 = vunpack.c.l.b16 %v9107
      %v9153 = vunpack.c.h.b16 %v9107
      %v9154 = vunpack.c.l.b16 %v9108
      %v9155 = vunpack.c.h.b16 %v9108
      %v9156 = vunpack.c.l.b16 %v9109
      %v9157 = vunpack.c.h.b16 %v9109
      %v9158 = vunpack.c.l.b16 %v9110
      %v9159 = vunpack.c.h.b16 %v9110
      %v9160 = vunpack.c.l.b16 %v9111
      %v9161 = vunpack.c.h.b16 %v9111
      %v9162 = vunpack.c.l.b16 %v9112
      %v9163 = vunpack.c.h.b16 %v9112
      %v9164 = vunpack.c.l.b16 %v9113
      %v9165 = vunpack.c.h.b16 %v9113
      %v9166 = vunpack.c.l.b16 %v9114
      %v9167 = vunpack.c.h.b16 %v9114
      %v9168 = vunpack.c.l.b16 %v9115
      %v9169 = vunpack.c.h.b16 %v9115
      %v9170 = vpack.c.b16 %v9134, %v9134
      %v9171 = vpack.c.b16 %v9135, %v9135
      %v9172 = vpack.c.b16 %v9136, %v9136
      %v9173 = vpack.c.b16 %v9137, %v9137
      %v9174 = vpack.c.b16 %v9138, %v9138
      %v9175 = vpack.c.b16 %v9139, %v9139
      %v9176 = vpack.c.b16 %v9140, %v9140
      %v9177 = vpack.c.b16 %v9141, %v9141
      %v9178 = vpack.c.b16 %v9142, %v9142
      %v9179 = vpack.c.b16 %v9143, %v9143
      %v9180 = vpack.c.b16 %v9144, %v9144
      %v9181 = vpack.c.b16 %v9145, %v9145
      %v9182 = vpack.c.b16 %v9146, %v9146
      %v9183 = vpack.c.b16 %v9147, %v9147
      %v9184 = vpack.c.b16 %v9148, %v9148
      %v9185 = vpack.c.b16 %v9149, %v9149
      %v9186 = vpack.c.b16 %v9150, %v9150
      %v9187 = vpack.c.b16 %v9151, %v9151
      %v9188 = vpack.c.b16 %v9152, %v9152
      %v9189 = vpack.c.b16 %v9153, %v9153
      %v9190 = vpack.c.b16 %v9154, %v9154
      %v9191 = vpack.c.b16 %v9155, %v9155
      %v9192 = vpack.c.b16 %v9156, %v9156
      %v9193 = vpack.c.b16 %v9157, %v9157
      %v9194 = vpack.c.b16 %v9158, %v9158
      %v9195 = vpack.c.b16 %v9159, %v9159
      %v9196 = vpack.c.b16 %v9160, %v9160
      %v9197 = vpack.c.b16 %v9161, %v9161
      %v9198 = vpack.c.b16 %v9162, %v9162
      %v9199 = vpack.c.b16 %v9163, %v9163
      %v9200 = vpack.c.b16 %v9164, %v9164
      %v9201 = vpack.c.b16 %v9165, %v9165
      %v9202 = vpack.c.b16 %v9166, %v9166
      %v9203 = vpack.c.b16 %v9167, %v9167
      %v9204 = vpack.c.b16 %v9168, %v9168
      %v9205 = vpack.c.b16 %v9169, %v9169
      %9242 = vst.msk [vmem:[%s224] sm:$0xf] %vm4920, %v9170
      %9243 = vst.msk [vmem:[%s224 + $0x4] sm:$0xf] %vm4920, %v9171
      %9244 = vst.msk [vmem:[%s224 + $0x8] sm:$0xf] %vm4920, %v9172
      %9245 = vst.msk [vmem:[%s224 + $0xc] sm:$0xf] %vm4920, %v9173
      %9246 = vst.msk [vmem:[%s224 + $0x10] sm:$0xf] %vm4920, %v9174
      %9247 = vst.msk [vmem:[%s224 + $0x14] sm:$0xf] %vm4920, %v9175
      %9248 = vst.msk [vmem:[%s224 + $0x18] sm:$0xf] %vm4920, %v9176
      %9249 = vst.msk [vmem:[%s224 + $0x1c] sm:$0xf] %vm4920, %v9177
      %9250 = vst.msk [vmem:[%s224 + $0x20] sm:$0xf] %vm4920, %v9178
      %9251 = vst.msk [vmem:[%s224 + $0x24] sm:$0xf] %vm4920, %v9179
      %9252 = vst.msk [vmem:[%s224 + $0x28] sm:$0xf] %vm4920, %v9180
      %9253 = vst.msk [vmem:[%s224 + $0x2c] sm:$0xf] %vm4920, %v9181
      %9254 = vst.msk [vmem:[%s224 + $0x30] sm:$0xf] %vm4920, %v9182
      %9255 = vst.msk [vmem:[%s224 + $0x34] sm:$0xf] %vm4920, %v9183
      %9256 = vst.msk [vmem:[%s224 + $0x38] sm:$0xf] %vm4920, %v9184
      %9257 = vst.msk [vmem:[%s224 + $0x3c] sm:$0xf] %vm4920, %v9185
      %9258 = vst.msk [vmem:[%s224 + $0x40] sm:$0xf] %vm4920, %v9186
      %9259 = vst.msk [vmem:[%s224 + $0x44] sm:$0xf] %vm4920, %v9187
      %9260 = vst.msk [vmem:[%s224 + $0x48] sm:$0xf] %vm4920, %v9188
      %9261 = vst.msk [vmem:[%s224 + $0x4c] sm:$0xf] %vm4920, %v9189
      %9262 = vst.msk [vmem:[%s224 + $0x50] sm:$0xf] %vm4920, %v9190
      %9263 = vst.msk [vmem:[%s224 + $0x54] sm:$0xf] %vm4920, %v9191
      %9264 = vst.msk [vmem:[%s224 + $0x58] sm:$0xf] %vm4920, %v9192
      %9265 = vst.msk [vmem:[%s224 + $0x5c] sm:$0xf] %vm4920, %v9193
      %9266 = vst.msk [vmem:[%s224 + $0x60] sm:$0xf] %vm4920, %v9194
      %9267 = vst.msk [vmem:[%s224 + $0x64] sm:$0xf] %vm4920, %v9195
      %9268 = vst.msk [vmem:[%s224 + $0x68] sm:$0xf] %vm4920, %v9196
      %9269 = vst.msk [vmem:[%s224 + $0x6c] sm:$0xf] %vm4920, %v9197
      %9270 = vst.msk [vmem:[%s224 + $0x70] sm:$0xf] %vm4920, %v9198
      %9271 = vst.msk [vmem:[%s224 + $0x74] sm:$0xf] %vm4920, %v9199
      %9272 = vst.msk [vmem:[%s224 + $0x78] sm:$0xf] %vm4920, %v9200
      %9273 = vst.msk [vmem:[%s224 + $0x7c] sm:$0xf] %vm4920, %v9201
      %9274 = vst.msk [vmem:[%s224 + $0x80] sm:$0xf] %vm4920, %v9202
      %9275 = vst.msk [vmem:[%s224 + $0x84] sm:$0xf] %vm4920, %v9203
      %9276 = vst.msk [vmem:[%s224 + $0x88] sm:$0xf] %vm4920, %v9204
      %9277 = vst.msk [vmem:[%s224 + $0x8c] sm:$0xf] %vm4920, %v9205
      %p9278 = scmp.lt.s32.totalorder %s16, 1
      %s9279 = scalar_select %p9278, %s16, 1
      %s9280 = smul.addr %s9279, 36
      %s9281 = smul.addr %s9280, 4
      %s9282 = scalar_lea.vmem %s5, %s9281
      // Predicated region
      $region45: #{c2f_forward.4} parent=39 // pred_check
        %p9283 = pneg %p144
      $region46: #{c2f_forward.4} parent=39 // pred_check_branch
        %9285 = sbr.rel (%p9283) target = $region48
      $region47: #{c2f_forward.4} parent=39 // pred_region
        _
      $region48: #{c2f_forward.4} parent=39 // pred_fallthru
        _
    $region40: #{c2f_forward.4} parent=5 // pred_fallthru
      _
    %p9286 = scmp.le.s32.totalorder 2, %s11
    // Predicated region
    $region49: #{c2f_forward.4} parent=5 // pred_check
      %p9287 = pneg %p9286
    $region50: #{c2f_forward.4} parent=5 // pred_check_branch
      %9289 = sbr.rel (%p9287) target = $region52
    $region51: #{c2f_forward.4} parent=5 // pred_region
      %s9290 = ssub.s32 %s11, 2
      // Predicated region
      $region53: #{c2f_forward.4} parent=51 // pred_check
        %p9291 = pneg %p150
      $region54: #{c2f_forward.4} parent=51 // pred_check_branch
        %9293 = sbr.rel (%p9291) target = $region56
      $region55: #{c2f_forward.4} parent=51 // pred_region
        %p9294 = scmp.lt.s32.totalorder %s17, 1
        %s9295 = scalar_select %p9294, %s17, 1
        %s9296 = smul.addr %s9295, 36
        %s9297 = smul.addr %s9296, 4
        %s9298 = scalar_lea.vmem %s5, %s9297
      $region56: #{c2f_forward.4} parent=51 // pred_fallthru
        _
    $region52: #{c2f_forward.4} parent=5 // pred_fallthru
      _
  $region6: #{c2f_forward.4} parent=0 // loop_footer
    %s15 = sadd.s32 1, %s11
  $region7: #{c2f_forward.4} parent=0 // loop_footer_branch
    %10 = sbr.rel target = $region3
  $region8: #{c2f_forward.4} parent=0 // loop_exit
    _

</llo_original>
